<compile_context>
chip_gen: v7x
topology: tpu7x:2x2x1
jax: 0.10.0
libtpu: 0.0.40
codegen_flags: <defaults>
</compile_context>

<pallas_src>
import functools

import jax
import jax.numpy as jnp
from jax import lax
from jax.experimental import pallas as pl

BN_EPS = 1e-5
GUMBEL_EPS = 1e-10        # eps actually passed down by gumbel_softmax()
TEMPERATURE = 0.5
E_PAD = 128               # embedding_dim (=100) zero-padded to a full lane tile
MXU_DTYPE = jnp.bfloat16  # operand dtype for the large matmuls (f32 accumulation)

K1 = 10                   # conv1 kernel size
K2 = 10                   # conv2 kernel size
C1 = 8                    # conv1 out channels
C2 = 16                   # conv2 out channels


def _bn(h, gamma, beta):
    """Training-mode BatchNorm: per-column batch stats over rows, biased var."""
    mean = jnp.mean(h, axis=0, keepdims=True)
    var = jnp.mean((h - mean) ** 2, axis=0, keepdims=True)
    return gamma * (h - mean) * lax.rsqrt(var + BN_EPS) + beta


# ----------------------------------------------------------------------------
# Kernel 1: fused node-feature encoder  conv1/bn1 -> conv2/bn2 -> fc/bn3
# ----------------------------------------------------------------------------

def _encoder_kernel(x1_ref, w1_ref, b1_ref, g1_ref, be1_ref,
                    w2_ref, b2_ref, g2_ref, be2_ref,
                    wfc_ref, bfc_ref, g3_ref, be3_ref, emb_ref):
    """x1_ref : [L1*N, 10]  im2col of node_feas, rows ordered (time, node).
    w2_ref : [10*8, 16]   conv2 weight, row k*8+c == conv2.weight[:, c, k].
    wfc_ref: [L2*16, 128] fc weight, rows permuted to (time, channel) order.
    emb_ref: [N, 128]     node embeddings (cols >= 100 stay exactly zero).
    """
    n_nodes = emb_ref.shape[0]
    l1 = x1_ref.shape[0] // n_nodes
    l2 = l1 - K2 + 1
    l2n = l2 * n_nodes

    # conv1 + relu + bn1  (stats over all (time, node) rows == BatchNorm1d(8))
    h1 = jnp.dot(x1_ref[...], w1_ref[...], preferred_element_type=jnp.float32)
    h1 = _bn(jnp.maximum(h1 + b1_ref[...], 0.0), g1_ref[...], be1_ref[...])

    # conv2 as a sum over taps: rows are (time, node), so tap k's window is the
    # contiguous, 8-aligned row slice [k*N, k*N + L2*N).
    w2 = w2_ref[...]
    acc2 = b2_ref[...]
    for k in range(K2):
        acc2 = acc2 + jnp.dot(h1[k * n_nodes:k * n_nodes + l2n, :],
                              w2[k * C1:(k + 1) * C1, :],
                              preferred_element_type=jnp.float32)
    h2 = _bn(jnp.maximum(acc2, 0.0), g2_ref[...], be2_ref[...])     # [L2*N, 16]

    # fc as a sum over time steps (weight rows pre-permuted to (time, channel),
    # equivalent to torch's channel-major flatten of [N, 16, L2]).
    wfc = wfc_ref[...]
    acc3 = bfc_ref[...]
    for t in range(l2):
        acc3 = acc3 + jnp.dot(h2[t * n_nodes:(t + 1) * n_nodes, :],
                              wfc[t * C2:(t + 1) * C2, :],
                              preferred_element_type=jnp.float32)
    emb_ref[...] = _bn(jnp.maximum(acc3, 0.0), g3_ref[...], be3_ref[...])


def node_feature_encoder(x1, prep, num_nodes):
    return pl.pallas_call(
        _encoder_kernel,
        out_shape=jax.ShapeDtypeStruct((num_nodes, E_PAD), jnp.float32),
    )(x1, prep["w1"], prep["b1"], prep["g1"], prep["be1"],
      prep["w2s"], prep["b2"], prep["g2"], prep["be2"],
      prep["wfc_t"], prep["bfc"], prep["g3"], prep["be3"])


# ----------------------------------------------------------------------------
# Kernel 2: fc_mean fusion + edge logits + hard Gumbel + cosine similarity
# ----------------------------------------------------------------------------

def _graph_kernel(hflat_ref, emb_ref, wm_ref, bm_ref, ws_ref, wr_ref, bo_ref,
                  wc_ref, bc_ref, u_ref, slab_ref, sim_ref):
    """hflat_ref: [B*N, Dm]    TSFormer output, rows ordered (batch, node).
    emb_ref  : [N, 128]      node embeddings from the encoder kernel.
    ws/wr    : [128, 128]    sender / receiver halves of fc_out (bf16).
    wc_ref   : [128, 128]    fc_cat weight, only cols 0..1 non-zero (bf16).
    u_ref    : [B*N*N, 2]    uniform noise for the Gumbel sample.
    slab_ref : [B*N*N, 128]  lane-dense output: cols 0..1 = fc_cat logits,
               col 2 = hard-Gumbel adjacency (channel-0 of the one-hot).
    sim_ref  : [B, N, N]     batched cosine similarity of hflat.
    """
    n_nodes, e_pad = emb_ref.shape
    batch = sim_ref.shape[0]
    nn = n_nodes * n_nodes

    hflat = hflat_ref[...]                                            # f32

    # his_ave = relu(fc_mean(H_flat)); x = node_embedding + his_ave  (batch folded)
    his = jnp.dot(hflat.astype(MXU_DTYPE), wm_ref[...],
                  preferred_element_type=jnp.float32)
    his = jnp.maximum(his + bm_ref[...], 0.0)
    x = his + jnp.concatenate([emb_ref[...]] * batch, axis=0)         # [B*N, 128]

    # fc_out(cat(senders, receivers)) == x[sender]@Ws + x[receiver]@Wr + bo,
    # so the one-hot rel matmuls collapse to two [B*N,E]x[E,E] matmuls + a
    # broadcast add on the VPU.
    xb = x.astype(MXU_DTYPE)
    xs = jnp.dot(xb, ws_ref[...], preferred_element_type=jnp.float32) + bo_ref[...]
    xr = jnp.dot(xb, wr_ref[...], preferred_element_type=jnp.float32)

    h_blocks = []
    for b in range(batch):
        xs_b = xs[b * n_nodes:(b + 1) * n_nodes, :]   # sender index j (fast)
        xr_b = xr[b * n_nodes:(b + 1) * n_nodes, :]   # receiver index i (slow)
        h_b = (xr_b[:, None, :] + xs_b[None, :, :]).reshape(nn, e_pad)
        h_blocks.append(jnp.maximum(h_b, 0.0))

        # kNN-guidance cosine similarity: pre-normalize rows, single matmul.
        # (operands stay f32: the matmul is tiny and uses a transposed contraction)
        hb = hflat[b * n_nodes:(b + 1) * n_nodes, :]
        norm = jnp.sqrt(jnp.sum(hb * hb, axis=-1, keepdims=True)) + 1e-7
        hn = hb / norm
        sim_ref[b] = lax.dot_general(hn, hn, (((1,), (1,)), ((), ())),
                                     preferred_element_type=jnp.float32)

    h_all = jnp.concatenate(h_blocks, axis=0)                         # [B*N*N, 128]

    # fc_cat: wc padded to a full 128-wide slab (cols >= 2 zero) -> one unmasked
    # lane-dense store of the whole [B*N*N, 128] output.
    logits = jnp.dot(h_all.astype(MXU_DTYPE), wc_ref[...],
                     preferred_element_type=jnp.float32) + bc_ref[...]

    # hard Gumbel-softmax: forward value is the one-hot argmax of (logits + g)/T;
    # softmax is monotone, so compare the perturbed logits directly.
    u = u_ref[...]
    g = -jnp.log(-jnp.log(u + GUMBEL_EPS) + GUMBEL_EPS)
    z = (logits[:, 0:2] + g) / TEMPERATURE
    adj_col = jnp.where(z[:, 0:1] >= z[:, 1:2], 1.0, 0.0)             # [B*N*N, 1]

    col = lax.broadcasted_iota(jnp.int32, (batch * nn, e_pad), 1)
    slab_ref[...] = jnp.where(col == 2, adj_col, logits)


def graph_learning(h_flat, emb, u, prep, batch, num_nodes):
    nn = num_nodes * num_nodes
    return pl.pallas_call(
        _graph_kernel,
        out_shape=(
            jax.ShapeDtypeStruct((batch * nn, E_PAD), jnp.float32),           # slab
            jax.ShapeDtypeStruct((batch, num_nodes, num_nodes), jnp.float32),  # cosine
        ),
    )(h_flat, emb, prep["wm"], prep["bm"], prep["ws"], prep["wr"], prep["bo"],
      prep["wc"], prep["bc"], u)


# ----------------------------------------------------------------------------
# Plain-JAX glue: TSFormer stub, parameter prep, kNN thresholding
# ----------------------------------------------------------------------------

def tsformer_stub(ts_in, w_ts, b_ts, L, d):
    # TODO(synk): TSFormer is an external pre-trained module passed into forward();
    # replaced by a deterministic tanh-linear stub producing H of shape [B, N, L, d].
    B, N = ts_in.shape[0], ts_in.shape[1]
    flat = ts_in.reshape(B, N, -1)
    H = jnp.tanh(jnp.einsum("bnp,pq->bnq", flat, w_ts) + b_ts)
    return H.reshape(B, N, L, d)


def init_torch_like_params(key, N, T, E, L, d, P):
    """Random parameters at the shapes the torch module would hold."""
    L1 = T - K1 + 1
    L2 = L1 - K2 + 1
    dim_fc = C2 * L2
    dim_fc_mean = L * d
    ks = jax.random.split(key, 14)

    def w(k, shape, scale=0.1):
        return (scale * jax.random.normal(k, shape)).astype(jnp.float32)

    return dict(
        conv1_w=w(ks[0], (C1, 1, K1)), conv1_b=w(ks[1], (C1,)),
        bn1_g=jnp.ones((C1,), jnp.float32), bn1_b=jnp.zeros((C1,), jnp.float32),
        conv2_w=w(ks[2], (C2, C1, K2)), conv2_b=w(ks[3], (C2,)),
        bn2_g=jnp.ones((C2,), jnp.float32), bn2_b=jnp.zeros((C2,), jnp.float32),
        fc_w=w(ks[4], (E, dim_fc)), fc_b=w(ks[5], (E,)),
        bn3_g=jnp.ones((E,), jnp.float32), bn3_b=jnp.zeros((E,), jnp.float32),
        fc_mean_w=w(ks[6], (E, dim_fc_mean)), fc_mean_b=w(ks[7], (E,)),
        fc_out_w=w(ks[8], (E, 2 * E)), fc_out_b=w(ks[9], (E,)),
        fc_cat_w=w(ks[10], (2, E)), fc_cat_b=w(ks[11], (2,)),
        ts_w=w(ks[12], (L * P, L * d)), ts_b=w(ks[13], (L * d,)),
    )


def prepare_params(p, T, E):
    """Re-layout / pad the torch-shaped params for the Pallas kernels."""
    L1 = T - K1 + 1
    L2 = L1 - K2 + 1

    def pad_cols(x):
        return jnp.pad(x, ((0, 0), (0, E_PAD - x.shape[1])))

    # conv1: [C1, 1, K1] -> im2col weight [K1, C1]
    w1 = p["conv1_w"].reshape(C1, K1).T
    # conv2: [C2, C1, K2] -> tap-stacked [K2*C1, C2]; row k*C1+c == conv2_w[:, c, k]
    w2s = jnp.transpose(p["conv2_w"], (2, 1, 0)).reshape(K2 * C1, C2)
    # fc: weight.T rows are (channel, time) (torch flattens [N, 16, L2] channel-
    # major); permute to (time, channel) so the kernel slices contiguous rows.
    wfc_t = p["fc_w"].T.reshape(C2, L2, E).transpose(1, 0, 2).reshape(L2 * C2, E)
    # fc_out: first E input columns act on senders, last E on receivers.
    w_out_t = p["fc_out_w"].T                                     # [2E, E]
    ws = jnp.zeros((E_PAD, E_PAD), jnp.float32).at[:E, :E].set(w_out_t[:E])
    wr = jnp.zeros((E_PAD, E_PAD), jnp.float32).at[:E, :E].set(w_out_t[E:])
    # fc_cat padded to a full [128, 128] slab (only cols 0..1 non-zero).
    wc = jnp.zeros((E_PAD, E_PAD), jnp.float32).at[:E, :2].set(p["fc_cat_w"].T)
    bc = jnp.zeros((1, E_PAD), jnp.float32).at[0, :2].set(p["fc_cat_b"])

    return dict(
        w1=w1, b1=p["conv1_b"][None, :],
        g1=p["bn1_g"][None, :], be1=p["bn1_b"][None, :],
        w2s=w2s, b2=p["conv2_b"][None, :],
        g2=p["bn2_g"][None, :], be2=p["bn2_b"][None, :],
        wfc_t=pad_cols(wfc_t), bfc=pad_cols(p["fc_b"][None, :]),
        g3=jnp.pad(p["bn3_g"][None, :], ((0, 0), (0, E_PAD - E)), constant_values=1.0),
        be3=pad_cols(p["bn3_b"][None, :]),
        wm=pad_cols(p["fc_mean_w"].T).astype(MXU_DTYPE),
        bm=pad_cols(p["fc_mean_b"][None, :]),
        ws=ws.astype(MXU_DTYPE), wr=wr.astype(MXU_DTYPE),
        bo=pad_cols(p["fc_out_b"][None, :]),
        wc=wc.astype(MXU_DTYPE), bc=bc,
        ts_w=p["ts_w"], ts_b=p["ts_b"],
    )


@functools.partial(jax.jit, static_argnames=("K", "L", "d"))
def discrete_graph_learning_forward(L_X, node_feas, prep, gumbel_key, *, K, L, d):
    B = L_X.shape[0]
    T, N = node_feas.shape
    L1 = T - K1 + 1

    # ---- fused node-feature encoder (conv1/bn1 -> conv2/bn2 -> fc/bn3) -------
    # im2col for conv1 (static node_feas), rows ordered (time, node) so conv2's
    # tap windows are contiguous 8-aligned row slices inside the kernel.
    x1 = jnp.stack([node_feas[j:j + L1, :] for j in range(K1)], axis=-1)
    x1 = x1.reshape(L1 * N, K1)
    emb = node_feature_encoder(x1, prep, N)                          # [N, 128]

    # ---- TSFormer output + fused graph-learning kernel -----------------------
    ts_in = L_X[..., 0:1].transpose(0, 2, 3, 1)                      # [B, N, 1, L*P]
    H = tsformer_stub(ts_in, prep["ts_w"], prep["ts_b"], L, d)       # [B, N, L, d]
    H_flat = H.reshape(B * N, L * d)

    U = jax.random.uniform(gumbel_key, (B * N * N, 2), jnp.float32)
    slab, sim = graph_learning(H_flat, emb, U, prep, B, N)

    logits = slab[:, 0:2].reshape(B, N * N, 2)
    adj = slab[:, 2].reshape(B, N, N)
    eye = jnp.eye(N, dtype=bool)[None]
    adj = jnp.where(eye, 0.0, adj)

    # ---- kNN guidance graph: top-k via threshold compare (no scatter) --------
    k = K * N
    sim_flat = sim.reshape(B, N * N)
    kth = lax.top_k(sim_flat, k)[0][:, -1:]
    adj_knn = (sim_flat >= kth).astype(jnp.float32).reshape(B, N, N)
    adj_knn = jnp.where(eye, 0.0, adj_knn)

    return logits, H, adj_knn, adj


# ----------------------------------------------------------------------------
# Main
# ----------------------------------------------------------------------------

if __name__ == "__main__":
    # Small synthetic configuration (module defaults scaled down):
    B = 2              # batch
    N = 8              # num_nodes
    T = 40             # train_length (node_feas time length)
    E = 100            # embedding_dim (hardcoded in the module)
    L, P, d = 4, 3, 24  # TSFormer: L segments, P per segment, d hidden
    C = 3              # input channels of L_X
    K = 2              # top-K multiplier (k = K * N)

    key = jax.random.PRNGKey(0)
    k_params, k_feas, k_lx, k_gumbel = jax.random.split(key, 4)

    torch_params = init_torch_like_params(k_params, N, T, E, L, d, P)
    prep = prepare_params(torch_params, T, E)

    node_feas = jax.random.normal(k_feas, (T, N), jnp.float32)        # [train_length, N]
    L_X = jax.random.normal(k_lx, (B, L * P, N, C), jnp.float32)      # [B, L*P, N, C]

    outs = discrete_graph_learning_forward(L_X, node_feas, prep, k_gumbel,
                                           K=K, L=L, d=d)
    outs = jax.block_until_ready(outs)
    logits, H, adj_knn, adj = outs

    assert logits.shape == (B, N * N, 2)
    assert H.shape == (B, N, L, d)
    assert adj_knn.shape == (B, N, N)
    assert adj.shape == (B, N, N)
    assert bool(jnp.all(jnp.diagonal(adj, axis1=1, axis2=2) == 0.0))
    assert bool(jnp.all(jnp.diagonal(adj_knn, axis1=1, axis2=2) == 0.0))
    assert bool(jnp.all((adj == 0.0) | (adj == 1.0)))
    assert bool(jnp.all(jnp.isfinite(logits)))

    print("KERNEL_OK")
</pallas_src>

<mosaic_0001>
module attributes {stable_mosaic.version = 11 : i64} {
  func.func @_encoder_kernel(%arg0: memref<248x10xf32, #tpu.memory_space<vmem>>, %arg1: memref<10x8xf32, #tpu.memory_space<vmem>>, %arg2: memref<1x8xf32, #tpu.memory_space<vmem>>, %arg3: memref<1x8xf32, #tpu.memory_space<vmem>>, %arg4: memref<1x8xf32, #tpu.memory_space<vmem>>, %arg5: memref<80x16xf32, #tpu.memory_space<vmem>>, %arg6: memref<1x16xf32, #tpu.memory_space<vmem>>, %arg7: memref<1x16xf32, #tpu.memory_space<vmem>>, %arg8: memref<1x16xf32, #tpu.memory_space<vmem>>, %arg9: memref<352x128xf32, #tpu.memory_space<vmem>>, %arg10: memref<1x128xf32, #tpu.memory_space<vmem>>, %arg11: memref<1x128xf32, #tpu.memory_space<vmem>>, %arg12: memref<1x128xf32, #tpu.memory_space<vmem>>, %arg13: memref<8x128xf32, #tpu.memory_space<vmem>>) attributes {dimension_semantics = [], scalar_prefetch = 0 : i64, scratch_operands = 0 : i64, tpu.core_type = #tpu.core_type<tc>} {
    %c0 = arith.constant 0 : index
    %c0_0 = arith.constant 0 : index
    %0 = vector.load %arg0[%c0, %c0_0] : memref<248x10xf32, #tpu.memory_space<vmem>>, vector<248x10xf32>
    %c0_1 = arith.constant 0 : index
    %c0_2 = arith.constant 0 : index
    %1 = vector.load %arg1[%c0_1, %c0_2] : memref<10x8xf32, #tpu.memory_space<vmem>>, vector<10x8xf32>
    %cst = arith.constant dense<0.000000e+00> : vector<248x8xf32>
    %2 = tpu.matmul %0, %1, %cst {dimension_numbers = #tpu.dot_dimension_numbers<[1], [0], [0], [1], [0, 0, 1, 1], [], []>} : vector<248x10xf32>, vector<10x8xf32>, vector<248x8xf32> -> vector<248x8xf32>
    %c0_3 = arith.constant 0 : index
    %c0_4 = arith.constant 0 : index
    %3 = vector.load %arg2[%c0_3, %c0_4] : memref<1x8xf32, #tpu.memory_space<vmem>>, vector<1x8xf32>
    %4 = vector.broadcast %3 : vector<1x8xf32> to vector<248x8xf32>
    %5 = arith.addf %2, %4 : vector<248x8xf32>
    %cst_5 = arith.constant 0.000000e+00 : f32
    %6 = vector.broadcast %cst_5 : f32 to vector<248x8xf32>
    %7 = arith.maximumf %5, %6 : vector<248x8xf32>
    %c0_6 = arith.constant 0 : index
    %c0_7 = arith.constant 0 : index
    %8 = vector.load %arg3[%c0_6, %c0_7] : memref<1x8xf32, #tpu.memory_space<vmem>>, vector<1x8xf32>
    %c0_8 = arith.constant 0 : index
    %c0_9 = arith.constant 0 : index
    %9 = vector.load %arg4[%c0_8, %c0_9] : memref<1x8xf32, #tpu.memory_space<vmem>>, vector<1x8xf32>
    %cst_10 = arith.constant dense<0.000000e+00> : vector<8xf32>
    %10 = vector.multi_reduction <add>, %7, %cst_10 [0] : vector<248x8xf32> to vector<8xf32>
    %11 = vector.shape_cast %10 : vector<8xf32> to vector<1x8xf32>
    %cst_11 = arith.constant 2.480000e+02 : f32
    %12 = vector.broadcast %cst_11 : f32 to vector<1x8xf32>
    %13 = arith.divf %11, %12 : vector<1x8xf32>
    %14 = vector.broadcast %13 : vector<1x8xf32> to vector<248x8xf32>
    %15 = arith.subf %7, %14 : vector<248x8xf32>
    %16 = arith.mulf %15, %15 : vector<248x8xf32>
    %cst_12 = arith.constant dense<0.000000e+00> : vector<8xf32>
    %17 = vector.multi_reduction <add>, %16, %cst_12 [0] : vector<248x8xf32> to vector<8xf32>
    %18 = vector.shape_cast %17 : vector<8xf32> to vector<1x8xf32>
    %cst_13 = arith.constant 2.480000e+02 : f32
    %19 = vector.broadcast %cst_13 : f32 to vector<1x8xf32>
    %20 = arith.divf %18, %19 : vector<1x8xf32>
    %21 = vector.broadcast %13 : vector<1x8xf32> to vector<248x8xf32>
    %22 = arith.subf %7, %21 : vector<248x8xf32>
    %23 = vector.broadcast %8 : vector<1x8xf32> to vector<248x8xf32>
    %24 = arith.mulf %23, %22 : vector<248x8xf32>
    %cst_14 = arith.constant 9.99999974E-6 : f32
    %25 = vector.broadcast %cst_14 : f32 to vector<1x8xf32>
    %26 = arith.addf %20, %25 : vector<1x8xf32>
    %27 = math.rsqrt %26 : vector<1x8xf32>
    %28 = vector.broadcast %27 : vector<1x8xf32> to vector<248x8xf32>
    %29 = arith.mulf %24, %28 : vector<248x8xf32>
    %30 = vector.broadcast %9 : vector<1x8xf32> to vector<248x8xf32>
    %31 = arith.addf %29, %30 : vector<248x8xf32>
    %c0_15 = arith.constant 0 : index
    %c0_16 = arith.constant 0 : index
    %32 = vector.load %arg5[%c0_15, %c0_16] : memref<80x16xf32, #tpu.memory_space<vmem>>, vector<80x16xf32>
    %c0_17 = arith.constant 0 : index
    %c0_18 = arith.constant 0 : index
    %33 = vector.load %arg6[%c0_17, %c0_18] : memref<1x16xf32, #tpu.memory_space<vmem>>, vector<1x16xf32>
    %34 = vector.extract_strided_slice %31 {offsets = [0, 0], sizes = [176, 8], strides = [1, 1]} : vector<248x8xf32> to vector<176x8xf32>
    %35 = vector.extract_strided_slice %32 {offsets = [0, 0], sizes = [8, 16], strides = [1, 1]} : vector<80x16xf32> to vector<8x16xf32>
    %cst_19 = arith.constant dense<0.000000e+00> : vector<176x16xf32>
    %36 = tpu.matmul %34, %35, %cst_19 {dimension_numbers = #tpu.dot_dimension_numbers<[1], [0], [0], [1], [0, 0, 1, 1], [], []>} : vector<176x8xf32>, vector<8x16xf32>, vector<176x16xf32> -> vector<176x16xf32>
    %37 = vector.broadcast %33 : vector<1x16xf32> to vector<176x16xf32>
    %38 = arith.addf %37, %36 : vector<176x16xf32>
    %39 = vector.extract_strided_slice %31 {offsets = [8, 0], sizes = [176, 8], strides = [1, 1]} : vector<248x8xf32> to vector<176x8xf32>
    %40 = vector.extract_strided_slice %32 {offsets = [8, 0], sizes = [8, 16], strides = [1, 1]} : vector<80x16xf32> to vector<8x16xf32>
    %cst_20 = arith.constant dense<0.000000e+00> : vector<176x16xf32>
    %41 = tpu.matmul %39, %40, %cst_20 {dimension_numbers = #tpu.dot_dimension_numbers<[1], [0], [0], [1], [0, 0, 1, 1], [], []>} : vector<176x8xf32>, vector<8x16xf32>, vector<176x16xf32> -> vector<176x16xf32>
    %42 = arith.addf %38, %41 : vector<176x16xf32>
    %43 = vector.extract_strided_slice %31 {offsets = [16, 0], sizes = [176, 8], strides = [1, 1]} : vector<248x8xf32> to vector<176x8xf32>
    %44 = vector.extract_strided_slice %32 {offsets = [16, 0], sizes = [8, 16], strides = [1, 1]} : vector<80x16xf32> to vector<8x16xf32>
    %cst_21 = arith.constant dense<0.000000e+00> : vector<176x16xf32>
    %45 = tpu.matmul %43, %44, %cst_21 {dimension_numbers = #tpu.dot_dimension_numbers<[1], [0], [0], [1], [0, 0, 1, 1], [], []>} : vector<176x8xf32>, vector<8x16xf32>, vector<176x16xf32> -> vector<176x16xf32>
    %46 = arith.addf %42, %45 : vector<176x16xf32>
    %47 = vector.extract_strided_slice %31 {offsets = [24, 0], sizes = [176, 8], strides = [1, 1]} : vector<248x8xf32> to vector<176x8xf32>
    %48 = vector.extract_strided_slice %32 {offsets = [24, 0], sizes = [8, 16], strides = [1, 1]} : vector<80x16xf32> to vector<8x16xf32>
    %cst_22 = arith.constant dense<0.000000e+00> : vector<176x16xf32>
    %49 = tpu.matmul %47, %48, %cst_22 {dimension_numbers = #tpu.dot_dimension_numbers<[1], [0], [0], [1], [0, 0, 1, 1], [], []>} : vector<176x8xf32>, vector<8x16xf32>, vector<176x16xf32> -> vector<176x16xf32>
    %50 = arith.addf %46, %49 : vector<176x16xf32>
    %51 = vector.extract_strided_slice %31 {offsets = [32, 0], sizes = [176, 8], strides = [1, 1]} : vector<248x8xf32> to vector<176x8xf32>
    %52 = vector.extract_strided_slice %32 {offsets = [32, 0], sizes = [8, 16], strides = [1, 1]} : vector<80x16xf32> to vector<8x16xf32>
    %cst_23 = arith.constant dense<0.000000e+00> : vector<176x16xf32>
    %53 = tpu.matmul %51, %52, %cst_23 {dimension_numbers = #tpu.dot_dimension_numbers<[1], [0], [0], [1], [0, 0, 1, 1], [], []>} : vector<176x8xf32>, vector<8x16xf32>, vector<176x16xf32> -> vector<176x16xf32>
    %54 = arith.addf %50, %53 : vector<176x16xf32>
    %55 = vector.extract_strided_slice %31 {offsets = [40, 0], sizes = [176, 8], strides = [1, 1]} : vector<248x8xf32> to vector<176x8xf32>
    %56 = vector.extract_strided_slice %32 {offsets = [40, 0], sizes = [8, 16], strides = [1, 1]} : vector<80x16xf32> to vector<8x16xf32>
    %cst_24 = arith.constant dense<0.000000e+00> : vector<176x16xf32>
    %57 = tpu.matmul %55, %56, %cst_24 {dimension_numbers = #tpu.dot_dimension_numbers<[1], [0], [0], [1], [0, 0, 1, 1], [], []>} : vector<176x8xf32>, vector<8x16xf32>, vector<176x16xf32> -> vector<176x16xf32>
    %58 = arith.addf %54, %57 : vector<176x16xf32>
    %59 = vector.extract_strided_slice %31 {offsets = [48, 0], sizes = [176, 8], strides = [1, 1]} : vector<248x8xf32> to vector<176x8xf32>
    %60 = vector.extract_strided_slice %32 {offsets = [48, 0], sizes = [8, 16], strides = [1, 1]} : vector<80x16xf32> to vector<8x16xf32>
    %cst_25 = arith.constant dense<0.000000e+00> : vector<176x16xf32>
    %61 = tpu.matmul %59, %60, %cst_25 {dimension_numbers = #tpu.dot_dimension_numbers<[1], [0], [0], [1], [0, 0, 1, 1], [], []>} : vector<176x8xf32>, vector<8x16xf32>, vector<176x16xf32> -> vector<176x16xf32>
    %62 = arith.addf %58, %61 : vector<176x16xf32>
    %63 = vector.extract_strided_slice %31 {offsets = [56, 0], sizes = [176, 8], strides = [1, 1]} : vector<248x8xf32> to vector<176x8xf32>
    %64 = vector.extract_strided_slice %32 {offsets = [56, 0], sizes = [8, 16], strides = [1, 1]} : vector<80x16xf32> to vector<8x16xf32>
    %cst_26 = arith.constant dense<0.000000e+00> : vector<176x16xf32>
    %65 = tpu.matmul %63, %64, %cst_26 {dimension_numbers = #tpu.dot_dimension_numbers<[1], [0], [0], [1], [0, 0, 1, 1], [], []>} : vector<176x8xf32>, vector<8x16xf32>, vector<176x16xf32> -> vector<176x16xf32>
    %66 = arith.addf %62, %65 : vector<176x16xf32>
    %67 = vector.extract_strided_slice %31 {offsets = [64, 0], sizes = [176, 8], strides = [1, 1]} : vector<248x8xf32> to vector<176x8xf32>
    %68 = vector.extract_strided_slice %32 {offsets = [64, 0], sizes = [8, 16], strides = [1, 1]} : vector<80x16xf32> to vector<8x16xf32>
    %cst_27 = arith.constant dense<0.000000e+00> : vector<176x16xf32>
    %69 = tpu.matmul %67, %68, %cst_27 {dimension_numbers = #tpu.dot_dimension_numbers<[1], [0], [0], [1], [0, 0, 1, 1], [], []>} : vector<176x8xf32>, vector<8x16xf32>, vector<176x16xf32> -> vector<176x16xf32>
    %70 = arith.addf %66, %69 : vector<176x16xf32>
    %71 = vector.extract_strided_slice %31 {offsets = [72, 0], sizes = [176, 8], strides = [1, 1]} : vector<248x8xf32> to vector<176x8xf32>
    %72 = vector.extract_strided_slice %32 {offsets = [72, 0], sizes = [8, 16], strides = [1, 1]} : vector<80x16xf32> to vector<8x16xf32>
    %cst_28 = arith.constant dense<0.000000e+00> : vector<176x16xf32>
    %73 = tpu.matmul %71, %72, %cst_28 {dimension_numbers = #tpu.dot_dimension_numbers<[1], [0], [0], [1], [0, 0, 1, 1], [], []>} : vector<176x8xf32>, vector<8x16xf32>, vector<176x16xf32> -> vector<176x16xf32>
    %74 = arith.addf %70, %73 : vector<176x16xf32>
    %cst_29 = arith.constant 0.000000e+00 : f32
    %75 = vector.broadcast %cst_29 : f32 to vector<176x16xf32>
    %76 = arith.maximumf %74, %75 : vector<176x16xf32>
    %c0_30 = arith.constant 0 : index
    %c0_31 = arith.constant 0 : index
    %77 = vector.load %arg7[%c0_30, %c0_31] : memref<1x16xf32, #tpu.memory_space<vmem>>, vector<1x16xf32>
    %c0_32 = arith.constant 0 : index
    %c0_33 = arith.constant 0 : index
    %78 = vector.load %arg8[%c0_32, %c0_33] : memref<1x16xf32, #tpu.memory_space<vmem>>, vector<1x16xf32>
    %cst_34 = arith.constant dense<0.000000e+00> : vector<16xf32>
    %79 = vector.multi_reduction <add>, %76, %cst_34 [0] : vector<176x16xf32> to vector<16xf32>
    %80 = vector.shape_cast %79 : vector<16xf32> to vector<1x16xf32>
    %cst_35 = arith.constant 1.760000e+02 : f32
    %81 = vector.broadcast %cst_35 : f32 to vector<1x16xf32>
    %82 = arith.divf %80, %81 : vector<1x16xf32>
    %83 = vector.broadcast %82 : vector<1x16xf32> to vector<176x16xf32>
    %84 = arith.subf %76, %83 : vector<176x16xf32>
    %85 = arith.mulf %84, %84 : vector<176x16xf32>
    %cst_36 = arith.constant dense<0.000000e+00> : vector<16xf32>
    %86 = vector.multi_reduction <add>, %85, %cst_36 [0] : vector<176x16xf32> to vector<16xf32>
    %87 = vector.shape_cast %86 : vector<16xf32> to vector<1x16xf32>
    %cst_37 = arith.constant 1.760000e+02 : f32
    %88 = vector.broadcast %cst_37 : f32 to vector<1x16xf32>
    %89 = arith.divf %87, %88 : vector<1x16xf32>
    %90 = vector.broadcast %82 : vector<1x16xf32> to vector<176x16xf32>
    %91 = arith.subf %76, %90 : vector<176x16xf32>
    %92 = vector.broadcast %77 : vector<1x16xf32> to vector<176x16xf32>
    %93 = arith.mulf %92, %91 : vector<176x16xf32>
    %cst_38 = arith.constant 9.99999974E-6 : f32
    %94 = vector.broadcast %cst_38 : f32 to vector<1x16xf32>
    %95 = arith.addf %89, %94 : vector<1x16xf32>
    %96 = math.rsqrt %95 : vector<1x16xf32>
    %97 = vector.broadcast %96 : vector<1x16xf32> to vector<176x16xf32>
    %98 = arith.mulf %93, %97 : vector<176x16xf32>
    %99 = vector.broadcast %78 : vector<1x16xf32> to vector<176x16xf32>
    %100 = arith.addf %98, %99 : vector<176x16xf32>
    %c0_39 = arith.constant 0 : index
    %c0_40 = arith.constant 0 : index
    %101 = vector.load %arg9[%c0_39, %c0_40] : memref<352x128xf32, #tpu.memory_space<vmem>>, vector<352x128xf32>
    %c0_41 = arith.constant 0 : index
    %c0_42 = arith.constant 0 : index
    %102 = vector.load %arg10[%c0_41, %c0_42] : memref<1x128xf32, #tpu.memory_space<vmem>>, vector<1x128xf32>
    %103 = vector.extract_strided_slice %100 {offsets = [0, 0], sizes = [8, 16], strides = [1, 1]} : vector<176x16xf32> to vector<8x16xf32>
    %104 = vector.extract_strided_slice %101 {offsets = [0, 0], sizes = [16, 128], strides = [1, 1]} : vector<352x128xf32> to vector<16x128xf32>
    %cst_43 = arith.constant dense<0.000000e+00> : vector<8x128xf32>
    %105 = tpu.matmul %103, %104, %cst_43 {dimension_numbers = #tpu.dot_dimension_numbers<[1], [0], [0], [1], [0, 0, 1, 1], [], []>} : vector<8x16xf32>, vector<16x128xf32>, vector<8x128xf32> -> vector<8x128xf32>
    %106 = vector.broadcast %102 : vector<1x128xf32> to vector<8x128xf32>
    %107 = arith.addf %106, %105 : vector<8x128xf32>
    %108 = vector.extract_strided_slice %100 {offsets = [8, 0], sizes = [8, 16], strides = [1, 1]} : vector<176x16xf32> to vector<8x16xf32>
    %109 = vector.extract_strided_slice %101 {offsets = [16, 0], sizes = [16, 128], strides = [1, 1]} : vector<352x128xf32> to vector<16x128xf32>
    %cst_44 = arith.constant dense<0.000000e+00> : vector<8x128xf32>
    %110 = tpu.matmul %108, %109, %cst_44 {dimension_numbers = #tpu.dot_dimension_numbers<[1], [0], [0], [1], [0, 0, 1, 1], [], []>} : vector<8x16xf32>, vector<16x128xf32>, vector<8x128xf32> -> vector<8x128xf32>
    %111 = arith.addf %107, %110 : vector<8x128xf32>
    %112 = vector.extract_strided_slice %100 {offsets = [16, 0], sizes = [8, 16], strides = [1, 1]} : vector<176x16xf32> to vector<8x16xf32>
    %113 = vector.extract_strided_slice %101 {offsets = [32, 0], sizes = [16, 128], strides = [1, 1]} : vector<352x128xf32> to vector<16x128xf32>
    %cst_45 = arith.constant dense<0.000000e+00> : vector<8x128xf32>
    %114 = tpu.matmul %112, %113, %cst_45 {dimension_numbers = #tpu.dot_dimension_numbers<[1], [0], [0], [1], [0, 0, 1, 1], [], []>} : vector<8x16xf32>, vector<16x128xf32>, vector<8x128xf32> -> vector<8x128xf32>
    %115 = arith.addf %111, %114 : vector<8x128xf32>
    %116 = vector.extract_strided_slice %100 {offsets = [24, 0], sizes = [8, 16], strides = [1, 1]} : vector<176x16xf32> to vector<8x16xf32>
    %117 = vector.extract_strided_slice %101 {offsets = [48, 0], sizes = [16, 128], strides = [1, 1]} : vector<352x128xf32> to vector<16x128xf32>
    %cst_46 = arith.constant dense<0.000000e+00> : vector<8x128xf32>
    %118 = tpu.matmul %116, %117, %cst_46 {dimension_numbers = #tpu.dot_dimension_numbers<[1], [0], [0], [1], [0, 0, 1, 1], [], []>} : vector<8x16xf32>, vector<16x128xf32>, vector<8x128xf32> -> vector<8x128xf32>
    %119 = arith.addf %115, %118 : vector<8x128xf32>
    %120 = vector.extract_strided_slice %100 {offsets = [32, 0], sizes = [8, 16], strides = [1, 1]} : vector<176x16xf32> to vector<8x16xf32>
    %121 = vector.extract_strided_slice %101 {offsets = [64, 0], sizes = [16, 128], strides = [1, 1]} : vector<352x128xf32> to vector<16x128xf32>
    %cst_47 = arith.constant dense<0.000000e+00> : vector<8x128xf32>
    %122 = tpu.matmul %120, %121, %cst_47 {dimension_numbers = #tpu.dot_dimension_numbers<[1], [0], [0], [1], [0, 0, 1, 1], [], []>} : vector<8x16xf32>, vector<16x128xf32>, vector<8x128xf32> -> vector<8x128xf32>
    %123 = arith.addf %119, %122 : vector<8x128xf32>
    %124 = vector.extract_strided_slice %100 {offsets = [40, 0], sizes = [8, 16], strides = [1, 1]} : vector<176x16xf32> to vector<8x16xf32>
    %125 = vector.extract_strided_slice %101 {offsets = [80, 0], sizes = [16, 128], strides = [1, 1]} : vector<352x128xf32> to vector<16x128xf32>
    %cst_48 = arith.constant dense<0.000000e+00> : vector<8x128xf32>
    %126 = tpu.matmul %124, %125, %cst_48 {dimension_numbers = #tpu.dot_dimension_numbers<[1], [0], [0], [1], [0, 0, 1, 1], [], []>} : vector<8x16xf32>, vector<16x128xf32>, vector<8x128xf32> -> vector<8x128xf32>
    %127 = arith.addf %123, %126 : vector<8x128xf32>
    %128 = vector.extract_strided_slice %100 {offsets = [48, 0], sizes = [8, 16], strides = [1, 1]} : vector<176x16xf32> to vector<8x16xf32>
    %129 = vector.extract_strided_slice %101 {offsets = [96, 0], sizes = [16, 128], strides = [1, 1]} : vector<352x128xf32> to vector<16x128xf32>
    %cst_49 = arith.constant dense<0.000000e+00> : vector<8x128xf32>
    %130 = tpu.matmul %128, %129, %cst_49 {dimension_numbers = #tpu.dot_dimension_numbers<[1], [0], [0], [1], [0, 0, 1, 1], [], []>} : vector<8x16xf32>, vector<16x128xf32>, vector<8x128xf32> -> vector<8x128xf32>
    %131 = arith.addf %127, %130 : vector<8x128xf32>
    %132 = vector.extract_strided_slice %100 {offsets = [56, 0], sizes = [8, 16], strides = [1, 1]} : vector<176x16xf32> to vector<8x16xf32>
    %133 = vector.extract_strided_slice %101 {offsets = [112, 0], sizes = [16, 128], strides = [1, 1]} : vector<352x128xf32> to vector<16x128xf32>
    %cst_50 = arith.constant dense<0.000000e+00> : vector<8x128xf32>
    %134 = tpu.matmul %132, %133, %cst_50 {dimension_numbers = #tpu.dot_dimension_numbers<[1], [0], [0], [1], [0, 0, 1, 1], [], []>} : vector<8x16xf32>, vector<16x128xf32>, vector<8x128xf32> -> vector<8x128xf32>
    %135 = arith.addf %131, %134 : vector<8x128xf32>
    %136 = vector.extract_strided_slice %100 {offsets = [64, 0], sizes = [8, 16], strides = [1, 1]} : vector<176x16xf32> to vector<8x16xf32>
    %137 = vector.extract_strided_slice %101 {offsets = [128, 0], sizes = [16, 128], strides = [1, 1]} : vector<352x128xf32> to vector<16x128xf32>
    %cst_51 = arith.constant dense<0.000000e+00> : vector<8x128xf32>
    %138 = tpu.matmul %136, %137, %cst_51 {dimension_numbers = #tpu.dot_dimension_numbers<[1], [0], [0], [1], [0, 0, 1, 1], [], []>} : vector<8x16xf32>, vector<16x128xf32>, vector<8x128xf32> -> vector<8x128xf32>
    %139 = arith.addf %135, %138 : vector<8x128xf32>
    %140 = vector.extract_strided_slice %100 {offsets = [72, 0], sizes = [8, 16], strides = [1, 1]} : vector<176x16xf32> to vector<8x16xf32>
    %141 = vector.extract_strided_slice %101 {offsets = [144, 0], sizes = [16, 128], strides = [1, 1]} : vector<352x128xf32> to vector<16x128xf32>
    %cst_52 = arith.constant dense<0.000000e+00> : vector<8x128xf32>
    %142 = tpu.matmul %140, %141, %cst_52 {dimension_numbers = #tpu.dot_dimension_numbers<[1], [0], [0], [1], [0, 0, 1, 1], [], []>} : vector<8x16xf32>, vector<16x128xf32>, vector<8x128xf32> -> vector<8x128xf32>
    %143 = arith.addf %139, %142 : vector<8x128xf32>
    %144 = vector.extract_strided_slice %100 {offsets = [80, 0], sizes = [8, 16], strides = [1, 1]} : vector<176x16xf32> to vector<8x16xf32>
    %145 = vector.extract_strided_slice %101 {offsets = [160, 0], sizes = [16, 128], strides = [1, 1]} : vector<352x128xf32> to vector<16x128xf32>
    %cst_53 = arith.constant dense<0.000000e+00> : vector<8x128xf32>
    %146 = tpu.matmul %144, %145, %cst_53 {dimension_numbers = #tpu.dot_dimension_numbers<[1], [0], [0], [1], [0, 0, 1, 1], [], []>} : vector<8x16xf32>, vector<16x128xf32>, vector<8x128xf32> -> vector<8x128xf32>
    %147 = arith.addf %143, %146 : vector<8x128xf32>
    %148 = vector.extract_strided_slice %100 {offsets = [88, 0], sizes = [8, 16], strides = [1, 1]} : vector<176x16xf32> to vector<8x16xf32>
    %149 = vector.extract_strided_slice %101 {offsets = [176, 0], sizes = [16, 128], strides = [1, 1]} : vector<352x128xf32> to vector<16x128xf32>
    %cst_54 = arith.constant dense<0.000000e+00> : vector<8x128xf32>
    %150 = tpu.matmul %148, %149, %cst_54 {dimension_numbers = #tpu.dot_dimension_numbers<[1], [0], [0], [1], [0, 0, 1, 1], [], []>} : vector<8x16xf32>, vector<16x128xf32>, vector<8x128xf32> -> vector<8x128xf32>
    %151 = arith.addf %147, %150 : vector<8x128xf32>
    %152 = vector.extract_strided_slice %100 {offsets = [96, 0], sizes = [8, 16], strides = [1, 1]} : vector<176x16xf32> to vector<8x16xf32>
    %153 = vector.extract_strided_slice %101 {offsets = [192, 0], sizes = [16, 128], strides = [1, 1]} : vector<352x128xf32> to vector<16x128xf32>
    %cst_55 = arith.constant dense<0.000000e+00> : vector<8x128xf32>
    %154 = tpu.matmul %152, %153, %cst_55 {dimension_numbers = #tpu.dot_dimension_numbers<[1], [0], [0], [1], [0, 0, 1, 1], [], []>} : vector<8x16xf32>, vector<16x128xf32>, vector<8x128xf32> -> vector<8x128xf32>
    %155 = arith.addf %151, %154 : vector<8x128xf32>
    %156 = vector.extract_strided_slice %100 {offsets = [104, 0], sizes = [8, 16], strides = [1, 1]} : vector<176x16xf32> to vector<8x16xf32>
    %157 = vector.extract_strided_slice %101 {offsets = [208, 0], sizes = [16, 128], strides = [1, 1]} : vector<352x128xf32> to vector<16x128xf32>
    %cst_56 = arith.constant dense<0.000000e+00> : vector<8x128xf32>
    %158 = tpu.matmul %156, %157, %cst_56 {dimension_numbers = #tpu.dot_dimension_numbers<[1], [0], [0], [1], [0, 0, 1, 1], [], []>} : vector<8x16xf32>, vector<16x128xf32>, vector<8x128xf32> -> vector<8x128xf32>
    %159 = arith.addf %155, %158 : vector<8x128xf32>
    %160 = vector.extract_strided_slice %100 {offsets = [112, 0], sizes = [8, 16], strides = [1, 1]} : vector<176x16xf32> to vector<8x16xf32>
    %161 = vector.extract_strided_slice %101 {offsets = [224, 0], sizes = [16, 128], strides = [1, 1]} : vector<352x128xf32> to vector<16x128xf32>
    %cst_57 = arith.constant dense<0.000000e+00> : vector<8x128xf32>
    %162 = tpu.matmul %160, %161, %cst_57 {dimension_numbers = #tpu.dot_dimension_numbers<[1], [0], [0], [1], [0, 0, 1, 1], [], []>} : vector<8x16xf32>, vector<16x128xf32>, vector<8x128xf32> -> vector<8x128xf32>
    %163 = arith.addf %159, %162 : vector<8x128xf32>
    %164 = vector.extract_strided_slice %100 {offsets = [120, 0], sizes = [8, 16], strides = [1, 1]} : vector<176x16xf32> to vector<8x16xf32>
    %165 = vector.extract_strided_slice %101 {offsets = [240, 0], sizes = [16, 128], strides = [1, 1]} : vector<352x128xf32> to vector<16x128xf32>
    %cst_58 = arith.constant dense<0.000000e+00> : vector<8x128xf32>
    %166 = tpu.matmul %164, %165, %cst_58 {dimension_numbers = #tpu.dot_dimension_numbers<[1], [0], [0], [1], [0, 0, 1, 1], [], []>} : vector<8x16xf32>, vector<16x128xf32>, vector<8x128xf32> -> vector<8x128xf32>
    %167 = arith.addf %163, %166 : vector<8x128xf32>
    %168 = vector.extract_strided_slice %100 {offsets = [128, 0], sizes = [8, 16], strides = [1, 1]} : vector<176x16xf32> to vector<8x16xf32>
    %169 = vector.extract_strided_slice %101 {offsets = [256, 0], sizes = [16, 128], strides = [1, 1]} : vector<352x128xf32> to vector<16x128xf32>
    %cst_59 = arith.constant dense<0.000000e+00> : vector<8x128xf32>
    %170 = tpu.matmul %168, %169, %cst_59 {dimension_numbers = #tpu.dot_dimension_numbers<[1], [0], [0], [1], [0, 0, 1, 1], [], []>} : vector<8x16xf32>, vector<16x128xf32>, vector<8x128xf32> -> vector<8x128xf32>
    %171 = arith.addf %167, %170 : vector<8x128xf32>
    %172 = vector.extract_strided_slice %100 {offsets = [136, 0], sizes = [8, 16], strides = [1, 1]} : vector<176x16xf32> to vector<8x16xf32>
    %173 = vector.extract_strided_slice %101 {offsets = [272, 0], sizes = [16, 128], strides = [1, 1]} : vector<352x128xf32> to vector<16x128xf32>
    %cst_60 = arith.constant dense<0.000000e+00> : vector<8x128xf32>
    %174 = tpu.matmul %172, %173, %cst_60 {dimension_numbers = #tpu.dot_dimension_numbers<[1], [0], [0], [1], [0, 0, 1, 1], [], []>} : vector<8x16xf32>, vector<16x128xf32>, vector<8x128xf32> -> vector<8x128xf32>
    %175 = arith.addf %171, %174 : vector<8x128xf32>
    %176 = vector.extract_strided_slice %100 {offsets = [144, 0], sizes = [8, 16], strides = [1, 1]} : vector<176x16xf32> to vector<8x16xf32>
    %177 = vector.extract_strided_slice %101 {offsets = [288, 0], sizes = [16, 128], strides = [1, 1]} : vector<352x128xf32> to vector<16x128xf32>
    %cst_61 = arith.constant dense<0.000000e+00> : vector<8x128xf32>
    %178 = tpu.matmul %176, %177, %cst_61 {dimension_numbers = #tpu.dot_dimension_numbers<[1], [0], [0], [1], [0, 0, 1, 1], [], []>} : vector<8x16xf32>, vector<16x128xf32>, vector<8x128xf32> -> vector<8x128xf32>
    %179 = arith.addf %175, %178 : vector<8x128xf32>
    %180 = vector.extract_strided_slice %100 {offsets = [152, 0], sizes = [8, 16], strides = [1, 1]} : vector<176x16xf32> to vector<8x16xf32>
    %181 = vector.extract_strided_slice %101 {offsets = [304, 0], sizes = [16, 128], strides = [1, 1]} : vector<352x128xf32> to vector<16x128xf32>
    %cst_62 = arith.constant dense<0.000000e+00> : vector<8x128xf32>
    %182 = tpu.matmul %180, %181, %cst_62 {dimension_numbers = #tpu.dot_dimension_numbers<[1], [0], [0], [1], [0, 0, 1, 1], [], []>} : vector<8x16xf32>, vector<16x128xf32>, vector<8x128xf32> -> vector<8x128xf32>
    %183 = arith.addf %179, %182 : vector<8x128xf32>
    %184 = vector.extract_strided_slice %100 {offsets = [160, 0], sizes = [8, 16], strides = [1, 1]} : vector<176x16xf32> to vector<8x16xf32>
    %185 = vector.extract_strided_slice %101 {offsets = [320, 0], sizes = [16, 128], strides = [1, 1]} : vector<352x128xf32> to vector<16x128xf32>
    %cst_63 = arith.constant dense<0.000000e+00> : vector<8x128xf32>
    %186 = tpu.matmul %184, %185, %cst_63 {dimension_numbers = #tpu.dot_dimension_numbers<[1], [0], [0], [1], [0, 0, 1, 1], [], []>} : vector<8x16xf32>, vector<16x128xf32>, vector<8x128xf32> -> vector<8x128xf32>
    %187 = arith.addf %183, %186 : vector<8x128xf32>
    %188 = vector.extract_strided_slice %100 {offsets = [168, 0], sizes = [8, 16], strides = [1, 1]} : vector<176x16xf32> to vector<8x16xf32>
    %189 = vector.extract_strided_slice %101 {offsets = [336, 0], sizes = [16, 128], strides = [1, 1]} : vector<352x128xf32> to vector<16x128xf32>
    %cst_64 = arith.constant dense<0.000000e+00> : vector<8x128xf32>
    %190 = tpu.matmul %188, %189, %cst_64 {dimension_numbers = #tpu.dot_dimension_numbers<[1], [0], [0], [1], [0, 0, 1, 1], [], []>} : vector<8x16xf32>, vector<16x128xf32>, vector<8x128xf32> -> vector<8x128xf32>
    %191 = arith.addf %187, %190 : vector<8x128xf32>
    %cst_65 = arith.constant 0.000000e+00 : f32
    %192 = vector.broadcast %cst_65 : f32 to vector<8x128xf32>
    %193 = arith.maximumf %191, %192 : vector<8x128xf32>
    %c0_66 = arith.constant 0 : index
    %c0_67 = arith.constant 0 : index
    %194 = vector.load %arg11[%c0_66, %c0_67] : memref<1x128xf32, #tpu.memory_space<vmem>>, vector<1x128xf32>
    %c0_68 = arith.constant 0 : index
    %c0_69 = arith.constant 0 : index
    %195 = vector.load %arg12[%c0_68, %c0_69] : memref<1x128xf32, #tpu.memory_space<vmem>>, vector<1x128xf32>
    %cst_70 = arith.constant dense<0.000000e+00> : vector<128xf32>
    %196 = vector.multi_reduction <add>, %193, %cst_70 [0] : vector<8x128xf32> to vector<128xf32>
    %197 = vector.shape_cast %196 : vector<128xf32> to vector<1x128xf32>
    %cst_71 = arith.constant 8.000000e+00 : f32
    %198 = vector.broadcast %cst_71 : f32 to vector<1x128xf32>
    %199 = arith.divf %197, %198 : vector<1x128xf32>
    %200 = vector.broadcast %199 : vector<1x128xf32> to vector<8x128xf32>
    %201 = arith.subf %193, %200 : vector<8x128xf32>
    %202 = arith.mulf %201, %201 : vector<8x128xf32>
    %cst_72 = arith.constant dense<0.000000e+00> : vector<128xf32>
    %203 = vector.multi_reduction <add>, %202, %cst_72 [0] : vector<8x128xf32> to vector<128xf32>
    %204 = vector.shape_cast %203 : vector<128xf32> to vector<1x128xf32>
    %cst_73 = arith.constant 8.000000e+00 : f32
    %205 = vector.broadcast %cst_73 : f32 to vector<1x128xf32>
    %206 = arith.divf %204, %205 : vector<1x128xf32>
    %207 = vector.broadcast %199 : vector<1x128xf32> to vector<8x128xf32>
    %208 = arith.subf %193, %207 : vector<8x128xf32>
    %209 = vector.broadcast %194 : vector<1x128xf32> to vector<8x128xf32>
    %210 = arith.mulf %209, %208 : vector<8x128xf32>
    %cst_74 = arith.constant 9.99999974E-6 : f32
    %211 = vector.broadcast %cst_74 : f32 to vector<1x128xf32>
    %212 = arith.addf %206, %211 : vector<1x128xf32>
    %213 = math.rsqrt %212 : vector<1x128xf32>
    %214 = vector.broadcast %213 : vector<1x128xf32> to vector<8x128xf32>
    %215 = arith.mulf %210, %214 : vector<8x128xf32>
    %216 = vector.broadcast %195 : vector<1x128xf32> to vector<8x128xf32>
    %217 = arith.addf %215, %216 : vector<8x128xf32>
    %c0_75 = arith.constant 0 : index
    %c0_76 = arith.constant 0 : index
    %218 = vector.load %arg13[%c0_75, %c0_76] : memref<8x128xf32, #tpu.memory_space<vmem>>, vector<8x128xf32>
    tpu.vector_store %arg13[%c0_75, %c0_76], %217 {strides = array<i32>} : memref<8x128xf32, #tpu.memory_space<vmem>>, vector<8x128xf32>,
    return
  }
}

module attributes {stable_mosaic.version = 11 : i64} {
  func.func @_graph_kernel(%arg0: memref<16x96xf32, #tpu.memory_space<vmem>>, %arg1: memref<8x128xf32, #tpu.memory_space<vmem>>, %arg2: memref<96x128xbf16, #tpu.memory_space<vmem>>, %arg3: memref<1x128xf32, #tpu.memory_space<vmem>>, %arg4: memref<128x128xbf16, #tpu.memory_space<vmem>>, %arg5: memref<128x128xbf16, #tpu.memory_space<vmem>>, %arg6: memref<1x128xf32, #tpu.memory_space<vmem>>, %arg7: memref<128x128xbf16, #tpu.memory_space<vmem>>, %arg8: memref<1x128xf32, #tpu.memory_space<vmem>>, %arg9: memref<128x2xf32, #tpu.memory_space<vmem>>, %arg10: memref<128x128xf32, #tpu.memory_space<vmem>>, %arg11: memref<2x8x8xf32, #tpu.memory_space<vmem>>) attributes {dimension_semantics = [], scalar_prefetch = 0 : i64, scratch_operands = 0 : i64, tpu.core_type = #tpu.core_type<tc>} {
    %c0 = arith.constant 0 : index
    %c0_0 = arith.constant 0 : index
    %0 = vector.load %arg0[%c0, %c0_0] : memref<16x96xf32, #tpu.memory_space<vmem>>, vector<16x96xf32>
    %1 = arith.truncf %0 : vector<16x96xf32> to vector<16x96xbf16>
    %c0_1 = arith.constant 0 : index
    %c0_2 = arith.constant 0 : index
    %2 = vector.load %arg2[%c0_1, %c0_2] : memref<96x128xbf16, #tpu.memory_space<vmem>>, vector<96x128xbf16>
    %cst = arith.constant dense<0.000000e+00> : vector<16x128xf32>
    %3 = tpu.matmul %1, %2, %cst {dimension_numbers = #tpu.dot_dimension_numbers<[1], [0], [0], [1], [0, 0, 1, 1], [], []>} : vector<16x96xbf16>, vector<96x128xbf16>, vector<16x128xf32> -> vector<16x128xf32>
    %c0_3 = arith.constant 0 : index
    %c0_4 = arith.constant 0 : index
    %4 = vector.load %arg3[%c0_3, %c0_4] : memref<1x128xf32, #tpu.memory_space<vmem>>, vector<1x128xf32>
    %5 = vector.broadcast %4 : vector<1x128xf32> to vector<16x128xf32>
    %6 = arith.addf %3, %5 : vector<16x128xf32>
    %cst_5 = arith.constant 0.000000e+00 : f32
    %7 = vector.broadcast %cst_5 : f32 to vector<16x128xf32>
    %8 = arith.maximumf %6, %7 : vector<16x128xf32>
    %c0_6 = arith.constant 0 : index
    %c0_7 = arith.constant 0 : index
    %9 = vector.load %arg1[%c0_6, %c0_7] : memref<8x128xf32, #tpu.memory_space<vmem>>, vector<8x128xf32>
    %10 = tpu.concatenate %9, %9 in 0 : vector<8x128xf32>, vector<8x128xf32> -> vector<16x128xf32>
    %11 = arith.addf %8, %10 : vector<16x128xf32>
    %12 = arith.truncf %11 : vector<16x128xf32> to vector<16x128xbf16>
    %c0_8 = arith.constant 0 : index
    %c0_9 = arith.constant 0 : index
    %13 = vector.load %arg4[%c0_8, %c0_9] : memref<128x128xbf16, #tpu.memory_space<vmem>>, vector<128x128xbf16>
    %cst_10 = arith.constant dense<0.000000e+00> : vector<16x128xf32>
    %14 = tpu.matmul %12, %13, %cst_10 {dimension_numbers = #tpu.dot_dimension_numbers<[1], [0], [0], [1], [0, 0, 1, 1], [], []>} : vector<16x128xbf16>, vector<128x128xbf16>, vector<16x128xf32> -> vector<16x128xf32>
    %c0_11 = arith.constant 0 : index
    %c0_12 = arith.constant 0 : index
    %15 = vector.load %arg6[%c0_11, %c0_12] : memref<1x128xf32, #tpu.memory_space<vmem>>, vector<1x128xf32>
    %16 = vector.broadcast %15 : vector<1x128xf32> to vector<16x128xf32>
    %17 = arith.addf %14, %16 : vector<16x128xf32>
    %c0_13 = arith.constant 0 : index
    %c0_14 = arith.constant 0 : index
    %18 = vector.load %arg5[%c0_13, %c0_14] : memref<128x128xbf16, #tpu.memory_space<vmem>>, vector<128x128xbf16>
    %cst_15 = arith.constant dense<0.000000e+00> : vector<16x128xf32>
    %19 = tpu.matmul %12, %18, %cst_15 {dimension_numbers = #tpu.dot_dimension_numbers<[1], [0], [0], [1], [0, 0, 1, 1], [], []>} : vector<16x128xbf16>, vector<128x128xbf16>, vector<16x128xf32> -> vector<16x128xf32>
    %20 = vector.extract_strided_slice %17 {offsets = [0, 0], sizes = [8, 128], strides = [1, 1]} : vector<16x128xf32> to vector<8x128xf32>
    %21 = vector.extract_strided_slice %19 {offsets = [0, 0], sizes = [8, 128], strides = [1, 1]} : vector<16x128xf32> to vector<8x128xf32>
    %22 = vector.shape_cast %21 : vector<8x128xf32> to vector<8x1x128xf32>
    %23 = vector.shape_cast %20 : vector<8x128xf32> to vector<1x8x128xf32>
    %24 = vector.broadcast %22 : vector<8x1x128xf32> to vector<8x8x128xf32>
    %25 = vector.broadcast %23 : vector<1x8x128xf32> to vector<8x8x128xf32>
    %26 = arith.addf %24, %25 : vector<8x8x128xf32>
    %27 = vector.shape_cast %26 : vector<8x8x128xf32> to vector<64x128xf32>
    %cst_16 = arith.constant 0.000000e+00 : f32
    %28 = vector.broadcast %cst_16 : f32 to vector<64x128xf32>
    %29 = arith.maximumf %27, %28 : vector<64x128xf32>
    %30 = vector.extract_strided_slice %0 {offsets = [0, 0], sizes = [8, 96], strides = [1, 1]} : vector<16x96xf32> to vector<8x96xf32>
    %31 = arith.mulf %30, %30 : vector<8x96xf32>
    %cst_17 = arith.constant dense<0.000000e+00> : vector<8xf32>
    %32 = vector.multi_reduction <add>, %31, %cst_17 [1] : vector<8x96xf32> to vector<8xf32>
    %33 = vector.shape_cast %32 : vector<8xf32> to vector<8x1xf32>
    %34 = math.sqrt %33 : vector<8x1xf32>
    %cst_18 = arith.constant 1.000000e-07 : f32
    %35 = vector.broadcast %cst_18 : f32 to vector<8x1xf32>
    %36 = arith.addf %34, %35 : vector<8x1xf32>
    %37 = vector.broadcast %36 : vector<8x1xf32> to vector<8x96xf32>
    %38 = arith.divf %30, %37 : vector<8x96xf32>
    %cst_19 = arith.constant dense<0.000000e+00> : vector<8x8xf32>
    %39 = tpu.matmul %38, %38, %cst_19 {dimension_numbers = #tpu.dot_dimension_numbers<[1], [1], [0], [0], [0, 0, 1, 0], [], []>} : vector<8x96xf32>, vector<8x96xf32>, vector<8x8xf32> -> vector<8x8xf32>
    %c0_20 = arith.constant 0 : index
    %c0_21 = arith.constant 0 : index
    %c0_22 = arith.constant 0 : index
    %40 = vector.load %arg11[%c0_20, %c0_21, %c0_22] : memref<2x8x8xf32, #tpu.memory_space<vmem>>, vector<1x8x8xf32>
    %41 = vector.shape_cast %40 : vector<1x8x8xf32> to vector<8x8xf32>
    %42 = vector.shape_cast %39 : vector<8x8xf32> to vector<1x8x8xf32>
    tpu.vector_store %arg11[%c0_20, %c0_21, %c0_22], %42 {strides = array<i32>} : memref<2x8x8xf32, #tpu.memory_space<vmem>>, vector<1x8x8xf32>,
    %43 = vector.extract_strided_slice %17 {offsets = [8, 0], sizes = [8, 128], strides = [1, 1]} : vector<16x128xf32> to vector<8x128xf32>
    %44 = vector.extract_strided_slice %19 {offsets = [8, 0], sizes = [8, 128], strides = [1, 1]} : vector<16x128xf32> to vector<8x128xf32>
    %45 = vector.shape_cast %44 : vector<8x128xf32> to vector<8x1x128xf32>
    %46 = vector.shape_cast %43 : vector<8x128xf32> to vector<1x8x128xf32>
    %47 = vector.broadcast %45 : vector<8x1x128xf32> to vector<8x8x128xf32>
    %48 = vector.broadcast %46 : vector<1x8x128xf32> to vector<8x8x128xf32>
    %49 = arith.addf %47, %48 : vector<8x8x128xf32>
    %50 = vector.shape_cast %49 : vector<8x8x128xf32> to vector<64x128xf32>
    %cst_23 = arith.constant 0.000000e+00 : f32
    %51 = vector.broadcast %cst_23 : f32 to vector<64x128xf32>
    %52 = arith.maximumf %50, %51 : vector<64x128xf32>
    %53 = vector.extract_strided_slice %0 {offsets = [8, 0], sizes = [8, 96], strides = [1, 1]} : vector<16x96xf32> to vector<8x96xf32>
    %54 = arith.mulf %53, %53 : vector<8x96xf32>
    %cst_24 = arith.constant dense<0.000000e+00> : vector<8xf32>
    %55 = vector.multi_reduction <add>, %54, %cst_24 [1] : vector<8x96xf32> to vector<8xf32>
    %56 = vector.shape_cast %55 : vector<8xf32> to vector<8x1xf32>
    %57 = math.sqrt %56 : vector<8x1xf32>
    %cst_25 = arith.constant 1.000000e-07 : f32
    %58 = vector.broadcast %cst_25 : f32 to vector<8x1xf32>
    %59 = arith.addf %57, %58 : vector<8x1xf32>
    %60 = vector.broadcast %59 : vector<8x1xf32> to vector<8x96xf32>
    %61 = arith.divf %53, %60 : vector<8x96xf32>
    %cst_26 = arith.constant dense<0.000000e+00> : vector<8x8xf32>
    %62 = tpu.matmul %61, %61, %cst_26 {dimension_numbers = #tpu.dot_dimension_numbers<[1], [1], [0], [0], [0, 0, 1, 0], [], []>} : vector<8x96xf32>, vector<8x96xf32>, vector<8x8xf32> -> vector<8x8xf32>
    %c1 = arith.constant 1 : index
    %c0_27 = arith.constant 0 : index
    %c0_28 = arith.constant 0 : index
    %63 = vector.load %arg11[%c1, %c0_27, %c0_28] : memref<2x8x8xf32, #tpu.memory_space<vmem>>, vector<1x8x8xf32>
    %64 = vector.shape_cast %63 : vector<1x8x8xf32> to vector<8x8xf32>
    %65 = vector.shape_cast %62 : vector<8x8xf32> to vector<1x8x8xf32>
    tpu.vector_store %arg11[%c1, %c0_27, %c0_28], %65 {strides = array<i32>} : memref<2x8x8xf32, #tpu.memory_space<vmem>>, vector<1x8x8xf32>,
    %66 = tpu.concatenate %29, %52 in 0 : vector<64x128xf32>, vector<64x128xf32> -> vector<128x128xf32>
    %67 = arith.truncf %66 : vector<128x128xf32> to vector<128x128xbf16>
    %c0_29 = arith.constant 0 : index
    %c0_30 = arith.constant 0 : index
    %68 = vector.load %arg7[%c0_29, %c0_30] : memref<128x128xbf16, #tpu.memory_space<vmem>>, vector<128x128xbf16>
    %cst_31 = arith.constant dense<0.000000e+00> : vector<128x128xf32>
    %69 = tpu.matmul %67, %68, %cst_31 {dimension_numbers = #tpu.dot_dimension_numbers<[1], [0], [0], [1], [0, 0, 1, 1], [], []>} : vector<128x128xbf16>, vector<128x128xbf16>, vector<128x128xf32> -> vector<128x128xf32>
    %c0_32 = arith.constant 0 : index
    %c0_33 = arith.constant 0 : index
    %70 = vector.load %arg8[%c0_32, %c0_33] : memref<1x128xf32, #tpu.memory_space<vmem>>, vector<1x128xf32>
    %71 = vector.broadcast %70 : vector<1x128xf32> to vector<128x128xf32>
    %72 = arith.addf %69, %71 : vector<128x128xf32>
    %c0_34 = arith.constant 0 : index
    %c0_35 = arith.constant 0 : index
    %73 = vector.load %arg9[%c0_34, %c0_35] : memref<128x2xf32, #tpu.memory_space<vmem>>, vector<128x2xf32>
    %cst_36 = arith.constant 1.000000e-10 : f32
    %74 = vector.broadcast %cst_36 : f32 to vector<128x2xf32>
    %75 = arith.addf %73, %74 : vector<128x2xf32>
    %76 = math.log %75 : vector<128x2xf32>
    %cst_37 = arith.constant 0.000000e+00 : f32
    %77 = vector.broadcast %cst_37 : f32 to vector<128x2xf32>
    %78 = arith.subf %77, %76 : vector<128x2xf32>
    %cst_38 = arith.constant 1.000000e-10 : f32
    %79 = vector.broadcast %cst_38 : f32 to vector<128x2xf32>
    %80 = arith.addf %78, %79 : vector<128x2xf32>
    %81 = math.log %80 : vector<128x2xf32>
    %cst_39 = arith.constant 0.000000e+00 : f32
    %82 = vector.broadcast %cst_39 : f32 to vector<128x2xf32>
    %83 = arith.subf %82, %81 : vector<128x2xf32>
    %84 = vector.extract_strided_slice %72 {offsets = [0, 0], sizes = [128, 2], strides = [1, 1]} : vector<128x128xf32> to vector<128x2xf32>
    %85 = arith.addf %84, %83 : vector<128x2xf32>
    %cst_40 = arith.constant 5.000000e-01 : f32
    %86 = vector.broadcast %cst_40 : f32 to vector<128x2xf32>
    %87 = arith.divf %85, %86 : vector<128x2xf32>
    %88 = vector.extract_strided_slice %87 {offsets = [0, 0], sizes = [128, 1], strides = [1, 1]} : vector<128x2xf32> to vector<128x1xf32>
    %89 = vector.extract_strided_slice %87 {offsets = [0, 1], sizes = [128, 1], strides = [1, 1]} : vector<128x2xf32> to vector<128x1xf32>
    %90 = arith.cmpf oge, %88, %89 : vector<128x1xf32>
    %cst_41 = arith.constant 1.000000e+00 : f32
    %cst_42 = arith.constant 0.000000e+00 : f32
    %91 = vector.broadcast %cst_41 : f32 to vector<128x1xf32>
    %92 = vector.broadcast %cst_42 : f32 to vector<128x1xf32>
    %93 = arith.select %90, %91, %92 : vector<128x1xi1>, vector<128x1xf32>
    %94 = tpu.iota {dimensions = array<i32: 1>} : vector<128x128xi32>
    %c2_i32 = arith.constant 2 : i32
    %95 = vector.broadcast %c2_i32 : i32 to vector<128x128xi32>
    %96 = arith.cmpi eq, %94, %95 : vector<128x128xi32>
    %97 = vector.shape_cast %93 : vector<128x1xf32> to vector<128x1xf32>
    %98 = vector.broadcast %97 : vector<128x1xf32> to vector<128x128xf32>
    %99 = arith.select %96, %98, %72 : vector<128x128xi1>, vector<128x128xf32>
    %c0_43 = arith.constant 0 : index
    %c0_44 = arith.constant 0 : index
    %100 = vector.load %arg10[%c0_43, %c0_44] : memref<128x128xf32, #tpu.memory_space<vmem>>, vector<128x128xf32>
    tpu.vector_store %arg10[%c0_43, %c0_44], %99 {strides = array<i32>} : memref<128x128xf32, #tpu.memory_space<vmem>>, vector<128x128xf32>,
    return
  }
}

</mosaic_0001>

<llo_original>
// kernel: squeeze.5
$region0: #{squeeze.5}
  %s0 = inlined_call_operand.vmem [shape: f32[128], index: 0, kind: input, shape index: {}]
  %s1 = inlined_call_operand.vmem [shape: f32[2,8,8], index: 1, kind: output, shape index: {}]
  $region1: #{squeeze.5} parent=0
    #allocation0 [shape = 'u8[4096]{0}', space=vmem, size = 0x1000, scoped, tag = 'scoped mem for input reshape']
    %s3 = sshllo.u32 0, 1
    %v4 = vld [vmem:[%s0] sm:%s3]
    %5 = vst [vmem:[#allocation0] sm:%s3] %v4
    %v6 = vld [vmem:[#allocation0] sm:$0x1]
    %vm7 = vcmask 64512
    %8 = vst.msk [vmem:[%s1] sm:$0x1] %vm7, %v6
    %v9 = vld [vmem:[#allocation0] sm:$0x1]
    %10 = vrot.lane.b32.xlu0 %v9, 120
    %v11 = vpop.permute.xlu0 %10
    %vm12 = vcmask 64512
    %s13 = scalar_lea.vmem %s1, 1
    %14 = vst.msk [vmem:[%s13] sm:$0x1] %vm12, %v11
    %v15 = vld [vmem:[#allocation0] sm:$0x1]
    %16 = vrot.lane.b32.xlu0 %v15, 112
    %v17 = vpop.permute.xlu0 %16
    %vm18 = vcmask 64512
    %s19 = scalar_lea.vmem %s1, 2
    %20 = vst.msk [vmem:[%s19] sm:$0x1] %vm18, %v17
    %v21 = vld [vmem:[#allocation0] sm:$0x1]
    %22 = vrot.lane.b32.xlu0 %v21, 104
    %v23 = vpop.permute.xlu0 %22
    %vm24 = vcmask 64512
    %s25 = scalar_lea.vmem %s1, 3
    %26 = vst.msk [vmem:[%s25] sm:$0x1] %vm24, %v23
    %v27 = vld [vmem:[#allocation0] sm:$0x1]
    %28 = vrot.lane.b32.xlu0 %v27, 96
    %v29 = vpop.permute.xlu0 %28
    %vm30 = vcmask 64512
    %s31 = scalar_lea.vmem %s1, 4
    %32 = vst.msk [vmem:[%s31] sm:$0x1] %vm30, %v29
    %v33 = vld [vmem:[#allocation0] sm:$0x1]
    %34 = vrot.lane.b32.xlu0 %v33, 88
    %v35 = vpop.permute.xlu0 %34
    %vm36 = vcmask 64512
    %s37 = scalar_lea.vmem %s1, 5
    %38 = vst.msk [vmem:[%s37] sm:$0x1] %vm36, %v35
    %v39 = vld [vmem:[#allocation0] sm:$0x1]
    %40 = vrot.lane.b32.xlu0 %v39, 80
    %v41 = vpop.permute.xlu0 %40
    %vm42 = vcmask 64512
    %s43 = scalar_lea.vmem %s1, 6
    %44 = vst.msk [vmem:[%s43] sm:$0x1] %vm42, %v41
    %v45 = vld [vmem:[#allocation0] sm:$0x1]
    %46 = vrot.lane.b32.xlu0 %v45, 72
    %v47 = vpop.permute.xlu0 %46
    %vm48 = vcmask 64512
    %s49 = scalar_lea.vmem %s1, 7
    %50 = vst.msk [vmem:[%s49] sm:$0x1] %vm48, %v47
    %v51 = vld [vmem:[#allocation0] sm:$0x1]
    %52 = vrot.lane.b32.xlu0 %v51, 64
    %v53 = vpop.permute.xlu0 %52
    %vm54 = vcmask 64512
    %s55 = scalar_lea.vmem %s1, 8
    %56 = vst.msk [vmem:[%s55] sm:$0x1] %vm54, %v53
    %v57 = vld [vmem:[#allocation0] sm:$0x1]
    %58 = vrot.lane.b32.xlu0 %v57, 56
    %v59 = vpop.permute.xlu0 %58
    %vm60 = vcmask 64512
    %s61 = scalar_lea.vmem %s1, 9
    %62 = vst.msk [vmem:[%s61] sm:$0x1] %vm60, %v59
    %v63 = vld [vmem:[#allocation0] sm:$0x1]
    %64 = vrot.lane.b32.xlu0 %v63, 48
    %v65 = vpop.permute.xlu0 %64
    %vm66 = vcmask 64512
    %s67 = scalar_lea.vmem %s1, 10
    %68 = vst.msk [vmem:[%s67] sm:$0x1] %vm66, %v65
    %v69 = vld [vmem:[#allocation0] sm:$0x1]
    %70 = vrot.lane.b32.xlu0 %v69, 40
    %v71 = vpop.permute.xlu0 %70
    %vm72 = vcmask 64512
    %s73 = scalar_lea.vmem %s1, 11
    %74 = vst.msk [vmem:[%s73] sm:$0x1] %vm72, %v71
    %v75 = vld [vmem:[#allocation0] sm:$0x1]
    %76 = vrot.lane.b32.xlu0 %v75, 32
    %v77 = vpop.permute.xlu0 %76
    %vm78 = vcmask 64512
    %s79 = scalar_lea.vmem %s1, 12
    %80 = vst.msk [vmem:[%s79] sm:$0x1] %vm78, %v77
    %v81 = vld [vmem:[#allocation0] sm:$0x1]
    %82 = vrot.lane.b32.xlu0 %v81, 24
    %v83 = vpop.permute.xlu0 %82
    %vm84 = vcmask 64512
    %s85 = scalar_lea.vmem %s1, 13
    %86 = vst.msk [vmem:[%s85] sm:$0x1] %vm84, %v83
    %v87 = vld [vmem:[#allocation0] sm:$0x1]
    %88 = vrot.lane.b32.xlu0 %v87, 16
    %v89 = vpop.permute.xlu0 %88
    %vm90 = vcmask 64512
    %s91 = scalar_lea.vmem %s1, 14
    %92 = vst.msk [vmem:[%s91] sm:$0x1] %vm90, %v89
    %v93 = vld [vmem:[#allocation0] sm:$0x1]
    %94 = vrot.lane.b32.xlu0 %v93, 8
    %v95 = vpop.permute.xlu0 %94
    %vm96 = vcmask 64512
    %s97 = scalar_lea.vmem %s1, 15
    %98 = vst.msk [vmem:[%s97] sm:$0x1] %vm96, %v95

// kernel: discrete_graph_learning_forward.3
$region0: #{discrete_graph_learning_forward.3}
  #allocation0 [shape = 'u32[]', space=smem, size = 0x4, offset = 0x4, fixed_abs, tag = 'smem constant byte address 0x4 - core index']
  #allocation1 [shape = 'u32[144,128]{1,0:T(1,128)}', space=vmem, size = 0x12000, scoped, tag = 'internal scratch']
  %s0 = inlined_call_operand.vmem [shape: f32[16,96], index: 0, kind: input, shape index: {}]
  %s1 = inlined_call_operand.vmem [shape: f32[8,128], index: 1, kind: input, shape index: {}]
  %s2 = inlined_call_operand.vmem [shape: bf16[96,128], index: 2, kind: input, shape index: {}]
  %s3 = inlined_call_operand.vmem [shape: f32[1,128], index: 3, kind: input, shape index: {}]
  %s4 = inlined_call_operand.vmem [shape: bf16[128,128], index: 4, kind: input, shape index: {}]
  %s5 = inlined_call_operand.vmem [shape: bf16[128,128], index: 5, kind: input, shape index: {}]
  %s6 = inlined_call_operand.vmem [shape: f32[1,128], index: 6, kind: input, shape index: {}]
  %s7 = inlined_call_operand.vmem [shape: bf16[128,128], index: 7, kind: input, shape index: {}]
  %s8 = inlined_call_operand.vmem [shape: f32[1,128], index: 8, kind: input, shape index: {}]
  %s9 = inlined_call_operand.vmem [shape: f32[128,2], index: 9, kind: input, shape index: {}]
  %s10 = inlined_call_operand.vmem [shape: f32[128,128], index: 10, kind: output, shape index: {0}]
  %s11 = inlined_call_operand.vmem [shape: f32[2,8,8], index: 11, kind: output, shape index: {1}]
  %12 = xla_tuple %s10, %s11
  %s13 = sld [smem:[#allocation0]]
  $region58: #{discrete_graph_learning_forward.3} parent=0
    _
  %s15 = ssub.s32 1, %s13
  %s16 = scalar_select 0, %s15, %s13
  // Predicated region
  $region2: #{discrete_graph_learning_forward.3} parent=0 // pred_check
    _
  $region3: #{discrete_graph_learning_forward.3} parent=0 // pred_check_branch
    %18 = sbr.rel (0) target = $region5
  $region4: #{discrete_graph_learning_forward.3} parent=0 // pred_region
    _
  $region5: #{discrete_graph_learning_forward.3} parent=0 // pred_fallthru
    _
  // Predicated region
  $region6: #{discrete_graph_learning_forward.3} parent=0 // pred_check
    _
  $region7: #{discrete_graph_learning_forward.3} parent=0 // pred_check_branch
    %20 = sbr.rel (0) target = $region9
  $region8: #{discrete_graph_learning_forward.3} parent=0 // pred_region
    _
  $region9: #{discrete_graph_learning_forward.3} parent=0 // pred_fallthru
    _
  // Predicated region
  $region10: #{discrete_graph_learning_forward.3} parent=0 // pred_check
    _
  $region11: #{discrete_graph_learning_forward.3} parent=0 // pred_check_branch
    %22 = sbr.rel (0) target = $region13
  $region12: #{discrete_graph_learning_forward.3} parent=0 // pred_region
    _
  $region13: #{discrete_graph_learning_forward.3} parent=0 // pred_fallthru
    _
  // Predicated region
  $region14: #{discrete_graph_learning_forward.3} parent=0 // pred_check
    _
  $region15: #{discrete_graph_learning_forward.3} parent=0 // pred_check_branch
    %24 = sbr.rel (0) target = $region17
  $region16: #{discrete_graph_learning_forward.3} parent=0 // pred_region
    _
  $region17: #{discrete_graph_learning_forward.3} parent=0 // pred_fallthru
    _
  // Predicated region
  $region18: #{discrete_graph_learning_forward.3} parent=0 // pred_check
    _
  $region19: #{discrete_graph_learning_forward.3} parent=0 // pred_check_branch
    %26 = sbr.rel (0) target = $region21
  $region20: #{discrete_graph_learning_forward.3} parent=0 // pred_region
    _
  $region21: #{discrete_graph_learning_forward.3} parent=0 // pred_fallthru
    _
  // Predicated region
  $region22: #{discrete_graph_learning_forward.3} parent=0 // pred_check
    _
  $region23: #{discrete_graph_learning_forward.3} parent=0 // pred_check_branch
    %28 = sbr.rel (0) target = $region25
  $region24: #{discrete_graph_learning_forward.3} parent=0 // pred_region
    _
  $region25: #{discrete_graph_learning_forward.3} parent=0 // pred_fallthru
    _
  // Predicated region
  $region26: #{discrete_graph_learning_forward.3} parent=0 // pred_check
    _
  $region27: #{discrete_graph_learning_forward.3} parent=0 // pred_check_branch
    %30 = sbr.rel (0) target = $region29
  $region28: #{discrete_graph_learning_forward.3} parent=0 // pred_region
    _
  $region29: #{discrete_graph_learning_forward.3} parent=0 // pred_fallthru
    _
  // Predicated region
  $region30: #{discrete_graph_learning_forward.3} parent=0 // pred_check
    _
  $region31: #{discrete_graph_learning_forward.3} parent=0 // pred_check_branch
    %32 = sbr.rel (0) target = $region33
  $region32: #{discrete_graph_learning_forward.3} parent=0 // pred_region
    _
  $region33: #{discrete_graph_learning_forward.3} parent=0 // pred_fallthru
    _
  // Predicated region
  $region34: #{discrete_graph_learning_forward.3} parent=0 // pred_check
    _
  $region35: #{discrete_graph_learning_forward.3} parent=0 // pred_check_branch
    %34 = sbr.rel (0) target = $region37
  $region36: #{discrete_graph_learning_forward.3} parent=0 // pred_region
    _
  $region37: #{discrete_graph_learning_forward.3} parent=0 // pred_fallthru
    _
  // Predicated region
  $region38: #{discrete_graph_learning_forward.3} parent=0 // pred_check
    _
  $region39: #{discrete_graph_learning_forward.3} parent=0 // pred_check_branch
    %36 = sbr.rel (0) target = $region41
  $region40: #{discrete_graph_learning_forward.3} parent=0 // pred_region
    _
  $region41: #{discrete_graph_learning_forward.3} parent=0 // pred_fallthru
    _
  %v38 = vld [vmem:[%s0] sm:$0xff]
  %v39 = vld [vmem:[%s0 + $0x8] sm:$0xff]
  %v40 = vpack.c.bf16 %v39, %v38
  %v41 = vld [vmem:[%s2] sm:$0xf]
  %v42 = vld [vmem:[%s2 + $0x4] sm:$0xf]
  %v43 = vld [vmem:[%s2 + $0x8] sm:$0xf]
  %v44 = vld [vmem:[%s2 + $0xc] sm:$0xf]
  %v45 = vld [vmem:[%s2 + $0x10] sm:$0xf]
  %v46 = vld [vmem:[%s2 + $0x14] sm:$0xf]
  %v47 = vld [vmem:[%s2 + $0x18] sm:$0xf]
  %v48 = vld [vmem:[%s2 + $0x1c] sm:$0xf]
  %v49 = vld [vmem:[%s2 + $0x20] sm:$0xf]
  %v50 = vld [vmem:[%s2 + $0x24] sm:$0xf]
  %v51 = vld [vmem:[%s2 + $0x28] sm:$0xf]
  %v52 = vld [vmem:[%s2 + $0x2c] sm:$0xf]
  %v53 = vld [vmem:[%s3] sm:$0x1]
  %v55 = vlaneseq
  %v56 = vshrl.u32 %v55, 7
  %v57 = vsub.s32 0, %v56
  %v58 = vrot.slane %v53, %v57
  %v72 = vunpack.c.l.b16 %v41
  %v73 = vunpack.c.l.b16 %v42
  %v74 = vunpack.c.l.b16 %v43
  %v75 = vunpack.c.l.b16 %v44
  %v76 = vunpack.c.l.b16 %v45
  %v77 = vunpack.c.l.b16 %v46
  %v78 = vunpack.c.l.b16 %v47
  %v79 = vunpack.c.l.b16 %v48
  %v80 = vunpack.c.l.b16 %v49
  %v81 = vunpack.c.l.b16 %v50
  %v82 = vunpack.c.l.b16 %v51
  %v83 = vunpack.c.l.b16 %v52
  %v84 = vpack.c.b16 %v73, %v72
  %v85 = vpack.c.b16 %v75, %v74
  %v86 = vpack.c.b16 %v77, %v76
  %v87 = vpack.c.b16 %v79, %v78
  %v88 = vpack.c.b16 %v81, %v80
  %v89 = vpack.c.b16 %v83, %v82
  %vm96 = vcmask 785408
  %v98 = vsel %vm96, %v40, 0
  %100 = vmatprep.subr.bf16.mxu0 0
  %101 = vmatpush1.bf16.msra.mxu0 %v84
  %102 = vmatprep.subr.bf16.mxu0 0
  %103 = vmatpush1.bf16.msra.mxu0 %v85
  %104 = vmatprep.subr.bf16.mxu0 0
  %105 = vmatpush1.bf16.msra.mxu0 %v86
  %106 = vmatprep.subr.bf16.mxu0 0
  %107 = vmatpush1.bf16.msra.mxu0 %v87
  %108 = vmatprep.subr.bf16.mxu0 0
  %109 = vmatpush1.bf16.msra.mxu0 %v88
  %110 = vmatprep.subr.bf16.mxu0 0
  %111 = vmatpush1.bf16.msra.mxu0 %v89
  %112 = vmatprep.subr.bf16.mxu0 0
  %113 = vmatpush1.bf16.msra.mxu0 0
  %114 = vmatprep.subr.bf16.mxu0 0
  %115 = vmatpush1.bf16.msra.mxu0 0
  %116 = vmatprep.subr.bf16.mxu0 0
  %117 = vmatpush1.bf16.msra.mxu0 0
  %118 = vmatprep.subr.bf16.mxu0 0
  %119 = vmatpush1.bf16.msra.mxu0 0
  %120 = vmatprep.subr.bf16.mxu0 0
  %121 = vmatpush1.bf16.msra.mxu0 0
  %122 = vmatprep.subr.bf16.mxu0 0
  %123 = vmatpush1.bf16.msra.mxu0 0
  %124 = vmatprep.subr.bf16.mxu0 0
  %125 = vmatpush1.bf16.msra.mxu0 0
  %126 = vmatprep.subr.bf16.mxu0 0
  %127 = vmatpush1.bf16.msra.mxu0 0
  %128 = vmatprep.subr.bf16.mxu0 0
  %129 = vmatpush1.bf16.msra.mxu0 0
  %130 = vmatprep.subr.bf16.mxu0 0
  %131 = vmatpush1.bf16.msra.mxu0 0
  %132 = vmatprep.mubr.bf16.mxu0 0
  %133 = vmatmul.mubr.bf16.gmra.mrb[0].mxu0 %v98
  %v134 = vpop.f32.mrb[0].mxu0
  %v135 = vadd.f32 %v58, %v134
  %v136 = vpop.f32.mrb[0].mxu0
  %v137 = vpop.f32.mrb[0].mxu0
  %v138 = vadd.f32 %v58, %v137
  %v139 = vpop.f32.mrb[0].mxu0
  %140 = vdwg.mxu0
  %v141 = vmax.f32 %v135, 0.0
  %v142 = vmax.f32 %v138, 0.0
  %v143 = vld [vmem:[%s1] sm:$0xff]
  %v144 = vadd.f32 %v141, %v143
  %v145 = vadd.f32 %v142, %v143
  %v146 = vpack.c.bf16 %v145, %v144
  %v147 = vld [vmem:[%s4] sm:$0xf]
  %v148 = vld [vmem:[%s4 + $0x4] sm:$0xf]
  %v149 = vld [vmem:[%s4 + $0x8] sm:$0xf]
  %v150 = vld [vmem:[%s4 + $0xc] sm:$0xf]
  %v151 = vld [vmem:[%s4 + $0x10] sm:$0xf]
  %v152 = vld [vmem:[%s4 + $0x14] sm:$0xf]
  %v153 = vld [vmem:[%s4 + $0x18] sm:$0xf]
  %v154 = vld [vmem:[%s4 + $0x1c] sm:$0xf]
  %v155 = vld [vmem:[%s4 + $0x20] sm:$0xf]
  %v156 = vld [vmem:[%s4 + $0x24] sm:$0xf]
  %v157 = vld [vmem:[%s4 + $0x28] sm:$0xf]
  %v158 = vld [vmem:[%s4 + $0x2c] sm:$0xf]
  %v159 = vld [vmem:[%s4 + $0x30] sm:$0xf]
  %v160 = vld [vmem:[%s4 + $0x34] sm:$0xf]
  %v161 = vld [vmem:[%s4 + $0x38] sm:$0xf]
  %v162 = vld [vmem:[%s4 + $0x3c] sm:$0xf]
  %v163 = vld [vmem:[%s6] sm:$0x1]
  %v165 = vlaneseq
  %v166 = vshrl.u32 %v165, 7
  %v167 = vsub.s32 0, %v166
  %v168 = vrot.slane %v163, %v167
  %v186 = vunpack.c.l.b16 %v147
  %v187 = vunpack.c.l.b16 %v148
  %v188 = vunpack.c.l.b16 %v149
  %v189 = vunpack.c.l.b16 %v150
  %v190 = vunpack.c.l.b16 %v151
  %v191 = vunpack.c.l.b16 %v152
  %v192 = vunpack.c.l.b16 %v153
  %v193 = vunpack.c.l.b16 %v154
  %v194 = vunpack.c.l.b16 %v155
  %v195 = vunpack.c.l.b16 %v156
  %v196 = vunpack.c.l.b16 %v157
  %v197 = vunpack.c.l.b16 %v158
  %v198 = vunpack.c.l.b16 %v159
  %v199 = vunpack.c.l.b16 %v160
  %v200 = vunpack.c.l.b16 %v161
  %v201 = vunpack.c.l.b16 %v162
  %v202 = vpack.c.b16 %v187, %v186
  %v203 = vpack.c.b16 %v189, %v188
  %v204 = vpack.c.b16 %v191, %v190
  %v205 = vpack.c.b16 %v193, %v192
  %v206 = vpack.c.b16 %v195, %v194
  %v207 = vpack.c.b16 %v197, %v196
  %v208 = vpack.c.b16 %v199, %v198
  %v209 = vpack.c.b16 %v201, %v200
  %218 = vmatprep.subr.bf16.mxu0 0
  %219 = vmatpush1.bf16.msra.mxu0 %v202
  %220 = vmatprep.subr.bf16.mxu0 0
  %221 = vmatpush1.bf16.msra.mxu0 %v203
  %222 = vmatprep.subr.bf16.mxu0 0
  %223 = vmatpush1.bf16.msra.mxu0 %v204
  %224 = vmatprep.subr.bf16.mxu0 0
  %225 = vmatpush1.bf16.msra.mxu0 %v205
  %226 = vmatprep.subr.bf16.mxu0 0
  %227 = vmatpush1.bf16.msra.mxu0 %v206
  %228 = vmatprep.subr.bf16.mxu0 0
  %229 = vmatpush1.bf16.msra.mxu0 %v207
  %230 = vmatprep.subr.bf16.mxu0 0
  %231 = vmatpush1.bf16.msra.mxu0 %v208
  %232 = vmatprep.subr.bf16.mxu0 0
  %233 = vmatpush1.bf16.msra.mxu0 %v209
  %234 = vmatprep.subr.bf16.mxu0 0
  %235 = vmatpush1.bf16.msra.mxu0 0
  %236 = vmatprep.subr.bf16.mxu0 0
  %237 = vmatpush1.bf16.msra.mxu0 0
  %238 = vmatprep.subr.bf16.mxu0 0
  %239 = vmatpush1.bf16.msra.mxu0 0
  %240 = vmatprep.subr.bf16.mxu0 0
  %241 = vmatpush1.bf16.msra.mxu0 0
  %242 = vmatprep.subr.bf16.mxu0 0
  %243 = vmatpush1.bf16.msra.mxu0 0
  %244 = vmatprep.subr.bf16.mxu0 0
  %245 = vmatpush1.bf16.msra.mxu0 0
  %246 = vmatprep.subr.bf16.mxu0 0
  %247 = vmatpush1.bf16.msra.mxu0 0
  %248 = vmatprep.subr.bf16.mxu0 0
  %249 = vmatpush1.bf16.msra.mxu0 0
  %250 = vmatprep.mubr.bf16.mxu0 0
  %251 = vmatmul.mubr.bf16.gmra.mrb[0].mxu0 %v146
  %v252 = vpop.f32.mrb[0].mxu0
  %v253 = vadd.f32 %v168, %v252
  %v254 = vpop.f32.mrb[0].mxu0
  %v255 = vpop.f32.mrb[0].mxu0
  %v256 = vadd.f32 %v168, %v255
  %v257 = vpop.f32.mrb[0].mxu0
  %258 = vdwg.mxu0
  %v259 = vld [vmem:[%s5] sm:$0xf]
  %v260 = vld [vmem:[%s5 + $0x4] sm:$0xf]
  %v261 = vld [vmem:[%s5 + $0x8] sm:$0xf]
  %v262 = vld [vmem:[%s5 + $0xc] sm:$0xf]
  %v263 = vld [vmem:[%s5 + $0x10] sm:$0xf]
  %v264 = vld [vmem:[%s5 + $0x14] sm:$0xf]
  %v265 = vld [vmem:[%s5 + $0x18] sm:$0xf]
  %v266 = vld [vmem:[%s5 + $0x1c] sm:$0xf]
  %v267 = vld [vmem:[%s5 + $0x20] sm:$0xf]
  %v268 = vld [vmem:[%s5 + $0x24] sm:$0xf]
  %v269 = vld [vmem:[%s5 + $0x28] sm:$0xf]
  %v270 = vld [vmem:[%s5 + $0x2c] sm:$0xf]
  %v271 = vld [vmem:[%s5 + $0x30] sm:$0xf]
  %v272 = vld [vmem:[%s5 + $0x34] sm:$0xf]
  %v273 = vld [vmem:[%s5 + $0x38] sm:$0xf]
  %v274 = vld [vmem:[%s5 + $0x3c] sm:$0xf]
  %v291 = vunpack.c.l.b16 %v259
  %v292 = vunpack.c.l.b16 %v260
  %v293 = vunpack.c.l.b16 %v261
  %v294 = vunpack.c.l.b16 %v262
  %v295 = vunpack.c.l.b16 %v263
  %v296 = vunpack.c.l.b16 %v264
  %v297 = vunpack.c.l.b16 %v265
  %v298 = vunpack.c.l.b16 %v266
  %v299 = vunpack.c.l.b16 %v267
  %v300 = vunpack.c.l.b16 %v268
  %v301 = vunpack.c.l.b16 %v269
  %v302 = vunpack.c.l.b16 %v270
  %v303 = vunpack.c.l.b16 %v271
  %v304 = vunpack.c.l.b16 %v272
  %v305 = vunpack.c.l.b16 %v273
  %v306 = vunpack.c.l.b16 %v274
  %v307 = vpack.c.b16 %v292, %v291
  %v308 = vpack.c.b16 %v294, %v293
  %v309 = vpack.c.b16 %v296, %v295
  %v310 = vpack.c.b16 %v298, %v297
  %v311 = vpack.c.b16 %v300, %v299
  %v312 = vpack.c.b16 %v302, %v301
  %v313 = vpack.c.b16 %v304, %v303
  %v314 = vpack.c.b16 %v306, %v305
  %323 = vmatprep.subr.bf16.mxu0 0
  %324 = vmatpush1.bf16.msra.mxu0 %v307
  %325 = vmatprep.subr.bf16.mxu0 0
  %326 = vmatpush1.bf16.msra.mxu0 %v308
  %327 = vmatprep.subr.bf16.mxu0 0
  %328 = vmatpush1.bf16.msra.mxu0 %v309
  %329 = vmatprep.subr.bf16.mxu0 0
  %330 = vmatpush1.bf16.msra.mxu0 %v310
  %331 = vmatprep.subr.bf16.mxu0 0
  %332 = vmatpush1.bf16.msra.mxu0 %v311
  %333 = vmatprep.subr.bf16.mxu0 0
  %334 = vmatpush1.bf16.msra.mxu0 %v312
  %335 = vmatprep.subr.bf16.mxu0 0
  %336 = vmatpush1.bf16.msra.mxu0 %v313
  %337 = vmatprep.subr.bf16.mxu0 0
  %338 = vmatpush1.bf16.msra.mxu0 %v314
  %339 = vmatprep.subr.bf16.mxu0 0
  %340 = vmatpush1.bf16.msra.mxu0 0
  %341 = vmatprep.subr.bf16.mxu0 0
  %342 = vmatpush1.bf16.msra.mxu0 0
  %343 = vmatprep.subr.bf16.mxu0 0
  %344 = vmatpush1.bf16.msra.mxu0 0
  %345 = vmatprep.subr.bf16.mxu0 0
  %346 = vmatpush1.bf16.msra.mxu0 0
  %347 = vmatprep.subr.bf16.mxu0 0
  %348 = vmatpush1.bf16.msra.mxu0 0
  %349 = vmatprep.subr.bf16.mxu0 0
  %350 = vmatpush1.bf16.msra.mxu0 0
  %351 = vmatprep.subr.bf16.mxu0 0
  %352 = vmatpush1.bf16.msra.mxu0 0
  %353 = vmatprep.subr.bf16.mxu0 0
  %354 = vmatpush1.bf16.msra.mxu0 0
  %355 = vmatprep.mubr.bf16.mxu0 0
  %356 = vmatmul.mubr.bf16.gmra.mrb[0].mxu0 %v146
  %v357 = vpop.f32.mrb[0].mxu0
  %v358 = vadd.f32 0.0, %v357
  %v359 = vpop.f32.mrb[0].mxu0
  %v360 = vpop.f32.mrb[0].mxu0
  %v361 = vadd.f32 0.0, %v360
  %v362 = vpop.f32.mrb[0].mxu0
  %363 = vdwg.mxu0
  %v365 = vcombine.high %v358, %v358
  %v367 = vunpack.c.l.s4 1966171168
  %v368 = vunpack.c.0.s8 %v367
  %v369 = vlaneseq
  %v370 = vshrl.u32 %v369, 7
  %v371 = vsub.s32 %v368, %v370
  %v372 = vrot.slane %v358, %v371
  %v374 = vunpack.c.l.s4 1966171168
  %v375 = vunpack.c.0.s8 %v374
  %v376 = vlaneseq
  %v377 = vshrl.u32 %v376, 7
  %v378 = vsub.s32 %v375, %v377
  %v379 = vrot.slane %v365, %v378
  %v380 = vcombine.high %v372, %v372
  %v381 = vcombine.high %v379, %v379
  %v383 = vunpack.c.l.s4 1966171168
  %v384 = vunpack.c.0.s8 %v383
  %v385 = vlaneseq
  %v386 = vshrl.u32 %v385, 7
  %v387 = vsub.s32 %v384, %v386
  %v388 = vrot.slane %v372, %v387
  %v390 = vunpack.c.l.s4 1966171168
  %v391 = vunpack.c.0.s8 %v390
  %v392 = vlaneseq
  %v393 = vshrl.u32 %v392, 7
  %v394 = vsub.s32 %v391, %v393
  %v395 = vrot.slane %v379, %v394
  %v397 = vunpack.c.l.s4 1966171168
  %v398 = vunpack.c.0.s8 %v397
  %v399 = vlaneseq
  %v400 = vshrl.u32 %v399, 7
  %v401 = vsub.s32 %v398, %v400
  %v402 = vrot.slane %v380, %v401
  %v404 = vunpack.c.l.s4 1966171168
  %v405 = vunpack.c.0.s8 %v404
  %v406 = vlaneseq
  %v407 = vshrl.u32 %v406, 7
  %v408 = vsub.s32 %v405, %v407
  %v409 = vrot.slane %v381, %v408
  %v410 = vcombine.high %v388, %v388
  %v411 = vcombine.high %v395, %v395
  %v412 = vcombine.high %v402, %v402
  %v413 = vcombine.high %v409, %v409
  %v414 = vlaneseq
  %v415 = vshrl.u32 %v414, 7
  %v416 = vsub.s32 0, %v415
  %v417 = vrot.slane %v388, %v416
  %v418 = vlaneseq
  %v419 = vshrl.u32 %v418, 7
  %v420 = vsub.s32 0, %v419
  %v421 = vrot.slane %v402, %v420
  %v422 = vlaneseq
  %v423 = vshrl.u32 %v422, 7
  %v424 = vsub.s32 0, %v423
  %v425 = vrot.slane %v410, %v424
  %v426 = vlaneseq
  %v427 = vshrl.u32 %v426, 7
  %v428 = vsub.s32 0, %v427
  %v429 = vrot.slane %v412, %v428
  %v430 = vlaneseq
  %v431 = vshrl.u32 %v430, 7
  %v432 = vsub.s32 0, %v431
  %v433 = vrot.slane %v395, %v432
  %v434 = vlaneseq
  %v435 = vshrl.u32 %v434, 7
  %v436 = vsub.s32 0, %v435
  %v437 = vrot.slane %v409, %v436
  %v438 = vlaneseq
  %v439 = vshrl.u32 %v438, 7
  %v440 = vsub.s32 0, %v439
  %v441 = vrot.slane %v411, %v440
  %v442 = vlaneseq
  %v443 = vshrl.u32 %v442, 7
  %v444 = vsub.s32 0, %v443
  %v445 = vrot.slane %v413, %v444
  %v454 = vadd.f32 %v417, %v253
  %v455 = vadd.f32 %v421, %v253
  %v456 = vadd.f32 %v425, %v253
  %v457 = vadd.f32 %v429, %v253
  %v458 = vadd.f32 %v433, %v253
  %v459 = vadd.f32 %v437, %v253
  %v460 = vadd.f32 %v441, %v253
  %v461 = vadd.f32 %v445, %v253
  %v462 = vmax.f32 %v454, 0.0
  %v463 = vmax.f32 %v455, 0.0
  %v464 = vmax.f32 %v456, 0.0
  %v465 = vmax.f32 %v457, 0.0
  %v466 = vmax.f32 %v458, 0.0
  %v467 = vmax.f32 %v459, 0.0
  %v468 = vmax.f32 %v460, 0.0
  %v469 = vmax.f32 %v461, 0.0
  %v470 = vmul.f32 %v38, %v38
  %v471 = vsel %vm96, %v470, 0.0
  %472 = vadd.xlane.f32.xlu0 %v471
  %v473 = vpop.xlane.xlu0 %472
  %v474 = vrsqrt.pop %v473
  %v475 = vmul.f32 %v473, %v474
  %vm476 = vcmp.eq.f32.partialorder %v473, inf
  %v477 = vsel %vm476, %v473, %v475
  %vm478 = vcmp.eq.f32.partialorder %v473, 0.0
  %v479 = vand.u32 %v473, 2147483648
  %v480 = vsel %vm478, %v479, %v477
  %v481 = vadd.f32 %v480, 1e-07
  %v482 = vrcp.pop %v481
  %v483 = vmul.f32 %v38, %v482
  %v485 = vsel %vm96, %v483, 0
  %487 = vmatprep.subr.mxu0 0.0
  %488 = vmatpush1.xpose.msra.mxu0 %v485
  %489 = vmatprep.subr.mxu0 0.0
  %490 = vmatpush1.xpose.msra.mxu0 0.0
  %491 = vmatprep.subr.mxu0 0.0
  %492 = vmatpush1.xpose.msra.mxu0 0.0
  %493 = vmatprep.subr.mxu0 0.0
  %494 = vmatpush1.xpose.msra.mxu0 0.0
  %495 = vmatprep.subr.mxu0 0.0
  %496 = vmatpush1.xpose.msra.mxu0 0.0
  %497 = vmatprep.subr.mxu0 0.0
  %498 = vmatpush1.xpose.msra.mxu0 0.0
  %499 = vmatprep.subr.mxu0 0.0
  %500 = vmatpush1.xpose.msra.mxu0 0.0
  %501 = vmatprep.subr.mxu0 0.0
  %502 = vmatpush1.xpose.msra.mxu0 0.0
  %503 = vmatprep.subr.mxu0 0.0
  %504 = vmatpush1.xpose.msra.mxu0 0.0
  %505 = vmatprep.subr.mxu0 0.0
  %506 = vmatpush1.xpose.msra.mxu0 0.0
  %507 = vmatprep.subr.mxu0 0.0
  %508 = vmatpush1.xpose.msra.mxu0 0.0
  %509 = vmatprep.subr.mxu0 0.0
  %510 = vmatpush1.xpose.msra.mxu0 0.0
  %511 = vmatprep.subr.mxu0 0.0
  %512 = vmatpush1.xpose.msra.mxu0 0.0
  %513 = vmatprep.subr.mxu0 0.0
  %514 = vmatpush1.xpose.msra.mxu0 0.0
  %515 = vmatprep.subr.mxu0 0.0
  %516 = vmatpush1.xpose.msra.mxu0 0.0
  %517 = vmatprep.subr.mxu0 0.0
  %518 = vmatpush1.xpose.msra.mxu0 0.0
  %519 = vmatprep.subr.mxu0 0.0
  %520 = vmatpush1.xpose.msra.mxu0 0.0
  %521 = vmatprep.subr.mxu0 0.0
  %522 = vmatpush1.xpose.msra.mxu0 0.0
  %523 = vmatprep.subr.mxu0 0.0
  %524 = vmatpush1.xpose.msra.mxu0 0.0
  %525 = vmatprep.subr.mxu0 0.0
  %526 = vmatpush1.xpose.msra.mxu0 0.0
  %527 = vmatprep.subr.mxu0 0.0
  %528 = vmatpush1.xpose.msra.mxu0 0.0
  %529 = vmatprep.subr.mxu0 0.0
  %530 = vmatpush1.xpose.msra.mxu0 0.0
  %531 = vmatprep.subr.mxu0 0.0
  %532 = vmatpush1.xpose.msra.mxu0 0.0
  %533 = vmatprep.subr.mxu0 0.0
  %534 = vmatpush1.xpose.msra.mxu0 0.0
  %535 = vmatprep.subr.mxu0 0.0
  %536 = vmatpush1.xpose.msra.mxu0 0.0
  %537 = vmatprep.subr.mxu0 0.0
  %538 = vmatpush1.xpose.msra.mxu0 0.0
  %539 = vmatprep.subr.mxu0 0.0
  %540 = vmatpush1.xpose.msra.mxu0 0.0
  %541 = vmatprep.subr.mxu0 0.0
  %542 = vmatpush1.xpose.msra.mxu0 0.0
  %543 = vmatprep.subr.mxu0 0.0
  %544 = vmatpush1.xpose.msra.mxu0 0.0
  %545 = vmatprep.subr.mxu0 0.0
  %546 = vmatpush1.xpose.msra.mxu0 0.0
  %547 = vmatprep.subr.mxu0 0.0
  %548 = vmatpush1.xpose.msra.mxu0 0.0
  %549 = vmatprep.subr.mxu0 0.0
  %550 = vmatpush1.xpose.msra.mxu0 0.0
  %551 = vmatprep.mubr.f32.mxu0 0.0
  %552 = vmatmul.mubr.f32.gmra.mrb[0].mxu0 %v485
  %v553 = vpop.f32.mrb[0].mxu0
  %v554 = vadd.f32 0.0, %v553
  %v555 = vpop.f32.mrb[0].mxu0
  %556 = vdwg.mxu0
  %vm557 = vcmask 64512
  %558 = vst.msk [vmem:[%s11] sm:$0xff] %vm557, %v554
  %v560 = vcombine.high %v361, %v361
  %v562 = vunpack.c.l.s4 1966171168
  %v563 = vunpack.c.0.s8 %v562
  %v564 = vlaneseq
  %v565 = vshrl.u32 %v564, 7
  %v566 = vsub.s32 %v563, %v565
  %v567 = vrot.slane %v361, %v566
  %v569 = vunpack.c.l.s4 1966171168
  %v570 = vunpack.c.0.s8 %v569
  %v571 = vlaneseq
  %v572 = vshrl.u32 %v571, 7
  %v573 = vsub.s32 %v570, %v572
  %v574 = vrot.slane %v560, %v573
  %v575 = vcombine.high %v567, %v567
  %v576 = vcombine.high %v574, %v574
  %v578 = vunpack.c.l.s4 1966171168
  %v579 = vunpack.c.0.s8 %v578
  %v580 = vlaneseq
  %v581 = vshrl.u32 %v580, 7
  %v582 = vsub.s32 %v579, %v581
  %v583 = vrot.slane %v567, %v582
  %v585 = vunpack.c.l.s4 1966171168
  %v586 = vunpack.c.0.s8 %v585
  %v587 = vlaneseq
  %v588 = vshrl.u32 %v587, 7
  %v589 = vsub.s32 %v586, %v588
  %v590 = vrot.slane %v574, %v589
  %v592 = vunpack.c.l.s4 1966171168
  %v593 = vunpack.c.0.s8 %v592
  %v594 = vlaneseq
  %v595 = vshrl.u32 %v594, 7
  %v596 = vsub.s32 %v593, %v595
  %v597 = vrot.slane %v575, %v596
  %v599 = vunpack.c.l.s4 1966171168
  %v600 = vunpack.c.0.s8 %v599
  %v601 = vlaneseq
  %v602 = vshrl.u32 %v601, 7
  %v603 = vsub.s32 %v600, %v602
  %v604 = vrot.slane %v576, %v603
  %v605 = vcombine.high %v583, %v583
  %v606 = vcombine.high %v590, %v590
  %v607 = vcombine.high %v597, %v597
  %v608 = vcombine.high %v604, %v604
  %v609 = vlaneseq
  %v610 = vshrl.u32 %v609, 7
  %v611 = vsub.s32 0, %v610
  %v612 = vrot.slane %v583, %v611
  %v613 = vlaneseq
  %v614 = vshrl.u32 %v613, 7
  %v615 = vsub.s32 0, %v614
  %v616 = vrot.slane %v597, %v615
  %v617 = vlaneseq
  %v618 = vshrl.u32 %v617, 7
  %v619 = vsub.s32 0, %v618
  %v620 = vrot.slane %v605, %v619
  %v621 = vlaneseq
  %v622 = vshrl.u32 %v621, 7
  %v623 = vsub.s32 0, %v622
  %v624 = vrot.slane %v607, %v623
  %v625 = vlaneseq
  %v626 = vshrl.u32 %v625, 7
  %v627 = vsub.s32 0, %v626
  %v628 = vrot.slane %v590, %v627
  %v629 = vlaneseq
  %v630 = vshrl.u32 %v629, 7
  %v631 = vsub.s32 0, %v630
  %v632 = vrot.slane %v604, %v631
  %v633 = vlaneseq
  %v634 = vshrl.u32 %v633, 7
  %v635 = vsub.s32 0, %v634
  %v636 = vrot.slane %v606, %v635
  %v637 = vlaneseq
  %v638 = vshrl.u32 %v637, 7
  %v639 = vsub.s32 0, %v638
  %v640 = vrot.slane %v608, %v639
  %v649 = vadd.f32 %v612, %v256
  %v650 = vadd.f32 %v616, %v256
  %v651 = vadd.f32 %v620, %v256
  %v652 = vadd.f32 %v624, %v256
  %v653 = vadd.f32 %v628, %v256
  %v654 = vadd.f32 %v632, %v256
  %v655 = vadd.f32 %v636, %v256
  %v656 = vadd.f32 %v640, %v256
  %v657 = vmax.f32 %v649, 0.0
  %v658 = vmax.f32 %v650, 0.0
  %v659 = vmax.f32 %v651, 0.0
  %v660 = vmax.f32 %v652, 0.0
  %v661 = vmax.f32 %v653, 0.0
  %v662 = vmax.f32 %v654, 0.0
  %v663 = vmax.f32 %v655, 0.0
  %v664 = vmax.f32 %v656, 0.0
  %v665 = vmul.f32 %v39, %v39
  %v666 = vsel %vm96, %v665, 0.0
  %667 = vadd.xlane.f32.xlu0 %v666
  %v668 = vpop.xlane.xlu0 %667
  %v669 = vrsqrt.pop %v668
  %v670 = vmul.f32 %v668, %v669
  %vm671 = vcmp.eq.f32.partialorder %v668, inf
  %v672 = vsel %vm671, %v668, %v670
  %vm673 = vcmp.eq.f32.partialorder %v668, 0.0
  %v674 = vand.u32 %v668, 2147483648
  %v675 = vsel %vm673, %v674, %v672
  %v676 = vadd.f32 %v675, 1e-07
  %v677 = vrcp.pop %v676
  %v678 = vmul.f32 %v39, %v677
  %v680 = vsel %vm96, %v678, 0
  %682 = vmatprep.subr.mxu0 0.0
  %683 = vmatpush1.xpose.msra.mxu0 %v680
  %684 = vmatprep.subr.mxu0 0.0
  %685 = vmatpush1.xpose.msra.mxu0 0.0
  %686 = vmatprep.subr.mxu0 0.0
  %687 = vmatpush1.xpose.msra.mxu0 0.0
  %688 = vmatprep.subr.mxu0 0.0
  %689 = vmatpush1.xpose.msra.mxu0 0.0
  %690 = vmatprep.subr.mxu0 0.0
  %691 = vmatpush1.xpose.msra.mxu0 0.0
  %692 = vmatprep.subr.mxu0 0.0
  %693 = vmatpush1.xpose.msra.mxu0 0.0
  %694 = vmatprep.subr.mxu0 0.0
  %695 = vmatpush1.xpose.msra.mxu0 0.0
  %696 = vmatprep.subr.mxu0 0.0
  %697 = vmatpush1.xpose.msra.mxu0 0.0
  %698 = vmatprep.subr.mxu0 0.0
  %699 = vmatpush1.xpose.msra.mxu0 0.0
  %700 = vmatprep.subr.mxu0 0.0
  %701 = vmatpush1.xpose.msra.mxu0 0.0
  %702 = vmatprep.subr.mxu0 0.0
  %703 = vmatpush1.xpose.msra.mxu0 0.0
  %704 = vmatprep.subr.mxu0 0.0
  %705 = vmatpush1.xpose.msra.mxu0 0.0
  %706 = vmatprep.subr.mxu0 0.0
  %707 = vmatpush1.xpose.msra.mxu0 0.0
  %708 = vmatprep.subr.mxu0 0.0
  %709 = vmatpush1.xpose.msra.mxu0 0.0
  %710 = vmatprep.subr.mxu0 0.0
  %711 = vmatpush1.xpose.msra.mxu0 0.0
  %712 = vmatprep.subr.mxu0 0.0
  %713 = vmatpush1.xpose.msra.mxu0 0.0
  %714 = vmatprep.subr.mxu0 0.0
  %715 = vmatpush1.xpose.msra.mxu0 0.0
  %716 = vmatprep.subr.mxu0 0.0
  %717 = vmatpush1.xpose.msra.mxu0 0.0
  %718 = vmatprep.subr.mxu0 0.0
  %719 = vmatpush1.xpose.msra.mxu0 0.0
  %720 = vmatprep.subr.mxu0 0.0
  %721 = vmatpush1.xpose.msra.mxu0 0.0
  %722 = vmatprep.subr.mxu0 0.0
  %723 = vmatpush1.xpose.msra.mxu0 0.0
  %724 = vmatprep.subr.mxu0 0.0
  %725 = vmatpush1.xpose.msra.mxu0 0.0
  %726 = vmatprep.subr.mxu0 0.0
  %727 = vmatpush1.xpose.msra.mxu0 0.0
  %728 = vmatprep.subr.mxu0 0.0
  %729 = vmatpush1.xpose.msra.mxu0 0.0
  %730 = vmatprep.subr.mxu0 0.0
  %731 = vmatpush1.xpose.msra.mxu0 0.0
  %732 = vmatprep.subr.mxu0 0.0
  %733 = vmatpush1.xpose.msra.mxu0 0.0
  %734 = vmatprep.subr.mxu0 0.0
  %735 = vmatpush1.xpose.msra.mxu0 0.0
  %736 = vmatprep.subr.mxu0 0.0
  %737 = vmatpush1.xpose.msra.mxu0 0.0
  %738 = vmatprep.subr.mxu0 0.0
  %739 = vmatpush1.xpose.msra.mxu0 0.0
  %740 = vmatprep.subr.mxu0 0.0
  %741 = vmatpush1.xpose.msra.mxu0 0.0
  %742 = vmatprep.subr.mxu0 0.0
  %743 = vmatpush1.xpose.msra.mxu0 0.0
  %744 = vmatprep.subr.mxu0 0.0
  %745 = vmatpush1.xpose.msra.mxu0 0.0
  %746 = vmatprep.mubr.f32.mxu0 0.0
  %747 = vmatmul.mubr.f32.gmra.mrb[0].mxu0 %v680
  %v748 = vpop.f32.mrb[0].mxu0
  %v749 = vadd.f32 0.0, %v748
  %v750 = vpop.f32.mrb[0].mxu0
  %751 = vdwg.mxu0
  %s752 = scalar_lea.vmem %s11, 8
  %753 = vst.msk [vmem:[%s752] sm:$0xff] %vm557, %v749
  %v754 = vpack.c.bf16 %v463, %v462
  %v755 = vpack.c.bf16 %v465, %v464
  %v756 = vpack.c.bf16 %v467, %v466
  %v757 = vpack.c.bf16 %v469, %v468
  %v758 = vpack.c.bf16 %v658, %v657
  %v759 = vpack.c.bf16 %v660, %v659
  %v760 = vpack.c.bf16 %v662, %v661
  %v761 = vpack.c.bf16 %v664, %v663
  %v762 = vld [vmem:[%s7] sm:$0xf]
  %v763 = vld [vmem:[%s7 + $0x4] sm:$0xf]
  %v764 = vld [vmem:[%s7 + $0x8] sm:$0xf]
  %v765 = vld [vmem:[%s7 + $0xc] sm:$0xf]
  %v766 = vld [vmem:[%s7 + $0x10] sm:$0xf]
  %v767 = vld [vmem:[%s7 + $0x14] sm:$0xf]
  %v768 = vld [vmem:[%s7 + $0x18] sm:$0xf]
  %v769 = vld [vmem:[%s7 + $0x1c] sm:$0xf]
  %v770 = vld [vmem:[%s7 + $0x20] sm:$0xf]
  %v771 = vld [vmem:[%s7 + $0x24] sm:$0xf]
  %v772 = vld [vmem:[%s7 + $0x28] sm:$0xf]
  %v773 = vld [vmem:[%s7 + $0x2c] sm:$0xf]
  %v774 = vld [vmem:[%s7 + $0x30] sm:$0xf]
  %v775 = vld [vmem:[%s7 + $0x34] sm:$0xf]
  %v776 = vld [vmem:[%s7 + $0x38] sm:$0xf]
  %v777 = vld [vmem:[%s7 + $0x3c] sm:$0xf]
  %v778 = vld [vmem:[%s8] sm:$0x1]
  %v780 = vlaneseq
  %v781 = vshrl.u32 %v780, 7
  %v782 = vsub.s32 0, %v781
  %v783 = vrot.slane %v778, %v782
  %v801 = vunpack.c.l.b16 %v762
  %v802 = vunpack.c.l.b16 %v763
  %v803 = vunpack.c.l.b16 %v764
  %v804 = vunpack.c.l.b16 %v765
  %v805 = vunpack.c.l.b16 %v766
  %v806 = vunpack.c.l.b16 %v767
  %v807 = vunpack.c.l.b16 %v768
  %v808 = vunpack.c.l.b16 %v769
  %v809 = vunpack.c.l.b16 %v770
  %v810 = vunpack.c.l.b16 %v771
  %v811 = vunpack.c.l.b16 %v772
  %v812 = vunpack.c.l.b16 %v773
  %v813 = vunpack.c.l.b16 %v774
  %v814 = vunpack.c.l.b16 %v775
  %v815 = vunpack.c.l.b16 %v776
  %v816 = vunpack.c.l.b16 %v777
  %v817 = vpack.c.b16 %v802, %v801
  %v818 = vpack.c.b16 %v804, %v803
  %v819 = vpack.c.b16 %v806, %v805
  %v820 = vpack.c.b16 %v808, %v807
  %v821 = vpack.c.b16 %v810, %v809
  %v822 = vpack.c.b16 %v812, %v811
  %v823 = vpack.c.b16 %v814, %v813
  %v824 = vpack.c.b16 %v816, %v815
  %833 = vmatprep.subr.bf16.mxu0 0
  %834 = vmatpush1.bf16.msra.mxu0 %v817
  %835 = vmatprep.subr.bf16.mxu0 0
  %836 = vmatpush1.bf16.msra.mxu0 %v818
  %837 = vmatprep.subr.bf16.mxu0 0
  %838 = vmatpush1.bf16.msra.mxu0 %v819
  %839 = vmatprep.subr.bf16.mxu0 0
  %840 = vmatpush1.bf16.msra.mxu0 %v820
  %841 = vmatprep.subr.bf16.mxu0 0
  %842 = vmatpush1.bf16.msra.mxu0 %v821
  %843 = vmatprep.subr.bf16.mxu0 0
  %844 = vmatpush1.bf16.msra.mxu0 %v822
  %845 = vmatprep.subr.bf16.mxu0 0
  %846 = vmatpush1.bf16.msra.mxu0 %v823
  %847 = vmatprep.subr.bf16.mxu0 0
  %848 = vmatpush1.bf16.msra.mxu0 %v824
  %849 = vmatprep.subr.bf16.mxu0 0
  %850 = vmatpush1.bf16.msra.mxu0 0
  %851 = vmatprep.subr.bf16.mxu0 0
  %852 = vmatpush1.bf16.msra.mxu0 0
  %853 = vmatprep.subr.bf16.mxu0 0
  %854 = vmatpush1.bf16.msra.mxu0 0
  %855 = vmatprep.subr.bf16.mxu0 0
  %856 = vmatpush1.bf16.msra.mxu0 0
  %857 = vmatprep.subr.bf16.mxu0 0
  %858 = vmatpush1.bf16.msra.mxu0 0
  %859 = vmatprep.subr.bf16.mxu0 0
  %860 = vmatpush1.bf16.msra.mxu0 0
  %861 = vmatprep.subr.bf16.mxu0 0
  %862 = vmatpush1.bf16.msra.mxu0 0
  %863 = vmatprep.subr.bf16.mxu0 0
  %864 = vmatpush1.bf16.msra.mxu0 0
  %865 = vmatprep.mubr.bf16.mxu0 0
  %866 = vmatmul.mubr.bf16.gmra.mrb[0].mxu0 %v754
  %v867 = vpop.f32.mrb[0].mxu0
  %v868 = vadd.f32 %v783, %v867
  %v869 = vpop.f32.mrb[0].mxu0
  %v870 = vpop.f32.mrb[0].mxu0
  %v871 = vadd.f32 %v783, %v870
  %v872 = vpop.f32.mrb[0].mxu0
  %873 = vmatprep.mubr.bf16.mxu0 0
  %874 = vmatmul.mubr.bf16.gmra.mrb[0].mxu0 %v755
  %v875 = vpop.f32.mrb[0].mxu0
  %v876 = vadd.f32 %v783, %v875
  %v877 = vpop.f32.mrb[0].mxu0
  %v878 = vpop.f32.mrb[0].mxu0
  %v879 = vadd.f32 %v783, %v878
  %v880 = vpop.f32.mrb[0].mxu0
  %881 = vmatprep.mubr.bf16.mxu0 0
  %882 = vmatmul.mubr.bf16.gmra.mrb[0].mxu0 %v756
  %v883 = vpop.f32.mrb[0].mxu0
  %v884 = vadd.f32 %v783, %v883
  %v885 = vpop.f32.mrb[0].mxu0
  %v886 = vpop.f32.mrb[0].mxu0
  %v887 = vadd.f32 %v783, %v886
  %v888 = vpop.f32.mrb[0].mxu0
  %889 = vmatprep.mubr.bf16.mxu0 0
  %890 = vmatmul.mubr.bf16.gmra.mrb[0].mxu0 %v757
  %v891 = vpop.f32.mrb[0].mxu0
  %v892 = vadd.f32 %v783, %v891
  %v893 = vpop.f32.mrb[0].mxu0
  %v894 = vpop.f32.mrb[0].mxu0
  %v895 = vadd.f32 %v783, %v894
  %v896 = vpop.f32.mrb[0].mxu0
  %897 = vmatprep.mubr.bf16.mxu0 0
  %898 = vmatmul.mubr.bf16.gmra.mrb[0].mxu0 %v758
  %v899 = vpop.f32.mrb[0].mxu0
  %v900 = vadd.f32 %v783, %v899
  %v901 = vpop.f32.mrb[0].mxu0
  %v902 = vpop.f32.mrb[0].mxu0
  %v903 = vadd.f32 %v783, %v902
  %v904 = vpop.f32.mrb[0].mxu0
  %905 = vmatprep.mubr.bf16.mxu0 0
  %906 = vmatmul.mubr.bf16.gmra.mrb[0].mxu0 %v759
  %v907 = vpop.f32.mrb[0].mxu0
  %v908 = vadd.f32 %v783, %v907
  %v909 = vpop.f32.mrb[0].mxu0
  %v910 = vpop.f32.mrb[0].mxu0
  %v911 = vadd.f32 %v783, %v910
  %v912 = vpop.f32.mrb[0].mxu0
  %913 = vmatprep.mubr.bf16.mxu0 0
  %914 = vmatmul.mubr.bf16.gmra.mrb[0].mxu0 %v760
  %v915 = vpop.f32.mrb[0].mxu0
  %v916 = vadd.f32 %v783, %v915
  %v917 = vpop.f32.mrb[0].mxu0
  %v918 = vpop.f32.mrb[0].mxu0
  %v919 = vadd.f32 %v783, %v918
  %v920 = vpop.f32.mrb[0].mxu0
  %921 = vmatprep.mubr.bf16.mxu0 0
  %922 = vmatmul.mubr.bf16.gmra.mrb[0].mxu0 %v761
  %v923 = vpop.f32.mrb[0].mxu0
  %v924 = vadd.f32 %v783, %v923
  %v925 = vpop.f32.mrb[0].mxu0
  %v926 = vpop.f32.mrb[0].mxu0
  %v927 = vadd.f32 %v783, %v926
  %v928 = vpop.f32.mrb[0].mxu0
  %929 = vdwg.mxu0
  %v930 = vld [vmem:[%s9] sm:$0xff]
  %v931 = vld [vmem:[%s9 + $0x8] sm:$0xff]
  %v932 = vld [vmem:[%s9 + $0x10] sm:$0xff]
  %v933 = vld [vmem:[%s9 + $0x18] sm:$0xff]
  %v934 = vld [vmem:[%s9 + $0x20] sm:$0xff]
  %v935 = vld [vmem:[%s9 + $0x28] sm:$0xff]
  %v936 = vld [vmem:[%s9 + $0x30] sm:$0xff]
  %v937 = vld [vmem:[%s9 + $0x38] sm:$0xff]
  %v938 = vld [vmem:[%s9 + $0x40] sm:$0xff]
  %v939 = vld [vmem:[%s9 + $0x48] sm:$0xff]
  %v940 = vld [vmem:[%s9 + $0x50] sm:$0xff]
  %v941 = vld [vmem:[%s9 + $0x58] sm:$0xff]
  %v942 = vld [vmem:[%s9 + $0x60] sm:$0xff]
  %v943 = vld [vmem:[%s9 + $0x68] sm:$0xff]
  %v944 = vld [vmem:[%s9 + $0x70] sm:$0xff]
  %v945 = vld [vmem:[%s9 + $0x78] sm:$0xff]
  %v946 = vadd.f32 %v930, 1e-10
  %v947 = vadd.f32 %v931, 1e-10
  %v948 = vadd.f32 %v932, 1e-10
  %v949 = vadd.f32 %v933, 1e-10
  %v950 = vadd.f32 %v934, 1e-10
  %v951 = vadd.f32 %v935, 1e-10
  %v952 = vadd.f32 %v936, 1e-10
  %v953 = vadd.f32 %v937, 1e-10
  %v954 = vadd.f32 %v938, 1e-10
  %v955 = vadd.f32 %v939, 1e-10
  %v956 = vadd.f32 %v940, 1e-10
  %v957 = vadd.f32 %v941, 1e-10
  %v958 = vadd.f32 %v942, 1e-10
  %v959 = vadd.f32 %v943, 1e-10
  %v960 = vadd.f32 %v944, 1e-10
  %v961 = vadd.f32 %v945, 1e-10
  %v962 = vlog2.pop %v946
  %v963 = vmul.f32 %v962, 0.6931472
  %v964 = vlog2.pop %v947
  %v965 = vmul.f32 %v964, 0.6931472
  %v966 = vlog2.pop %v948
  %v967 = vmul.f32 %v966, 0.6931472
  %v968 = vlog2.pop %v949
  %v969 = vmul.f32 %v968, 0.6931472
  %v970 = vlog2.pop %v950
  %v971 = vmul.f32 %v970, 0.6931472
  %v972 = vlog2.pop %v951
  %v973 = vmul.f32 %v972, 0.6931472
  %v974 = vlog2.pop %v952
  %v975 = vmul.f32 %v974, 0.6931472
  %v976 = vlog2.pop %v953
  %v977 = vmul.f32 %v976, 0.6931472
  %v978 = vlog2.pop %v954
  %v979 = vmul.f32 %v978, 0.6931472
  %v980 = vlog2.pop %v955
  %v981 = vmul.f32 %v980, 0.6931472
  %v982 = vlog2.pop %v956
  %v983 = vmul.f32 %v982, 0.6931472
  %v984 = vlog2.pop %v957
  %v985 = vmul.f32 %v984, 0.6931472
  %v986 = vlog2.pop %v958
  %v987 = vmul.f32 %v986, 0.6931472
  %v988 = vlog2.pop %v959
  %v989 = vmul.f32 %v988, 0.6931472
  %v990 = vlog2.pop %v960
  %v991 = vmul.f32 %v990, 0.6931472
  %v992 = vlog2.pop %v961
  %v993 = vmul.f32 %v992, 0.6931472
  %v994 = vsub.f32 0.0, %v963
  %v995 = vsub.f32 0.0, %v965
  %v996 = vsub.f32 0.0, %v967
  %v997 = vsub.f32 0.0, %v969
  %v998 = vsub.f32 0.0, %v971
  %v999 = vsub.f32 0.0, %v973
  %v1000 = vsub.f32 0.0, %v975
  %v1001 = vsub.f32 0.0, %v977
  %v1002 = vsub.f32 0.0, %v979
  %v1003 = vsub.f32 0.0, %v981
  %v1004 = vsub.f32 0.0, %v983
  %v1005 = vsub.f32 0.0, %v985
  %v1006 = vsub.f32 0.0, %v987
  %v1007 = vsub.f32 0.0, %v989
  %v1008 = vsub.f32 0.0, %v991
  %v1009 = vsub.f32 0.0, %v993
  %v1010 = vadd.f32 %v994, 1e-10
  %v1011 = vadd.f32 %v995, 1e-10
  %v1012 = vadd.f32 %v996, 1e-10
  %v1013 = vadd.f32 %v997, 1e-10
  %v1014 = vadd.f32 %v998, 1e-10
  %v1015 = vadd.f32 %v999, 1e-10
  %v1016 = vadd.f32 %v1000, 1e-10
  %v1017 = vadd.f32 %v1001, 1e-10
  %v1018 = vadd.f32 %v1002, 1e-10
  %v1019 = vadd.f32 %v1003, 1e-10
  %v1020 = vadd.f32 %v1004, 1e-10
  %v1021 = vadd.f32 %v1005, 1e-10
  %v1022 = vadd.f32 %v1006, 1e-10
  %v1023 = vadd.f32 %v1007, 1e-10
  %v1024 = vadd.f32 %v1008, 1e-10
  %v1025 = vadd.f32 %v1009, 1e-10
  %v1026 = vlog2.pop %v1010
  %v1027 = vmul.f32 %v1026, 0.6931472
  %v1028 = vlog2.pop %v1011
  %v1029 = vmul.f32 %v1028, 0.6931472
  %v1030 = vlog2.pop %v1012
  %v1031 = vmul.f32 %v1030, 0.6931472
  %v1032 = vlog2.pop %v1013
  %v1033 = vmul.f32 %v1032, 0.6931472
  %v1034 = vlog2.pop %v1014
  %v1035 = vmul.f32 %v1034, 0.6931472
  %v1036 = vlog2.pop %v1015
  %v1037 = vmul.f32 %v1036, 0.6931472
  %v1038 = vlog2.pop %v1016
  %v1039 = vmul.f32 %v1038, 0.6931472
  %v1040 = vlog2.pop %v1017
  %v1041 = vmul.f32 %v1040, 0.6931472
  %v1042 = vlog2.pop %v1018
  %v1043 = vmul.f32 %v1042, 0.6931472
  %v1044 = vlog2.pop %v1019
  %v1045 = vmul.f32 %v1044, 0.6931472
  %v1046 = vlog2.pop %v1020
  %v1047 = vmul.f32 %v1046, 0.6931472
  %v1048 = vlog2.pop %v1021
  %v1049 = vmul.f32 %v1048, 0.6931472
  %v1050 = vlog2.pop %v1022
  %v1051 = vmul.f32 %v1050, 0.6931472
  %v1052 = vlog2.pop %v1023
  %v1053 = vmul.f32 %v1052, 0.6931472
  %v1054 = vlog2.pop %v1024
  %v1055 = vmul.f32 %v1054, 0.6931472
  %v1056 = vlog2.pop %v1025
  %v1057 = vmul.f32 %v1056, 0.6931472
  %v1058 = vsub.f32 0.0, %v1027
  %v1059 = vsub.f32 0.0, %v1029
  %v1060 = vsub.f32 0.0, %v1031
  %v1061 = vsub.f32 0.0, %v1033
  %v1062 = vsub.f32 0.0, %v1035
  %v1063 = vsub.f32 0.0, %v1037
  %v1064 = vsub.f32 0.0, %v1039
  %v1065 = vsub.f32 0.0, %v1041
  %v1066 = vsub.f32 0.0, %v1043
  %v1067 = vsub.f32 0.0, %v1045
  %v1068 = vsub.f32 0.0, %v1047
  %v1069 = vsub.f32 0.0, %v1049
  %v1070 = vsub.f32 0.0, %v1051
  %v1071 = vsub.f32 0.0, %v1053
  %v1072 = vsub.f32 0.0, %v1055
  %v1073 = vsub.f32 0.0, %v1057
  %v1074 = vadd.f32 %v868, %v1058
  %v1075 = vadd.f32 %v871, %v1059
  %v1076 = vadd.f32 %v876, %v1060
  %v1077 = vadd.f32 %v879, %v1061
  %v1078 = vadd.f32 %v884, %v1062
  %v1079 = vadd.f32 %v887, %v1063
  %v1080 = vadd.f32 %v892, %v1064
  %v1081 = vadd.f32 %v895, %v1065
  %v1082 = vadd.f32 %v900, %v1066
  %v1083 = vadd.f32 %v903, %v1067
  %v1084 = vadd.f32 %v908, %v1068
  %v1085 = vadd.f32 %v911, %v1069
  %v1086 = vadd.f32 %v916, %v1070
  %v1087 = vadd.f32 %v919, %v1071
  %v1088 = vadd.f32 %v924, %v1072
  %v1089 = vadd.f32 %v927, %v1073
  %v1090 = vrcp.pop 0.5
  %v1091 = vmul.f32 %v1074, %v1090
  %v1092 = vmul.f32 %v1075, %v1090
  %v1093 = vmul.f32 %v1076, %v1090
  %v1094 = vmul.f32 %v1077, %v1090
  %v1095 = vmul.f32 %v1078, %v1090
  %v1096 = vmul.f32 %v1079, %v1090
  %v1097 = vmul.f32 %v1080, %v1090
  %v1098 = vmul.f32 %v1081, %v1090
  %v1099 = vmul.f32 %v1082, %v1090
  %v1100 = vmul.f32 %v1083, %v1090
  %v1101 = vmul.f32 %v1084, %v1090
  %v1102 = vmul.f32 %v1085, %v1090
  %v1103 = vmul.f32 %v1086, %v1090
  %v1104 = vmul.f32 %v1087, %v1090
  %v1105 = vmul.f32 %v1088, %v1090
  %v1106 = vmul.f32 %v1089, %v1090
  %1123 = vrot.lane.b32.xlu0 %v1091, 127
  %v1124 = vpop.permute.xlu0 %1123
  %1125 = vrot.lane.b32.xlu0 %v1092, 127
  %v1126 = vpop.permute.xlu0 %1125
  %1127 = vrot.lane.b32.xlu0 %v1093, 127
  %v1128 = vpop.permute.xlu0 %1127
  %1129 = vrot.lane.b32.xlu0 %v1094, 127
  %v1130 = vpop.permute.xlu0 %1129
  %1131 = vrot.lane.b32.xlu0 %v1095, 127
  %v1132 = vpop.permute.xlu0 %1131
  %1133 = vrot.lane.b32.xlu0 %v1096, 127
  %v1134 = vpop.permute.xlu0 %1133
  %1135 = vrot.lane.b32.xlu0 %v1097, 127
  %v1136 = vpop.permute.xlu0 %1135
  %1137 = vrot.lane.b32.xlu0 %v1098, 127
  %v1138 = vpop.permute.xlu0 %1137
  %1139 = vrot.lane.b32.xlu0 %v1099, 127
  %v1140 = vpop.permute.xlu0 %1139
  %1141 = vrot.lane.b32.xlu0 %v1100, 127
  %v1142 = vpop.permute.xlu0 %1141
  %1143 = vrot.lane.b32.xlu0 %v1101, 127
  %v1144 = vpop.permute.xlu0 %1143
  %1145 = vrot.lane.b32.xlu0 %v1102, 127
  %v1146 = vpop.permute.xlu0 %1145
  %1147 = vrot.lane.b32.xlu0 %v1103, 127
  %v1148 = vpop.permute.xlu0 %1147
  %1149 = vrot.lane.b32.xlu0 %v1104, 127
  %v1150 = vpop.permute.xlu0 %1149
  %1151 = vrot.lane.b32.xlu0 %v1105, 127
  %v1152 = vpop.permute.xlu0 %1151
  %1153 = vrot.lane.b32.xlu0 %v1106, 127
  %v1154 = vpop.permute.xlu0 %1153
  %vm1171 = vcmp.ge.f32.partialorder %v1091, %v1124
  %vm1172 = vcmp.ge.f32.partialorder %v1092, %v1126
  %vm1173 = vcmp.ge.f32.partialorder %v1093, %v1128
  %vm1174 = vcmp.ge.f32.partialorder %v1094, %v1130
  %vm1175 = vcmp.ge.f32.partialorder %v1095, %v1132
  %vm1176 = vcmp.ge.f32.partialorder %v1096, %v1134
  %vm1177 = vcmp.ge.f32.partialorder %v1097, %v1136
  %vm1178 = vcmp.ge.f32.partialorder %v1098, %v1138
  %vm1179 = vcmp.ge.f32.partialorder %v1099, %v1140
  %vm1180 = vcmp.ge.f32.partialorder %v1100, %v1142
  %vm1181 = vcmp.ge.f32.partialorder %v1101, %v1144
  %vm1182 = vcmp.ge.f32.partialorder %v1102, %v1146
  %vm1183 = vcmp.ge.f32.partialorder %v1103, %v1148
  %vm1184 = vcmp.ge.f32.partialorder %v1104, %v1150
  %vm1185 = vcmp.ge.f32.partialorder %v1105, %v1152
  %vm1186 = vcmp.ge.f32.partialorder %v1106, %v1154
  %v1187 = vsel %vm1171, 1.0, 0.0
  %v1188 = vsel %vm1172, 1.0, 0.0
  %v1189 = vsel %vm1173, 1.0, 0.0
  %v1190 = vsel %vm1174, 1.0, 0.0
  %v1191 = vsel %vm1175, 1.0, 0.0
  %v1192 = vsel %vm1176, 1.0, 0.0
  %v1193 = vsel %vm1177, 1.0, 0.0
  %v1194 = vsel %vm1178, 1.0, 0.0
  %v1195 = vsel %vm1179, 1.0, 0.0
  %v1196 = vsel %vm1180, 1.0, 0.0
  %v1197 = vsel %vm1181, 1.0, 0.0
  %v1198 = vsel %vm1182, 1.0, 0.0
  %v1199 = vsel %vm1183, 1.0, 0.0
  %v1200 = vsel %vm1184, 1.0, 0.0
  %v1201 = vsel %vm1185, 1.0, 0.0
  %v1202 = vsel %vm1186, 1.0, 0.0
  %v1203 = vlaneseq
  %v1204 = vand.u32 %v1203, 127
  %vm1205 = vcmp.eq.s32.totalorder %v1204, 2
  %1207 = vset.pattern.permute.xlu0 0
  %1208 = vperm.xlu0 %1207, %v1187
  %v1209 = vpop.permute.xlu0 %1208
  %1212 = vset.pattern.permute.xlu0 0
  %1213 = vperm.xlu0 %1212, %v1188
  %v1214 = vpop.permute.xlu0 %1213
  %1217 = vset.pattern.permute.xlu0 0
  %1218 = vperm.xlu0 %1217, %v1189
  %v1219 = vpop.permute.xlu0 %1218
  %1222 = vset.pattern.permute.xlu0 0
  %1223 = vperm.xlu0 %1222, %v1190
  %v1224 = vpop.permute.xlu0 %1223
  %1227 = vset.pattern.permute.xlu0 0
  %1228 = vperm.xlu0 %1227, %v1191
  %v1229 = vpop.permute.xlu0 %1228
  %1232 = vset.pattern.permute.xlu0 0
  %1233 = vperm.xlu0 %1232, %v1192
  %v1234 = vpop.permute.xlu0 %1233
  %1237 = vset.pattern.permute.xlu0 0
  %1238 = vperm.xlu0 %1237, %v1193
  %v1239 = vpop.permute.xlu0 %1238
  %1242 = vset.pattern.permute.xlu0 0
  %1243 = vperm.xlu0 %1242, %v1194
  %v1244 = vpop.permute.xlu0 %1243
  %1247 = vset.pattern.permute.xlu0 0
  %1248 = vperm.xlu0 %1247, %v1195
  %v1249 = vpop.permute.xlu0 %1248
  %1252 = vset.pattern.permute.xlu0 0
  %1253 = vperm.xlu0 %1252, %v1196
  %v1254 = vpop.permute.xlu0 %1253
  %1257 = vset.pattern.permute.xlu0 0
  %1258 = vperm.xlu0 %1257, %v1197
  %v1259 = vpop.permute.xlu0 %1258
  %1262 = vset.pattern.permute.xlu0 0
  %1263 = vperm.xlu0 %1262, %v1198
  %v1264 = vpop.permute.xlu0 %1263
  %1267 = vset.pattern.permute.xlu0 0
  %1268 = vperm.xlu0 %1267, %v1199
  %v1269 = vpop.permute.xlu0 %1268
  %1272 = vset.pattern.permute.xlu0 0
  %1273 = vperm.xlu0 %1272, %v1200
  %v1274 = vpop.permute.xlu0 %1273
  %1277 = vset.pattern.permute.xlu0 0
  %1278 = vperm.xlu0 %1277, %v1201
  %v1279 = vpop.permute.xlu0 %1278
  %1282 = vset.pattern.permute.xlu0 0
  %1283 = vperm.xlu0 %1282, %v1202
  %v1284 = vpop.permute.xlu0 %1283
  %v1286 = vsel %vm1205, %v1209, %v868
  %v1287 = vsel %vm1205, %v1214, %v871
  %v1288 = vsel %vm1205, %v1219, %v876
  %v1289 = vsel %vm1205, %v1224, %v879
  %v1290 = vsel %vm1205, %v1229, %v884
  %v1291 = vsel %vm1205, %v1234, %v887
  %v1292 = vsel %vm1205, %v1239, %v892
  %v1293 = vsel %vm1205, %v1244, %v895
  %v1294 = vsel %vm1205, %v1249, %v900
  %v1295 = vsel %vm1205, %v1254, %v903
  %v1296 = vsel %vm1205, %v1259, %v908
  %v1297 = vsel %vm1205, %v1264, %v911
  %v1298 = vsel %vm1205, %v1269, %v916
  %v1299 = vsel %vm1205, %v1274, %v919
  %v1300 = vsel %vm1205, %v1279, %v924
  %v1301 = vsel %vm1205, %v1284, %v927
  %1302 = vst [vmem:[%s10] sm:$0xff] %v1286
  %1303 = vst [vmem:[%s10 + $0x8] sm:$0xff] %v1287
  %1304 = vst [vmem:[%s10 + $0x10] sm:$0xff] %v1288
  %1305 = vst [vmem:[%s10 + $0x18] sm:$0xff] %v1289
  %1306 = vst [vmem:[%s10 + $0x20] sm:$0xff] %v1290
  %1307 = vst [vmem:[%s10 + $0x28] sm:$0xff] %v1291
  %1308 = vst [vmem:[%s10 + $0x30] sm:$0xff] %v1292
  %1309 = vst [vmem:[%s10 + $0x38] sm:$0xff] %v1293
  %1310 = vst [vmem:[%s10 + $0x40] sm:$0xff] %v1294
  %1311 = vst [vmem:[%s10 + $0x48] sm:$0xff] %v1295
  %1312 = vst [vmem:[%s10 + $0x50] sm:$0xff] %v1296
  %1313 = vst [vmem:[%s10 + $0x58] sm:$0xff] %v1297
  %1314 = vst [vmem:[%s10 + $0x60] sm:$0xff] %v1298
  %1315 = vst [vmem:[%s10 + $0x68] sm:$0xff] %v1299
  %1316 = vst [vmem:[%s10 + $0x70] sm:$0xff] %v1300
  %1317 = vst [vmem:[%s10 + $0x78] sm:$0xff] %v1301
  // Predicated region
  $region42: #{discrete_graph_learning_forward.3} parent=0 // pred_check
    _
  $region43: #{discrete_graph_learning_forward.3} parent=0 // pred_check_branch
    %1319 = sbr.rel (0) target = $region45
  $region44: #{discrete_graph_learning_forward.3} parent=0 // pred_region
    _
  $region45: #{discrete_graph_learning_forward.3} parent=0 // pred_fallthru
    _
  // Predicated region
  $region46: #{discrete_graph_learning_forward.3} parent=0 // pred_check
    _
  $region47: #{discrete_graph_learning_forward.3} parent=0 // pred_check_branch
    %1321 = sbr.rel (0) target = $region49
  $region48: #{discrete_graph_learning_forward.3} parent=0 // pred_region
    _
  $region49: #{discrete_graph_learning_forward.3} parent=0 // pred_fallthru
    _
  // Predicated region
  $region50: #{discrete_graph_learning_forward.3} parent=0 // pred_check
    _
  $region51: #{discrete_graph_learning_forward.3} parent=0 // pred_check_branch
    %1323 = sbr.rel (0) target = $region53
  $region52: #{discrete_graph_learning_forward.3} parent=0 // pred_region
    _
  $region53: #{discrete_graph_learning_forward.3} parent=0 // pred_fallthru
    _
  // Predicated region
  $region54: #{discrete_graph_learning_forward.3} parent=0 // pred_check
    _
  $region55: #{discrete_graph_learning_forward.3} parent=0 // pred_check_branch
    %1325 = sbr.rel (0) target = $region57
  $region56: #{discrete_graph_learning_forward.3} parent=0 // pred_region
    _
  $region57: #{discrete_graph_learning_forward.3} parent=0 // pred_fallthru
    _

// kernel: discrete_graph_learning_forward.2
$region0: #{discrete_graph_learning_forward.2}
  #allocation0 [shape = 'u32[]', space=smem, size = 0x4, offset = 0x4, fixed_abs, tag = 'smem constant byte address 0x4 - core index']
  #allocation1 [shape = 'u32[144,128]{1,0:T(1,128)}', space=vmem, size = 0x12000, scoped, tag = 'internal scratch']
  %s0 = inlined_call_operand.vmem [shape: f32[248,10], index: 0, kind: input, shape index: {}]
  %s1 = inlined_call_operand.vmem [shape: f32[10,8], index: 1, kind: input, shape index: {}]
  %s2 = inlined_call_operand.vmem [shape: f32[1,8], index: 2, kind: input, shape index: {}]
  %s3 = inlined_call_operand.vmem [shape: f32[1,8], index: 3, kind: input, shape index: {}]
  %s4 = inlined_call_operand.vmem [shape: f32[1,8], index: 4, kind: input, shape index: {}]
  %s5 = inlined_call_operand.vmem [shape: f32[80,16], index: 5, kind: input, shape index: {}]
  %s6 = inlined_call_operand.vmem [shape: f32[1,16], index: 6, kind: input, shape index: {}]
  %s7 = inlined_call_operand.vmem [shape: f32[1,16], index: 7, kind: input, shape index: {}]
  %s8 = inlined_call_operand.vmem [shape: f32[1,16], index: 8, kind: input, shape index: {}]
  %s9 = inlined_call_operand.vmem [shape: f32[352,128], index: 9, kind: input, shape index: {}]
  %s10 = inlined_call_operand.vmem [shape: f32[1,128], index: 10, kind: input, shape index: {}]
  %s11 = inlined_call_operand.vmem [shape: f32[1,128], index: 11, kind: input, shape index: {}]
  %s12 = inlined_call_operand.vmem [shape: f32[1,128], index: 12, kind: input, shape index: {}]
  %s13 = inlined_call_operand.vmem [shape: f32[8,128], index: 13, kind: output, shape index: {}]
  %s14 = sld [smem:[#allocation0]]
  $region62: #{discrete_graph_learning_forward.2} parent=0
    _
  %s16 = ssub.s32 1, %s14
  %s17 = scalar_select 0, %s16, %s14
  // Predicated region
  $region2: #{discrete_graph_learning_forward.2} parent=0 // pred_check
    _
  $region3: #{discrete_graph_learning_forward.2} parent=0 // pred_check_branch
    %19 = sbr.rel (0) target = $region5
  $region4: #{discrete_graph_learning_forward.2} parent=0 // pred_region
    _
  $region5: #{discrete_graph_learning_forward.2} parent=0 // pred_fallthru
    _
  // Predicated region
  $region6: #{discrete_graph_learning_forward.2} parent=0 // pred_check
    _
  $region7: #{discrete_graph_learning_forward.2} parent=0 // pred_check_branch
    %21 = sbr.rel (0) target = $region9
  $region8: #{discrete_graph_learning_forward.2} parent=0 // pred_region
    _
  $region9: #{discrete_graph_learning_forward.2} parent=0 // pred_fallthru
    _
  // Predicated region
  $region10: #{discrete_graph_learning_forward.2} parent=0 // pred_check
    _
  $region11: #{discrete_graph_learning_forward.2} parent=0 // pred_check_branch
    %23 = sbr.rel (0) target = $region13
  $region12: #{discrete_graph_learning_forward.2} parent=0 // pred_region
    _
  $region13: #{discrete_graph_learning_forward.2} parent=0 // pred_fallthru
    _
  // Predicated region
  $region14: #{discrete_graph_learning_forward.2} parent=0 // pred_check
    _
  $region15: #{discrete_graph_learning_forward.2} parent=0 // pred_check_branch
    %25 = sbr.rel (0) target = $region17
  $region16: #{discrete_graph_learning_forward.2} parent=0 // pred_region
    _
  $region17: #{discrete_graph_learning_forward.2} parent=0 // pred_fallthru
    _
  // Predicated region
  $region18: #{discrete_graph_learning_forward.2} parent=0 // pred_check
    _
  $region19: #{discrete_graph_learning_forward.2} parent=0 // pred_check_branch
    %27 = sbr.rel (0) target = $region21
  $region20: #{discrete_graph_learning_forward.2} parent=0 // pred_region
    _
  $region21: #{discrete_graph_learning_forward.2} parent=0 // pred_fallthru
    _
  // Predicated region
  $region22: #{discrete_graph_learning_forward.2} parent=0 // pred_check
    _
  $region23: #{discrete_graph_learning_forward.2} parent=0 // pred_check_branch
    %29 = sbr.rel (0) target = $region25
  $region24: #{discrete_graph_learning_forward.2} parent=0 // pred_region
    _
  $region25: #{discrete_graph_learning_forward.2} parent=0 // pred_fallthru
    _
  // Predicated region
  $region26: #{discrete_graph_learning_forward.2} parent=0 // pred_check
    _
  $region27: #{discrete_graph_learning_forward.2} parent=0 // pred_check_branch
    %31 = sbr.rel (0) target = $region29
  $region28: #{discrete_graph_learning_forward.2} parent=0 // pred_region
    _
  $region29: #{discrete_graph_learning_forward.2} parent=0 // pred_fallthru
    _
  // Predicated region
  $region30: #{discrete_graph_learning_forward.2} parent=0 // pred_check
    _
  $region31: #{discrete_graph_learning_forward.2} parent=0 // pred_check_branch
    %33 = sbr.rel (0) target = $region33
  $region32: #{discrete_graph_learning_forward.2} parent=0 // pred_region
    _
  $region33: #{discrete_graph_learning_forward.2} parent=0 // pred_fallthru
    _
  // Predicated region
  $region34: #{discrete_graph_learning_forward.2} parent=0 // pred_check
    _
  $region35: #{discrete_graph_learning_forward.2} parent=0 // pred_check_branch
    %35 = sbr.rel (0) target = $region37
  $region36: #{discrete_graph_learning_forward.2} parent=0 // pred_region
    _
  $region37: #{discrete_graph_learning_forward.2} parent=0 // pred_fallthru
    _
  // Predicated region
  $region38: #{discrete_graph_learning_forward.2} parent=0 // pred_check
    _
  $region39: #{discrete_graph_learning_forward.2} parent=0 // pred_check_branch
    %37 = sbr.rel (0) target = $region41
  $region40: #{discrete_graph_learning_forward.2} parent=0 // pred_region
    _
  $region41: #{discrete_graph_learning_forward.2} parent=0 // pred_fallthru
    _
  // Predicated region
  $region42: #{discrete_graph_learning_forward.2} parent=0 // pred_check
    _
  $region43: #{discrete_graph_learning_forward.2} parent=0 // pred_check_branch
    %39 = sbr.rel (0) target = $region45
  $region44: #{discrete_graph_learning_forward.2} parent=0 // pred_region
    _
  $region45: #{discrete_graph_learning_forward.2} parent=0 // pred_fallthru
    _
  // Predicated region
  $region46: #{discrete_graph_learning_forward.2} parent=0 // pred_check
    _
  $region47: #{discrete_graph_learning_forward.2} parent=0 // pred_check_branch
    %41 = sbr.rel (0) target = $region49
  $region48: #{discrete_graph_learning_forward.2} parent=0 // pred_region
    _
  $region49: #{discrete_graph_learning_forward.2} parent=0 // pred_fallthru
    _
  // Predicated region
  $region50: #{discrete_graph_learning_forward.2} parent=0 // pred_check
    _
  $region51: #{discrete_graph_learning_forward.2} parent=0 // pred_check_branch
    %43 = sbr.rel (0) target = $region53
  $region52: #{discrete_graph_learning_forward.2} parent=0 // pred_region
    _
  $region53: #{discrete_graph_learning_forward.2} parent=0 // pred_fallthru
    _
  %v44 = vld [vmem:[%s0] sm:$0xff]
  %v45 = vld [vmem:[%s0 + $0x8] sm:$0xff]
  %v46 = vld [vmem:[%s0 + $0x10] sm:$0xff]
  %v47 = vld [vmem:[%s0 + $0x18] sm:$0xff]
  %v48 = vld [vmem:[%s0 + $0x20] sm:$0xff]
  %v49 = vld [vmem:[%s0 + $0x28] sm:$0xff]
  %v50 = vld [vmem:[%s0 + $0x30] sm:$0xff]
  %v51 = vld [vmem:[%s0 + $0x38] sm:$0xff]
  %v52 = vld [vmem:[%s0 + $0x40] sm:$0xff]
  %v53 = vld [vmem:[%s0 + $0x48] sm:$0xff]
  %v54 = vld [vmem:[%s0 + $0x50] sm:$0xff]
  %v55 = vld [vmem:[%s0 + $0x58] sm:$0xff]
  %v56 = vld [vmem:[%s0 + $0x60] sm:$0xff]
  %v57 = vld [vmem:[%s0 + $0x68] sm:$0xff]
  %v58 = vld [vmem:[%s0 + $0x70] sm:$0xff]
  %v59 = vld [vmem:[%s0 + $0x78] sm:$0xff]
  %v60 = vld [vmem:[%s0 + $0x80] sm:$0xff]
  %v61 = vld [vmem:[%s0 + $0x88] sm:$0xff]
  %v62 = vld [vmem:[%s0 + $0x90] sm:$0xff]
  %v63 = vld [vmem:[%s0 + $0x98] sm:$0xff]
  %v64 = vld [vmem:[%s0 + $0xa0] sm:$0xff]
  %v65 = vld [vmem:[%s0 + $0xa8] sm:$0xff]
  %v66 = vld [vmem:[%s0 + $0xb0] sm:$0xff]
  %v67 = vld [vmem:[%s0 + $0xb8] sm:$0xff]
  %v68 = vld [vmem:[%s0 + $0xc0] sm:$0xff]
  %v69 = vld [vmem:[%s0 + $0xc8] sm:$0xff]
  %v70 = vld [vmem:[%s0 + $0xd0] sm:$0xff]
  %v71 = vld [vmem:[%s0 + $0xd8] sm:$0xff]
  %v72 = vld [vmem:[%s0 + $0xe0] sm:$0xff]
  %v73 = vld [vmem:[%s0 + $0xe8] sm:$0xff]
  %v74 = vld [vmem:[%s0 + $0xf0] sm:$0xff]
  %v75 = vld [vmem:[%s1] sm:$0xff]
  %v76 = vld [vmem:[%s1 + $0x8] sm:$0x3]
  %v77 = vld [vmem:[%s2] sm:$0x1]
  %v79 = vlaneseq
  %v80 = vshrl.u32 %v79, 7
  %v81 = vsub.s32 0, %v80
  %v82 = vrot.slane %v77, %v81
  %vm84 = vcmask 80896
  %v86 = vsel %vm84, %v44, 0
  %v89 = vsel %vm84, %v45, 0
  %v92 = vsel %vm84, %v46, 0
  %v95 = vsel %vm84, %v47, 0
  %v98 = vsel %vm84, %v48, 0
  %v101 = vsel %vm84, %v49, 0
  %v104 = vsel %vm84, %v50, 0
  %v107 = vsel %vm84, %v51, 0
  %v110 = vsel %vm84, %v52, 0
  %v113 = vsel %vm84, %v53, 0
  %v116 = vsel %vm84, %v54, 0
  %v119 = vsel %vm84, %v55, 0
  %v122 = vsel %vm84, %v56, 0
  %v125 = vsel %vm84, %v57, 0
  %v128 = vsel %vm84, %v58, 0
  %v131 = vsel %vm84, %v59, 0
  %v134 = vsel %vm84, %v60, 0
  %v137 = vsel %vm84, %v61, 0
  %v140 = vsel %vm84, %v62, 0
  %v143 = vsel %vm84, %v63, 0
  %v146 = vsel %vm84, %v64, 0
  %v149 = vsel %vm84, %v65, 0
  %v152 = vsel %vm84, %v66, 0
  %v155 = vsel %vm84, %v67, 0
  %v158 = vsel %vm84, %v68, 0
  %v161 = vsel %vm84, %v69, 0
  %v164 = vsel %vm84, %v70, 0
  %v167 = vsel %vm84, %v71, 0
  %v170 = vsel %vm84, %v72, 0
  %v173 = vsel %vm84, %v73, 0
  %v176 = vsel %vm84, %v74, 0
  %vm178 = vcmask 1041408
  %v180 = vsel %vm178, %v76, 0
  %182 = vmatprep.subr.mxu0 0.0
  %183 = vmatpush1.msra.mxu0 %v75
  %184 = vmatprep.subr.mxu0 0.0
  %185 = vmatpush1.msra.mxu0 %v180
  %186 = vmatprep.subr.mxu0 0.0
  %187 = vmatpush1.msra.mxu0 0.0
  %188 = vmatprep.subr.mxu0 0.0
  %189 = vmatpush1.msra.mxu0 0.0
  %190 = vmatprep.subr.mxu0 0.0
  %191 = vmatpush1.msra.mxu0 0.0
  %192 = vmatprep.subr.mxu0 0.0
  %193 = vmatpush1.msra.mxu0 0.0
  %194 = vmatprep.subr.mxu0 0.0
  %195 = vmatpush1.msra.mxu0 0.0
  %196 = vmatprep.subr.mxu0 0.0
  %197 = vmatpush1.msra.mxu0 0.0
  %198 = vmatprep.subr.mxu0 0.0
  %199 = vmatpush1.msra.mxu0 0.0
  %200 = vmatprep.subr.mxu0 0.0
  %201 = vmatpush1.msra.mxu0 0.0
  %202 = vmatprep.subr.mxu0 0.0
  %203 = vmatpush1.msra.mxu0 0.0
  %204 = vmatprep.subr.mxu0 0.0
  %205 = vmatpush1.msra.mxu0 0.0
  %206 = vmatprep.subr.mxu0 0.0
  %207 = vmatpush1.msra.mxu0 0.0
  %208 = vmatprep.subr.mxu0 0.0
  %209 = vmatpush1.msra.mxu0 0.0
  %210 = vmatprep.subr.mxu0 0.0
  %211 = vmatpush1.msra.mxu0 0.0
  %212 = vmatprep.subr.mxu0 0.0
  %213 = vmatpush1.msra.mxu0 0.0
  %214 = vmatprep.subr.mxu0 0.0
  %215 = vmatpush1.msra.mxu0 0.0
  %216 = vmatprep.subr.mxu0 0.0
  %217 = vmatpush1.msra.mxu0 0.0
  %218 = vmatprep.subr.mxu0 0.0
  %219 = vmatpush1.msra.mxu0 0.0
  %220 = vmatprep.subr.mxu0 0.0
  %221 = vmatpush1.msra.mxu0 0.0
  %222 = vmatprep.subr.mxu0 0.0
  %223 = vmatpush1.msra.mxu0 0.0
  %224 = vmatprep.subr.mxu0 0.0
  %225 = vmatpush1.msra.mxu0 0.0
  %226 = vmatprep.subr.mxu0 0.0
  %227 = vmatpush1.msra.mxu0 0.0
  %228 = vmatprep.subr.mxu0 0.0
  %229 = vmatpush1.msra.mxu0 0.0
  %230 = vmatprep.subr.mxu0 0.0
  %231 = vmatpush1.msra.mxu0 0.0
  %232 = vmatprep.subr.mxu0 0.0
  %233 = vmatpush1.msra.mxu0 0.0
  %234 = vmatprep.subr.mxu0 0.0
  %235 = vmatpush1.msra.mxu0 0.0
  %236 = vmatprep.subr.mxu0 0.0
  %237 = vmatpush1.msra.mxu0 0.0
  %238 = vmatprep.subr.mxu0 0.0
  %239 = vmatpush1.msra.mxu0 0.0
  %240 = vmatprep.subr.mxu0 0.0
  %241 = vmatpush1.msra.mxu0 0.0
  %242 = vmatprep.subr.mxu0 0.0
  %243 = vmatpush1.msra.mxu0 0.0
  %244 = vmatprep.subr.mxu0 0.0
  %245 = vmatpush1.msra.mxu0 0.0
  %246 = vmatprep.mubr.f32.mxu0 0.0
  %247 = vmatmul.mubr.f32.gmra.mrb[0].mxu0 %v86
  %v248 = vpop.f32.mrb[0].mxu0
  %v249 = vadd.f32 %v82, %v248
  %v250 = vpop.f32.mrb[0].mxu0
  %251 = vmatprep.mubr.f32.mxu0 0.0
  %252 = vmatmul.mubr.f32.gmra.mrb[0].mxu0 %v89
  %v253 = vpop.f32.mrb[0].mxu0
  %v254 = vadd.f32 %v82, %v253
  %v255 = vpop.f32.mrb[0].mxu0
  %256 = vmatprep.mubr.f32.mxu0 0.0
  %257 = vmatmul.mubr.f32.gmra.mrb[0].mxu0 %v92
  %v258 = vpop.f32.mrb[0].mxu0
  %v259 = vadd.f32 %v82, %v258
  %v260 = vpop.f32.mrb[0].mxu0
  %261 = vmatprep.mubr.f32.mxu0 0.0
  %262 = vmatmul.mubr.f32.gmra.mrb[0].mxu0 %v95
  %v263 = vpop.f32.mrb[0].mxu0
  %v264 = vadd.f32 %v82, %v263
  %v265 = vpop.f32.mrb[0].mxu0
  %266 = vmatprep.mubr.f32.mxu0 0.0
  %267 = vmatmul.mubr.f32.gmra.mrb[0].mxu0 %v98
  %v268 = vpop.f32.mrb[0].mxu0
  %v269 = vadd.f32 %v82, %v268
  %v270 = vpop.f32.mrb[0].mxu0
  %271 = vmatprep.mubr.f32.mxu0 0.0
  %272 = vmatmul.mubr.f32.gmra.mrb[0].mxu0 %v101
  %v273 = vpop.f32.mrb[0].mxu0
  %v274 = vadd.f32 %v82, %v273
  %v275 = vpop.f32.mrb[0].mxu0
  %276 = vmatprep.mubr.f32.mxu0 0.0
  %277 = vmatmul.mubr.f32.gmra.mrb[0].mxu0 %v104
  %v278 = vpop.f32.mrb[0].mxu0
  %v279 = vadd.f32 %v82, %v278
  %v280 = vpop.f32.mrb[0].mxu0
  %281 = vmatprep.mubr.f32.mxu0 0.0
  %282 = vmatmul.mubr.f32.gmra.mrb[0].mxu0 %v107
  %v283 = vpop.f32.mrb[0].mxu0
  %v284 = vadd.f32 %v82, %v283
  %v285 = vpop.f32.mrb[0].mxu0
  %286 = vmatprep.mubr.f32.mxu0 0.0
  %287 = vmatmul.mubr.f32.gmra.mrb[0].mxu0 %v110
  %v288 = vpop.f32.mrb[0].mxu0
  %v289 = vadd.f32 %v82, %v288
  %v290 = vpop.f32.mrb[0].mxu0
  %291 = vmatprep.mubr.f32.mxu0 0.0
  %292 = vmatmul.mubr.f32.gmra.mrb[0].mxu0 %v113
  %v293 = vpop.f32.mrb[0].mxu0
  %v294 = vadd.f32 %v82, %v293
  %v295 = vpop.f32.mrb[0].mxu0
  %296 = vmatprep.mubr.f32.mxu0 0.0
  %297 = vmatmul.mubr.f32.gmra.mrb[0].mxu0 %v116
  %v298 = vpop.f32.mrb[0].mxu0
  %v299 = vadd.f32 %v82, %v298
  %v300 = vpop.f32.mrb[0].mxu0
  %301 = vmatprep.mubr.f32.mxu0 0.0
  %302 = vmatmul.mubr.f32.gmra.mrb[0].mxu0 %v119
  %v303 = vpop.f32.mrb[0].mxu0
  %v304 = vadd.f32 %v82, %v303
  %v305 = vpop.f32.mrb[0].mxu0
  %306 = vmatprep.mubr.f32.mxu0 0.0
  %307 = vmatmul.mubr.f32.gmra.mrb[0].mxu0 %v122
  %v308 = vpop.f32.mrb[0].mxu0
  %v309 = vadd.f32 %v82, %v308
  %v310 = vpop.f32.mrb[0].mxu0
  %311 = vmatprep.mubr.f32.mxu0 0.0
  %312 = vmatmul.mubr.f32.gmra.mrb[0].mxu0 %v125
  %v313 = vpop.f32.mrb[0].mxu0
  %v314 = vadd.f32 %v82, %v313
  %v315 = vpop.f32.mrb[0].mxu0
  %316 = vmatprep.mubr.f32.mxu0 0.0
  %317 = vmatmul.mubr.f32.gmra.mrb[0].mxu0 %v128
  %v318 = vpop.f32.mrb[0].mxu0
  %v319 = vadd.f32 %v82, %v318
  %v320 = vpop.f32.mrb[0].mxu0
  %321 = vmatprep.mubr.f32.mxu0 0.0
  %322 = vmatmul.mubr.f32.gmra.mrb[0].mxu0 %v131
  %v323 = vpop.f32.mrb[0].mxu0
  %v324 = vadd.f32 %v82, %v323
  %v325 = vpop.f32.mrb[0].mxu0
  %326 = vmatprep.mubr.f32.mxu0 0.0
  %327 = vmatmul.mubr.f32.gmra.mrb[0].mxu0 %v134
  %v328 = vpop.f32.mrb[0].mxu0
  %v329 = vadd.f32 %v82, %v328
  %v330 = vpop.f32.mrb[0].mxu0
  %331 = vmatprep.mubr.f32.mxu0 0.0
  %332 = vmatmul.mubr.f32.gmra.mrb[0].mxu0 %v137
  %v333 = vpop.f32.mrb[0].mxu0
  %v334 = vadd.f32 %v82, %v333
  %v335 = vpop.f32.mrb[0].mxu0
  %336 = vmatprep.mubr.f32.mxu0 0.0
  %337 = vmatmul.mubr.f32.gmra.mrb[0].mxu0 %v140
  %v338 = vpop.f32.mrb[0].mxu0
  %v339 = vadd.f32 %v82, %v338
  %v340 = vpop.f32.mrb[0].mxu0
  %341 = vmatprep.mubr.f32.mxu0 0.0
  %342 = vmatmul.mubr.f32.gmra.mrb[0].mxu0 %v143
  %v343 = vpop.f32.mrb[0].mxu0
  %v344 = vadd.f32 %v82, %v343
  %v345 = vpop.f32.mrb[0].mxu0
  %346 = vmatprep.mubr.f32.mxu0 0.0
  %347 = vmatmul.mubr.f32.gmra.mrb[0].mxu0 %v146
  %v348 = vpop.f32.mrb[0].mxu0
  %v349 = vadd.f32 %v82, %v348
  %v350 = vpop.f32.mrb[0].mxu0
  %351 = vmatprep.mubr.f32.mxu0 0.0
  %352 = vmatmul.mubr.f32.gmra.mrb[0].mxu0 %v149
  %v353 = vpop.f32.mrb[0].mxu0
  %v354 = vadd.f32 %v82, %v353
  %v355 = vpop.f32.mrb[0].mxu0
  %356 = vmatprep.mubr.f32.mxu0 0.0
  %357 = vmatmul.mubr.f32.gmra.mrb[0].mxu0 %v152
  %v358 = vpop.f32.mrb[0].mxu0
  %v359 = vadd.f32 %v82, %v358
  %v360 = vpop.f32.mrb[0].mxu0
  %361 = vmatprep.mubr.f32.mxu0 0.0
  %362 = vmatmul.mubr.f32.gmra.mrb[0].mxu0 %v155
  %v363 = vpop.f32.mrb[0].mxu0
  %v364 = vadd.f32 %v82, %v363
  %v365 = vpop.f32.mrb[0].mxu0
  %366 = vmatprep.mubr.f32.mxu0 0.0
  %367 = vmatmul.mubr.f32.gmra.mrb[0].mxu0 %v158
  %v368 = vpop.f32.mrb[0].mxu0
  %v369 = vadd.f32 %v82, %v368
  %v370 = vpop.f32.mrb[0].mxu0
  %371 = vmatprep.mubr.f32.mxu0 0.0
  %372 = vmatmul.mubr.f32.gmra.mrb[0].mxu0 %v161
  %v373 = vpop.f32.mrb[0].mxu0
  %v374 = vadd.f32 %v82, %v373
  %v375 = vpop.f32.mrb[0].mxu0
  %376 = vmatprep.mubr.f32.mxu0 0.0
  %377 = vmatmul.mubr.f32.gmra.mrb[0].mxu0 %v164
  %v378 = vpop.f32.mrb[0].mxu0
  %v379 = vadd.f32 %v82, %v378
  %v380 = vpop.f32.mrb[0].mxu0
  %381 = vmatprep.mubr.f32.mxu0 0.0
  %382 = vmatmul.mubr.f32.gmra.mrb[0].mxu0 %v167
  %v383 = vpop.f32.mrb[0].mxu0
  %v384 = vadd.f32 %v82, %v383
  %v385 = vpop.f32.mrb[0].mxu0
  %386 = vmatprep.mubr.f32.mxu0 0.0
  %387 = vmatmul.mubr.f32.gmra.mrb[0].mxu0 %v170
  %v388 = vpop.f32.mrb[0].mxu0
  %v389 = vadd.f32 %v82, %v388
  %v390 = vpop.f32.mrb[0].mxu0
  %391 = vmatprep.mubr.f32.mxu0 0.0
  %392 = vmatmul.mubr.f32.gmra.mrb[0].mxu0 %v173
  %v393 = vpop.f32.mrb[0].mxu0
  %v394 = vadd.f32 %v82, %v393
  %v395 = vpop.f32.mrb[0].mxu0
  %396 = vmatprep.mubr.f32.mxu0 0.0
  %397 = vmatmul.mubr.f32.gmra.mrb[0].mxu0 %v176
  %v398 = vpop.f32.mrb[0].mxu0
  %v399 = vadd.f32 %v82, %v398
  %v400 = vpop.f32.mrb[0].mxu0
  %401 = vdwg.mxu0
  %v402 = vmax.f32 %v249, 0.0
  %v403 = vmax.f32 %v254, 0.0
  %v404 = vmax.f32 %v259, 0.0
  %v405 = vmax.f32 %v264, 0.0
  %v406 = vmax.f32 %v269, 0.0
  %v407 = vmax.f32 %v274, 0.0
  %v408 = vmax.f32 %v279, 0.0
  %v409 = vmax.f32 %v284, 0.0
  %v410 = vmax.f32 %v289, 0.0
  %v411 = vmax.f32 %v294, 0.0
  %v412 = vmax.f32 %v299, 0.0
  %v413 = vmax.f32 %v304, 0.0
  %v414 = vmax.f32 %v309, 0.0
  %v415 = vmax.f32 %v314, 0.0
  %v416 = vmax.f32 %v319, 0.0
  %v417 = vmax.f32 %v324, 0.0
  %v418 = vmax.f32 %v329, 0.0
  %v419 = vmax.f32 %v334, 0.0
  %v420 = vmax.f32 %v339, 0.0
  %v421 = vmax.f32 %v344, 0.0
  %v422 = vmax.f32 %v349, 0.0
  %v423 = vmax.f32 %v354, 0.0
  %v424 = vmax.f32 %v359, 0.0
  %v425 = vmax.f32 %v364, 0.0
  %v426 = vmax.f32 %v369, 0.0
  %v427 = vmax.f32 %v374, 0.0
  %v428 = vmax.f32 %v379, 0.0
  %v429 = vmax.f32 %v384, 0.0
  %v430 = vmax.f32 %v389, 0.0
  %v431 = vmax.f32 %v394, 0.0
  %v432 = vmax.f32 %v399, 0.0
  %v433 = vld [vmem:[%s3] sm:$0x1]
  %v434 = vld [vmem:[%s4] sm:$0x1]
  %vm435 = vcmask 64512
  %v436 = vsel %vm435, %v402, 0.0
  %v437 = vsel %vm435, %v403, 0.0
  %v438 = vadd.f32 %v436, %v437
  %v439 = vsel %vm435, %v404, 0.0
  %v440 = vadd.f32 %v438, %v439
  %v441 = vsel %vm435, %v405, 0.0
  %v442 = vadd.f32 %v440, %v441
  %v443 = vsel %vm435, %v406, 0.0
  %v444 = vadd.f32 %v442, %v443
  %v445 = vsel %vm435, %v407, 0.0
  %v446 = vadd.f32 %v444, %v445
  %v447 = vsel %vm435, %v408, 0.0
  %v448 = vadd.f32 %v446, %v447
  %v449 = vsel %vm435, %v409, 0.0
  %v450 = vadd.f32 %v448, %v449
  %v451 = vsel %vm435, %v410, 0.0
  %v452 = vadd.f32 %v450, %v451
  %v453 = vsel %vm435, %v411, 0.0
  %v454 = vadd.f32 %v452, %v453
  %v455 = vsel %vm435, %v412, 0.0
  %v456 = vadd.f32 %v454, %v455
  %v457 = vsel %vm435, %v413, 0.0
  %v458 = vadd.f32 %v456, %v457
  %v459 = vsel %vm435, %v414, 0.0
  %v460 = vadd.f32 %v458, %v459
  %v461 = vsel %vm435, %v415, 0.0
  %v462 = vadd.f32 %v460, %v461
  %v463 = vsel %vm435, %v416, 0.0
  %v464 = vadd.f32 %v462, %v463
  %v465 = vsel %vm435, %v417, 0.0
  %v466 = vadd.f32 %v464, %v465
  %v467 = vsel %vm435, %v418, 0.0
  %v468 = vadd.f32 %v466, %v467
  %v469 = vsel %vm435, %v419, 0.0
  %v470 = vadd.f32 %v468, %v469
  %v471 = vsel %vm435, %v420, 0.0
  %v472 = vadd.f32 %v470, %v471
  %v473 = vsel %vm435, %v421, 0.0
  %v474 = vadd.f32 %v472, %v473
  %v475 = vsel %vm435, %v422, 0.0
  %v476 = vadd.f32 %v474, %v475
  %v477 = vsel %vm435, %v423, 0.0
  %v478 = vadd.f32 %v476, %v477
  %v479 = vsel %vm435, %v424, 0.0
  %v480 = vadd.f32 %v478, %v479
  %v481 = vsel %vm435, %v425, 0.0
  %v482 = vadd.f32 %v480, %v481
  %v483 = vsel %vm435, %v426, 0.0
  %v484 = vadd.f32 %v482, %v483
  %v485 = vsel %vm435, %v427, 0.0
  %v486 = vadd.f32 %v484, %v485
  %v487 = vsel %vm435, %v428, 0.0
  %v488 = vadd.f32 %v486, %v487
  %v489 = vsel %vm435, %v429, 0.0
  %v490 = vadd.f32 %v488, %v489
  %v491 = vsel %vm435, %v430, 0.0
  %v492 = vadd.f32 %v490, %v491
  %v493 = vsel %vm435, %v431, 0.0
  %v494 = vadd.f32 %v492, %v493
  %v495 = vsel %vm435, %v432, 0.0
  %v496 = vadd.f32 %v494, %v495
  %v497 = vrot.slane %v496, 4
  %v498 = vadd.f32 %v496, %v497
  %v499 = vrot.slane %v498, 2
  %v500 = vadd.f32 %v498, %v499
  %v501 = vrot.slane %v500, 1
  %v502 = vadd.f32 %v500, %v501
  %v503 = vrcp.pop 248.0
  %v504 = vmul.f32 %v502, %v503
  %v505 = vsub.f32 %v402, %v504
  %v506 = vsub.f32 %v403, %v504
  %v507 = vsub.f32 %v404, %v504
  %v508 = vsub.f32 %v405, %v504
  %v509 = vsub.f32 %v406, %v504
  %v510 = vsub.f32 %v407, %v504
  %v511 = vsub.f32 %v408, %v504
  %v512 = vsub.f32 %v409, %v504
  %v513 = vsub.f32 %v410, %v504
  %v514 = vsub.f32 %v411, %v504
  %v515 = vsub.f32 %v412, %v504
  %v516 = vsub.f32 %v413, %v504
  %v517 = vsub.f32 %v414, %v504
  %v518 = vsub.f32 %v415, %v504
  %v519 = vsub.f32 %v416, %v504
  %v520 = vsub.f32 %v417, %v504
  %v521 = vsub.f32 %v418, %v504
  %v522 = vsub.f32 %v419, %v504
  %v523 = vsub.f32 %v420, %v504
  %v524 = vsub.f32 %v421, %v504
  %v525 = vsub.f32 %v422, %v504
  %v526 = vsub.f32 %v423, %v504
  %v527 = vsub.f32 %v424, %v504
  %v528 = vsub.f32 %v425, %v504
  %v529 = vsub.f32 %v426, %v504
  %v530 = vsub.f32 %v427, %v504
  %v531 = vsub.f32 %v428, %v504
  %v532 = vsub.f32 %v429, %v504
  %v533 = vsub.f32 %v430, %v504
  %v534 = vsub.f32 %v431, %v504
  %v535 = vsub.f32 %v432, %v504
  %v536 = vmul.f32 %v505, %v505
  %v537 = vmul.f32 %v506, %v506
  %v538 = vmul.f32 %v507, %v507
  %v539 = vmul.f32 %v508, %v508
  %v540 = vmul.f32 %v509, %v509
  %v541 = vmul.f32 %v510, %v510
  %v542 = vmul.f32 %v511, %v511
  %v543 = vmul.f32 %v512, %v512
  %v544 = vmul.f32 %v513, %v513
  %v545 = vmul.f32 %v514, %v514
  %v546 = vmul.f32 %v515, %v515
  %v547 = vmul.f32 %v516, %v516
  %v548 = vmul.f32 %v517, %v517
  %v549 = vmul.f32 %v518, %v518
  %v550 = vmul.f32 %v519, %v519
  %v551 = vmul.f32 %v520, %v520
  %v552 = vmul.f32 %v521, %v521
  %v553 = vmul.f32 %v522, %v522
  %v554 = vmul.f32 %v523, %v523
  %v555 = vmul.f32 %v524, %v524
  %v556 = vmul.f32 %v525, %v525
  %v557 = vmul.f32 %v526, %v526
  %v558 = vmul.f32 %v527, %v527
  %v559 = vmul.f32 %v528, %v528
  %v560 = vmul.f32 %v529, %v529
  %v561 = vmul.f32 %v530, %v530
  %v562 = vmul.f32 %v531, %v531
  %v563 = vmul.f32 %v532, %v532
  %v564 = vmul.f32 %v533, %v533
  %v565 = vmul.f32 %v534, %v534
  %v566 = vmul.f32 %v535, %v535
  %v567 = vsel %vm435, %v536, 0.0
  %v568 = vsel %vm435, %v537, 0.0
  %v569 = vadd.f32 %v567, %v568
  %v570 = vsel %vm435, %v538, 0.0
  %v571 = vadd.f32 %v569, %v570
  %v572 = vsel %vm435, %v539, 0.0
  %v573 = vadd.f32 %v571, %v572
  %v574 = vsel %vm435, %v540, 0.0
  %v575 = vadd.f32 %v573, %v574
  %v576 = vsel %vm435, %v541, 0.0
  %v577 = vadd.f32 %v575, %v576
  %v578 = vsel %vm435, %v542, 0.0
  %v579 = vadd.f32 %v577, %v578
  %v580 = vsel %vm435, %v543, 0.0
  %v581 = vadd.f32 %v579, %v580
  %v582 = vsel %vm435, %v544, 0.0
  %v583 = vadd.f32 %v581, %v582
  %v584 = vsel %vm435, %v545, 0.0
  %v585 = vadd.f32 %v583, %v584
  %v586 = vsel %vm435, %v546, 0.0
  %v587 = vadd.f32 %v585, %v586
  %v588 = vsel %vm435, %v547, 0.0
  %v589 = vadd.f32 %v587, %v588
  %v590 = vsel %vm435, %v548, 0.0
  %v591 = vadd.f32 %v589, %v590
  %v592 = vsel %vm435, %v549, 0.0
  %v593 = vadd.f32 %v591, %v592
  %v594 = vsel %vm435, %v550, 0.0
  %v595 = vadd.f32 %v593, %v594
  %v596 = vsel %vm435, %v551, 0.0
  %v597 = vadd.f32 %v595, %v596
  %v598 = vsel %vm435, %v552, 0.0
  %v599 = vadd.f32 %v597, %v598
  %v600 = vsel %vm435, %v553, 0.0
  %v601 = vadd.f32 %v599, %v600
  %v602 = vsel %vm435, %v554, 0.0
  %v603 = vadd.f32 %v601, %v602
  %v604 = vsel %vm435, %v555, 0.0
  %v605 = vadd.f32 %v603, %v604
  %v606 = vsel %vm435, %v556, 0.0
  %v607 = vadd.f32 %v605, %v606
  %v608 = vsel %vm435, %v557, 0.0
  %v609 = vadd.f32 %v607, %v608
  %v610 = vsel %vm435, %v558, 0.0
  %v611 = vadd.f32 %v609, %v610
  %v612 = vsel %vm435, %v559, 0.0
  %v613 = vadd.f32 %v611, %v612
  %v614 = vsel %vm435, %v560, 0.0
  %v615 = vadd.f32 %v613, %v614
  %v616 = vsel %vm435, %v561, 0.0
  %v617 = vadd.f32 %v615, %v616
  %v618 = vsel %vm435, %v562, 0.0
  %v619 = vadd.f32 %v617, %v618
  %v620 = vsel %vm435, %v563, 0.0
  %v621 = vadd.f32 %v619, %v620
  %v622 = vsel %vm435, %v564, 0.0
  %v623 = vadd.f32 %v621, %v622
  %v624 = vsel %vm435, %v565, 0.0
  %v625 = vadd.f32 %v623, %v624
  %v626 = vsel %vm435, %v566, 0.0
  %v627 = vadd.f32 %v625, %v626
  %v628 = vrot.slane %v627, 4
  %v629 = vadd.f32 %v627, %v628
  %v630 = vrot.slane %v629, 2
  %v631 = vadd.f32 %v629, %v630
  %v632 = vrot.slane %v631, 1
  %v633 = vadd.f32 %v631, %v632
  %v634 = vmul.f32 %v633, %v503
  %v636 = vlaneseq
  %v637 = vshrl.u32 %v636, 7
  %v638 = vsub.s32 0, %v637
  %v639 = vrot.slane %v433, %v638
  %v641 = vmul.f32 %v639, %v505
  %v642 = vmul.f32 %v639, %v506
  %v643 = vmul.f32 %v639, %v507
  %v644 = vmul.f32 %v639, %v508
  %v645 = vmul.f32 %v639, %v509
  %v646 = vmul.f32 %v639, %v510
  %v647 = vmul.f32 %v639, %v511
  %v648 = vmul.f32 %v639, %v512
  %v649 = vmul.f32 %v639, %v513
  %v650 = vmul.f32 %v639, %v514
  %v651 = vmul.f32 %v639, %v515
  %v652 = vmul.f32 %v639, %v516
  %v653 = vmul.f32 %v639, %v517
  %v654 = vmul.f32 %v639, %v518
  %v655 = vmul.f32 %v639, %v519
  %v656 = vmul.f32 %v639, %v520
  %v657 = vmul.f32 %v639, %v521
  %v658 = vmul.f32 %v639, %v522
  %v659 = vmul.f32 %v639, %v523
  %v660 = vmul.f32 %v639, %v524
  %v661 = vmul.f32 %v639, %v525
  %v662 = vmul.f32 %v639, %v526
  %v663 = vmul.f32 %v639, %v527
  %v664 = vmul.f32 %v639, %v528
  %v665 = vmul.f32 %v639, %v529
  %v666 = vmul.f32 %v639, %v530
  %v667 = vmul.f32 %v639, %v531
  %v668 = vmul.f32 %v639, %v532
  %v669 = vmul.f32 %v639, %v533
  %v670 = vmul.f32 %v639, %v534
  %v671 = vmul.f32 %v639, %v535
  %v672 = vadd.f32 %v634, 1e-05
  %v673 = vrsqrt.pop %v672
  %v674 = vmul.f32 %v641, %v673
  %v675 = vmul.f32 %v642, %v673
  %v676 = vmul.f32 %v643, %v673
  %v677 = vmul.f32 %v644, %v673
  %v678 = vmul.f32 %v645, %v673
  %v679 = vmul.f32 %v646, %v673
  %v680 = vmul.f32 %v647, %v673
  %v681 = vmul.f32 %v648, %v673
  %v682 = vmul.f32 %v649, %v673
  %v683 = vmul.f32 %v650, %v673
  %v684 = vmul.f32 %v651, %v673
  %v685 = vmul.f32 %v652, %v673
  %v686 = vmul.f32 %v653, %v673
  %v687 = vmul.f32 %v654, %v673
  %v688 = vmul.f32 %v655, %v673
  %v689 = vmul.f32 %v656, %v673
  %v690 = vmul.f32 %v657, %v673
  %v691 = vmul.f32 %v658, %v673
  %v692 = vmul.f32 %v659, %v673
  %v693 = vmul.f32 %v660, %v673
  %v694 = vmul.f32 %v661, %v673
  %v695 = vmul.f32 %v662, %v673
  %v696 = vmul.f32 %v663, %v673
  %v697 = vmul.f32 %v664, %v673
  %v698 = vmul.f32 %v665, %v673
  %v699 = vmul.f32 %v666, %v673
  %v700 = vmul.f32 %v667, %v673
  %v701 = vmul.f32 %v668, %v673
  %v702 = vmul.f32 %v669, %v673
  %v703 = vmul.f32 %v670, %v673
  %v704 = vmul.f32 %v671, %v673
  %v706 = vlaneseq
  %v707 = vshrl.u32 %v706, 7
  %v708 = vsub.s32 0, %v707
  %v709 = vrot.slane %v434, %v708
  %v711 = vadd.f32 %v674, %v709
  %v712 = vadd.f32 %v675, %v709
  %v713 = vadd.f32 %v676, %v709
  %v714 = vadd.f32 %v677, %v709
  %v715 = vadd.f32 %v678, %v709
  %v716 = vadd.f32 %v679, %v709
  %v717 = vadd.f32 %v680, %v709
  %v718 = vadd.f32 %v681, %v709
  %v719 = vadd.f32 %v682, %v709
  %v720 = vadd.f32 %v683, %v709
  %v721 = vadd.f32 %v684, %v709
  %v722 = vadd.f32 %v685, %v709
  %v723 = vadd.f32 %v686, %v709
  %v724 = vadd.f32 %v687, %v709
  %v725 = vadd.f32 %v688, %v709
  %v726 = vadd.f32 %v689, %v709
  %v727 = vadd.f32 %v690, %v709
  %v728 = vadd.f32 %v691, %v709
  %v729 = vadd.f32 %v692, %v709
  %v730 = vadd.f32 %v693, %v709
  %v731 = vadd.f32 %v694, %v709
  %v732 = vadd.f32 %v695, %v709
  %v733 = vadd.f32 %v696, %v709
  %v734 = vadd.f32 %v697, %v709
  %v735 = vadd.f32 %v698, %v709
  %v736 = vadd.f32 %v699, %v709
  %v737 = vadd.f32 %v700, %v709
  %v738 = vadd.f32 %v701, %v709
  %v739 = vadd.f32 %v702, %v709
  %v740 = vadd.f32 %v703, %v709
  %v741 = vadd.f32 %v704, %v709
  %v742 = vld [vmem:[%s5] sm:$0xff]
  %v743 = vld [vmem:[%s5 + $0x8] sm:$0xff]
  %v744 = vld [vmem:[%s5 + $0x10] sm:$0xff]
  %v745 = vld [vmem:[%s5 + $0x18] sm:$0xff]
  %v746 = vld [vmem:[%s5 + $0x20] sm:$0xff]
  %v747 = vld [vmem:[%s5 + $0x28] sm:$0xff]
  %v748 = vld [vmem:[%s5 + $0x30] sm:$0xff]
  %v749 = vld [vmem:[%s5 + $0x38] sm:$0xff]
  %v750 = vld [vmem:[%s5 + $0x40] sm:$0xff]
  %v751 = vld [vmem:[%s5 + $0x48] sm:$0xff]
  %v752 = vld [vmem:[%s6] sm:$0x1]
  %v754 = vsel %vm435, %v711, 0
  %v757 = vsel %vm435, %v712, 0
  %v760 = vsel %vm435, %v713, 0
  %v763 = vsel %vm435, %v714, 0
  %v766 = vsel %vm435, %v715, 0
  %v769 = vsel %vm435, %v716, 0
  %v772 = vsel %vm435, %v717, 0
  %v775 = vsel %vm435, %v718, 0
  %v778 = vsel %vm435, %v719, 0
  %v781 = vsel %vm435, %v720, 0
  %v784 = vsel %vm435, %v721, 0
  %v787 = vsel %vm435, %v722, 0
  %v790 = vsel %vm435, %v723, 0
  %v793 = vsel %vm435, %v724, 0
  %v796 = vsel %vm435, %v725, 0
  %v799 = vsel %vm435, %v726, 0
  %v802 = vsel %vm435, %v727, 0
  %v805 = vsel %vm435, %v728, 0
  %v808 = vsel %vm435, %v729, 0
  %v811 = vsel %vm435, %v730, 0
  %v814 = vsel %vm435, %v731, 0
  %v817 = vsel %vm435, %v732, 0
  %819 = vmatprep.subr.mxu0 0.0
  %820 = vmatpush1.msra.mxu0 %v742
  %821 = vmatprep.subr.mxu0 0.0
  %822 = vmatpush1.msra.mxu0 0.0
  %823 = vmatprep.subr.mxu0 0.0
  %824 = vmatpush1.msra.mxu0 0.0
  %825 = vmatprep.subr.mxu0 0.0
  %826 = vmatpush1.msra.mxu0 0.0
  %827 = vmatprep.subr.mxu0 0.0
  %828 = vmatpush1.msra.mxu0 0.0
  %829 = vmatprep.subr.mxu0 0.0
  %830 = vmatpush1.msra.mxu0 0.0
  %831 = vmatprep.subr.mxu0 0.0
  %832 = vmatpush1.msra.mxu0 0.0
  %833 = vmatprep.subr.mxu0 0.0
  %834 = vmatpush1.msra.mxu0 0.0
  %835 = vmatprep.subr.mxu0 0.0
  %836 = vmatpush1.msra.mxu0 0.0
  %837 = vmatprep.subr.mxu0 0.0
  %838 = vmatpush1.msra.mxu0 0.0
  %839 = vmatprep.subr.mxu0 0.0
  %840 = vmatpush1.msra.mxu0 0.0
  %841 = vmatprep.subr.mxu0 0.0
  %842 = vmatpush1.msra.mxu0 0.0
  %843 = vmatprep.subr.mxu0 0.0
  %844 = vmatpush1.msra.mxu0 0.0
  %845 = vmatprep.subr.mxu0 0.0
  %846 = vmatpush1.msra.mxu0 0.0
  %847 = vmatprep.subr.mxu0 0.0
  %848 = vmatpush1.msra.mxu0 0.0
  %849 = vmatprep.subr.mxu0 0.0
  %850 = vmatpush1.msra.mxu0 0.0
  %851 = vmatprep.subr.mxu0 0.0
  %852 = vmatpush1.msra.mxu0 0.0
  %853 = vmatprep.subr.mxu0 0.0
  %854 = vmatpush1.msra.mxu0 0.0
  %855 = vmatprep.subr.mxu0 0.0
  %856 = vmatpush1.msra.mxu0 0.0
  %857 = vmatprep.subr.mxu0 0.0
  %858 = vmatpush1.msra.mxu0 0.0
  %859 = vmatprep.subr.mxu0 0.0
  %860 = vmatpush1.msra.mxu0 0.0
  %861 = vmatprep.subr.mxu0 0.0
  %862 = vmatpush1.msra.mxu0 0.0
  %863 = vmatprep.subr.mxu0 0.0
  %864 = vmatpush1.msra.mxu0 0.0
  %865 = vmatprep.subr.mxu0 0.0
  %866 = vmatpush1.msra.mxu0 0.0
  %867 = vmatprep.subr.mxu0 0.0
  %868 = vmatpush1.msra.mxu0 0.0
  %869 = vmatprep.subr.mxu0 0.0
  %870 = vmatpush1.msra.mxu0 0.0
  %871 = vmatprep.subr.mxu0 0.0
  %872 = vmatpush1.msra.mxu0 0.0
  %873 = vmatprep.subr.mxu0 0.0
  %874 = vmatpush1.msra.mxu0 0.0
  %875 = vmatprep.subr.mxu0 0.0
  %876 = vmatpush1.msra.mxu0 0.0
  %877 = vmatprep.subr.mxu0 0.0
  %878 = vmatpush1.msra.mxu0 0.0
  %879 = vmatprep.subr.mxu0 0.0
  %880 = vmatpush1.msra.mxu0 0.0
  %881 = vmatprep.subr.mxu0 0.0
  %882 = vmatpush1.msra.mxu0 0.0
  %883 = vmatprep.mubr.f32.mxu0 0.0
  %884 = vmatmul.mubr.f32.gmra.mrb[0].mxu0 %v754
  %v885 = vpop.f32.mrb[0].mxu0
  %v886 = vadd.f32 0.0, %v885
  %v887 = vpop.f32.mrb[0].mxu0
  %888 = vmatprep.mubr.f32.mxu0 0.0
  %889 = vmatmul.mubr.f32.gmra.mrb[0].mxu0 %v757
  %v890 = vpop.f32.mrb[0].mxu0
  %v891 = vadd.f32 0.0, %v890
  %v892 = vpop.f32.mrb[0].mxu0
  %893 = vmatprep.mubr.f32.mxu0 0.0
  %894 = vmatmul.mubr.f32.gmra.mrb[0].mxu0 %v760
  %v895 = vpop.f32.mrb[0].mxu0
  %v896 = vadd.f32 0.0, %v895
  %v897 = vpop.f32.mrb[0].mxu0
  %898 = vmatprep.mubr.f32.mxu0 0.0
  %899 = vmatmul.mubr.f32.gmra.mrb[0].mxu0 %v763
  %v900 = vpop.f32.mrb[0].mxu0
  %v901 = vadd.f32 0.0, %v900
  %v902 = vpop.f32.mrb[0].mxu0
  %903 = vmatprep.mubr.f32.mxu0 0.0
  %904 = vmatmul.mubr.f32.gmra.mrb[0].mxu0 %v766
  %v905 = vpop.f32.mrb[0].mxu0
  %v906 = vadd.f32 0.0, %v905
  %v907 = vpop.f32.mrb[0].mxu0
  %908 = vmatprep.mubr.f32.mxu0 0.0
  %909 = vmatmul.mubr.f32.gmra.mrb[0].mxu0 %v769
  %v910 = vpop.f32.mrb[0].mxu0
  %v911 = vadd.f32 0.0, %v910
  %v912 = vpop.f32.mrb[0].mxu0
  %913 = vmatprep.mubr.f32.mxu0 0.0
  %914 = vmatmul.mubr.f32.gmra.mrb[0].mxu0 %v772
  %v915 = vpop.f32.mrb[0].mxu0
  %v916 = vadd.f32 0.0, %v915
  %v917 = vpop.f32.mrb[0].mxu0
  %918 = vmatprep.mubr.f32.mxu0 0.0
  %919 = vmatmul.mubr.f32.gmra.mrb[0].mxu0 %v775
  %v920 = vpop.f32.mrb[0].mxu0
  %v921 = vadd.f32 0.0, %v920
  %v922 = vpop.f32.mrb[0].mxu0
  %923 = vmatprep.mubr.f32.mxu0 0.0
  %924 = vmatmul.mubr.f32.gmra.mrb[0].mxu0 %v778
  %v925 = vpop.f32.mrb[0].mxu0
  %v926 = vadd.f32 0.0, %v925
  %v927 = vpop.f32.mrb[0].mxu0
  %928 = vmatprep.mubr.f32.mxu0 0.0
  %929 = vmatmul.mubr.f32.gmra.mrb[0].mxu0 %v781
  %v930 = vpop.f32.mrb[0].mxu0
  %v931 = vadd.f32 0.0, %v930
  %v932 = vpop.f32.mrb[0].mxu0
  %933 = vmatprep.mubr.f32.mxu0 0.0
  %934 = vmatmul.mubr.f32.gmra.mrb[0].mxu0 %v784
  %v935 = vpop.f32.mrb[0].mxu0
  %v936 = vadd.f32 0.0, %v935
  %v937 = vpop.f32.mrb[0].mxu0
  %938 = vmatprep.mubr.f32.mxu0 0.0
  %939 = vmatmul.mubr.f32.gmra.mrb[0].mxu0 %v787
  %v940 = vpop.f32.mrb[0].mxu0
  %v941 = vadd.f32 0.0, %v940
  %v942 = vpop.f32.mrb[0].mxu0
  %943 = vmatprep.mubr.f32.mxu0 0.0
  %944 = vmatmul.mubr.f32.gmra.mrb[0].mxu0 %v790
  %v945 = vpop.f32.mrb[0].mxu0
  %v946 = vadd.f32 0.0, %v945
  %v947 = vpop.f32.mrb[0].mxu0
  %948 = vmatprep.mubr.f32.mxu0 0.0
  %949 = vmatmul.mubr.f32.gmra.mrb[0].mxu0 %v793
  %v950 = vpop.f32.mrb[0].mxu0
  %v951 = vadd.f32 0.0, %v950
  %v952 = vpop.f32.mrb[0].mxu0
  %953 = vmatprep.mubr.f32.mxu0 0.0
  %954 = vmatmul.mubr.f32.gmra.mrb[0].mxu0 %v796
  %v955 = vpop.f32.mrb[0].mxu0
  %v956 = vadd.f32 0.0, %v955
  %v957 = vpop.f32.mrb[0].mxu0
  %958 = vmatprep.mubr.f32.mxu0 0.0
  %959 = vmatmul.mubr.f32.gmra.mrb[0].mxu0 %v799
  %v960 = vpop.f32.mrb[0].mxu0
  %v961 = vadd.f32 0.0, %v960
  %v962 = vpop.f32.mrb[0].mxu0
  %963 = vmatprep.mubr.f32.mxu0 0.0
  %964 = vmatmul.mubr.f32.gmra.mrb[0].mxu0 %v802
  %v965 = vpop.f32.mrb[0].mxu0
  %v966 = vadd.f32 0.0, %v965
  %v967 = vpop.f32.mrb[0].mxu0
  %968 = vmatprep.mubr.f32.mxu0 0.0
  %969 = vmatmul.mubr.f32.gmra.mrb[0].mxu0 %v805
  %v970 = vpop.f32.mrb[0].mxu0
  %v971 = vadd.f32 0.0, %v970
  %v972 = vpop.f32.mrb[0].mxu0
  %973 = vmatprep.mubr.f32.mxu0 0.0
  %974 = vmatmul.mubr.f32.gmra.mrb[0].mxu0 %v808
  %v975 = vpop.f32.mrb[0].mxu0
  %v976 = vadd.f32 0.0, %v975
  %v977 = vpop.f32.mrb[0].mxu0
  %978 = vmatprep.mubr.f32.mxu0 0.0
  %979 = vmatmul.mubr.f32.gmra.mrb[0].mxu0 %v811
  %v980 = vpop.f32.mrb[0].mxu0
  %v981 = vadd.f32 0.0, %v980
  %v982 = vpop.f32.mrb[0].mxu0
  %983 = vmatprep.mubr.f32.mxu0 0.0
  %984 = vmatmul.mubr.f32.gmra.mrb[0].mxu0 %v814
  %v985 = vpop.f32.mrb[0].mxu0
  %v986 = vadd.f32 0.0, %v985
  %v987 = vpop.f32.mrb[0].mxu0
  %988 = vmatprep.mubr.f32.mxu0 0.0
  %989 = vmatmul.mubr.f32.gmra.mrb[0].mxu0 %v817
  %v990 = vpop.f32.mrb[0].mxu0
  %v991 = vadd.f32 0.0, %v990
  %v992 = vpop.f32.mrb[0].mxu0
  %993 = vdwg.mxu0
  %v995 = vlaneseq
  %v996 = vshrl.u32 %v995, 7
  %v997 = vsub.s32 0, %v996
  %v998 = vrot.slane %v752, %v997
  %v1000 = vadd.f32 %v998, %v886
  %v1001 = vadd.f32 %v998, %v891
  %v1002 = vadd.f32 %v998, %v896
  %v1003 = vadd.f32 %v998, %v901
  %v1004 = vadd.f32 %v998, %v906
  %v1005 = vadd.f32 %v998, %v911
  %v1006 = vadd.f32 %v998, %v916
  %v1007 = vadd.f32 %v998, %v921
  %v1008 = vadd.f32 %v998, %v926
  %v1009 = vadd.f32 %v998, %v931
  %v1010 = vadd.f32 %v998, %v936
  %v1011 = vadd.f32 %v998, %v941
  %v1012 = vadd.f32 %v998, %v946
  %v1013 = vadd.f32 %v998, %v951
  %v1014 = vadd.f32 %v998, %v956
  %v1015 = vadd.f32 %v998, %v961
  %v1016 = vadd.f32 %v998, %v966
  %v1017 = vadd.f32 %v998, %v971
  %v1018 = vadd.f32 %v998, %v976
  %v1019 = vadd.f32 %v998, %v981
  %v1020 = vadd.f32 %v998, %v986
  %v1021 = vadd.f32 %v998, %v991
  %v1023 = vsel %vm435, %v733, 0
  %1025 = vmatprep.subr.mxu0 0.0
  %1026 = vmatpush1.msra.mxu0 %v743
  %1027 = vmatprep.subr.mxu0 0.0
  %1028 = vmatpush1.msra.mxu0 0.0
  %1029 = vmatprep.subr.mxu0 0.0
  %1030 = vmatpush1.msra.mxu0 0.0
  %1031 = vmatprep.subr.mxu0 0.0
  %1032 = vmatpush1.msra.mxu0 0.0
  %1033 = vmatprep.subr.mxu0 0.0
  %1034 = vmatpush1.msra.mxu0 0.0
  %1035 = vmatprep.subr.mxu0 0.0
  %1036 = vmatpush1.msra.mxu0 0.0
  %1037 = vmatprep.subr.mxu0 0.0
  %1038 = vmatpush1.msra.mxu0 0.0
  %1039 = vmatprep.subr.mxu0 0.0
  %1040 = vmatpush1.msra.mxu0 0.0
  %1041 = vmatprep.subr.mxu0 0.0
  %1042 = vmatpush1.msra.mxu0 0.0
  %1043 = vmatprep.subr.mxu0 0.0
  %1044 = vmatpush1.msra.mxu0 0.0
  %1045 = vmatprep.subr.mxu0 0.0
  %1046 = vmatpush1.msra.mxu0 0.0
  %1047 = vmatprep.subr.mxu0 0.0
  %1048 = vmatpush1.msra.mxu0 0.0
  %1049 = vmatprep.subr.mxu0 0.0
  %1050 = vmatpush1.msra.mxu0 0.0
  %1051 = vmatprep.subr.mxu0 0.0
  %1052 = vmatpush1.msra.mxu0 0.0
  %1053 = vmatprep.subr.mxu0 0.0
  %1054 = vmatpush1.msra.mxu0 0.0
  %1055 = vmatprep.subr.mxu0 0.0
  %1056 = vmatpush1.msra.mxu0 0.0
  %1057 = vmatprep.subr.mxu0 0.0
  %1058 = vmatpush1.msra.mxu0 0.0
  %1059 = vmatprep.subr.mxu0 0.0
  %1060 = vmatpush1.msra.mxu0 0.0
  %1061 = vmatprep.subr.mxu0 0.0
  %1062 = vmatpush1.msra.mxu0 0.0
  %1063 = vmatprep.subr.mxu0 0.0
  %1064 = vmatpush1.msra.mxu0 0.0
  %1065 = vmatprep.subr.mxu0 0.0
  %1066 = vmatpush1.msra.mxu0 0.0
  %1067 = vmatprep.subr.mxu0 0.0
  %1068 = vmatpush1.msra.mxu0 0.0
  %1069 = vmatprep.subr.mxu0 0.0
  %1070 = vmatpush1.msra.mxu0 0.0
  %1071 = vmatprep.subr.mxu0 0.0
  %1072 = vmatpush1.msra.mxu0 0.0
  %1073 = vmatprep.subr.mxu0 0.0
  %1074 = vmatpush1.msra.mxu0 0.0
  %1075 = vmatprep.subr.mxu0 0.0
  %1076 = vmatpush1.msra.mxu0 0.0
  %1077 = vmatprep.subr.mxu0 0.0
  %1078 = vmatpush1.msra.mxu0 0.0
  %1079 = vmatprep.subr.mxu0 0.0
  %1080 = vmatpush1.msra.mxu0 0.0
  %1081 = vmatprep.subr.mxu0 0.0
  %1082 = vmatpush1.msra.mxu0 0.0
  %1083 = vmatprep.subr.mxu0 0.0
  %1084 = vmatpush1.msra.mxu0 0.0
  %1085 = vmatprep.subr.mxu0 0.0
  %1086 = vmatpush1.msra.mxu0 0.0
  %1087 = vmatprep.subr.mxu0 0.0
  %1088 = vmatpush1.msra.mxu0 0.0
  %1089 = vmatprep.mubr.f32.mxu0 0.0
  %1090 = vmatmul.mubr.f32.gmra.mrb[0].mxu0 %v757
  %v1091 = vpop.f32.mrb[0].mxu0
  %v1092 = vadd.f32 0.0, %v1091
  %v1093 = vpop.f32.mrb[0].mxu0
  %1094 = vmatprep.mubr.f32.mxu0 0.0
  %1095 = vmatmul.mubr.f32.gmra.mrb[0].mxu0 %v760
  %v1096 = vpop.f32.mrb[0].mxu0
  %v1097 = vadd.f32 0.0, %v1096
  %v1098 = vpop.f32.mrb[0].mxu0
  %1099 = vmatprep.mubr.f32.mxu0 0.0
  %1100 = vmatmul.mubr.f32.gmra.mrb[0].mxu0 %v763
  %v1101 = vpop.f32.mrb[0].mxu0
  %v1102 = vadd.f32 0.0, %v1101
  %v1103 = vpop.f32.mrb[0].mxu0
  %1104 = vmatprep.mubr.f32.mxu0 0.0
  %1105 = vmatmul.mubr.f32.gmra.mrb[0].mxu0 %v766
  %v1106 = vpop.f32.mrb[0].mxu0
  %v1107 = vadd.f32 0.0, %v1106
  %v1108 = vpop.f32.mrb[0].mxu0
  %1109 = vmatprep.mubr.f32.mxu0 0.0
  %1110 = vmatmul.mubr.f32.gmra.mrb[0].mxu0 %v769
  %v1111 = vpop.f32.mrb[0].mxu0
  %v1112 = vadd.f32 0.0, %v1111
  %v1113 = vpop.f32.mrb[0].mxu0
  %1114 = vmatprep.mubr.f32.mxu0 0.0
  %1115 = vmatmul.mubr.f32.gmra.mrb[0].mxu0 %v772
  %v1116 = vpop.f32.mrb[0].mxu0
  %v1117 = vadd.f32 0.0, %v1116
  %v1118 = vpop.f32.mrb[0].mxu0
  %1119 = vmatprep.mubr.f32.mxu0 0.0
  %1120 = vmatmul.mubr.f32.gmra.mrb[0].mxu0 %v775
  %v1121 = vpop.f32.mrb[0].mxu0
  %v1122 = vadd.f32 0.0, %v1121
  %v1123 = vpop.f32.mrb[0].mxu0
  %1124 = vmatprep.mubr.f32.mxu0 0.0
  %1125 = vmatmul.mubr.f32.gmra.mrb[0].mxu0 %v778
  %v1126 = vpop.f32.mrb[0].mxu0
  %v1127 = vadd.f32 0.0, %v1126
  %v1128 = vpop.f32.mrb[0].mxu0
  %1129 = vmatprep.mubr.f32.mxu0 0.0
  %1130 = vmatmul.mubr.f32.gmra.mrb[0].mxu0 %v781
  %v1131 = vpop.f32.mrb[0].mxu0
  %v1132 = vadd.f32 0.0, %v1131
  %v1133 = vpop.f32.mrb[0].mxu0
  %1134 = vmatprep.mubr.f32.mxu0 0.0
  %1135 = vmatmul.mubr.f32.gmra.mrb[0].mxu0 %v784
  %v1136 = vpop.f32.mrb[0].mxu0
  %v1137 = vadd.f32 0.0, %v1136
  %v1138 = vpop.f32.mrb[0].mxu0
  %1139 = vmatprep.mubr.f32.mxu0 0.0
  %1140 = vmatmul.mubr.f32.gmra.mrb[0].mxu0 %v787
  %v1141 = vpop.f32.mrb[0].mxu0
  %v1142 = vadd.f32 0.0, %v1141
  %v1143 = vpop.f32.mrb[0].mxu0
  %1144 = vmatprep.mubr.f32.mxu0 0.0
  %1145 = vmatmul.mubr.f32.gmra.mrb[0].mxu0 %v790
  %v1146 = vpop.f32.mrb[0].mxu0
  %v1147 = vadd.f32 0.0, %v1146
  %v1148 = vpop.f32.mrb[0].mxu0
  %1149 = vmatprep.mubr.f32.mxu0 0.0
  %1150 = vmatmul.mubr.f32.gmra.mrb[0].mxu0 %v793
  %v1151 = vpop.f32.mrb[0].mxu0
  %v1152 = vadd.f32 0.0, %v1151
  %v1153 = vpop.f32.mrb[0].mxu0
  %1154 = vmatprep.mubr.f32.mxu0 0.0
  %1155 = vmatmul.mubr.f32.gmra.mrb[0].mxu0 %v796
  %v1156 = vpop.f32.mrb[0].mxu0
  %v1157 = vadd.f32 0.0, %v1156
  %v1158 = vpop.f32.mrb[0].mxu0
  %1159 = vmatprep.mubr.f32.mxu0 0.0
  %1160 = vmatmul.mubr.f32.gmra.mrb[0].mxu0 %v799
  %v1161 = vpop.f32.mrb[0].mxu0
  %v1162 = vadd.f32 0.0, %v1161
  %v1163 = vpop.f32.mrb[0].mxu0
  %1164 = vmatprep.mubr.f32.mxu0 0.0
  %1165 = vmatmul.mubr.f32.gmra.mrb[0].mxu0 %v802
  %v1166 = vpop.f32.mrb[0].mxu0
  %v1167 = vadd.f32 0.0, %v1166
  %v1168 = vpop.f32.mrb[0].mxu0
  %1169 = vmatprep.mubr.f32.mxu0 0.0
  %1170 = vmatmul.mubr.f32.gmra.mrb[0].mxu0 %v805
  %v1171 = vpop.f32.mrb[0].mxu0
  %v1172 = vadd.f32 0.0, %v1171
  %v1173 = vpop.f32.mrb[0].mxu0
  %1174 = vmatprep.mubr.f32.mxu0 0.0
  %1175 = vmatmul.mubr.f32.gmra.mrb[0].mxu0 %v808
  %v1176 = vpop.f32.mrb[0].mxu0
  %v1177 = vadd.f32 0.0, %v1176
  %v1178 = vpop.f32.mrb[0].mxu0
  %1179 = vmatprep.mubr.f32.mxu0 0.0
  %1180 = vmatmul.mubr.f32.gmra.mrb[0].mxu0 %v811
  %v1181 = vpop.f32.mrb[0].mxu0
  %v1182 = vadd.f32 0.0, %v1181
  %v1183 = vpop.f32.mrb[0].mxu0
  %1184 = vmatprep.mubr.f32.mxu0 0.0
  %1185 = vmatmul.mubr.f32.gmra.mrb[0].mxu0 %v814
  %v1186 = vpop.f32.mrb[0].mxu0
  %v1187 = vadd.f32 0.0, %v1186
  %v1188 = vpop.f32.mrb[0].mxu0
  %1189 = vmatprep.mubr.f32.mxu0 0.0
  %1190 = vmatmul.mubr.f32.gmra.mrb[0].mxu0 %v817
  %v1191 = vpop.f32.mrb[0].mxu0
  %v1192 = vadd.f32 0.0, %v1191
  %v1193 = vpop.f32.mrb[0].mxu0
  %1194 = vmatprep.mubr.f32.mxu0 0.0
  %1195 = vmatmul.mubr.f32.gmra.mrb[0].mxu0 %v1023
  %v1196 = vpop.f32.mrb[0].mxu0
  %v1197 = vadd.f32 0.0, %v1196
  %v1198 = vpop.f32.mrb[0].mxu0
  %1199 = vdwg.mxu0
  %v1200 = vadd.f32 %v1000, %v1092
  %v1201 = vadd.f32 %v1001, %v1097
  %v1202 = vadd.f32 %v1002, %v1102
  %v1203 = vadd.f32 %v1003, %v1107
  %v1204 = vadd.f32 %v1004, %v1112
  %v1205 = vadd.f32 %v1005, %v1117
  %v1206 = vadd.f32 %v1006, %v1122
  %v1207 = vadd.f32 %v1007, %v1127
  %v1208 = vadd.f32 %v1008, %v1132
  %v1209 = vadd.f32 %v1009, %v1137
  %v1210 = vadd.f32 %v1010, %v1142
  %v1211 = vadd.f32 %v1011, %v1147
  %v1212 = vadd.f32 %v1012, %v1152
  %v1213 = vadd.f32 %v1013, %v1157
  %v1214 = vadd.f32 %v1014, %v1162
  %v1215 = vadd.f32 %v1015, %v1167
  %v1216 = vadd.f32 %v1016, %v1172
  %v1217 = vadd.f32 %v1017, %v1177
  %v1218 = vadd.f32 %v1018, %v1182
  %v1219 = vadd.f32 %v1019, %v1187
  %v1220 = vadd.f32 %v1020, %v1192
  %v1221 = vadd.f32 %v1021, %v1197
  %v1223 = vsel %vm435, %v734, 0
  %1225 = vmatprep.subr.mxu0 0.0
  %1226 = vmatpush1.msra.mxu0 %v744
  %1227 = vmatprep.subr.mxu0 0.0
  %1228 = vmatpush1.msra.mxu0 0.0
  %1229 = vmatprep.subr.mxu0 0.0
  %1230 = vmatpush1.msra.mxu0 0.0
  %1231 = vmatprep.subr.mxu0 0.0
  %1232 = vmatpush1.msra.mxu0 0.0
  %1233 = vmatprep.subr.mxu0 0.0
  %1234 = vmatpush1.msra.mxu0 0.0
  %1235 = vmatprep.subr.mxu0 0.0
  %1236 = vmatpush1.msra.mxu0 0.0
  %1237 = vmatprep.subr.mxu0 0.0
  %1238 = vmatpush1.msra.mxu0 0.0
  %1239 = vmatprep.subr.mxu0 0.0
  %1240 = vmatpush1.msra.mxu0 0.0
  %1241 = vmatprep.subr.mxu0 0.0
  %1242 = vmatpush1.msra.mxu0 0.0
  %1243 = vmatprep.subr.mxu0 0.0
  %1244 = vmatpush1.msra.mxu0 0.0
  %1245 = vmatprep.subr.mxu0 0.0
  %1246 = vmatpush1.msra.mxu0 0.0
  %1247 = vmatprep.subr.mxu0 0.0
  %1248 = vmatpush1.msra.mxu0 0.0
  %1249 = vmatprep.subr.mxu0 0.0
  %1250 = vmatpush1.msra.mxu0 0.0
  %1251 = vmatprep.subr.mxu0 0.0
  %1252 = vmatpush1.msra.mxu0 0.0
  %1253 = vmatprep.subr.mxu0 0.0
  %1254 = vmatpush1.msra.mxu0 0.0
  %1255 = vmatprep.subr.mxu0 0.0
  %1256 = vmatpush1.msra.mxu0 0.0
  %1257 = vmatprep.subr.mxu0 0.0
  %1258 = vmatpush1.msra.mxu0 0.0
  %1259 = vmatprep.subr.mxu0 0.0
  %1260 = vmatpush1.msra.mxu0 0.0
  %1261 = vmatprep.subr.mxu0 0.0
  %1262 = vmatpush1.msra.mxu0 0.0
  %1263 = vmatprep.subr.mxu0 0.0
  %1264 = vmatpush1.msra.mxu0 0.0
  %1265 = vmatprep.subr.mxu0 0.0
  %1266 = vmatpush1.msra.mxu0 0.0
  %1267 = vmatprep.subr.mxu0 0.0
  %1268 = vmatpush1.msra.mxu0 0.0
  %1269 = vmatprep.subr.mxu0 0.0
  %1270 = vmatpush1.msra.mxu0 0.0
  %1271 = vmatprep.subr.mxu0 0.0
  %1272 = vmatpush1.msra.mxu0 0.0
  %1273 = vmatprep.subr.mxu0 0.0
  %1274 = vmatpush1.msra.mxu0 0.0
  %1275 = vmatprep.subr.mxu0 0.0
  %1276 = vmatpush1.msra.mxu0 0.0
  %1277 = vmatprep.subr.mxu0 0.0
  %1278 = vmatpush1.msra.mxu0 0.0
  %1279 = vmatprep.subr.mxu0 0.0
  %1280 = vmatpush1.msra.mxu0 0.0
  %1281 = vmatprep.subr.mxu0 0.0
  %1282 = vmatpush1.msra.mxu0 0.0
  %1283 = vmatprep.subr.mxu0 0.0
  %1284 = vmatpush1.msra.mxu0 0.0
  %1285 = vmatprep.subr.mxu0 0.0
  %1286 = vmatpush1.msra.mxu0 0.0
  %1287 = vmatprep.subr.mxu0 0.0
  %1288 = vmatpush1.msra.mxu0 0.0
  %1289 = vmatprep.mubr.f32.mxu0 0.0
  %1290 = vmatmul.mubr.f32.gmra.mrb[0].mxu0 %v760
  %v1291 = vpop.f32.mrb[0].mxu0
  %v1292 = vadd.f32 0.0, %v1291
  %v1293 = vpop.f32.mrb[0].mxu0
  %1294 = vmatprep.mubr.f32.mxu0 0.0
  %1295 = vmatmul.mubr.f32.gmra.mrb[0].mxu0 %v763
  %v1296 = vpop.f32.mrb[0].mxu0
  %v1297 = vadd.f32 0.0, %v1296
  %v1298 = vpop.f32.mrb[0].mxu0
  %1299 = vmatprep.mubr.f32.mxu0 0.0
  %1300 = vmatmul.mubr.f32.gmra.mrb[0].mxu0 %v766
  %v1301 = vpop.f32.mrb[0].mxu0
  %v1302 = vadd.f32 0.0, %v1301
  %v1303 = vpop.f32.mrb[0].mxu0
  %1304 = vmatprep.mubr.f32.mxu0 0.0
  %1305 = vmatmul.mubr.f32.gmra.mrb[0].mxu0 %v769
  %v1306 = vpop.f32.mrb[0].mxu0
  %v1307 = vadd.f32 0.0, %v1306
  %v1308 = vpop.f32.mrb[0].mxu0
  %1309 = vmatprep.mubr.f32.mxu0 0.0
  %1310 = vmatmul.mubr.f32.gmra.mrb[0].mxu0 %v772
  %v1311 = vpop.f32.mrb[0].mxu0
  %v1312 = vadd.f32 0.0, %v1311
  %v1313 = vpop.f32.mrb[0].mxu0
  %1314 = vmatprep.mubr.f32.mxu0 0.0
  %1315 = vmatmul.mubr.f32.gmra.mrb[0].mxu0 %v775
  %v1316 = vpop.f32.mrb[0].mxu0
  %v1317 = vadd.f32 0.0, %v1316
  %v1318 = vpop.f32.mrb[0].mxu0
  %1319 = vmatprep.mubr.f32.mxu0 0.0
  %1320 = vmatmul.mubr.f32.gmra.mrb[0].mxu0 %v778
  %v1321 = vpop.f32.mrb[0].mxu0
  %v1322 = vadd.f32 0.0, %v1321
  %v1323 = vpop.f32.mrb[0].mxu0
  %1324 = vmatprep.mubr.f32.mxu0 0.0
  %1325 = vmatmul.mubr.f32.gmra.mrb[0].mxu0 %v781
  %v1326 = vpop.f32.mrb[0].mxu0
  %v1327 = vadd.f32 0.0, %v1326
  %v1328 = vpop.f32.mrb[0].mxu0
  %1329 = vmatprep.mubr.f32.mxu0 0.0
  %1330 = vmatmul.mubr.f32.gmra.mrb[0].mxu0 %v784
  %v1331 = vpop.f32.mrb[0].mxu0
  %v1332 = vadd.f32 0.0, %v1331
  %v1333 = vpop.f32.mrb[0].mxu0
  %1334 = vmatprep.mubr.f32.mxu0 0.0
  %1335 = vmatmul.mubr.f32.gmra.mrb[0].mxu0 %v787
  %v1336 = vpop.f32.mrb[0].mxu0
  %v1337 = vadd.f32 0.0, %v1336
  %v1338 = vpop.f32.mrb[0].mxu0
  %1339 = vmatprep.mubr.f32.mxu0 0.0
  %1340 = vmatmul.mubr.f32.gmra.mrb[0].mxu0 %v790
  %v1341 = vpop.f32.mrb[0].mxu0
  %v1342 = vadd.f32 0.0, %v1341
  %v1343 = vpop.f32.mrb[0].mxu0
  %1344 = vmatprep.mubr.f32.mxu0 0.0
  %1345 = vmatmul.mubr.f32.gmra.mrb[0].mxu0 %v793
  %v1346 = vpop.f32.mrb[0].mxu0
  %v1347 = vadd.f32 0.0, %v1346
  %v1348 = vpop.f32.mrb[0].mxu0
  %1349 = vmatprep.mubr.f32.mxu0 0.0
  %1350 = vmatmul.mubr.f32.gmra.mrb[0].mxu0 %v796
  %v1351 = vpop.f32.mrb[0].mxu0
  %v1352 = vadd.f32 0.0, %v1351
  %v1353 = vpop.f32.mrb[0].mxu0
  %1354 = vmatprep.mubr.f32.mxu0 0.0
  %1355 = vmatmul.mubr.f32.gmra.mrb[0].mxu0 %v799
  %v1356 = vpop.f32.mrb[0].mxu0
  %v1357 = vadd.f32 0.0, %v1356
  %v1358 = vpop.f32.mrb[0].mxu0
  %1359 = vmatprep.mubr.f32.mxu0 0.0
  %1360 = vmatmul.mubr.f32.gmra.mrb[0].mxu0 %v802
  %v1361 = vpop.f32.mrb[0].mxu0
  %v1362 = vadd.f32 0.0, %v1361
  %v1363 = vpop.f32.mrb[0].mxu0
  %1364 = vmatprep.mubr.f32.mxu0 0.0
  %1365 = vmatmul.mubr.f32.gmra.mrb[0].mxu0 %v805
  %v1366 = vpop.f32.mrb[0].mxu0
  %v1367 = vadd.f32 0.0, %v1366
  %v1368 = vpop.f32.mrb[0].mxu0
  %1369 = vmatprep.mubr.f32.mxu0 0.0
  %1370 = vmatmul.mubr.f32.gmra.mrb[0].mxu0 %v808
  %v1371 = vpop.f32.mrb[0].mxu0
  %v1372 = vadd.f32 0.0, %v1371
  %v1373 = vpop.f32.mrb[0].mxu0
  %1374 = vmatprep.mubr.f32.mxu0 0.0
  %1375 = vmatmul.mubr.f32.gmra.mrb[0].mxu0 %v811
  %v1376 = vpop.f32.mrb[0].mxu0
  %v1377 = vadd.f32 0.0, %v1376
  %v1378 = vpop.f32.mrb[0].mxu0
  %1379 = vmatprep.mubr.f32.mxu0 0.0
  %1380 = vmatmul.mubr.f32.gmra.mrb[0].mxu0 %v814
  %v1381 = vpop.f32.mrb[0].mxu0
  %v1382 = vadd.f32 0.0, %v1381
  %v1383 = vpop.f32.mrb[0].mxu0
  %1384 = vmatprep.mubr.f32.mxu0 0.0
  %1385 = vmatmul.mubr.f32.gmra.mrb[0].mxu0 %v817
  %v1386 = vpop.f32.mrb[0].mxu0
  %v1387 = vadd.f32 0.0, %v1386
  %v1388 = vpop.f32.mrb[0].mxu0
  %1389 = vmatprep.mubr.f32.mxu0 0.0
  %1390 = vmatmul.mubr.f32.gmra.mrb[0].mxu0 %v1023
  %v1391 = vpop.f32.mrb[0].mxu0
  %v1392 = vadd.f32 0.0, %v1391
  %v1393 = vpop.f32.mrb[0].mxu0
  %1394 = vmatprep.mubr.f32.mxu0 0.0
  %1395 = vmatmul.mubr.f32.gmra.mrb[0].mxu0 %v1223
  %v1396 = vpop.f32.mrb[0].mxu0
  %v1397 = vadd.f32 0.0, %v1396
  %v1398 = vpop.f32.mrb[0].mxu0
  %1399 = vdwg.mxu0
  %v1400 = vadd.f32 %v1200, %v1292
  %v1401 = vadd.f32 %v1201, %v1297
  %v1402 = vadd.f32 %v1202, %v1302
  %v1403 = vadd.f32 %v1203, %v1307
  %v1404 = vadd.f32 %v1204, %v1312
  %v1405 = vadd.f32 %v1205, %v1317
  %v1406 = vadd.f32 %v1206, %v1322
  %v1407 = vadd.f32 %v1207, %v1327
  %v1408 = vadd.f32 %v1208, %v1332
  %v1409 = vadd.f32 %v1209, %v1337
  %v1410 = vadd.f32 %v1210, %v1342
  %v1411 = vadd.f32 %v1211, %v1347
  %v1412 = vadd.f32 %v1212, %v1352
  %v1413 = vadd.f32 %v1213, %v1357
  %v1414 = vadd.f32 %v1214, %v1362
  %v1415 = vadd.f32 %v1215, %v1367
  %v1416 = vadd.f32 %v1216, %v1372
  %v1417 = vadd.f32 %v1217, %v1377
  %v1418 = vadd.f32 %v1218, %v1382
  %v1419 = vadd.f32 %v1219, %v1387
  %v1420 = vadd.f32 %v1220, %v1392
  %v1421 = vadd.f32 %v1221, %v1397
  %v1423 = vsel %vm435, %v735, 0
  %1425 = vmatprep.subr.mxu0 0.0
  %1426 = vmatpush1.msra.mxu0 %v745
  %1427 = vmatprep.subr.mxu0 0.0
  %1428 = vmatpush1.msra.mxu0 0.0
  %1429 = vmatprep.subr.mxu0 0.0
  %1430 = vmatpush1.msra.mxu0 0.0
  %1431 = vmatprep.subr.mxu0 0.0
  %1432 = vmatpush1.msra.mxu0 0.0
  %1433 = vmatprep.subr.mxu0 0.0
  %1434 = vmatpush1.msra.mxu0 0.0
  %1435 = vmatprep.subr.mxu0 0.0
  %1436 = vmatpush1.msra.mxu0 0.0
  %1437 = vmatprep.subr.mxu0 0.0
  %1438 = vmatpush1.msra.mxu0 0.0
  %1439 = vmatprep.subr.mxu0 0.0
  %1440 = vmatpush1.msra.mxu0 0.0
  %1441 = vmatprep.subr.mxu0 0.0
  %1442 = vmatpush1.msra.mxu0 0.0
  %1443 = vmatprep.subr.mxu0 0.0
  %1444 = vmatpush1.msra.mxu0 0.0
  %1445 = vmatprep.subr.mxu0 0.0
  %1446 = vmatpush1.msra.mxu0 0.0
  %1447 = vmatprep.subr.mxu0 0.0
  %1448 = vmatpush1.msra.mxu0 0.0
  %1449 = vmatprep.subr.mxu0 0.0
  %1450 = vmatpush1.msra.mxu0 0.0
  %1451 = vmatprep.subr.mxu0 0.0
  %1452 = vmatpush1.msra.mxu0 0.0
  %1453 = vmatprep.subr.mxu0 0.0
  %1454 = vmatpush1.msra.mxu0 0.0
  %1455 = vmatprep.subr.mxu0 0.0
  %1456 = vmatpush1.msra.mxu0 0.0
  %1457 = vmatprep.subr.mxu0 0.0
  %1458 = vmatpush1.msra.mxu0 0.0
  %1459 = vmatprep.subr.mxu0 0.0
  %1460 = vmatpush1.msra.mxu0 0.0
  %1461 = vmatprep.subr.mxu0 0.0
  %1462 = vmatpush1.msra.mxu0 0.0
  %1463 = vmatprep.subr.mxu0 0.0
  %1464 = vmatpush1.msra.mxu0 0.0
  %1465 = vmatprep.subr.mxu0 0.0
  %1466 = vmatpush1.msra.mxu0 0.0
  %1467 = vmatprep.subr.mxu0 0.0
  %1468 = vmatpush1.msra.mxu0 0.0
  %1469 = vmatprep.subr.mxu0 0.0
  %1470 = vmatpush1.msra.mxu0 0.0
  %1471 = vmatprep.subr.mxu0 0.0
  %1472 = vmatpush1.msra.mxu0 0.0
  %1473 = vmatprep.subr.mxu0 0.0
  %1474 = vmatpush1.msra.mxu0 0.0
  %1475 = vmatprep.subr.mxu0 0.0
  %1476 = vmatpush1.msra.mxu0 0.0
  %1477 = vmatprep.subr.mxu0 0.0
  %1478 = vmatpush1.msra.mxu0 0.0
  %1479 = vmatprep.subr.mxu0 0.0
  %1480 = vmatpush1.msra.mxu0 0.0
  %1481 = vmatprep.subr.mxu0 0.0
  %1482 = vmatpush1.msra.mxu0 0.0
  %1483 = vmatprep.subr.mxu0 0.0
  %1484 = vmatpush1.msra.mxu0 0.0
  %1485 = vmatprep.subr.mxu0 0.0
  %1486 = vmatpush1.msra.mxu0 0.0
  %1487 = vmatprep.subr.mxu0 0.0
  %1488 = vmatpush1.msra.mxu0 0.0
  %1489 = vmatprep.mubr.f32.mxu0 0.0
  %1490 = vmatmul.mubr.f32.gmra.mrb[0].mxu0 %v763
  %v1491 = vpop.f32.mrb[0].mxu0
  %v1492 = vadd.f32 0.0, %v1491
  %v1493 = vpop.f32.mrb[0].mxu0
  %1494 = vmatprep.mubr.f32.mxu0 0.0
  %1495 = vmatmul.mubr.f32.gmra.mrb[0].mxu0 %v766
  %v1496 = vpop.f32.mrb[0].mxu0
  %v1497 = vadd.f32 0.0, %v1496
  %v1498 = vpop.f32.mrb[0].mxu0
  %1499 = vmatprep.mubr.f32.mxu0 0.0
  %1500 = vmatmul.mubr.f32.gmra.mrb[0].mxu0 %v769
  %v1501 = vpop.f32.mrb[0].mxu0
  %v1502 = vadd.f32 0.0, %v1501
  %v1503 = vpop.f32.mrb[0].mxu0
  %1504 = vmatprep.mubr.f32.mxu0 0.0
  %1505 = vmatmul.mubr.f32.gmra.mrb[0].mxu0 %v772
  %v1506 = vpop.f32.mrb[0].mxu0
  %v1507 = vadd.f32 0.0, %v1506
  %v1508 = vpop.f32.mrb[0].mxu0
  %1509 = vmatprep.mubr.f32.mxu0 0.0
  %1510 = vmatmul.mubr.f32.gmra.mrb[0].mxu0 %v775
  %v1511 = vpop.f32.mrb[0].mxu0
  %v1512 = vadd.f32 0.0, %v1511
  %v1513 = vpop.f32.mrb[0].mxu0
  %1514 = vmatprep.mubr.f32.mxu0 0.0
  %1515 = vmatmul.mubr.f32.gmra.mrb[0].mxu0 %v778
  %v1516 = vpop.f32.mrb[0].mxu0
  %v1517 = vadd.f32 0.0, %v1516
  %v1518 = vpop.f32.mrb[0].mxu0
  %1519 = vmatprep.mubr.f32.mxu0 0.0
  %1520 = vmatmul.mubr.f32.gmra.mrb[0].mxu0 %v781
  %v1521 = vpop.f32.mrb[0].mxu0
  %v1522 = vadd.f32 0.0, %v1521
  %v1523 = vpop.f32.mrb[0].mxu0
  %1524 = vmatprep.mubr.f32.mxu0 0.0
  %1525 = vmatmul.mubr.f32.gmra.mrb[0].mxu0 %v784
  %v1526 = vpop.f32.mrb[0].mxu0
  %v1527 = vadd.f32 0.0, %v1526
  %v1528 = vpop.f32.mrb[0].mxu0
  %1529 = vmatprep.mubr.f32.mxu0 0.0
  %1530 = vmatmul.mubr.f32.gmra.mrb[0].mxu0 %v787
  %v1531 = vpop.f32.mrb[0].mxu0
  %v1532 = vadd.f32 0.0, %v1531
  %v1533 = vpop.f32.mrb[0].mxu0
  %1534 = vmatprep.mubr.f32.mxu0 0.0
  %1535 = vmatmul.mubr.f32.gmra.mrb[0].mxu0 %v790
  %v1536 = vpop.f32.mrb[0].mxu0
  %v1537 = vadd.f32 0.0, %v1536
  %v1538 = vpop.f32.mrb[0].mxu0
  %1539 = vmatprep.mubr.f32.mxu0 0.0
  %1540 = vmatmul.mubr.f32.gmra.mrb[0].mxu0 %v793
  %v1541 = vpop.f32.mrb[0].mxu0
  %v1542 = vadd.f32 0.0, %v1541
  %v1543 = vpop.f32.mrb[0].mxu0
  %1544 = vmatprep.mubr.f32.mxu0 0.0
  %1545 = vmatmul.mubr.f32.gmra.mrb[0].mxu0 %v796
  %v1546 = vpop.f32.mrb[0].mxu0
  %v1547 = vadd.f32 0.0, %v1546
  %v1548 = vpop.f32.mrb[0].mxu0
  %1549 = vmatprep.mubr.f32.mxu0 0.0
  %1550 = vmatmul.mubr.f32.gmra.mrb[0].mxu0 %v799
  %v1551 = vpop.f32.mrb[0].mxu0
  %v1552 = vadd.f32 0.0, %v1551
  %v1553 = vpop.f32.mrb[0].mxu0
  %1554 = vmatprep.mubr.f32.mxu0 0.0
  %1555 = vmatmul.mubr.f32.gmra.mrb[0].mxu0 %v802
  %v1556 = vpop.f32.mrb[0].mxu0
  %v1557 = vadd.f32 0.0, %v1556
  %v1558 = vpop.f32.mrb[0].mxu0
  %1559 = vmatprep.mubr.f32.mxu0 0.0
  %1560 = vmatmul.mubr.f32.gmra.mrb[0].mxu0 %v805
  %v1561 = vpop.f32.mrb[0].mxu0
  %v1562 = vadd.f32 0.0, %v1561
  %v1563 = vpop.f32.mrb[0].mxu0
  %1564 = vmatprep.mubr.f32.mxu0 0.0
  %1565 = vmatmul.mubr.f32.gmra.mrb[0].mxu0 %v808
  %v1566 = vpop.f32.mrb[0].mxu0
  %v1567 = vadd.f32 0.0, %v1566
  %v1568 = vpop.f32.mrb[0].mxu0
  %1569 = vmatprep.mubr.f32.mxu0 0.0
  %1570 = vmatmul.mubr.f32.gmra.mrb[0].mxu0 %v811
  %v1571 = vpop.f32.mrb[0].mxu0
  %v1572 = vadd.f32 0.0, %v1571
  %v1573 = vpop.f32.mrb[0].mxu0
  %1574 = vmatprep.mubr.f32.mxu0 0.0
  %1575 = vmatmul.mubr.f32.gmra.mrb[0].mxu0 %v814
  %v1576 = vpop.f32.mrb[0].mxu0
  %v1577 = vadd.f32 0.0, %v1576
  %v1578 = vpop.f32.mrb[0].mxu0
  %1579 = vmatprep.mubr.f32.mxu0 0.0
  %1580 = vmatmul.mubr.f32.gmra.mrb[0].mxu0 %v817
  %v1581 = vpop.f32.mrb[0].mxu0
  %v1582 = vadd.f32 0.0, %v1581
  %v1583 = vpop.f32.mrb[0].mxu0
  %1584 = vmatprep.mubr.f32.mxu0 0.0
  %1585 = vmatmul.mubr.f32.gmra.mrb[0].mxu0 %v1023
  %v1586 = vpop.f32.mrb[0].mxu0
  %v1587 = vadd.f32 0.0, %v1586
  %v1588 = vpop.f32.mrb[0].mxu0
  %1589 = vmatprep.mubr.f32.mxu0 0.0
  %1590 = vmatmul.mubr.f32.gmra.mrb[0].mxu0 %v1223
  %v1591 = vpop.f32.mrb[0].mxu0
  %v1592 = vadd.f32 0.0, %v1591
  %v1593 = vpop.f32.mrb[0].mxu0
  %1594 = vmatprep.mubr.f32.mxu0 0.0
  %1595 = vmatmul.mubr.f32.gmra.mrb[0].mxu0 %v1423
  %v1596 = vpop.f32.mrb[0].mxu0
  %v1597 = vadd.f32 0.0, %v1596
  %v1598 = vpop.f32.mrb[0].mxu0
  %1599 = vdwg.mxu0
  %v1600 = vadd.f32 %v1400, %v1492
  %v1601 = vadd.f32 %v1401, %v1497
  %v1602 = vadd.f32 %v1402, %v1502
  %v1603 = vadd.f32 %v1403, %v1507
  %v1604 = vadd.f32 %v1404, %v1512
  %v1605 = vadd.f32 %v1405, %v1517
  %v1606 = vadd.f32 %v1406, %v1522
  %v1607 = vadd.f32 %v1407, %v1527
  %v1608 = vadd.f32 %v1408, %v1532
  %v1609 = vadd.f32 %v1409, %v1537
  %v1610 = vadd.f32 %v1410, %v1542
  %v1611 = vadd.f32 %v1411, %v1547
  %v1612 = vadd.f32 %v1412, %v1552
  %v1613 = vadd.f32 %v1413, %v1557
  %v1614 = vadd.f32 %v1414, %v1562
  %v1615 = vadd.f32 %v1415, %v1567
  %v1616 = vadd.f32 %v1416, %v1572
  %v1617 = vadd.f32 %v1417, %v1577
  %v1618 = vadd.f32 %v1418, %v1582
  %v1619 = vadd.f32 %v1419, %v1587
  %v1620 = vadd.f32 %v1420, %v1592
  %v1621 = vadd.f32 %v1421, %v1597
  %v1623 = vsel %vm435, %v736, 0
  %1625 = vmatprep.subr.mxu0 0.0
  %1626 = vmatpush1.msra.mxu0 %v746
  %1627 = vmatprep.subr.mxu0 0.0
  %1628 = vmatpush1.msra.mxu0 0.0
  %1629 = vmatprep.subr.mxu0 0.0
  %1630 = vmatpush1.msra.mxu0 0.0
  %1631 = vmatprep.subr.mxu0 0.0
  %1632 = vmatpush1.msra.mxu0 0.0
  %1633 = vmatprep.subr.mxu0 0.0
  %1634 = vmatpush1.msra.mxu0 0.0
  %1635 = vmatprep.subr.mxu0 0.0
  %1636 = vmatpush1.msra.mxu0 0.0
  %1637 = vmatprep.subr.mxu0 0.0
  %1638 = vmatpush1.msra.mxu0 0.0
  %1639 = vmatprep.subr.mxu0 0.0
  %1640 = vmatpush1.msra.mxu0 0.0
  %1641 = vmatprep.subr.mxu0 0.0
  %1642 = vmatpush1.msra.mxu0 0.0
  %1643 = vmatprep.subr.mxu0 0.0
  %1644 = vmatpush1.msra.mxu0 0.0
  %1645 = vmatprep.subr.mxu0 0.0
  %1646 = vmatpush1.msra.mxu0 0.0
  %1647 = vmatprep.subr.mxu0 0.0
  %1648 = vmatpush1.msra.mxu0 0.0
  %1649 = vmatprep.subr.mxu0 0.0
  %1650 = vmatpush1.msra.mxu0 0.0
  %1651 = vmatprep.subr.mxu0 0.0
  %1652 = vmatpush1.msra.mxu0 0.0
  %1653 = vmatprep.subr.mxu0 0.0
  %1654 = vmatpush1.msra.mxu0 0.0
  %1655 = vmatprep.subr.mxu0 0.0
  %1656 = vmatpush1.msra.mxu0 0.0
  %1657 = vmatprep.subr.mxu0 0.0
  %1658 = vmatpush1.msra.mxu0 0.0
  %1659 = vmatprep.subr.mxu0 0.0
  %1660 = vmatpush1.msra.mxu0 0.0
  %1661 = vmatprep.subr.mxu0 0.0
  %1662 = vmatpush1.msra.mxu0 0.0
  %1663 = vmatprep.subr.mxu0 0.0
  %1664 = vmatpush1.msra.mxu0 0.0
  %1665 = vmatprep.subr.mxu0 0.0
  %1666 = vmatpush1.msra.mxu0 0.0
  %1667 = vmatprep.subr.mxu0 0.0
  %1668 = vmatpush1.msra.mxu0 0.0
  %1669 = vmatprep.subr.mxu0 0.0
  %1670 = vmatpush1.msra.mxu0 0.0
  %1671 = vmatprep.subr.mxu0 0.0
  %1672 = vmatpush1.msra.mxu0 0.0
  %1673 = vmatprep.subr.mxu0 0.0
  %1674 = vmatpush1.msra.mxu0 0.0
  %1675 = vmatprep.subr.mxu0 0.0
  %1676 = vmatpush1.msra.mxu0 0.0
  %1677 = vmatprep.subr.mxu0 0.0
  %1678 = vmatpush1.msra.mxu0 0.0
  %1679 = vmatprep.subr.mxu0 0.0
  %1680 = vmatpush1.msra.mxu0 0.0
  %1681 = vmatprep.subr.mxu0 0.0
  %1682 = vmatpush1.msra.mxu0 0.0
  %1683 = vmatprep.subr.mxu0 0.0
  %1684 = vmatpush1.msra.mxu0 0.0
  %1685 = vmatprep.subr.mxu0 0.0
  %1686 = vmatpush1.msra.mxu0 0.0
  %1687 = vmatprep.subr.mxu0 0.0
  %1688 = vmatpush1.msra.mxu0 0.0
  %1689 = vmatprep.mubr.f32.mxu0 0.0
  %1690 = vmatmul.mubr.f32.gmra.mrb[0].mxu0 %v766
  %v1691 = vpop.f32.mrb[0].mxu0
  %v1692 = vadd.f32 0.0, %v1691
  %v1693 = vpop.f32.mrb[0].mxu0
  %1694 = vmatprep.mubr.f32.mxu0 0.0
  %1695 = vmatmul.mubr.f32.gmra.mrb[0].mxu0 %v769
  %v1696 = vpop.f32.mrb[0].mxu0
  %v1697 = vadd.f32 0.0, %v1696
  %v1698 = vpop.f32.mrb[0].mxu0
  %1699 = vmatprep.mubr.f32.mxu0 0.0
  %1700 = vmatmul.mubr.f32.gmra.mrb[0].mxu0 %v772
  %v1701 = vpop.f32.mrb[0].mxu0
  %v1702 = vadd.f32 0.0, %v1701
  %v1703 = vpop.f32.mrb[0].mxu0
  %1704 = vmatprep.mubr.f32.mxu0 0.0
  %1705 = vmatmul.mubr.f32.gmra.mrb[0].mxu0 %v775
  %v1706 = vpop.f32.mrb[0].mxu0
  %v1707 = vadd.f32 0.0, %v1706
  %v1708 = vpop.f32.mrb[0].mxu0
  %1709 = vmatprep.mubr.f32.mxu0 0.0
  %1710 = vmatmul.mubr.f32.gmra.mrb[0].mxu0 %v778
  %v1711 = vpop.f32.mrb[0].mxu0
  %v1712 = vadd.f32 0.0, %v1711
  %v1713 = vpop.f32.mrb[0].mxu0
  %1714 = vmatprep.mubr.f32.mxu0 0.0
  %1715 = vmatmul.mubr.f32.gmra.mrb[0].mxu0 %v781
  %v1716 = vpop.f32.mrb[0].mxu0
  %v1717 = vadd.f32 0.0, %v1716
  %v1718 = vpop.f32.mrb[0].mxu0
  %1719 = vmatprep.mubr.f32.mxu0 0.0
  %1720 = vmatmul.mubr.f32.gmra.mrb[0].mxu0 %v784
  %v1721 = vpop.f32.mrb[0].mxu0
  %v1722 = vadd.f32 0.0, %v1721
  %v1723 = vpop.f32.mrb[0].mxu0
  %1724 = vmatprep.mubr.f32.mxu0 0.0
  %1725 = vmatmul.mubr.f32.gmra.mrb[0].mxu0 %v787
  %v1726 = vpop.f32.mrb[0].mxu0
  %v1727 = vadd.f32 0.0, %v1726
  %v1728 = vpop.f32.mrb[0].mxu0
  %1729 = vmatprep.mubr.f32.mxu0 0.0
  %1730 = vmatmul.mubr.f32.gmra.mrb[0].mxu0 %v790
  %v1731 = vpop.f32.mrb[0].mxu0
  %v1732 = vadd.f32 0.0, %v1731
  %v1733 = vpop.f32.mrb[0].mxu0
  %1734 = vmatprep.mubr.f32.mxu0 0.0
  %1735 = vmatmul.mubr.f32.gmra.mrb[0].mxu0 %v793
  %v1736 = vpop.f32.mrb[0].mxu0
  %v1737 = vadd.f32 0.0, %v1736
  %v1738 = vpop.f32.mrb[0].mxu0
  %1739 = vmatprep.mubr.f32.mxu0 0.0
  %1740 = vmatmul.mubr.f32.gmra.mrb[0].mxu0 %v796
  %v1741 = vpop.f32.mrb[0].mxu0
  %v1742 = vadd.f32 0.0, %v1741
  %v1743 = vpop.f32.mrb[0].mxu0
  %1744 = vmatprep.mubr.f32.mxu0 0.0
  %1745 = vmatmul.mubr.f32.gmra.mrb[0].mxu0 %v799
  %v1746 = vpop.f32.mrb[0].mxu0
  %v1747 = vadd.f32 0.0, %v1746
  %v1748 = vpop.f32.mrb[0].mxu0
  %1749 = vmatprep.mubr.f32.mxu0 0.0
  %1750 = vmatmul.mubr.f32.gmra.mrb[0].mxu0 %v802
  %v1751 = vpop.f32.mrb[0].mxu0
  %v1752 = vadd.f32 0.0, %v1751
  %v1753 = vpop.f32.mrb[0].mxu0
  %1754 = vmatprep.mubr.f32.mxu0 0.0
  %1755 = vmatmul.mubr.f32.gmra.mrb[0].mxu0 %v805
  %v1756 = vpop.f32.mrb[0].mxu0
  %v1757 = vadd.f32 0.0, %v1756
  %v1758 = vpop.f32.mrb[0].mxu0
  %1759 = vmatprep.mubr.f32.mxu0 0.0
  %1760 = vmatmul.mubr.f32.gmra.mrb[0].mxu0 %v808
  %v1761 = vpop.f32.mrb[0].mxu0
  %v1762 = vadd.f32 0.0, %v1761
  %v1763 = vpop.f32.mrb[0].mxu0
  %1764 = vmatprep.mubr.f32.mxu0 0.0
  %1765 = vmatmul.mubr.f32.gmra.mrb[0].mxu0 %v811
  %v1766 = vpop.f32.mrb[0].mxu0
  %v1767 = vadd.f32 0.0, %v1766
  %v1768 = vpop.f32.mrb[0].mxu0
  %1769 = vmatprep.mubr.f32.mxu0 0.0
  %1770 = vmatmul.mubr.f32.gmra.mrb[0].mxu0 %v814
  %v1771 = vpop.f32.mrb[0].mxu0
  %v1772 = vadd.f32 0.0, %v1771
  %v1773 = vpop.f32.mrb[0].mxu0
  %1774 = vmatprep.mubr.f32.mxu0 0.0
  %1775 = vmatmul.mubr.f32.gmra.mrb[0].mxu0 %v817
  %v1776 = vpop.f32.mrb[0].mxu0
  %v1777 = vadd.f32 0.0, %v1776
  %v1778 = vpop.f32.mrb[0].mxu0
  %1779 = vmatprep.mubr.f32.mxu0 0.0
  %1780 = vmatmul.mubr.f32.gmra.mrb[0].mxu0 %v1023
  %v1781 = vpop.f32.mrb[0].mxu0
  %v1782 = vadd.f32 0.0, %v1781
  %v1783 = vpop.f32.mrb[0].mxu0
  %1784 = vmatprep.mubr.f32.mxu0 0.0
  %1785 = vmatmul.mubr.f32.gmra.mrb[0].mxu0 %v1223
  %v1786 = vpop.f32.mrb[0].mxu0
  %v1787 = vadd.f32 0.0, %v1786
  %v1788 = vpop.f32.mrb[0].mxu0
  %1789 = vmatprep.mubr.f32.mxu0 0.0
  %1790 = vmatmul.mubr.f32.gmra.mrb[0].mxu0 %v1423
  %v1791 = vpop.f32.mrb[0].mxu0
  %v1792 = vadd.f32 0.0, %v1791
  %v1793 = vpop.f32.mrb[0].mxu0
  %1794 = vmatprep.mubr.f32.mxu0 0.0
  %1795 = vmatmul.mubr.f32.gmra.mrb[0].mxu0 %v1623
  %v1796 = vpop.f32.mrb[0].mxu0
  %v1797 = vadd.f32 0.0, %v1796
  %v1798 = vpop.f32.mrb[0].mxu0
  %1799 = vdwg.mxu0
  %v1800 = vadd.f32 %v1600, %v1692
  %v1801 = vadd.f32 %v1601, %v1697
  %v1802 = vadd.f32 %v1602, %v1702
  %v1803 = vadd.f32 %v1603, %v1707
  %v1804 = vadd.f32 %v1604, %v1712
  %v1805 = vadd.f32 %v1605, %v1717
  %v1806 = vadd.f32 %v1606, %v1722
  %v1807 = vadd.f32 %v1607, %v1727
  %v1808 = vadd.f32 %v1608, %v1732
  %v1809 = vadd.f32 %v1609, %v1737
  %v1810 = vadd.f32 %v1610, %v1742
  %v1811 = vadd.f32 %v1611, %v1747
  %v1812 = vadd.f32 %v1612, %v1752
  %v1813 = vadd.f32 %v1613, %v1757
  %v1814 = vadd.f32 %v1614, %v1762
  %v1815 = vadd.f32 %v1615, %v1767
  %v1816 = vadd.f32 %v1616, %v1772
  %v1817 = vadd.f32 %v1617, %v1777
  %v1818 = vadd.f32 %v1618, %v1782
  %v1819 = vadd.f32 %v1619, %v1787
  %v1820 = vadd.f32 %v1620, %v1792
  %v1821 = vadd.f32 %v1621, %v1797
  %v1823 = vsel %vm435, %v737, 0
  %1825 = vmatprep.subr.mxu0 0.0
  %1826 = vmatpush1.msra.mxu0 %v747
  %1827 = vmatprep.subr.mxu0 0.0
  %1828 = vmatpush1.msra.mxu0 0.0
  %1829 = vmatprep.subr.mxu0 0.0
  %1830 = vmatpush1.msra.mxu0 0.0
  %1831 = vmatprep.subr.mxu0 0.0
  %1832 = vmatpush1.msra.mxu0 0.0
  %1833 = vmatprep.subr.mxu0 0.0
  %1834 = vmatpush1.msra.mxu0 0.0
  %1835 = vmatprep.subr.mxu0 0.0
  %1836 = vmatpush1.msra.mxu0 0.0
  %1837 = vmatprep.subr.mxu0 0.0
  %1838 = vmatpush1.msra.mxu0 0.0
  %1839 = vmatprep.subr.mxu0 0.0
  %1840 = vmatpush1.msra.mxu0 0.0
  %1841 = vmatprep.subr.mxu0 0.0
  %1842 = vmatpush1.msra.mxu0 0.0
  %1843 = vmatprep.subr.mxu0 0.0
  %1844 = vmatpush1.msra.mxu0 0.0
  %1845 = vmatprep.subr.mxu0 0.0
  %1846 = vmatpush1.msra.mxu0 0.0
  %1847 = vmatprep.subr.mxu0 0.0
  %1848 = vmatpush1.msra.mxu0 0.0
  %1849 = vmatprep.subr.mxu0 0.0
  %1850 = vmatpush1.msra.mxu0 0.0
  %1851 = vmatprep.subr.mxu0 0.0
  %1852 = vmatpush1.msra.mxu0 0.0
  %1853 = vmatprep.subr.mxu0 0.0
  %1854 = vmatpush1.msra.mxu0 0.0
  %1855 = vmatprep.subr.mxu0 0.0
  %1856 = vmatpush1.msra.mxu0 0.0
  %1857 = vmatprep.subr.mxu0 0.0
  %1858 = vmatpush1.msra.mxu0 0.0
  %1859 = vmatprep.subr.mxu0 0.0
  %1860 = vmatpush1.msra.mxu0 0.0
  %1861 = vmatprep.subr.mxu0 0.0
  %1862 = vmatpush1.msra.mxu0 0.0
  %1863 = vmatprep.subr.mxu0 0.0
  %1864 = vmatpush1.msra.mxu0 0.0
  %1865 = vmatprep.subr.mxu0 0.0
  %1866 = vmatpush1.msra.mxu0 0.0
  %1867 = vmatprep.subr.mxu0 0.0
  %1868 = vmatpush1.msra.mxu0 0.0
  %1869 = vmatprep.subr.mxu0 0.0
  %1870 = vmatpush1.msra.mxu0 0.0
  %1871 = vmatprep.subr.mxu0 0.0
  %1872 = vmatpush1.msra.mxu0 0.0
  %1873 = vmatprep.subr.mxu0 0.0
  %1874 = vmatpush1.msra.mxu0 0.0
  %1875 = vmatprep.subr.mxu0 0.0
  %1876 = vmatpush1.msra.mxu0 0.0
  %1877 = vmatprep.subr.mxu0 0.0
  %1878 = vmatpush1.msra.mxu0 0.0
  %1879 = vmatprep.subr.mxu0 0.0
  %1880 = vmatpush1.msra.mxu0 0.0
  %1881 = vmatprep.subr.mxu0 0.0
  %1882 = vmatpush1.msra.mxu0 0.0
  %1883 = vmatprep.subr.mxu0 0.0
  %1884 = vmatpush1.msra.mxu0 0.0
  %1885 = vmatprep.subr.mxu0 0.0
  %1886 = vmatpush1.msra.mxu0 0.0
  %1887 = vmatprep.subr.mxu0 0.0
  %1888 = vmatpush1.msra.mxu0 0.0
  %1889 = vmatprep.mubr.f32.mxu0 0.0
  %1890 = vmatmul.mubr.f32.gmra.mrb[0].mxu0 %v769
  %v1891 = vpop.f32.mrb[0].mxu0
  %v1892 = vadd.f32 0.0, %v1891
  %v1893 = vpop.f32.mrb[0].mxu0
  %1894 = vmatprep.mubr.f32.mxu0 0.0
  %1895 = vmatmul.mubr.f32.gmra.mrb[0].mxu0 %v772
  %v1896 = vpop.f32.mrb[0].mxu0
  %v1897 = vadd.f32 0.0, %v1896
  %v1898 = vpop.f32.mrb[0].mxu0
  %1899 = vmatprep.mubr.f32.mxu0 0.0
  %1900 = vmatmul.mubr.f32.gmra.mrb[0].mxu0 %v775
  %v1901 = vpop.f32.mrb[0].mxu0
  %v1902 = vadd.f32 0.0, %v1901
  %v1903 = vpop.f32.mrb[0].mxu0
  %1904 = vmatprep.mubr.f32.mxu0 0.0
  %1905 = vmatmul.mubr.f32.gmra.mrb[0].mxu0 %v778
  %v1906 = vpop.f32.mrb[0].mxu0
  %v1907 = vadd.f32 0.0, %v1906
  %v1908 = vpop.f32.mrb[0].mxu0
  %1909 = vmatprep.mubr.f32.mxu0 0.0
  %1910 = vmatmul.mubr.f32.gmra.mrb[0].mxu0 %v781
  %v1911 = vpop.f32.mrb[0].mxu0
  %v1912 = vadd.f32 0.0, %v1911
  %v1913 = vpop.f32.mrb[0].mxu0
  %1914 = vmatprep.mubr.f32.mxu0 0.0
  %1915 = vmatmul.mubr.f32.gmra.mrb[0].mxu0 %v784
  %v1916 = vpop.f32.mrb[0].mxu0
  %v1917 = vadd.f32 0.0, %v1916
  %v1918 = vpop.f32.mrb[0].mxu0
  %1919 = vmatprep.mubr.f32.mxu0 0.0
  %1920 = vmatmul.mubr.f32.gmra.mrb[0].mxu0 %v787
  %v1921 = vpop.f32.mrb[0].mxu0
  %v1922 = vadd.f32 0.0, %v1921
  %v1923 = vpop.f32.mrb[0].mxu0
  %1924 = vmatprep.mubr.f32.mxu0 0.0
  %1925 = vmatmul.mubr.f32.gmra.mrb[0].mxu0 %v790
  %v1926 = vpop.f32.mrb[0].mxu0
  %v1927 = vadd.f32 0.0, %v1926
  %v1928 = vpop.f32.mrb[0].mxu0
  %1929 = vmatprep.mubr.f32.mxu0 0.0
  %1930 = vmatmul.mubr.f32.gmra.mrb[0].mxu0 %v793
  %v1931 = vpop.f32.mrb[0].mxu0
  %v1932 = vadd.f32 0.0, %v1931
  %v1933 = vpop.f32.mrb[0].mxu0
  %1934 = vmatprep.mubr.f32.mxu0 0.0
  %1935 = vmatmul.mubr.f32.gmra.mrb[0].mxu0 %v796
  %v1936 = vpop.f32.mrb[0].mxu0
  %v1937 = vadd.f32 0.0, %v1936
  %v1938 = vpop.f32.mrb[0].mxu0
  %1939 = vmatprep.mubr.f32.mxu0 0.0
  %1940 = vmatmul.mubr.f32.gmra.mrb[0].mxu0 %v799
  %v1941 = vpop.f32.mrb[0].mxu0
  %v1942 = vadd.f32 0.0, %v1941
  %v1943 = vpop.f32.mrb[0].mxu0
  %1944 = vmatprep.mubr.f32.mxu0 0.0
  %1945 = vmatmul.mubr.f32.gmra.mrb[0].mxu0 %v802
  %v1946 = vpop.f32.mrb[0].mxu0
  %v1947 = vadd.f32 0.0, %v1946
  %v1948 = vpop.f32.mrb[0].mxu0
  %1949 = vmatprep.mubr.f32.mxu0 0.0
  %1950 = vmatmul.mubr.f32.gmra.mrb[0].mxu0 %v805
  %v1951 = vpop.f32.mrb[0].mxu0
  %v1952 = vadd.f32 0.0, %v1951
  %v1953 = vpop.f32.mrb[0].mxu0
  %1954 = vmatprep.mubr.f32.mxu0 0.0
  %1955 = vmatmul.mubr.f32.gmra.mrb[0].mxu0 %v808
  %v1956 = vpop.f32.mrb[0].mxu0
  %v1957 = vadd.f32 0.0, %v1956
  %v1958 = vpop.f32.mrb[0].mxu0
  %1959 = vmatprep.mubr.f32.mxu0 0.0
  %1960 = vmatmul.mubr.f32.gmra.mrb[0].mxu0 %v811
  %v1961 = vpop.f32.mrb[0].mxu0
  %v1962 = vadd.f32 0.0, %v1961
  %v1963 = vpop.f32.mrb[0].mxu0
  %1964 = vmatprep.mubr.f32.mxu0 0.0
  %1965 = vmatmul.mubr.f32.gmra.mrb[0].mxu0 %v814
  %v1966 = vpop.f32.mrb[0].mxu0
  %v1967 = vadd.f32 0.0, %v1966
  %v1968 = vpop.f32.mrb[0].mxu0
  %1969 = vmatprep.mubr.f32.mxu0 0.0
  %1970 = vmatmul.mubr.f32.gmra.mrb[0].mxu0 %v817
  %v1971 = vpop.f32.mrb[0].mxu0
  %v1972 = vadd.f32 0.0, %v1971
  %v1973 = vpop.f32.mrb[0].mxu0
  %1974 = vmatprep.mubr.f32.mxu0 0.0
  %1975 = vmatmul.mubr.f32.gmra.mrb[0].mxu0 %v1023
  %v1976 = vpop.f32.mrb[0].mxu0
  %v1977 = vadd.f32 0.0, %v1976
  %v1978 = vpop.f32.mrb[0].mxu0
  %1979 = vmatprep.mubr.f32.mxu0 0.0
  %1980 = vmatmul.mubr.f32.gmra.mrb[0].mxu0 %v1223
  %v1981 = vpop.f32.mrb[0].mxu0
  %v1982 = vadd.f32 0.0, %v1981
  %v1983 = vpop.f32.mrb[0].mxu0
  %1984 = vmatprep.mubr.f32.mxu0 0.0
  %1985 = vmatmul.mubr.f32.gmra.mrb[0].mxu0 %v1423
  %v1986 = vpop.f32.mrb[0].mxu0
  %v1987 = vadd.f32 0.0, %v1986
  %v1988 = vpop.f32.mrb[0].mxu0
  %1989 = vmatprep.mubr.f32.mxu0 0.0
  %1990 = vmatmul.mubr.f32.gmra.mrb[0].mxu0 %v1623
  %v1991 = vpop.f32.mrb[0].mxu0
  %v1992 = vadd.f32 0.0, %v1991
  %v1993 = vpop.f32.mrb[0].mxu0
  %1994 = vmatprep.mubr.f32.mxu0 0.0
  %1995 = vmatmul.mubr.f32.gmra.mrb[0].mxu0 %v1823
  %v1996 = vpop.f32.mrb[0].mxu0
  %v1997 = vadd.f32 0.0, %v1996
  %v1998 = vpop.f32.mrb[0].mxu0
  %1999 = vdwg.mxu0
  %v2000 = vadd.f32 %v1800, %v1892
  %v2001 = vadd.f32 %v1801, %v1897
  %v2002 = vadd.f32 %v1802, %v1902
  %v2003 = vadd.f32 %v1803, %v1907
  %v2004 = vadd.f32 %v1804, %v1912
  %v2005 = vadd.f32 %v1805, %v1917
  %v2006 = vadd.f32 %v1806, %v1922
  %v2007 = vadd.f32 %v1807, %v1927
  %v2008 = vadd.f32 %v1808, %v1932
  %v2009 = vadd.f32 %v1809, %v1937
  %v2010 = vadd.f32 %v1810, %v1942
  %v2011 = vadd.f32 %v1811, %v1947
  %v2012 = vadd.f32 %v1812, %v1952
  %v2013 = vadd.f32 %v1813, %v1957
  %v2014 = vadd.f32 %v1814, %v1962
  %v2015 = vadd.f32 %v1815, %v1967
  %v2016 = vadd.f32 %v1816, %v1972
  %v2017 = vadd.f32 %v1817, %v1977
  %v2018 = vadd.f32 %v1818, %v1982
  %v2019 = vadd.f32 %v1819, %v1987
  %v2020 = vadd.f32 %v1820, %v1992
  %v2021 = vadd.f32 %v1821, %v1997
  %v2023 = vsel %vm435, %v738, 0
  %2025 = vmatprep.subr.mxu0 0.0
  %2026 = vmatpush1.msra.mxu0 %v748
  %2027 = vmatprep.subr.mxu0 0.0
  %2028 = vmatpush1.msra.mxu0 0.0
  %2029 = vmatprep.subr.mxu0 0.0
  %2030 = vmatpush1.msra.mxu0 0.0
  %2031 = vmatprep.subr.mxu0 0.0
  %2032 = vmatpush1.msra.mxu0 0.0
  %2033 = vmatprep.subr.mxu0 0.0
  %2034 = vmatpush1.msra.mxu0 0.0
  %2035 = vmatprep.subr.mxu0 0.0
  %2036 = vmatpush1.msra.mxu0 0.0
  %2037 = vmatprep.subr.mxu0 0.0
  %2038 = vmatpush1.msra.mxu0 0.0
  %2039 = vmatprep.subr.mxu0 0.0
  %2040 = vmatpush1.msra.mxu0 0.0
  %2041 = vmatprep.subr.mxu0 0.0
  %2042 = vmatpush1.msra.mxu0 0.0
  %2043 = vmatprep.subr.mxu0 0.0
  %2044 = vmatpush1.msra.mxu0 0.0
  %2045 = vmatprep.subr.mxu0 0.0
  %2046 = vmatpush1.msra.mxu0 0.0
  %2047 = vmatprep.subr.mxu0 0.0
  %2048 = vmatpush1.msra.mxu0 0.0
  %2049 = vmatprep.subr.mxu0 0.0
  %2050 = vmatpush1.msra.mxu0 0.0
  %2051 = vmatprep.subr.mxu0 0.0
  %2052 = vmatpush1.msra.mxu0 0.0
  %2053 = vmatprep.subr.mxu0 0.0
  %2054 = vmatpush1.msra.mxu0 0.0
  %2055 = vmatprep.subr.mxu0 0.0
  %2056 = vmatpush1.msra.mxu0 0.0
  %2057 = vmatprep.subr.mxu0 0.0
  %2058 = vmatpush1.msra.mxu0 0.0
  %2059 = vmatprep.subr.mxu0 0.0
  %2060 = vmatpush1.msra.mxu0 0.0
  %2061 = vmatprep.subr.mxu0 0.0
  %2062 = vmatpush1.msra.mxu0 0.0
  %2063 = vmatprep.subr.mxu0 0.0
  %2064 = vmatpush1.msra.mxu0 0.0
  %2065 = vmatprep.subr.mxu0 0.0
  %2066 = vmatpush1.msra.mxu0 0.0
  %2067 = vmatprep.subr.mxu0 0.0
  %2068 = vmatpush1.msra.mxu0 0.0
  %2069 = vmatprep.subr.mxu0 0.0
  %2070 = vmatpush1.msra.mxu0 0.0
  %2071 = vmatprep.subr.mxu0 0.0
  %2072 = vmatpush1.msra.mxu0 0.0
  %2073 = vmatprep.subr.mxu0 0.0
  %2074 = vmatpush1.msra.mxu0 0.0
  %2075 = vmatprep.subr.mxu0 0.0
  %2076 = vmatpush1.msra.mxu0 0.0
  %2077 = vmatprep.subr.mxu0 0.0
  %2078 = vmatpush1.msra.mxu0 0.0
  %2079 = vmatprep.subr.mxu0 0.0
  %2080 = vmatpush1.msra.mxu0 0.0
  %2081 = vmatprep.subr.mxu0 0.0
  %2082 = vmatpush1.msra.mxu0 0.0
  %2083 = vmatprep.subr.mxu0 0.0
  %2084 = vmatpush1.msra.mxu0 0.0
  %2085 = vmatprep.subr.mxu0 0.0
  %2086 = vmatpush1.msra.mxu0 0.0
  %2087 = vmatprep.subr.mxu0 0.0
  %2088 = vmatpush1.msra.mxu0 0.0
  %2089 = vmatprep.mubr.f32.mxu0 0.0
  %2090 = vmatmul.mubr.f32.gmra.mrb[0].mxu0 %v772
  %v2091 = vpop.f32.mrb[0].mxu0
  %v2092 = vadd.f32 0.0, %v2091
  %v2093 = vpop.f32.mrb[0].mxu0
  %2094 = vmatprep.mubr.f32.mxu0 0.0
  %2095 = vmatmul.mubr.f32.gmra.mrb[0].mxu0 %v775
  %v2096 = vpop.f32.mrb[0].mxu0
  %v2097 = vadd.f32 0.0, %v2096
  %v2098 = vpop.f32.mrb[0].mxu0
  %2099 = vmatprep.mubr.f32.mxu0 0.0
  %2100 = vmatmul.mubr.f32.gmra.mrb[0].mxu0 %v778
  %v2101 = vpop.f32.mrb[0].mxu0
  %v2102 = vadd.f32 0.0, %v2101
  %v2103 = vpop.f32.mrb[0].mxu0
  %2104 = vmatprep.mubr.f32.mxu0 0.0
  %2105 = vmatmul.mubr.f32.gmra.mrb[0].mxu0 %v781
  %v2106 = vpop.f32.mrb[0].mxu0
  %v2107 = vadd.f32 0.0, %v2106
  %v2108 = vpop.f32.mrb[0].mxu0
  %2109 = vmatprep.mubr.f32.mxu0 0.0
  %2110 = vmatmul.mubr.f32.gmra.mrb[0].mxu0 %v784
  %v2111 = vpop.f32.mrb[0].mxu0
  %v2112 = vadd.f32 0.0, %v2111
  %v2113 = vpop.f32.mrb[0].mxu0
  %2114 = vmatprep.mubr.f32.mxu0 0.0
  %2115 = vmatmul.mubr.f32.gmra.mrb[0].mxu0 %v787
  %v2116 = vpop.f32.mrb[0].mxu0
  %v2117 = vadd.f32 0.0, %v2116
  %v2118 = vpop.f32.mrb[0].mxu0
  %2119 = vmatprep.mubr.f32.mxu0 0.0
  %2120 = vmatmul.mubr.f32.gmra.mrb[0].mxu0 %v790
  %v2121 = vpop.f32.mrb[0].mxu0
  %v2122 = vadd.f32 0.0, %v2121
  %v2123 = vpop.f32.mrb[0].mxu0
  %2124 = vmatprep.mubr.f32.mxu0 0.0
  %2125 = vmatmul.mubr.f32.gmra.mrb[0].mxu0 %v793
  %v2126 = vpop.f32.mrb[0].mxu0
  %v2127 = vadd.f32 0.0, %v2126
  %v2128 = vpop.f32.mrb[0].mxu0
  %2129 = vmatprep.mubr.f32.mxu0 0.0
  %2130 = vmatmul.mubr.f32.gmra.mrb[0].mxu0 %v796
  %v2131 = vpop.f32.mrb[0].mxu0
  %v2132 = vadd.f32 0.0, %v2131
  %v2133 = vpop.f32.mrb[0].mxu0
  %2134 = vmatprep.mubr.f32.mxu0 0.0
  %2135 = vmatmul.mubr.f32.gmra.mrb[0].mxu0 %v799
  %v2136 = vpop.f32.mrb[0].mxu0
  %v2137 = vadd.f32 0.0, %v2136
  %v2138 = vpop.f32.mrb[0].mxu0
  %2139 = vmatprep.mubr.f32.mxu0 0.0
  %2140 = vmatmul.mubr.f32.gmra.mrb[0].mxu0 %v802
  %v2141 = vpop.f32.mrb[0].mxu0
  %v2142 = vadd.f32 0.0, %v2141
  %v2143 = vpop.f32.mrb[0].mxu0
  %2144 = vmatprep.mubr.f32.mxu0 0.0
  %2145 = vmatmul.mubr.f32.gmra.mrb[0].mxu0 %v805
  %v2146 = vpop.f32.mrb[0].mxu0
  %v2147 = vadd.f32 0.0, %v2146
  %v2148 = vpop.f32.mrb[0].mxu0
  %2149 = vmatprep.mubr.f32.mxu0 0.0
  %2150 = vmatmul.mubr.f32.gmra.mrb[0].mxu0 %v808
  %v2151 = vpop.f32.mrb[0].mxu0
  %v2152 = vadd.f32 0.0, %v2151
  %v2153 = vpop.f32.mrb[0].mxu0
  %2154 = vmatprep.mubr.f32.mxu0 0.0
  %2155 = vmatmul.mubr.f32.gmra.mrb[0].mxu0 %v811
  %v2156 = vpop.f32.mrb[0].mxu0
  %v2157 = vadd.f32 0.0, %v2156
  %v2158 = vpop.f32.mrb[0].mxu0
  %2159 = vmatprep.mubr.f32.mxu0 0.0
  %2160 = vmatmul.mubr.f32.gmra.mrb[0].mxu0 %v814
  %v2161 = vpop.f32.mrb[0].mxu0
  %v2162 = vadd.f32 0.0, %v2161
  %v2163 = vpop.f32.mrb[0].mxu0
  %2164 = vmatprep.mubr.f32.mxu0 0.0
  %2165 = vmatmul.mubr.f32.gmra.mrb[0].mxu0 %v817
  %v2166 = vpop.f32.mrb[0].mxu0
  %v2167 = vadd.f32 0.0, %v2166
  %v2168 = vpop.f32.mrb[0].mxu0
  %2169 = vmatprep.mubr.f32.mxu0 0.0
  %2170 = vmatmul.mubr.f32.gmra.mrb[0].mxu0 %v1023
  %v2171 = vpop.f32.mrb[0].mxu0
  %v2172 = vadd.f32 0.0, %v2171
  %v2173 = vpop.f32.mrb[0].mxu0
  %2174 = vmatprep.mubr.f32.mxu0 0.0
  %2175 = vmatmul.mubr.f32.gmra.mrb[0].mxu0 %v1223
  %v2176 = vpop.f32.mrb[0].mxu0
  %v2177 = vadd.f32 0.0, %v2176
  %v2178 = vpop.f32.mrb[0].mxu0
  %2179 = vmatprep.mubr.f32.mxu0 0.0
  %2180 = vmatmul.mubr.f32.gmra.mrb[0].mxu0 %v1423
  %v2181 = vpop.f32.mrb[0].mxu0
  %v2182 = vadd.f32 0.0, %v2181
  %v2183 = vpop.f32.mrb[0].mxu0
  %2184 = vmatprep.mubr.f32.mxu0 0.0
  %2185 = vmatmul.mubr.f32.gmra.mrb[0].mxu0 %v1623
  %v2186 = vpop.f32.mrb[0].mxu0
  %v2187 = vadd.f32 0.0, %v2186
  %v2188 = vpop.f32.mrb[0].mxu0
  %2189 = vmatprep.mubr.f32.mxu0 0.0
  %2190 = vmatmul.mubr.f32.gmra.mrb[0].mxu0 %v1823
  %v2191 = vpop.f32.mrb[0].mxu0
  %v2192 = vadd.f32 0.0, %v2191
  %v2193 = vpop.f32.mrb[0].mxu0
  %2194 = vmatprep.mubr.f32.mxu0 0.0
  %2195 = vmatmul.mubr.f32.gmra.mrb[0].mxu0 %v2023
  %v2196 = vpop.f32.mrb[0].mxu0
  %v2197 = vadd.f32 0.0, %v2196
  %v2198 = vpop.f32.mrb[0].mxu0
  %2199 = vdwg.mxu0
  %v2200 = vadd.f32 %v2000, %v2092
  %v2201 = vadd.f32 %v2001, %v2097
  %v2202 = vadd.f32 %v2002, %v2102
  %v2203 = vadd.f32 %v2003, %v2107
  %v2204 = vadd.f32 %v2004, %v2112
  %v2205 = vadd.f32 %v2005, %v2117
  %v2206 = vadd.f32 %v2006, %v2122
  %v2207 = vadd.f32 %v2007, %v2127
  %v2208 = vadd.f32 %v2008, %v2132
  %v2209 = vadd.f32 %v2009, %v2137
  %v2210 = vadd.f32 %v2010, %v2142
  %v2211 = vadd.f32 %v2011, %v2147
  %v2212 = vadd.f32 %v2012, %v2152
  %v2213 = vadd.f32 %v2013, %v2157
  %v2214 = vadd.f32 %v2014, %v2162
  %v2215 = vadd.f32 %v2015, %v2167
  %v2216 = vadd.f32 %v2016, %v2172
  %v2217 = vadd.f32 %v2017, %v2177
  %v2218 = vadd.f32 %v2018, %v2182
  %v2219 = vadd.f32 %v2019, %v2187
  %v2220 = vadd.f32 %v2020, %v2192
  %v2221 = vadd.f32 %v2021, %v2197
  %v2223 = vsel %vm435, %v739, 0
  %2225 = vmatprep.subr.mxu0 0.0
  %2226 = vmatpush1.msra.mxu0 %v749
  %2227 = vmatprep.subr.mxu0 0.0
  %2228 = vmatpush1.msra.mxu0 0.0
  %2229 = vmatprep.subr.mxu0 0.0
  %2230 = vmatpush1.msra.mxu0 0.0
  %2231 = vmatprep.subr.mxu0 0.0
  %2232 = vmatpush1.msra.mxu0 0.0
  %2233 = vmatprep.subr.mxu0 0.0
  %2234 = vmatpush1.msra.mxu0 0.0
  %2235 = vmatprep.subr.mxu0 0.0
  %2236 = vmatpush1.msra.mxu0 0.0
  %2237 = vmatprep.subr.mxu0 0.0
  %2238 = vmatpush1.msra.mxu0 0.0
  %2239 = vmatprep.subr.mxu0 0.0
  %2240 = vmatpush1.msra.mxu0 0.0
  %2241 = vmatprep.subr.mxu0 0.0
  %2242 = vmatpush1.msra.mxu0 0.0
  %2243 = vmatprep.subr.mxu0 0.0
  %2244 = vmatpush1.msra.mxu0 0.0
  %2245 = vmatprep.subr.mxu0 0.0
  %2246 = vmatpush1.msra.mxu0 0.0
  %2247 = vmatprep.subr.mxu0 0.0
  %2248 = vmatpush1.msra.mxu0 0.0
  %2249 = vmatprep.subr.mxu0 0.0
  %2250 = vmatpush1.msra.mxu0 0.0
  %2251 = vmatprep.subr.mxu0 0.0
  %2252 = vmatpush1.msra.mxu0 0.0
  %2253 = vmatprep.subr.mxu0 0.0
  %2254 = vmatpush1.msra.mxu0 0.0
  %2255 = vmatprep.subr.mxu0 0.0
  %2256 = vmatpush1.msra.mxu0 0.0
  %2257 = vmatprep.subr.mxu0 0.0
  %2258 = vmatpush1.msra.mxu0 0.0
  %2259 = vmatprep.subr.mxu0 0.0
  %2260 = vmatpush1.msra.mxu0 0.0
  %2261 = vmatprep.subr.mxu0 0.0
  %2262 = vmatpush1.msra.mxu0 0.0
  %2263 = vmatprep.subr.mxu0 0.0
  %2264 = vmatpush1.msra.mxu0 0.0
  %2265 = vmatprep.subr.mxu0 0.0
  %2266 = vmatpush1.msra.mxu0 0.0
  %2267 = vmatprep.subr.mxu0 0.0
  %2268 = vmatpush1.msra.mxu0 0.0
  %2269 = vmatprep.subr.mxu0 0.0
  %2270 = vmatpush1.msra.mxu0 0.0
  %2271 = vmatprep.subr.mxu0 0.0
  %2272 = vmatpush1.msra.mxu0 0.0
  %2273 = vmatprep.subr.mxu0 0.0
  %2274 = vmatpush1.msra.mxu0 0.0
  %2275 = vmatprep.subr.mxu0 0.0
  %2276 = vmatpush1.msra.mxu0 0.0
  %2277 = vmatprep.subr.mxu0 0.0
  %2278 = vmatpush1.msra.mxu0 0.0
  %2279 = vmatprep.subr.mxu0 0.0
  %2280 = vmatpush1.msra.mxu0 0.0
  %2281 = vmatprep.subr.mxu0 0.0
  %2282 = vmatpush1.msra.mxu0 0.0
  %2283 = vmatprep.subr.mxu0 0.0
  %2284 = vmatpush1.msra.mxu0 0.0
  %2285 = vmatprep.subr.mxu0 0.0
  %2286 = vmatpush1.msra.mxu0 0.0
  %2287 = vmatprep.subr.mxu0 0.0
  %2288 = vmatpush1.msra.mxu0 0.0
  %2289 = vmatprep.mubr.f32.mxu0 0.0
  %2290 = vmatmul.mubr.f32.gmra.mrb[0].mxu0 %v775
  %v2291 = vpop.f32.mrb[0].mxu0
  %v2292 = vadd.f32 0.0, %v2291
  %v2293 = vpop.f32.mrb[0].mxu0
  %2294 = vmatprep.mubr.f32.mxu0 0.0
  %2295 = vmatmul.mubr.f32.gmra.mrb[0].mxu0 %v778
  %v2296 = vpop.f32.mrb[0].mxu0
  %v2297 = vadd.f32 0.0, %v2296
  %v2298 = vpop.f32.mrb[0].mxu0
  %2299 = vmatprep.mubr.f32.mxu0 0.0
  %2300 = vmatmul.mubr.f32.gmra.mrb[0].mxu0 %v781
  %v2301 = vpop.f32.mrb[0].mxu0
  %v2302 = vadd.f32 0.0, %v2301
  %v2303 = vpop.f32.mrb[0].mxu0
  %2304 = vmatprep.mubr.f32.mxu0 0.0
  %2305 = vmatmul.mubr.f32.gmra.mrb[0].mxu0 %v784
  %v2306 = vpop.f32.mrb[0].mxu0
  %v2307 = vadd.f32 0.0, %v2306
  %v2308 = vpop.f32.mrb[0].mxu0
  %2309 = vmatprep.mubr.f32.mxu0 0.0
  %2310 = vmatmul.mubr.f32.gmra.mrb[0].mxu0 %v787
  %v2311 = vpop.f32.mrb[0].mxu0
  %v2312 = vadd.f32 0.0, %v2311
  %v2313 = vpop.f32.mrb[0].mxu0
  %2314 = vmatprep.mubr.f32.mxu0 0.0
  %2315 = vmatmul.mubr.f32.gmra.mrb[0].mxu0 %v790
  %v2316 = vpop.f32.mrb[0].mxu0
  %v2317 = vadd.f32 0.0, %v2316
  %v2318 = vpop.f32.mrb[0].mxu0
  %2319 = vmatprep.mubr.f32.mxu0 0.0
  %2320 = vmatmul.mubr.f32.gmra.mrb[0].mxu0 %v793
  %v2321 = vpop.f32.mrb[0].mxu0
  %v2322 = vadd.f32 0.0, %v2321
  %v2323 = vpop.f32.mrb[0].mxu0
  %2324 = vmatprep.mubr.f32.mxu0 0.0
  %2325 = vmatmul.mubr.f32.gmra.mrb[0].mxu0 %v796
  %v2326 = vpop.f32.mrb[0].mxu0
  %v2327 = vadd.f32 0.0, %v2326
  %v2328 = vpop.f32.mrb[0].mxu0
  %2329 = vmatprep.mubr.f32.mxu0 0.0
  %2330 = vmatmul.mubr.f32.gmra.mrb[0].mxu0 %v799
  %v2331 = vpop.f32.mrb[0].mxu0
  %v2332 = vadd.f32 0.0, %v2331
  %v2333 = vpop.f32.mrb[0].mxu0
  %2334 = vmatprep.mubr.f32.mxu0 0.0
  %2335 = vmatmul.mubr.f32.gmra.mrb[0].mxu0 %v802
  %v2336 = vpop.f32.mrb[0].mxu0
  %v2337 = vadd.f32 0.0, %v2336
  %v2338 = vpop.f32.mrb[0].mxu0
  %2339 = vmatprep.mubr.f32.mxu0 0.0
  %2340 = vmatmul.mubr.f32.gmra.mrb[0].mxu0 %v805
  %v2341 = vpop.f32.mrb[0].mxu0
  %v2342 = vadd.f32 0.0, %v2341
  %v2343 = vpop.f32.mrb[0].mxu0
  %2344 = vmatprep.mubr.f32.mxu0 0.0
  %2345 = vmatmul.mubr.f32.gmra.mrb[0].mxu0 %v808
  %v2346 = vpop.f32.mrb[0].mxu0
  %v2347 = vadd.f32 0.0, %v2346
  %v2348 = vpop.f32.mrb[0].mxu0
  %2349 = vmatprep.mubr.f32.mxu0 0.0
  %2350 = vmatmul.mubr.f32.gmra.mrb[0].mxu0 %v811
  %v2351 = vpop.f32.mrb[0].mxu0
  %v2352 = vadd.f32 0.0, %v2351
  %v2353 = vpop.f32.mrb[0].mxu0
  %2354 = vmatprep.mubr.f32.mxu0 0.0
  %2355 = vmatmul.mubr.f32.gmra.mrb[0].mxu0 %v814
  %v2356 = vpop.f32.mrb[0].mxu0
  %v2357 = vadd.f32 0.0, %v2356
  %v2358 = vpop.f32.mrb[0].mxu0
  %2359 = vmatprep.mubr.f32.mxu0 0.0
  %2360 = vmatmul.mubr.f32.gmra.mrb[0].mxu0 %v817
  %v2361 = vpop.f32.mrb[0].mxu0
  %v2362 = vadd.f32 0.0, %v2361
  %v2363 = vpop.f32.mrb[0].mxu0
  %2364 = vmatprep.mubr.f32.mxu0 0.0
  %2365 = vmatmul.mubr.f32.gmra.mrb[0].mxu0 %v1023
  %v2366 = vpop.f32.mrb[0].mxu0
  %v2367 = vadd.f32 0.0, %v2366
  %v2368 = vpop.f32.mrb[0].mxu0
  %2369 = vmatprep.mubr.f32.mxu0 0.0
  %2370 = vmatmul.mubr.f32.gmra.mrb[0].mxu0 %v1223
  %v2371 = vpop.f32.mrb[0].mxu0
  %v2372 = vadd.f32 0.0, %v2371
  %v2373 = vpop.f32.mrb[0].mxu0
  %2374 = vmatprep.mubr.f32.mxu0 0.0
  %2375 = vmatmul.mubr.f32.gmra.mrb[0].mxu0 %v1423
  %v2376 = vpop.f32.mrb[0].mxu0
  %v2377 = vadd.f32 0.0, %v2376
  %v2378 = vpop.f32.mrb[0].mxu0
  %2379 = vmatprep.mubr.f32.mxu0 0.0
  %2380 = vmatmul.mubr.f32.gmra.mrb[0].mxu0 %v1623
  %v2381 = vpop.f32.mrb[0].mxu0
  %v2382 = vadd.f32 0.0, %v2381
  %v2383 = vpop.f32.mrb[0].mxu0
  %2384 = vmatprep.mubr.f32.mxu0 0.0
  %2385 = vmatmul.mubr.f32.gmra.mrb[0].mxu0 %v1823
  %v2386 = vpop.f32.mrb[0].mxu0
  %v2387 = vadd.f32 0.0, %v2386
  %v2388 = vpop.f32.mrb[0].mxu0
  %2389 = vmatprep.mubr.f32.mxu0 0.0
  %2390 = vmatmul.mubr.f32.gmra.mrb[0].mxu0 %v2023
  %v2391 = vpop.f32.mrb[0].mxu0
  %v2392 = vadd.f32 0.0, %v2391
  %v2393 = vpop.f32.mrb[0].mxu0
  %2394 = vmatprep.mubr.f32.mxu0 0.0
  %2395 = vmatmul.mubr.f32.gmra.mrb[0].mxu0 %v2223
  %v2396 = vpop.f32.mrb[0].mxu0
  %v2397 = vadd.f32 0.0, %v2396
  %v2398 = vpop.f32.mrb[0].mxu0
  %2399 = vdwg.mxu0
  %v2400 = vadd.f32 %v2200, %v2292
  %v2401 = vadd.f32 %v2201, %v2297
  %v2402 = vadd.f32 %v2202, %v2302
  %v2403 = vadd.f32 %v2203, %v2307
  %v2404 = vadd.f32 %v2204, %v2312
  %v2405 = vadd.f32 %v2205, %v2317
  %v2406 = vadd.f32 %v2206, %v2322
  %v2407 = vadd.f32 %v2207, %v2327
  %v2408 = vadd.f32 %v2208, %v2332
  %v2409 = vadd.f32 %v2209, %v2337
  %v2410 = vadd.f32 %v2210, %v2342
  %v2411 = vadd.f32 %v2211, %v2347
  %v2412 = vadd.f32 %v2212, %v2352
  %v2413 = vadd.f32 %v2213, %v2357
  %v2414 = vadd.f32 %v2214, %v2362
  %v2415 = vadd.f32 %v2215, %v2367
  %v2416 = vadd.f32 %v2216, %v2372
  %v2417 = vadd.f32 %v2217, %v2377
  %v2418 = vadd.f32 %v2218, %v2382
  %v2419 = vadd.f32 %v2219, %v2387
  %v2420 = vadd.f32 %v2220, %v2392
  %v2421 = vadd.f32 %v2221, %v2397
  %v2423 = vsel %vm435, %v740, 0
  %2425 = vmatprep.subr.mxu0 0.0
  %2426 = vmatpush1.msra.mxu0 %v750
  %2427 = vmatprep.subr.mxu0 0.0
  %2428 = vmatpush1.msra.mxu0 0.0
  %2429 = vmatprep.subr.mxu0 0.0
  %2430 = vmatpush1.msra.mxu0 0.0
  %2431 = vmatprep.subr.mxu0 0.0
  %2432 = vmatpush1.msra.mxu0 0.0
  %2433 = vmatprep.subr.mxu0 0.0
  %2434 = vmatpush1.msra.mxu0 0.0
  %2435 = vmatprep.subr.mxu0 0.0
  %2436 = vmatpush1.msra.mxu0 0.0
  %2437 = vmatprep.subr.mxu0 0.0
  %2438 = vmatpush1.msra.mxu0 0.0
  %2439 = vmatprep.subr.mxu0 0.0
  %2440 = vmatpush1.msra.mxu0 0.0
  %2441 = vmatprep.subr.mxu0 0.0
  %2442 = vmatpush1.msra.mxu0 0.0
  %2443 = vmatprep.subr.mxu0 0.0
  %2444 = vmatpush1.msra.mxu0 0.0
  %2445 = vmatprep.subr.mxu0 0.0
  %2446 = vmatpush1.msra.mxu0 0.0
  %2447 = vmatprep.subr.mxu0 0.0
  %2448 = vmatpush1.msra.mxu0 0.0
  %2449 = vmatprep.subr.mxu0 0.0
  %2450 = vmatpush1.msra.mxu0 0.0
  %2451 = vmatprep.subr.mxu0 0.0
  %2452 = vmatpush1.msra.mxu0 0.0
  %2453 = vmatprep.subr.mxu0 0.0
  %2454 = vmatpush1.msra.mxu0 0.0
  %2455 = vmatprep.subr.mxu0 0.0
  %2456 = vmatpush1.msra.mxu0 0.0
  %2457 = vmatprep.subr.mxu0 0.0
  %2458 = vmatpush1.msra.mxu0 0.0
  %2459 = vmatprep.subr.mxu0 0.0
  %2460 = vmatpush1.msra.mxu0 0.0
  %2461 = vmatprep.subr.mxu0 0.0
  %2462 = vmatpush1.msra.mxu0 0.0
  %2463 = vmatprep.subr.mxu0 0.0
  %2464 = vmatpush1.msra.mxu0 0.0
  %2465 = vmatprep.subr.mxu0 0.0
  %2466 = vmatpush1.msra.mxu0 0.0
  %2467 = vmatprep.subr.mxu0 0.0
  %2468 = vmatpush1.msra.mxu0 0.0
  %2469 = vmatprep.subr.mxu0 0.0
  %2470 = vmatpush1.msra.mxu0 0.0
  %2471 = vmatprep.subr.mxu0 0.0
  %2472 = vmatpush1.msra.mxu0 0.0
  %2473 = vmatprep.subr.mxu0 0.0
  %2474 = vmatpush1.msra.mxu0 0.0
  %2475 = vmatprep.subr.mxu0 0.0
  %2476 = vmatpush1.msra.mxu0 0.0
  %2477 = vmatprep.subr.mxu0 0.0
  %2478 = vmatpush1.msra.mxu0 0.0
  %2479 = vmatprep.subr.mxu0 0.0
  %2480 = vmatpush1.msra.mxu0 0.0
  %2481 = vmatprep.subr.mxu0 0.0
  %2482 = vmatpush1.msra.mxu0 0.0
  %2483 = vmatprep.subr.mxu0 0.0
  %2484 = vmatpush1.msra.mxu0 0.0
  %2485 = vmatprep.subr.mxu0 0.0
  %2486 = vmatpush1.msra.mxu0 0.0
  %2487 = vmatprep.subr.mxu0 0.0
  %2488 = vmatpush1.msra.mxu0 0.0
  %2489 = vmatprep.mubr.f32.mxu0 0.0
  %2490 = vmatmul.mubr.f32.gmra.mrb[0].mxu0 %v778
  %v2491 = vpop.f32.mrb[0].mxu0
  %v2492 = vadd.f32 0.0, %v2491
  %v2493 = vpop.f32.mrb[0].mxu0
  %2494 = vmatprep.mubr.f32.mxu0 0.0
  %2495 = vmatmul.mubr.f32.gmra.mrb[0].mxu0 %v781
  %v2496 = vpop.f32.mrb[0].mxu0
  %v2497 = vadd.f32 0.0, %v2496
  %v2498 = vpop.f32.mrb[0].mxu0
  %2499 = vmatprep.mubr.f32.mxu0 0.0
  %2500 = vmatmul.mubr.f32.gmra.mrb[0].mxu0 %v784
  %v2501 = vpop.f32.mrb[0].mxu0
  %v2502 = vadd.f32 0.0, %v2501
  %v2503 = vpop.f32.mrb[0].mxu0
  %2504 = vmatprep.mubr.f32.mxu0 0.0
  %2505 = vmatmul.mubr.f32.gmra.mrb[0].mxu0 %v787
  %v2506 = vpop.f32.mrb[0].mxu0
  %v2507 = vadd.f32 0.0, %v2506
  %v2508 = vpop.f32.mrb[0].mxu0
  %2509 = vmatprep.mubr.f32.mxu0 0.0
  %2510 = vmatmul.mubr.f32.gmra.mrb[0].mxu0 %v790
  %v2511 = vpop.f32.mrb[0].mxu0
  %v2512 = vadd.f32 0.0, %v2511
  %v2513 = vpop.f32.mrb[0].mxu0
  %2514 = vmatprep.mubr.f32.mxu0 0.0
  %2515 = vmatmul.mubr.f32.gmra.mrb[0].mxu0 %v793
  %v2516 = vpop.f32.mrb[0].mxu0
  %v2517 = vadd.f32 0.0, %v2516
  %v2518 = vpop.f32.mrb[0].mxu0
  %2519 = vmatprep.mubr.f32.mxu0 0.0
  %2520 = vmatmul.mubr.f32.gmra.mrb[0].mxu0 %v796
  %v2521 = vpop.f32.mrb[0].mxu0
  %v2522 = vadd.f32 0.0, %v2521
  %v2523 = vpop.f32.mrb[0].mxu0
  %2524 = vmatprep.mubr.f32.mxu0 0.0
  %2525 = vmatmul.mubr.f32.gmra.mrb[0].mxu0 %v799
  %v2526 = vpop.f32.mrb[0].mxu0
  %v2527 = vadd.f32 0.0, %v2526
  %v2528 = vpop.f32.mrb[0].mxu0
  %2529 = vmatprep.mubr.f32.mxu0 0.0
  %2530 = vmatmul.mubr.f32.gmra.mrb[0].mxu0 %v802
  %v2531 = vpop.f32.mrb[0].mxu0
  %v2532 = vadd.f32 0.0, %v2531
  %v2533 = vpop.f32.mrb[0].mxu0
  %2534 = vmatprep.mubr.f32.mxu0 0.0
  %2535 = vmatmul.mubr.f32.gmra.mrb[0].mxu0 %v805
  %v2536 = vpop.f32.mrb[0].mxu0
  %v2537 = vadd.f32 0.0, %v2536
  %v2538 = vpop.f32.mrb[0].mxu0
  %2539 = vmatprep.mubr.f32.mxu0 0.0
  %2540 = vmatmul.mubr.f32.gmra.mrb[0].mxu0 %v808
  %v2541 = vpop.f32.mrb[0].mxu0
  %v2542 = vadd.f32 0.0, %v2541
  %v2543 = vpop.f32.mrb[0].mxu0
  %2544 = vmatprep.mubr.f32.mxu0 0.0
  %2545 = vmatmul.mubr.f32.gmra.mrb[0].mxu0 %v811
  %v2546 = vpop.f32.mrb[0].mxu0
  %v2547 = vadd.f32 0.0, %v2546
  %v2548 = vpop.f32.mrb[0].mxu0
  %2549 = vmatprep.mubr.f32.mxu0 0.0
  %2550 = vmatmul.mubr.f32.gmra.mrb[0].mxu0 %v814
  %v2551 = vpop.f32.mrb[0].mxu0
  %v2552 = vadd.f32 0.0, %v2551
  %v2553 = vpop.f32.mrb[0].mxu0
  %2554 = vmatprep.mubr.f32.mxu0 0.0
  %2555 = vmatmul.mubr.f32.gmra.mrb[0].mxu0 %v817
  %v2556 = vpop.f32.mrb[0].mxu0
  %v2557 = vadd.f32 0.0, %v2556
  %v2558 = vpop.f32.mrb[0].mxu0
  %2559 = vmatprep.mubr.f32.mxu0 0.0
  %2560 = vmatmul.mubr.f32.gmra.mrb[0].mxu0 %v1023
  %v2561 = vpop.f32.mrb[0].mxu0
  %v2562 = vadd.f32 0.0, %v2561
  %v2563 = vpop.f32.mrb[0].mxu0
  %2564 = vmatprep.mubr.f32.mxu0 0.0
  %2565 = vmatmul.mubr.f32.gmra.mrb[0].mxu0 %v1223
  %v2566 = vpop.f32.mrb[0].mxu0
  %v2567 = vadd.f32 0.0, %v2566
  %v2568 = vpop.f32.mrb[0].mxu0
  %2569 = vmatprep.mubr.f32.mxu0 0.0
  %2570 = vmatmul.mubr.f32.gmra.mrb[0].mxu0 %v1423
  %v2571 = vpop.f32.mrb[0].mxu0
  %v2572 = vadd.f32 0.0, %v2571
  %v2573 = vpop.f32.mrb[0].mxu0
  %2574 = vmatprep.mubr.f32.mxu0 0.0
  %2575 = vmatmul.mubr.f32.gmra.mrb[0].mxu0 %v1623
  %v2576 = vpop.f32.mrb[0].mxu0
  %v2577 = vadd.f32 0.0, %v2576
  %v2578 = vpop.f32.mrb[0].mxu0
  %2579 = vmatprep.mubr.f32.mxu0 0.0
  %2580 = vmatmul.mubr.f32.gmra.mrb[0].mxu0 %v1823
  %v2581 = vpop.f32.mrb[0].mxu0
  %v2582 = vadd.f32 0.0, %v2581
  %v2583 = vpop.f32.mrb[0].mxu0
  %2584 = vmatprep.mubr.f32.mxu0 0.0
  %2585 = vmatmul.mubr.f32.gmra.mrb[0].mxu0 %v2023
  %v2586 = vpop.f32.mrb[0].mxu0
  %v2587 = vadd.f32 0.0, %v2586
  %v2588 = vpop.f32.mrb[0].mxu0
  %2589 = vmatprep.mubr.f32.mxu0 0.0
  %2590 = vmatmul.mubr.f32.gmra.mrb[0].mxu0 %v2223
  %v2591 = vpop.f32.mrb[0].mxu0
  %v2592 = vadd.f32 0.0, %v2591
  %v2593 = vpop.f32.mrb[0].mxu0
  %2594 = vmatprep.mubr.f32.mxu0 0.0
  %2595 = vmatmul.mubr.f32.gmra.mrb[0].mxu0 %v2423
  %v2596 = vpop.f32.mrb[0].mxu0
  %v2597 = vadd.f32 0.0, %v2596
  %v2598 = vpop.f32.mrb[0].mxu0
  %2599 = vdwg.mxu0
  %v2600 = vadd.f32 %v2400, %v2492
  %v2601 = vadd.f32 %v2401, %v2497
  %v2602 = vadd.f32 %v2402, %v2502
  %v2603 = vadd.f32 %v2403, %v2507
  %v2604 = vadd.f32 %v2404, %v2512
  %v2605 = vadd.f32 %v2405, %v2517
  %v2606 = vadd.f32 %v2406, %v2522
  %v2607 = vadd.f32 %v2407, %v2527
  %v2608 = vadd.f32 %v2408, %v2532
  %v2609 = vadd.f32 %v2409, %v2537
  %v2610 = vadd.f32 %v2410, %v2542
  %v2611 = vadd.f32 %v2411, %v2547
  %v2612 = vadd.f32 %v2412, %v2552
  %v2613 = vadd.f32 %v2413, %v2557
  %v2614 = vadd.f32 %v2414, %v2562
  %v2615 = vadd.f32 %v2415, %v2567
  %v2616 = vadd.f32 %v2416, %v2572
  %v2617 = vadd.f32 %v2417, %v2577
  %v2618 = vadd.f32 %v2418, %v2582
  %v2619 = vadd.f32 %v2419, %v2587
  %v2620 = vadd.f32 %v2420, %v2592
  %v2621 = vadd.f32 %v2421, %v2597
  %v2623 = vsel %vm435, %v741, 0
  %2625 = vmatprep.subr.mxu0 0.0
  %2626 = vmatpush1.msra.mxu0 %v751
  %2627 = vmatprep.subr.mxu0 0.0
  %2628 = vmatpush1.msra.mxu0 0.0
  %2629 = vmatprep.subr.mxu0 0.0
  %2630 = vmatpush1.msra.mxu0 0.0
  %2631 = vmatprep.subr.mxu0 0.0
  %2632 = vmatpush1.msra.mxu0 0.0
  %2633 = vmatprep.subr.mxu0 0.0
  %2634 = vmatpush1.msra.mxu0 0.0
  %2635 = vmatprep.subr.mxu0 0.0
  %2636 = vmatpush1.msra.mxu0 0.0
  %2637 = vmatprep.subr.mxu0 0.0
  %2638 = vmatpush1.msra.mxu0 0.0
  %2639 = vmatprep.subr.mxu0 0.0
  %2640 = vmatpush1.msra.mxu0 0.0
  %2641 = vmatprep.subr.mxu0 0.0
  %2642 = vmatpush1.msra.mxu0 0.0
  %2643 = vmatprep.subr.mxu0 0.0
  %2644 = vmatpush1.msra.mxu0 0.0
  %2645 = vmatprep.subr.mxu0 0.0
  %2646 = vmatpush1.msra.mxu0 0.0
  %2647 = vmatprep.subr.mxu0 0.0
  %2648 = vmatpush1.msra.mxu0 0.0
  %2649 = vmatprep.subr.mxu0 0.0
  %2650 = vmatpush1.msra.mxu0 0.0
  %2651 = vmatprep.subr.mxu0 0.0
  %2652 = vmatpush1.msra.mxu0 0.0
  %2653 = vmatprep.subr.mxu0 0.0
  %2654 = vmatpush1.msra.mxu0 0.0
  %2655 = vmatprep.subr.mxu0 0.0
  %2656 = vmatpush1.msra.mxu0 0.0
  %2657 = vmatprep.subr.mxu0 0.0
  %2658 = vmatpush1.msra.mxu0 0.0
  %2659 = vmatprep.subr.mxu0 0.0
  %2660 = vmatpush1.msra.mxu0 0.0
  %2661 = vmatprep.subr.mxu0 0.0
  %2662 = vmatpush1.msra.mxu0 0.0
  %2663 = vmatprep.subr.mxu0 0.0
  %2664 = vmatpush1.msra.mxu0 0.0
  %2665 = vmatprep.subr.mxu0 0.0
  %2666 = vmatpush1.msra.mxu0 0.0
  %2667 = vmatprep.subr.mxu0 0.0
  %2668 = vmatpush1.msra.mxu0 0.0
  %2669 = vmatprep.subr.mxu0 0.0
  %2670 = vmatpush1.msra.mxu0 0.0
  %2671 = vmatprep.subr.mxu0 0.0
  %2672 = vmatpush1.msra.mxu0 0.0
  %2673 = vmatprep.subr.mxu0 0.0
  %2674 = vmatpush1.msra.mxu0 0.0
  %2675 = vmatprep.subr.mxu0 0.0
  %2676 = vmatpush1.msra.mxu0 0.0
  %2677 = vmatprep.subr.mxu0 0.0
  %2678 = vmatpush1.msra.mxu0 0.0
  %2679 = vmatprep.subr.mxu0 0.0
  %2680 = vmatpush1.msra.mxu0 0.0
  %2681 = vmatprep.subr.mxu0 0.0
  %2682 = vmatpush1.msra.mxu0 0.0
  %2683 = vmatprep.subr.mxu0 0.0
  %2684 = vmatpush1.msra.mxu0 0.0
  %2685 = vmatprep.subr.mxu0 0.0
  %2686 = vmatpush1.msra.mxu0 0.0
  %2687 = vmatprep.subr.mxu0 0.0
  %2688 = vmatpush1.msra.mxu0 0.0
  %2689 = vmatprep.mubr.f32.mxu0 0.0
  %2690 = vmatmul.mubr.f32.gmra.mrb[0].mxu0 %v781
  %v2691 = vpop.f32.mrb[0].mxu0
  %v2692 = vadd.f32 0.0, %v2691
  %v2693 = vpop.f32.mrb[0].mxu0
  %2694 = vmatprep.mubr.f32.mxu0 0.0
  %2695 = vmatmul.mubr.f32.gmra.mrb[0].mxu0 %v784
  %v2696 = vpop.f32.mrb[0].mxu0
  %v2697 = vadd.f32 0.0, %v2696
  %v2698 = vpop.f32.mrb[0].mxu0
  %2699 = vmatprep.mubr.f32.mxu0 0.0
  %2700 = vmatmul.mubr.f32.gmra.mrb[0].mxu0 %v787
  %v2701 = vpop.f32.mrb[0].mxu0
  %v2702 = vadd.f32 0.0, %v2701
  %v2703 = vpop.f32.mrb[0].mxu0
  %2704 = vmatprep.mubr.f32.mxu0 0.0
  %2705 = vmatmul.mubr.f32.gmra.mrb[0].mxu0 %v790
  %v2706 = vpop.f32.mrb[0].mxu0
  %v2707 = vadd.f32 0.0, %v2706
  %v2708 = vpop.f32.mrb[0].mxu0
  %2709 = vmatprep.mubr.f32.mxu0 0.0
  %2710 = vmatmul.mubr.f32.gmra.mrb[0].mxu0 %v793
  %v2711 = vpop.f32.mrb[0].mxu0
  %v2712 = vadd.f32 0.0, %v2711
  %v2713 = vpop.f32.mrb[0].mxu0
  %2714 = vmatprep.mubr.f32.mxu0 0.0
  %2715 = vmatmul.mubr.f32.gmra.mrb[0].mxu0 %v796
  %v2716 = vpop.f32.mrb[0].mxu0
  %v2717 = vadd.f32 0.0, %v2716
  %v2718 = vpop.f32.mrb[0].mxu0
  %2719 = vmatprep.mubr.f32.mxu0 0.0
  %2720 = vmatmul.mubr.f32.gmra.mrb[0].mxu0 %v799
  %v2721 = vpop.f32.mrb[0].mxu0
  %v2722 = vadd.f32 0.0, %v2721
  %v2723 = vpop.f32.mrb[0].mxu0
  %2724 = vmatprep.mubr.f32.mxu0 0.0
  %2725 = vmatmul.mubr.f32.gmra.mrb[0].mxu0 %v802
  %v2726 = vpop.f32.mrb[0].mxu0
  %v2727 = vadd.f32 0.0, %v2726
  %v2728 = vpop.f32.mrb[0].mxu0
  %2729 = vmatprep.mubr.f32.mxu0 0.0
  %2730 = vmatmul.mubr.f32.gmra.mrb[0].mxu0 %v805
  %v2731 = vpop.f32.mrb[0].mxu0
  %v2732 = vadd.f32 0.0, %v2731
  %v2733 = vpop.f32.mrb[0].mxu0
  %2734 = vmatprep.mubr.f32.mxu0 0.0
  %2735 = vmatmul.mubr.f32.gmra.mrb[0].mxu0 %v808
  %v2736 = vpop.f32.mrb[0].mxu0
  %v2737 = vadd.f32 0.0, %v2736
  %v2738 = vpop.f32.mrb[0].mxu0
  %2739 = vmatprep.mubr.f32.mxu0 0.0
  %2740 = vmatmul.mubr.f32.gmra.mrb[0].mxu0 %v811
  %v2741 = vpop.f32.mrb[0].mxu0
  %v2742 = vadd.f32 0.0, %v2741
  %v2743 = vpop.f32.mrb[0].mxu0
  %2744 = vmatprep.mubr.f32.mxu0 0.0
  %2745 = vmatmul.mubr.f32.gmra.mrb[0].mxu0 %v814
  %v2746 = vpop.f32.mrb[0].mxu0
  %v2747 = vadd.f32 0.0, %v2746
  %v2748 = vpop.f32.mrb[0].mxu0
  %2749 = vmatprep.mubr.f32.mxu0 0.0
  %2750 = vmatmul.mubr.f32.gmra.mrb[0].mxu0 %v817
  %v2751 = vpop.f32.mrb[0].mxu0
  %v2752 = vadd.f32 0.0, %v2751
  %v2753 = vpop.f32.mrb[0].mxu0
  %2754 = vmatprep.mubr.f32.mxu0 0.0
  %2755 = vmatmul.mubr.f32.gmra.mrb[0].mxu0 %v1023
  %v2756 = vpop.f32.mrb[0].mxu0
  %v2757 = vadd.f32 0.0, %v2756
  %v2758 = vpop.f32.mrb[0].mxu0
  %2759 = vmatprep.mubr.f32.mxu0 0.0
  %2760 = vmatmul.mubr.f32.gmra.mrb[0].mxu0 %v1223
  %v2761 = vpop.f32.mrb[0].mxu0
  %v2762 = vadd.f32 0.0, %v2761
  %v2763 = vpop.f32.mrb[0].mxu0
  %2764 = vmatprep.mubr.f32.mxu0 0.0
  %2765 = vmatmul.mubr.f32.gmra.mrb[0].mxu0 %v1423
  %v2766 = vpop.f32.mrb[0].mxu0
  %v2767 = vadd.f32 0.0, %v2766
  %v2768 = vpop.f32.mrb[0].mxu0
  %2769 = vmatprep.mubr.f32.mxu0 0.0
  %2770 = vmatmul.mubr.f32.gmra.mrb[0].mxu0 %v1623
  %v2771 = vpop.f32.mrb[0].mxu0
  %v2772 = vadd.f32 0.0, %v2771
  %v2773 = vpop.f32.mrb[0].mxu0
  %2774 = vmatprep.mubr.f32.mxu0 0.0
  %2775 = vmatmul.mubr.f32.gmra.mrb[0].mxu0 %v1823
  %v2776 = vpop.f32.mrb[0].mxu0
  %v2777 = vadd.f32 0.0, %v2776
  %v2778 = vpop.f32.mrb[0].mxu0
  %2779 = vmatprep.mubr.f32.mxu0 0.0
  %2780 = vmatmul.mubr.f32.gmra.mrb[0].mxu0 %v2023
  %v2781 = vpop.f32.mrb[0].mxu0
  %v2782 = vadd.f32 0.0, %v2781
  %v2783 = vpop.f32.mrb[0].mxu0
  %2784 = vmatprep.mubr.f32.mxu0 0.0
  %2785 = vmatmul.mubr.f32.gmra.mrb[0].mxu0 %v2223
  %v2786 = vpop.f32.mrb[0].mxu0
  %v2787 = vadd.f32 0.0, %v2786
  %v2788 = vpop.f32.mrb[0].mxu0
  %2789 = vmatprep.mubr.f32.mxu0 0.0
  %2790 = vmatmul.mubr.f32.gmra.mrb[0].mxu0 %v2423
  %v2791 = vpop.f32.mrb[0].mxu0
  %v2792 = vadd.f32 0.0, %v2791
  %v2793 = vpop.f32.mrb[0].mxu0
  %2794 = vmatprep.mubr.f32.mxu0 0.0
  %2795 = vmatmul.mubr.f32.gmra.mrb[0].mxu0 %v2623
  %v2796 = vpop.f32.mrb[0].mxu0
  %v2797 = vadd.f32 0.0, %v2796
  %v2798 = vpop.f32.mrb[0].mxu0
  %2799 = vdwg.mxu0
  %v2800 = vadd.f32 %v2600, %v2692
  %v2801 = vadd.f32 %v2601, %v2697
  %v2802 = vadd.f32 %v2602, %v2702
  %v2803 = vadd.f32 %v2603, %v2707
  %v2804 = vadd.f32 %v2604, %v2712
  %v2805 = vadd.f32 %v2605, %v2717
  %v2806 = vadd.f32 %v2606, %v2722
  %v2807 = vadd.f32 %v2607, %v2727
  %v2808 = vadd.f32 %v2608, %v2732
  %v2809 = vadd.f32 %v2609, %v2737
  %v2810 = vadd.f32 %v2610, %v2742
  %v2811 = vadd.f32 %v2611, %v2747
  %v2812 = vadd.f32 %v2612, %v2752
  %v2813 = vadd.f32 %v2613, %v2757
  %v2814 = vadd.f32 %v2614, %v2762
  %v2815 = vadd.f32 %v2615, %v2767
  %v2816 = vadd.f32 %v2616, %v2772
  %v2817 = vadd.f32 %v2617, %v2777
  %v2818 = vadd.f32 %v2618, %v2782
  %v2819 = vadd.f32 %v2619, %v2787
  %v2820 = vadd.f32 %v2620, %v2792
  %v2821 = vadd.f32 %v2621, %v2797
  %v2822 = vmax.f32 %v2800, 0.0
  %v2823 = vmax.f32 %v2801, 0.0
  %v2824 = vmax.f32 %v2802, 0.0
  %v2825 = vmax.f32 %v2803, 0.0
  %v2826 = vmax.f32 %v2804, 0.0
  %v2827 = vmax.f32 %v2805, 0.0
  %v2828 = vmax.f32 %v2806, 0.0
  %v2829 = vmax.f32 %v2807, 0.0
  %v2830 = vmax.f32 %v2808, 0.0
  %v2831 = vmax.f32 %v2809, 0.0
  %v2832 = vmax.f32 %v2810, 0.0
  %v2833 = vmax.f32 %v2811, 0.0
  %v2834 = vmax.f32 %v2812, 0.0
  %v2835 = vmax.f32 %v2813, 0.0
  %v2836 = vmax.f32 %v2814, 0.0
  %v2837 = vmax.f32 %v2815, 0.0
  %v2838 = vmax.f32 %v2816, 0.0
  %v2839 = vmax.f32 %v2817, 0.0
  %v2840 = vmax.f32 %v2818, 0.0
  %v2841 = vmax.f32 %v2819, 0.0
  %v2842 = vmax.f32 %v2820, 0.0
  %v2843 = vmax.f32 %v2821, 0.0
  %v2844 = vld [vmem:[%s7] sm:$0x1]
  %v2845 = vld [vmem:[%s8] sm:$0x1]
  %vm2846 = vcmask 130048
  %v2847 = vsel %vm2846, %v2822, 0.0
  %v2848 = vsel %vm2846, %v2823, 0.0
  %v2849 = vadd.f32 %v2847, %v2848
  %v2850 = vsel %vm2846, %v2824, 0.0
  %v2851 = vadd.f32 %v2849, %v2850
  %v2852 = vsel %vm2846, %v2825, 0.0
  %v2853 = vadd.f32 %v2851, %v2852
  %v2854 = vsel %vm2846, %v2826, 0.0
  %v2855 = vadd.f32 %v2853, %v2854
  %v2856 = vsel %vm2846, %v2827, 0.0
  %v2857 = vadd.f32 %v2855, %v2856
  %v2858 = vsel %vm2846, %v2828, 0.0
  %v2859 = vadd.f32 %v2857, %v2858
  %v2860 = vsel %vm2846, %v2829, 0.0
  %v2861 = vadd.f32 %v2859, %v2860
  %v2862 = vsel %vm2846, %v2830, 0.0
  %v2863 = vadd.f32 %v2861, %v2862
  %v2864 = vsel %vm2846, %v2831, 0.0
  %v2865 = vadd.f32 %v2863, %v2864
  %v2866 = vsel %vm2846, %v2832, 0.0
  %v2867 = vadd.f32 %v2865, %v2866
  %v2868 = vsel %vm2846, %v2833, 0.0
  %v2869 = vadd.f32 %v2867, %v2868
  %v2870 = vsel %vm2846, %v2834, 0.0
  %v2871 = vadd.f32 %v2869, %v2870
  %v2872 = vsel %vm2846, %v2835, 0.0
  %v2873 = vadd.f32 %v2871, %v2872
  %v2874 = vsel %vm2846, %v2836, 0.0
  %v2875 = vadd.f32 %v2873, %v2874
  %v2876 = vsel %vm2846, %v2837, 0.0
  %v2877 = vadd.f32 %v2875, %v2876
  %v2878 = vsel %vm2846, %v2838, 0.0
  %v2879 = vadd.f32 %v2877, %v2878
  %v2880 = vsel %vm2846, %v2839, 0.0
  %v2881 = vadd.f32 %v2879, %v2880
  %v2882 = vsel %vm2846, %v2840, 0.0
  %v2883 = vadd.f32 %v2881, %v2882
  %v2884 = vsel %vm2846, %v2841, 0.0
  %v2885 = vadd.f32 %v2883, %v2884
  %v2886 = vsel %vm2846, %v2842, 0.0
  %v2887 = vadd.f32 %v2885, %v2886
  %v2888 = vsel %vm2846, %v2843, 0.0
  %v2889 = vadd.f32 %v2887, %v2888
  %v2890 = vrot.slane %v2889, 4
  %v2891 = vadd.f32 %v2889, %v2890
  %v2892 = vrot.slane %v2891, 2
  %v2893 = vadd.f32 %v2891, %v2892
  %v2894 = vrot.slane %v2893, 1
  %v2895 = vadd.f32 %v2893, %v2894
  %v2896 = vrcp.pop 176.0
  %v2897 = vmul.f32 %v2895, %v2896
  %v2898 = vsub.f32 %v2822, %v2897
  %v2899 = vsub.f32 %v2823, %v2897
  %v2900 = vsub.f32 %v2824, %v2897
  %v2901 = vsub.f32 %v2825, %v2897
  %v2902 = vsub.f32 %v2826, %v2897
  %v2903 = vsub.f32 %v2827, %v2897
  %v2904 = vsub.f32 %v2828, %v2897
  %v2905 = vsub.f32 %v2829, %v2897
  %v2906 = vsub.f32 %v2830, %v2897
  %v2907 = vsub.f32 %v2831, %v2897
  %v2908 = vsub.f32 %v2832, %v2897
  %v2909 = vsub.f32 %v2833, %v2897
  %v2910 = vsub.f32 %v2834, %v2897
  %v2911 = vsub.f32 %v2835, %v2897
  %v2912 = vsub.f32 %v2836, %v2897
  %v2913 = vsub.f32 %v2837, %v2897
  %v2914 = vsub.f32 %v2838, %v2897
  %v2915 = vsub.f32 %v2839, %v2897
  %v2916 = vsub.f32 %v2840, %v2897
  %v2917 = vsub.f32 %v2841, %v2897
  %v2918 = vsub.f32 %v2842, %v2897
  %v2919 = vsub.f32 %v2843, %v2897
  %v2920 = vmul.f32 %v2898, %v2898
  %v2921 = vmul.f32 %v2899, %v2899
  %v2922 = vmul.f32 %v2900, %v2900
  %v2923 = vmul.f32 %v2901, %v2901
  %v2924 = vmul.f32 %v2902, %v2902
  %v2925 = vmul.f32 %v2903, %v2903
  %v2926 = vmul.f32 %v2904, %v2904
  %v2927 = vmul.f32 %v2905, %v2905
  %v2928 = vmul.f32 %v2906, %v2906
  %v2929 = vmul.f32 %v2907, %v2907
  %v2930 = vmul.f32 %v2908, %v2908
  %v2931 = vmul.f32 %v2909, %v2909
  %v2932 = vmul.f32 %v2910, %v2910
  %v2933 = vmul.f32 %v2911, %v2911
  %v2934 = vmul.f32 %v2912, %v2912
  %v2935 = vmul.f32 %v2913, %v2913
  %v2936 = vmul.f32 %v2914, %v2914
  %v2937 = vmul.f32 %v2915, %v2915
  %v2938 = vmul.f32 %v2916, %v2916
  %v2939 = vmul.f32 %v2917, %v2917
  %v2940 = vmul.f32 %v2918, %v2918
  %v2941 = vmul.f32 %v2919, %v2919
  %v2942 = vsel %vm2846, %v2920, 0.0
  %v2943 = vsel %vm2846, %v2921, 0.0
  %v2944 = vadd.f32 %v2942, %v2943
  %v2945 = vsel %vm2846, %v2922, 0.0
  %v2946 = vadd.f32 %v2944, %v2945
  %v2947 = vsel %vm2846, %v2923, 0.0
  %v2948 = vadd.f32 %v2946, %v2947
  %v2949 = vsel %vm2846, %v2924, 0.0
  %v2950 = vadd.f32 %v2948, %v2949
  %v2951 = vsel %vm2846, %v2925, 0.0
  %v2952 = vadd.f32 %v2950, %v2951
  %v2953 = vsel %vm2846, %v2926, 0.0
  %v2954 = vadd.f32 %v2952, %v2953
  %v2955 = vsel %vm2846, %v2927, 0.0
  %v2956 = vadd.f32 %v2954, %v2955
  %v2957 = vsel %vm2846, %v2928, 0.0
  %v2958 = vadd.f32 %v2956, %v2957
  %v2959 = vsel %vm2846, %v2929, 0.0
  %v2960 = vadd.f32 %v2958, %v2959
  %v2961 = vsel %vm2846, %v2930, 0.0
  %v2962 = vadd.f32 %v2960, %v2961
  %v2963 = vsel %vm2846, %v2931, 0.0
  %v2964 = vadd.f32 %v2962, %v2963
  %v2965 = vsel %vm2846, %v2932, 0.0
  %v2966 = vadd.f32 %v2964, %v2965
  %v2967 = vsel %vm2846, %v2933, 0.0
  %v2968 = vadd.f32 %v2966, %v2967
  %v2969 = vsel %vm2846, %v2934, 0.0
  %v2970 = vadd.f32 %v2968, %v2969
  %v2971 = vsel %vm2846, %v2935, 0.0
  %v2972 = vadd.f32 %v2970, %v2971
  %v2973 = vsel %vm2846, %v2936, 0.0
  %v2974 = vadd.f32 %v2972, %v2973
  %v2975 = vsel %vm2846, %v2937, 0.0
  %v2976 = vadd.f32 %v2974, %v2975
  %v2977 = vsel %vm2846, %v2938, 0.0
  %v2978 = vadd.f32 %v2976, %v2977
  %v2979 = vsel %vm2846, %v2939, 0.0
  %v2980 = vadd.f32 %v2978, %v2979
  %v2981 = vsel %vm2846, %v2940, 0.0
  %v2982 = vadd.f32 %v2980, %v2981
  %v2983 = vsel %vm2846, %v2941, 0.0
  %v2984 = vadd.f32 %v2982, %v2983
  %v2985 = vrot.slane %v2984, 4
  %v2986 = vadd.f32 %v2984, %v2985
  %v2987 = vrot.slane %v2986, 2
  %v2988 = vadd.f32 %v2986, %v2987
  %v2989 = vrot.slane %v2988, 1
  %v2990 = vadd.f32 %v2988, %v2989
  %v2991 = vmul.f32 %v2990, %v2896
  %v2993 = vlaneseq
  %v2994 = vshrl.u32 %v2993, 7
  %v2995 = vsub.s32 0, %v2994
  %v2996 = vrot.slane %v2844, %v2995
  %v2998 = vmul.f32 %v2996, %v2898
  %v2999 = vmul.f32 %v2996, %v2899
  %v3000 = vmul.f32 %v2996, %v2900
  %v3001 = vmul.f32 %v2996, %v2901
  %v3002 = vmul.f32 %v2996, %v2902
  %v3003 = vmul.f32 %v2996, %v2903
  %v3004 = vmul.f32 %v2996, %v2904
  %v3005 = vmul.f32 %v2996, %v2905
  %v3006 = vmul.f32 %v2996, %v2906
  %v3007 = vmul.f32 %v2996, %v2907
  %v3008 = vmul.f32 %v2996, %v2908
  %v3009 = vmul.f32 %v2996, %v2909
  %v3010 = vmul.f32 %v2996, %v2910
  %v3011 = vmul.f32 %v2996, %v2911
  %v3012 = vmul.f32 %v2996, %v2912
  %v3013 = vmul.f32 %v2996, %v2913
  %v3014 = vmul.f32 %v2996, %v2914
  %v3015 = vmul.f32 %v2996, %v2915
  %v3016 = vmul.f32 %v2996, %v2916
  %v3017 = vmul.f32 %v2996, %v2917
  %v3018 = vmul.f32 %v2996, %v2918
  %v3019 = vmul.f32 %v2996, %v2919
  %v3020 = vadd.f32 %v2991, 1e-05
  %v3021 = vrsqrt.pop %v3020
  %v3022 = vmul.f32 %v2998, %v3021
  %v3023 = vmul.f32 %v2999, %v3021
  %v3024 = vmul.f32 %v3000, %v3021
  %v3025 = vmul.f32 %v3001, %v3021
  %v3026 = vmul.f32 %v3002, %v3021
  %v3027 = vmul.f32 %v3003, %v3021
  %v3028 = vmul.f32 %v3004, %v3021
  %v3029 = vmul.f32 %v3005, %v3021
  %v3030 = vmul.f32 %v3006, %v3021
  %v3031 = vmul.f32 %v3007, %v3021
  %v3032 = vmul.f32 %v3008, %v3021
  %v3033 = vmul.f32 %v3009, %v3021
  %v3034 = vmul.f32 %v3010, %v3021
  %v3035 = vmul.f32 %v3011, %v3021
  %v3036 = vmul.f32 %v3012, %v3021
  %v3037 = vmul.f32 %v3013, %v3021
  %v3038 = vmul.f32 %v3014, %v3021
  %v3039 = vmul.f32 %v3015, %v3021
  %v3040 = vmul.f32 %v3016, %v3021
  %v3041 = vmul.f32 %v3017, %v3021
  %v3042 = vmul.f32 %v3018, %v3021
  %v3043 = vmul.f32 %v3019, %v3021
  %v3045 = vlaneseq
  %v3046 = vshrl.u32 %v3045, 7
  %v3047 = vsub.s32 0, %v3046
  %v3048 = vrot.slane %v2845, %v3047
  %v3050 = vadd.f32 %v3022, %v3048
  %v3051 = vadd.f32 %v3023, %v3048
  %v3052 = vadd.f32 %v3024, %v3048
  %v3053 = vadd.f32 %v3025, %v3048
  %v3054 = vadd.f32 %v3026, %v3048
  %v3055 = vadd.f32 %v3027, %v3048
  %v3056 = vadd.f32 %v3028, %v3048
  %v3057 = vadd.f32 %v3029, %v3048
  %v3058 = vadd.f32 %v3030, %v3048
  %v3059 = vadd.f32 %v3031, %v3048
  %v3060 = vadd.f32 %v3032, %v3048
  %v3061 = vadd.f32 %v3033, %v3048
  %v3062 = vadd.f32 %v3034, %v3048
  %v3063 = vadd.f32 %v3035, %v3048
  %v3064 = vadd.f32 %v3036, %v3048
  %v3065 = vadd.f32 %v3037, %v3048
  %v3066 = vadd.f32 %v3038, %v3048
  %v3067 = vadd.f32 %v3039, %v3048
  %v3068 = vadd.f32 %v3040, %v3048
  %v3069 = vadd.f32 %v3041, %v3048
  %v3070 = vadd.f32 %v3042, %v3048
  %v3071 = vadd.f32 %v3043, %v3048
  %v3072 = vld [vmem:[%s9] sm:$0xff]
  %v3073 = vld [vmem:[%s9 + $0x8] sm:$0xff]
  %v3074 = vld [vmem:[%s9 + $0x10] sm:$0xff]
  %v3075 = vld [vmem:[%s9 + $0x18] sm:$0xff]
  %v3076 = vld [vmem:[%s9 + $0x20] sm:$0xff]
  %v3077 = vld [vmem:[%s9 + $0x28] sm:$0xff]
  %v3078 = vld [vmem:[%s9 + $0x30] sm:$0xff]
  %v3079 = vld [vmem:[%s9 + $0x38] sm:$0xff]
  %v3080 = vld [vmem:[%s9 + $0x40] sm:$0xff]
  %v3081 = vld [vmem:[%s9 + $0x48] sm:$0xff]
  %v3082 = vld [vmem:[%s9 + $0x50] sm:$0xff]
  %v3083 = vld [vmem:[%s9 + $0x58] sm:$0xff]
  %v3084 = vld [vmem:[%s9 + $0x60] sm:$0xff]
  %v3085 = vld [vmem:[%s9 + $0x68] sm:$0xff]
  %v3086 = vld [vmem:[%s9 + $0x70] sm:$0xff]
  %v3087 = vld [vmem:[%s9 + $0x78] sm:$0xff]
  %v3088 = vld [vmem:[%s9 + $0x80] sm:$0xff]
  %v3089 = vld [vmem:[%s9 + $0x88] sm:$0xff]
  %v3090 = vld [vmem:[%s9 + $0x90] sm:$0xff]
  %v3091 = vld [vmem:[%s9 + $0x98] sm:$0xff]
  %v3092 = vld [vmem:[%s9 + $0xa0] sm:$0xff]
  %v3093 = vld [vmem:[%s9 + $0xa8] sm:$0xff]
  %v3094 = vld [vmem:[%s9 + $0xb0] sm:$0xff]
  %v3095 = vld [vmem:[%s9 + $0xb8] sm:$0xff]
  %v3096 = vld [vmem:[%s9 + $0xc0] sm:$0xff]
  %v3097 = vld [vmem:[%s9 + $0xc8] sm:$0xff]
  %v3098 = vld [vmem:[%s9 + $0xd0] sm:$0xff]
  %v3099 = vld [vmem:[%s9 + $0xd8] sm:$0xff]
  %v3100 = vld [vmem:[%s9 + $0xe0] sm:$0xff]
  %v3101 = vld [vmem:[%s9 + $0xe8] sm:$0xff]
  %v3102 = vld [vmem:[%s9 + $0xf0] sm:$0xff]
  %v3103 = vld [vmem:[%s9 + $0xf8] sm:$0xff]
  %v3104 = vld [vmem:[%s9 + $0x100] sm:$0xff]
  %v3105 = vld [vmem:[%s9 + $0x108] sm:$0xff]
  %v3106 = vld [vmem:[%s9 + $0x110] sm:$0xff]
  %v3107 = vld [vmem:[%s9 + $0x118] sm:$0xff]
  %v3108 = vld [vmem:[%s9 + $0x120] sm:$0xff]
  %v3109 = vld [vmem:[%s9 + $0x128] sm:$0xff]
  %v3110 = vld [vmem:[%s9 + $0x130] sm:$0xff]
  %v3111 = vld [vmem:[%s9 + $0x138] sm:$0xff]
  %v3112 = vld [vmem:[%s9 + $0x140] sm:$0xff]
  %v3113 = vld [vmem:[%s9 + $0x148] sm:$0xff]
  %v3114 = vld [vmem:[%s9 + $0x150] sm:$0xff]
  %v3115 = vld [vmem:[%s9 + $0x158] sm:$0xff]
  %v3116 = vld [vmem:[%s10] sm:$0x1]
  %v3118 = vsel %vm2846, %v3050, 0
  %3120 = vmatprep.subr.mxu0 0.0
  %3121 = vmatpush1.msra.mxu0 %v3072
  %3122 = vmatprep.subr.mxu0 0.0
  %3123 = vmatpush1.msra.mxu0 %v3073
  %3124 = vmatprep.subr.mxu0 0.0
  %3125 = vmatpush1.msra.mxu0 0.0
  %3126 = vmatprep.subr.mxu0 0.0
  %3127 = vmatpush1.msra.mxu0 0.0
  %3128 = vmatprep.subr.mxu0 0.0
  %3129 = vmatpush1.msra.mxu0 0.0
  %3130 = vmatprep.subr.mxu0 0.0
  %3131 = vmatpush1.msra.mxu0 0.0
  %3132 = vmatprep.subr.mxu0 0.0
  %3133 = vmatpush1.msra.mxu0 0.0
  %3134 = vmatprep.subr.mxu0 0.0
  %3135 = vmatpush1.msra.mxu0 0.0
  %3136 = vmatprep.subr.mxu0 0.0
  %3137 = vmatpush1.msra.mxu0 0.0
  %3138 = vmatprep.subr.mxu0 0.0
  %3139 = vmatpush1.msra.mxu0 0.0
  %3140 = vmatprep.subr.mxu0 0.0
  %3141 = vmatpush1.msra.mxu0 0.0
  %3142 = vmatprep.subr.mxu0 0.0
  %3143 = vmatpush1.msra.mxu0 0.0
  %3144 = vmatprep.subr.mxu0 0.0
  %3145 = vmatpush1.msra.mxu0 0.0
  %3146 = vmatprep.subr.mxu0 0.0
  %3147 = vmatpush1.msra.mxu0 0.0
  %3148 = vmatprep.subr.mxu0 0.0
  %3149 = vmatpush1.msra.mxu0 0.0
  %3150 = vmatprep.subr.mxu0 0.0
  %3151 = vmatpush1.msra.mxu0 0.0
  %3152 = vmatprep.subr.mxu0 0.0
  %3153 = vmatpush1.msra.mxu0 0.0
  %3154 = vmatprep.subr.mxu0 0.0
  %3155 = vmatpush1.msra.mxu0 0.0
  %3156 = vmatprep.subr.mxu0 0.0
  %3157 = vmatpush1.msra.mxu0 0.0
  %3158 = vmatprep.subr.mxu0 0.0
  %3159 = vmatpush1.msra.mxu0 0.0
  %3160 = vmatprep.subr.mxu0 0.0
  %3161 = vmatpush1.msra.mxu0 0.0
  %3162 = vmatprep.subr.mxu0 0.0
  %3163 = vmatpush1.msra.mxu0 0.0
  %3164 = vmatprep.subr.mxu0 0.0
  %3165 = vmatpush1.msra.mxu0 0.0
  %3166 = vmatprep.subr.mxu0 0.0
  %3167 = vmatpush1.msra.mxu0 0.0
  %3168 = vmatprep.subr.mxu0 0.0
  %3169 = vmatpush1.msra.mxu0 0.0
  %3170 = vmatprep.subr.mxu0 0.0
  %3171 = vmatpush1.msra.mxu0 0.0
  %3172 = vmatprep.subr.mxu0 0.0
  %3173 = vmatpush1.msra.mxu0 0.0
  %3174 = vmatprep.subr.mxu0 0.0
  %3175 = vmatpush1.msra.mxu0 0.0
  %3176 = vmatprep.subr.mxu0 0.0
  %3177 = vmatpush1.msra.mxu0 0.0
  %3178 = vmatprep.subr.mxu0 0.0
  %3179 = vmatpush1.msra.mxu0 0.0
  %3180 = vmatprep.subr.mxu0 0.0
  %3181 = vmatpush1.msra.mxu0 0.0
  %3182 = vmatprep.subr.mxu0 0.0
  %3183 = vmatpush1.msra.mxu0 0.0
  %3184 = vmatprep.mubr.f32.mxu0 0.0
  %3185 = vmatmul.mubr.f32.gmra.mrb[0].mxu0 %v3118
  %v3186 = vpop.f32.mrb[0].mxu0
  %v3187 = vadd.f32 0.0, %v3186
  %v3188 = vpop.f32.mrb[0].mxu0
  %3189 = vdwg.mxu0
  %v3191 = vlaneseq
  %v3192 = vshrl.u32 %v3191, 7
  %v3193 = vsub.s32 0, %v3192
  %v3194 = vrot.slane %v3116, %v3193
  %v3196 = vadd.f32 %v3194, %v3187
  %v3198 = vsel %vm2846, %v3051, 0
  %3200 = vmatprep.subr.mxu0 0.0
  %3201 = vmatpush1.msra.mxu0 %v3074
  %3202 = vmatprep.subr.mxu0 0.0
  %3203 = vmatpush1.msra.mxu0 %v3075
  %3204 = vmatprep.subr.mxu0 0.0
  %3205 = vmatpush1.msra.mxu0 0.0
  %3206 = vmatprep.subr.mxu0 0.0
  %3207 = vmatpush1.msra.mxu0 0.0
  %3208 = vmatprep.subr.mxu0 0.0
  %3209 = vmatpush1.msra.mxu0 0.0
  %3210 = vmatprep.subr.mxu0 0.0
  %3211 = vmatpush1.msra.mxu0 0.0
  %3212 = vmatprep.subr.mxu0 0.0
  %3213 = vmatpush1.msra.mxu0 0.0
  %3214 = vmatprep.subr.mxu0 0.0
  %3215 = vmatpush1.msra.mxu0 0.0
  %3216 = vmatprep.subr.mxu0 0.0
  %3217 = vmatpush1.msra.mxu0 0.0
  %3218 = vmatprep.subr.mxu0 0.0
  %3219 = vmatpush1.msra.mxu0 0.0
  %3220 = vmatprep.subr.mxu0 0.0
  %3221 = vmatpush1.msra.mxu0 0.0
  %3222 = vmatprep.subr.mxu0 0.0
  %3223 = vmatpush1.msra.mxu0 0.0
  %3224 = vmatprep.subr.mxu0 0.0
  %3225 = vmatpush1.msra.mxu0 0.0
  %3226 = vmatprep.subr.mxu0 0.0
  %3227 = vmatpush1.msra.mxu0 0.0
  %3228 = vmatprep.subr.mxu0 0.0
  %3229 = vmatpush1.msra.mxu0 0.0
  %3230 = vmatprep.subr.mxu0 0.0
  %3231 = vmatpush1.msra.mxu0 0.0
  %3232 = vmatprep.subr.mxu0 0.0
  %3233 = vmatpush1.msra.mxu0 0.0
  %3234 = vmatprep.subr.mxu0 0.0
  %3235 = vmatpush1.msra.mxu0 0.0
  %3236 = vmatprep.subr.mxu0 0.0
  %3237 = vmatpush1.msra.mxu0 0.0
  %3238 = vmatprep.subr.mxu0 0.0
  %3239 = vmatpush1.msra.mxu0 0.0
  %3240 = vmatprep.subr.mxu0 0.0
  %3241 = vmatpush1.msra.mxu0 0.0
  %3242 = vmatprep.subr.mxu0 0.0
  %3243 = vmatpush1.msra.mxu0 0.0
  %3244 = vmatprep.subr.mxu0 0.0
  %3245 = vmatpush1.msra.mxu0 0.0
  %3246 = vmatprep.subr.mxu0 0.0
  %3247 = vmatpush1.msra.mxu0 0.0
  %3248 = vmatprep.subr.mxu0 0.0
  %3249 = vmatpush1.msra.mxu0 0.0
  %3250 = vmatprep.subr.mxu0 0.0
  %3251 = vmatpush1.msra.mxu0 0.0
  %3252 = vmatprep.subr.mxu0 0.0
  %3253 = vmatpush1.msra.mxu0 0.0
  %3254 = vmatprep.subr.mxu0 0.0
  %3255 = vmatpush1.msra.mxu0 0.0
  %3256 = vmatprep.subr.mxu0 0.0
  %3257 = vmatpush1.msra.mxu0 0.0
  %3258 = vmatprep.subr.mxu0 0.0
  %3259 = vmatpush1.msra.mxu0 0.0
  %3260 = vmatprep.subr.mxu0 0.0
  %3261 = vmatpush1.msra.mxu0 0.0
  %3262 = vmatprep.subr.mxu0 0.0
  %3263 = vmatpush1.msra.mxu0 0.0
  %3264 = vmatprep.mubr.f32.mxu0 0.0
  %3265 = vmatmul.mubr.f32.gmra.mrb[0].mxu0 %v3198
  %v3266 = vpop.f32.mrb[0].mxu0
  %v3267 = vadd.f32 0.0, %v3266
  %v3268 = vpop.f32.mrb[0].mxu0
  %3269 = vdwg.mxu0
  %v3270 = vadd.f32 %v3196, %v3267
  %v3272 = vsel %vm2846, %v3052, 0
  %3274 = vmatprep.subr.mxu0 0.0
  %3275 = vmatpush1.msra.mxu0 %v3076
  %3276 = vmatprep.subr.mxu0 0.0
  %3277 = vmatpush1.msra.mxu0 %v3077
  %3278 = vmatprep.subr.mxu0 0.0
  %3279 = vmatpush1.msra.mxu0 0.0
  %3280 = vmatprep.subr.mxu0 0.0
  %3281 = vmatpush1.msra.mxu0 0.0
  %3282 = vmatprep.subr.mxu0 0.0
  %3283 = vmatpush1.msra.mxu0 0.0
  %3284 = vmatprep.subr.mxu0 0.0
  %3285 = vmatpush1.msra.mxu0 0.0
  %3286 = vmatprep.subr.mxu0 0.0
  %3287 = vmatpush1.msra.mxu0 0.0
  %3288 = vmatprep.subr.mxu0 0.0
  %3289 = vmatpush1.msra.mxu0 0.0
  %3290 = vmatprep.subr.mxu0 0.0
  %3291 = vmatpush1.msra.mxu0 0.0
  %3292 = vmatprep.subr.mxu0 0.0
  %3293 = vmatpush1.msra.mxu0 0.0
  %3294 = vmatprep.subr.mxu0 0.0
  %3295 = vmatpush1.msra.mxu0 0.0
  %3296 = vmatprep.subr.mxu0 0.0
  %3297 = vmatpush1.msra.mxu0 0.0
  %3298 = vmatprep.subr.mxu0 0.0
  %3299 = vmatpush1.msra.mxu0 0.0
  %3300 = vmatprep.subr.mxu0 0.0
  %3301 = vmatpush1.msra.mxu0 0.0
  %3302 = vmatprep.subr.mxu0 0.0
  %3303 = vmatpush1.msra.mxu0 0.0
  %3304 = vmatprep.subr.mxu0 0.0
  %3305 = vmatpush1.msra.mxu0 0.0
  %3306 = vmatprep.subr.mxu0 0.0
  %3307 = vmatpush1.msra.mxu0 0.0
  %3308 = vmatprep.subr.mxu0 0.0
  %3309 = vmatpush1.msra.mxu0 0.0
  %3310 = vmatprep.subr.mxu0 0.0
  %3311 = vmatpush1.msra.mxu0 0.0
  %3312 = vmatprep.subr.mxu0 0.0
  %3313 = vmatpush1.msra.mxu0 0.0
  %3314 = vmatprep.subr.mxu0 0.0
  %3315 = vmatpush1.msra.mxu0 0.0
  %3316 = vmatprep.subr.mxu0 0.0
  %3317 = vmatpush1.msra.mxu0 0.0
  %3318 = vmatprep.subr.mxu0 0.0
  %3319 = vmatpush1.msra.mxu0 0.0
  %3320 = vmatprep.subr.mxu0 0.0
  %3321 = vmatpush1.msra.mxu0 0.0
  %3322 = vmatprep.subr.mxu0 0.0
  %3323 = vmatpush1.msra.mxu0 0.0
  %3324 = vmatprep.subr.mxu0 0.0
  %3325 = vmatpush1.msra.mxu0 0.0
  %3326 = vmatprep.subr.mxu0 0.0
  %3327 = vmatpush1.msra.mxu0 0.0
  %3328 = vmatprep.subr.mxu0 0.0
  %3329 = vmatpush1.msra.mxu0 0.0
  %3330 = vmatprep.subr.mxu0 0.0
  %3331 = vmatpush1.msra.mxu0 0.0
  %3332 = vmatprep.subr.mxu0 0.0
  %3333 = vmatpush1.msra.mxu0 0.0
  %3334 = vmatprep.subr.mxu0 0.0
  %3335 = vmatpush1.msra.mxu0 0.0
  %3336 = vmatprep.subr.mxu0 0.0
  %3337 = vmatpush1.msra.mxu0 0.0
  %3338 = vmatprep.mubr.f32.mxu0 0.0
  %3339 = vmatmul.mubr.f32.gmra.mrb[0].mxu0 %v3272
  %v3340 = vpop.f32.mrb[0].mxu0
  %v3341 = vadd.f32 0.0, %v3340
  %v3342 = vpop.f32.mrb[0].mxu0
  %3343 = vdwg.mxu0
  %v3344 = vadd.f32 %v3270, %v3341
  %v3346 = vsel %vm2846, %v3053, 0
  %3348 = vmatprep.subr.mxu0 0.0
  %3349 = vmatpush1.msra.mxu0 %v3078
  %3350 = vmatprep.subr.mxu0 0.0
  %3351 = vmatpush1.msra.mxu0 %v3079
  %3352 = vmatprep.subr.mxu0 0.0
  %3353 = vmatpush1.msra.mxu0 0.0
  %3354 = vmatprep.subr.mxu0 0.0
  %3355 = vmatpush1.msra.mxu0 0.0
  %3356 = vmatprep.subr.mxu0 0.0
  %3357 = vmatpush1.msra.mxu0 0.0
  %3358 = vmatprep.subr.mxu0 0.0
  %3359 = vmatpush1.msra.mxu0 0.0
  %3360 = vmatprep.subr.mxu0 0.0
  %3361 = vmatpush1.msra.mxu0 0.0
  %3362 = vmatprep.subr.mxu0 0.0
  %3363 = vmatpush1.msra.mxu0 0.0
  %3364 = vmatprep.subr.mxu0 0.0
  %3365 = vmatpush1.msra.mxu0 0.0
  %3366 = vmatprep.subr.mxu0 0.0
  %3367 = vmatpush1.msra.mxu0 0.0
  %3368 = vmatprep.subr.mxu0 0.0
  %3369 = vmatpush1.msra.mxu0 0.0
  %3370 = vmatprep.subr.mxu0 0.0
  %3371 = vmatpush1.msra.mxu0 0.0
  %3372 = vmatprep.subr.mxu0 0.0
  %3373 = vmatpush1.msra.mxu0 0.0
  %3374 = vmatprep.subr.mxu0 0.0
  %3375 = vmatpush1.msra.mxu0 0.0
  %3376 = vmatprep.subr.mxu0 0.0
  %3377 = vmatpush1.msra.mxu0 0.0
  %3378 = vmatprep.subr.mxu0 0.0
  %3379 = vmatpush1.msra.mxu0 0.0
  %3380 = vmatprep.subr.mxu0 0.0
  %3381 = vmatpush1.msra.mxu0 0.0
  %3382 = vmatprep.subr.mxu0 0.0
  %3383 = vmatpush1.msra.mxu0 0.0
  %3384 = vmatprep.subr.mxu0 0.0
  %3385 = vmatpush1.msra.mxu0 0.0
  %3386 = vmatprep.subr.mxu0 0.0
  %3387 = vmatpush1.msra.mxu0 0.0
  %3388 = vmatprep.subr.mxu0 0.0
  %3389 = vmatpush1.msra.mxu0 0.0
  %3390 = vmatprep.subr.mxu0 0.0
  %3391 = vmatpush1.msra.mxu0 0.0
  %3392 = vmatprep.subr.mxu0 0.0
  %3393 = vmatpush1.msra.mxu0 0.0
  %3394 = vmatprep.subr.mxu0 0.0
  %3395 = vmatpush1.msra.mxu0 0.0
  %3396 = vmatprep.subr.mxu0 0.0
  %3397 = vmatpush1.msra.mxu0 0.0
  %3398 = vmatprep.subr.mxu0 0.0
  %3399 = vmatpush1.msra.mxu0 0.0
  %3400 = vmatprep.subr.mxu0 0.0
  %3401 = vmatpush1.msra.mxu0 0.0
  %3402 = vmatprep.subr.mxu0 0.0
  %3403 = vmatpush1.msra.mxu0 0.0
  %3404 = vmatprep.subr.mxu0 0.0
  %3405 = vmatpush1.msra.mxu0 0.0
  %3406 = vmatprep.subr.mxu0 0.0
  %3407 = vmatpush1.msra.mxu0 0.0
  %3408 = vmatprep.subr.mxu0 0.0
  %3409 = vmatpush1.msra.mxu0 0.0
  %3410 = vmatprep.subr.mxu0 0.0
  %3411 = vmatpush1.msra.mxu0 0.0
  %3412 = vmatprep.mubr.f32.mxu0 0.0
  %3413 = vmatmul.mubr.f32.gmra.mrb[0].mxu0 %v3346
  %v3414 = vpop.f32.mrb[0].mxu0
  %v3415 = vadd.f32 0.0, %v3414
  %v3416 = vpop.f32.mrb[0].mxu0
  %3417 = vdwg.mxu0
  %v3418 = vadd.f32 %v3344, %v3415
  %v3420 = vsel %vm2846, %v3054, 0
  %3422 = vmatprep.subr.mxu0 0.0
  %3423 = vmatpush1.msra.mxu0 %v3080
  %3424 = vmatprep.subr.mxu0 0.0
  %3425 = vmatpush1.msra.mxu0 %v3081
  %3426 = vmatprep.subr.mxu0 0.0
  %3427 = vmatpush1.msra.mxu0 0.0
  %3428 = vmatprep.subr.mxu0 0.0
  %3429 = vmatpush1.msra.mxu0 0.0
  %3430 = vmatprep.subr.mxu0 0.0
  %3431 = vmatpush1.msra.mxu0 0.0
  %3432 = vmatprep.subr.mxu0 0.0
  %3433 = vmatpush1.msra.mxu0 0.0
  %3434 = vmatprep.subr.mxu0 0.0
  %3435 = vmatpush1.msra.mxu0 0.0
  %3436 = vmatprep.subr.mxu0 0.0
  %3437 = vmatpush1.msra.mxu0 0.0
  %3438 = vmatprep.subr.mxu0 0.0
  %3439 = vmatpush1.msra.mxu0 0.0
  %3440 = vmatprep.subr.mxu0 0.0
  %3441 = vmatpush1.msra.mxu0 0.0
  %3442 = vmatprep.subr.mxu0 0.0
  %3443 = vmatpush1.msra.mxu0 0.0
  %3444 = vmatprep.subr.mxu0 0.0
  %3445 = vmatpush1.msra.mxu0 0.0
  %3446 = vmatprep.subr.mxu0 0.0
  %3447 = vmatpush1.msra.mxu0 0.0
  %3448 = vmatprep.subr.mxu0 0.0
  %3449 = vmatpush1.msra.mxu0 0.0
  %3450 = vmatprep.subr.mxu0 0.0
  %3451 = vmatpush1.msra.mxu0 0.0
  %3452 = vmatprep.subr.mxu0 0.0
  %3453 = vmatpush1.msra.mxu0 0.0
  %3454 = vmatprep.subr.mxu0 0.0
  %3455 = vmatpush1.msra.mxu0 0.0
  %3456 = vmatprep.subr.mxu0 0.0
  %3457 = vmatpush1.msra.mxu0 0.0
  %3458 = vmatprep.subr.mxu0 0.0
  %3459 = vmatpush1.msra.mxu0 0.0
  %3460 = vmatprep.subr.mxu0 0.0
  %3461 = vmatpush1.msra.mxu0 0.0
  %3462 = vmatprep.subr.mxu0 0.0
  %3463 = vmatpush1.msra.mxu0 0.0
  %3464 = vmatprep.subr.mxu0 0.0
  %3465 = vmatpush1.msra.mxu0 0.0
  %3466 = vmatprep.subr.mxu0 0.0
  %3467 = vmatpush1.msra.mxu0 0.0
  %3468 = vmatprep.subr.mxu0 0.0
  %3469 = vmatpush1.msra.mxu0 0.0
  %3470 = vmatprep.subr.mxu0 0.0
  %3471 = vmatpush1.msra.mxu0 0.0
  %3472 = vmatprep.subr.mxu0 0.0
  %3473 = vmatpush1.msra.mxu0 0.0
  %3474 = vmatprep.subr.mxu0 0.0
  %3475 = vmatpush1.msra.mxu0 0.0
  %3476 = vmatprep.subr.mxu0 0.0
  %3477 = vmatpush1.msra.mxu0 0.0
  %3478 = vmatprep.subr.mxu0 0.0
  %3479 = vmatpush1.msra.mxu0 0.0
  %3480 = vmatprep.subr.mxu0 0.0
  %3481 = vmatpush1.msra.mxu0 0.0
  %3482 = vmatprep.subr.mxu0 0.0
  %3483 = vmatpush1.msra.mxu0 0.0
  %3484 = vmatprep.subr.mxu0 0.0
  %3485 = vmatpush1.msra.mxu0 0.0
  %3486 = vmatprep.mubr.f32.mxu0 0.0
  %3487 = vmatmul.mubr.f32.gmra.mrb[0].mxu0 %v3420
  %v3488 = vpop.f32.mrb[0].mxu0
  %v3489 = vadd.f32 0.0, %v3488
  %v3490 = vpop.f32.mrb[0].mxu0
  %3491 = vdwg.mxu0
  %v3492 = vadd.f32 %v3418, %v3489
  %v3494 = vsel %vm2846, %v3055, 0
  %3496 = vmatprep.subr.mxu0 0.0
  %3497 = vmatpush1.msra.mxu0 %v3082
  %3498 = vmatprep.subr.mxu0 0.0
  %3499 = vmatpush1.msra.mxu0 %v3083
  %3500 = vmatprep.subr.mxu0 0.0
  %3501 = vmatpush1.msra.mxu0 0.0
  %3502 = vmatprep.subr.mxu0 0.0
  %3503 = vmatpush1.msra.mxu0 0.0
  %3504 = vmatprep.subr.mxu0 0.0
  %3505 = vmatpush1.msra.mxu0 0.0
  %3506 = vmatprep.subr.mxu0 0.0
  %3507 = vmatpush1.msra.mxu0 0.0
  %3508 = vmatprep.subr.mxu0 0.0
  %3509 = vmatpush1.msra.mxu0 0.0
  %3510 = vmatprep.subr.mxu0 0.0
  %3511 = vmatpush1.msra.mxu0 0.0
  %3512 = vmatprep.subr.mxu0 0.0
  %3513 = vmatpush1.msra.mxu0 0.0
  %3514 = vmatprep.subr.mxu0 0.0
  %3515 = vmatpush1.msra.mxu0 0.0
  %3516 = vmatprep.subr.mxu0 0.0
  %3517 = vmatpush1.msra.mxu0 0.0
  %3518 = vmatprep.subr.mxu0 0.0
  %3519 = vmatpush1.msra.mxu0 0.0
  %3520 = vmatprep.subr.mxu0 0.0
  %3521 = vmatpush1.msra.mxu0 0.0
  %3522 = vmatprep.subr.mxu0 0.0
  %3523 = vmatpush1.msra.mxu0 0.0
  %3524 = vmatprep.subr.mxu0 0.0
  %3525 = vmatpush1.msra.mxu0 0.0
  %3526 = vmatprep.subr.mxu0 0.0
  %3527 = vmatpush1.msra.mxu0 0.0
  %3528 = vmatprep.subr.mxu0 0.0
  %3529 = vmatpush1.msra.mxu0 0.0
  %3530 = vmatprep.subr.mxu0 0.0
  %3531 = vmatpush1.msra.mxu0 0.0
  %3532 = vmatprep.subr.mxu0 0.0
  %3533 = vmatpush1.msra.mxu0 0.0
  %3534 = vmatprep.subr.mxu0 0.0
  %3535 = vmatpush1.msra.mxu0 0.0
  %3536 = vmatprep.subr.mxu0 0.0
  %3537 = vmatpush1.msra.mxu0 0.0
  %3538 = vmatprep.subr.mxu0 0.0
  %3539 = vmatpush1.msra.mxu0 0.0
  %3540 = vmatprep.subr.mxu0 0.0
  %3541 = vmatpush1.msra.mxu0 0.0
  %3542 = vmatprep.subr.mxu0 0.0
  %3543 = vmatpush1.msra.mxu0 0.0
  %3544 = vmatprep.subr.mxu0 0.0
  %3545 = vmatpush1.msra.mxu0 0.0
  %3546 = vmatprep.subr.mxu0 0.0
  %3547 = vmatpush1.msra.mxu0 0.0
  %3548 = vmatprep.subr.mxu0 0.0
  %3549 = vmatpush1.msra.mxu0 0.0
  %3550 = vmatprep.subr.mxu0 0.0
  %3551 = vmatpush1.msra.mxu0 0.0
  %3552 = vmatprep.subr.mxu0 0.0
  %3553 = vmatpush1.msra.mxu0 0.0
  %3554 = vmatprep.subr.mxu0 0.0
  %3555 = vmatpush1.msra.mxu0 0.0
  %3556 = vmatprep.subr.mxu0 0.0
  %3557 = vmatpush1.msra.mxu0 0.0
  %3558 = vmatprep.subr.mxu0 0.0
  %3559 = vmatpush1.msra.mxu0 0.0
  %3560 = vmatprep.mubr.f32.mxu0 0.0
  %3561 = vmatmul.mubr.f32.gmra.mrb[0].mxu0 %v3494
  %v3562 = vpop.f32.mrb[0].mxu0
  %v3563 = vadd.f32 0.0, %v3562
  %v3564 = vpop.f32.mrb[0].mxu0
  %3565 = vdwg.mxu0
  %v3566 = vadd.f32 %v3492, %v3563
  %v3568 = vsel %vm2846, %v3056, 0
  %3570 = vmatprep.subr.mxu0 0.0
  %3571 = vmatpush1.msra.mxu0 %v3084
  %3572 = vmatprep.subr.mxu0 0.0
  %3573 = vmatpush1.msra.mxu0 %v3085
  %3574 = vmatprep.subr.mxu0 0.0
  %3575 = vmatpush1.msra.mxu0 0.0
  %3576 = vmatprep.subr.mxu0 0.0
  %3577 = vmatpush1.msra.mxu0 0.0
  %3578 = vmatprep.subr.mxu0 0.0
  %3579 = vmatpush1.msra.mxu0 0.0
  %3580 = vmatprep.subr.mxu0 0.0
  %3581 = vmatpush1.msra.mxu0 0.0
  %3582 = vmatprep.subr.mxu0 0.0
  %3583 = vmatpush1.msra.mxu0 0.0
  %3584 = vmatprep.subr.mxu0 0.0
  %3585 = vmatpush1.msra.mxu0 0.0
  %3586 = vmatprep.subr.mxu0 0.0
  %3587 = vmatpush1.msra.mxu0 0.0
  %3588 = vmatprep.subr.mxu0 0.0
  %3589 = vmatpush1.msra.mxu0 0.0
  %3590 = vmatprep.subr.mxu0 0.0
  %3591 = vmatpush1.msra.mxu0 0.0
  %3592 = vmatprep.subr.mxu0 0.0
  %3593 = vmatpush1.msra.mxu0 0.0
  %3594 = vmatprep.subr.mxu0 0.0
  %3595 = vmatpush1.msra.mxu0 0.0
  %3596 = vmatprep.subr.mxu0 0.0
  %3597 = vmatpush1.msra.mxu0 0.0
  %3598 = vmatprep.subr.mxu0 0.0
  %3599 = vmatpush1.msra.mxu0 0.0
  %3600 = vmatprep.subr.mxu0 0.0
  %3601 = vmatpush1.msra.mxu0 0.0
  %3602 = vmatprep.subr.mxu0 0.0
  %3603 = vmatpush1.msra.mxu0 0.0
  %3604 = vmatprep.subr.mxu0 0.0
  %3605 = vmatpush1.msra.mxu0 0.0
  %3606 = vmatprep.subr.mxu0 0.0
  %3607 = vmatpush1.msra.mxu0 0.0
  %3608 = vmatprep.subr.mxu0 0.0
  %3609 = vmatpush1.msra.mxu0 0.0
  %3610 = vmatprep.subr.mxu0 0.0
  %3611 = vmatpush1.msra.mxu0 0.0
  %3612 = vmatprep.subr.mxu0 0.0
  %3613 = vmatpush1.msra.mxu0 0.0
  %3614 = vmatprep.subr.mxu0 0.0
  %3615 = vmatpush1.msra.mxu0 0.0
  %3616 = vmatprep.subr.mxu0 0.0
  %3617 = vmatpush1.msra.mxu0 0.0
  %3618 = vmatprep.subr.mxu0 0.0
  %3619 = vmatpush1.msra.mxu0 0.0
  %3620 = vmatprep.subr.mxu0 0.0
  %3621 = vmatpush1.msra.mxu0 0.0
  %3622 = vmatprep.subr.mxu0 0.0
  %3623 = vmatpush1.msra.mxu0 0.0
  %3624 = vmatprep.subr.mxu0 0.0
  %3625 = vmatpush1.msra.mxu0 0.0
  %3626 = vmatprep.subr.mxu0 0.0
  %3627 = vmatpush1.msra.mxu0 0.0
  %3628 = vmatprep.subr.mxu0 0.0
  %3629 = vmatpush1.msra.mxu0 0.0
  %3630 = vmatprep.subr.mxu0 0.0
  %3631 = vmatpush1.msra.mxu0 0.0
  %3632 = vmatprep.subr.mxu0 0.0
  %3633 = vmatpush1.msra.mxu0 0.0
  %3634 = vmatprep.mubr.f32.mxu0 0.0
  %3635 = vmatmul.mubr.f32.gmra.mrb[0].mxu0 %v3568
  %v3636 = vpop.f32.mrb[0].mxu0
  %v3637 = vadd.f32 0.0, %v3636
  %v3638 = vpop.f32.mrb[0].mxu0
  %3639 = vdwg.mxu0
  %v3640 = vadd.f32 %v3566, %v3637
  %v3642 = vsel %vm2846, %v3057, 0
  %3644 = vmatprep.subr.mxu0 0.0
  %3645 = vmatpush1.msra.mxu0 %v3086
  %3646 = vmatprep.subr.mxu0 0.0
  %3647 = vmatpush1.msra.mxu0 %v3087
  %3648 = vmatprep.subr.mxu0 0.0
  %3649 = vmatpush1.msra.mxu0 0.0
  %3650 = vmatprep.subr.mxu0 0.0
  %3651 = vmatpush1.msra.mxu0 0.0
  %3652 = vmatprep.subr.mxu0 0.0
  %3653 = vmatpush1.msra.mxu0 0.0
  %3654 = vmatprep.subr.mxu0 0.0
  %3655 = vmatpush1.msra.mxu0 0.0
  %3656 = vmatprep.subr.mxu0 0.0
  %3657 = vmatpush1.msra.mxu0 0.0
  %3658 = vmatprep.subr.mxu0 0.0
  %3659 = vmatpush1.msra.mxu0 0.0
  %3660 = vmatprep.subr.mxu0 0.0
  %3661 = vmatpush1.msra.mxu0 0.0
  %3662 = vmatprep.subr.mxu0 0.0
  %3663 = vmatpush1.msra.mxu0 0.0
  %3664 = vmatprep.subr.mxu0 0.0
  %3665 = vmatpush1.msra.mxu0 0.0
  %3666 = vmatprep.subr.mxu0 0.0
  %3667 = vmatpush1.msra.mxu0 0.0
  %3668 = vmatprep.subr.mxu0 0.0
  %3669 = vmatpush1.msra.mxu0 0.0
  %3670 = vmatprep.subr.mxu0 0.0
  %3671 = vmatpush1.msra.mxu0 0.0
  %3672 = vmatprep.subr.mxu0 0.0
  %3673 = vmatpush1.msra.mxu0 0.0
  %3674 = vmatprep.subr.mxu0 0.0
  %3675 = vmatpush1.msra.mxu0 0.0
  %3676 = vmatprep.subr.mxu0 0.0
  %3677 = vmatpush1.msra.mxu0 0.0
  %3678 = vmatprep.subr.mxu0 0.0
  %3679 = vmatpush1.msra.mxu0 0.0
  %3680 = vmatprep.subr.mxu0 0.0
  %3681 = vmatpush1.msra.mxu0 0.0
  %3682 = vmatprep.subr.mxu0 0.0
  %3683 = vmatpush1.msra.mxu0 0.0
  %3684 = vmatprep.subr.mxu0 0.0
  %3685 = vmatpush1.msra.mxu0 0.0
  %3686 = vmatprep.subr.mxu0 0.0
  %3687 = vmatpush1.msra.mxu0 0.0
  %3688 = vmatprep.subr.mxu0 0.0
  %3689 = vmatpush1.msra.mxu0 0.0
  %3690 = vmatprep.subr.mxu0 0.0
  %3691 = vmatpush1.msra.mxu0 0.0
  %3692 = vmatprep.subr.mxu0 0.0
  %3693 = vmatpush1.msra.mxu0 0.0
  %3694 = vmatprep.subr.mxu0 0.0
  %3695 = vmatpush1.msra.mxu0 0.0
  %3696 = vmatprep.subr.mxu0 0.0
  %3697 = vmatpush1.msra.mxu0 0.0
  %3698 = vmatprep.subr.mxu0 0.0
  %3699 = vmatpush1.msra.mxu0 0.0
  %3700 = vmatprep.subr.mxu0 0.0
  %3701 = vmatpush1.msra.mxu0 0.0
  %3702 = vmatprep.subr.mxu0 0.0
  %3703 = vmatpush1.msra.mxu0 0.0
  %3704 = vmatprep.subr.mxu0 0.0
  %3705 = vmatpush1.msra.mxu0 0.0
  %3706 = vmatprep.subr.mxu0 0.0
  %3707 = vmatpush1.msra.mxu0 0.0
  %3708 = vmatprep.mubr.f32.mxu0 0.0
  %3709 = vmatmul.mubr.f32.gmra.mrb[0].mxu0 %v3642
  %v3710 = vpop.f32.mrb[0].mxu0
  %v3711 = vadd.f32 0.0, %v3710
  %v3712 = vpop.f32.mrb[0].mxu0
  %3713 = vdwg.mxu0
  %v3714 = vadd.f32 %v3640, %v3711
  %v3716 = vsel %vm2846, %v3058, 0
  %3718 = vmatprep.subr.mxu0 0.0
  %3719 = vmatpush1.msra.mxu0 %v3088
  %3720 = vmatprep.subr.mxu0 0.0
  %3721 = vmatpush1.msra.mxu0 %v3089
  %3722 = vmatprep.subr.mxu0 0.0
  %3723 = vmatpush1.msra.mxu0 0.0
  %3724 = vmatprep.subr.mxu0 0.0
  %3725 = vmatpush1.msra.mxu0 0.0
  %3726 = vmatprep.subr.mxu0 0.0
  %3727 = vmatpush1.msra.mxu0 0.0
  %3728 = vmatprep.subr.mxu0 0.0
  %3729 = vmatpush1.msra.mxu0 0.0
  %3730 = vmatprep.subr.mxu0 0.0
  %3731 = vmatpush1.msra.mxu0 0.0
  %3732 = vmatprep.subr.mxu0 0.0
  %3733 = vmatpush1.msra.mxu0 0.0
  %3734 = vmatprep.subr.mxu0 0.0
  %3735 = vmatpush1.msra.mxu0 0.0
  %3736 = vmatprep.subr.mxu0 0.0
  %3737 = vmatpush1.msra.mxu0 0.0
  %3738 = vmatprep.subr.mxu0 0.0
  %3739 = vmatpush1.msra.mxu0 0.0
  %3740 = vmatprep.subr.mxu0 0.0
  %3741 = vmatpush1.msra.mxu0 0.0
  %3742 = vmatprep.subr.mxu0 0.0
  %3743 = vmatpush1.msra.mxu0 0.0
  %3744 = vmatprep.subr.mxu0 0.0
  %3745 = vmatpush1.msra.mxu0 0.0
  %3746 = vmatprep.subr.mxu0 0.0
  %3747 = vmatpush1.msra.mxu0 0.0
  %3748 = vmatprep.subr.mxu0 0.0
  %3749 = vmatpush1.msra.mxu0 0.0
  %3750 = vmatprep.subr.mxu0 0.0
  %3751 = vmatpush1.msra.mxu0 0.0
  %3752 = vmatprep.subr.mxu0 0.0
  %3753 = vmatpush1.msra.mxu0 0.0
  %3754 = vmatprep.subr.mxu0 0.0
  %3755 = vmatpush1.msra.mxu0 0.0
  %3756 = vmatprep.subr.mxu0 0.0
  %3757 = vmatpush1.msra.mxu0 0.0
  %3758 = vmatprep.subr.mxu0 0.0
  %3759 = vmatpush1.msra.mxu0 0.0
  %3760 = vmatprep.subr.mxu0 0.0
  %3761 = vmatpush1.msra.mxu0 0.0
  %3762 = vmatprep.subr.mxu0 0.0
  %3763 = vmatpush1.msra.mxu0 0.0
  %3764 = vmatprep.subr.mxu0 0.0
  %3765 = vmatpush1.msra.mxu0 0.0
  %3766 = vmatprep.subr.mxu0 0.0
  %3767 = vmatpush1.msra.mxu0 0.0
  %3768 = vmatprep.subr.mxu0 0.0
  %3769 = vmatpush1.msra.mxu0 0.0
  %3770 = vmatprep.subr.mxu0 0.0
  %3771 = vmatpush1.msra.mxu0 0.0
  %3772 = vmatprep.subr.mxu0 0.0
  %3773 = vmatpush1.msra.mxu0 0.0
  %3774 = vmatprep.subr.mxu0 0.0
  %3775 = vmatpush1.msra.mxu0 0.0
  %3776 = vmatprep.subr.mxu0 0.0
  %3777 = vmatpush1.msra.mxu0 0.0
  %3778 = vmatprep.subr.mxu0 0.0
  %3779 = vmatpush1.msra.mxu0 0.0
  %3780 = vmatprep.subr.mxu0 0.0
  %3781 = vmatpush1.msra.mxu0 0.0
  %3782 = vmatprep.mubr.f32.mxu0 0.0
  %3783 = vmatmul.mubr.f32.gmra.mrb[0].mxu0 %v3716
  %v3784 = vpop.f32.mrb[0].mxu0
  %v3785 = vadd.f32 0.0, %v3784
  %v3786 = vpop.f32.mrb[0].mxu0
  %3787 = vdwg.mxu0
  %v3788 = vadd.f32 %v3714, %v3785
  %v3790 = vsel %vm2846, %v3059, 0
  %3792 = vmatprep.subr.mxu0 0.0
  %3793 = vmatpush1.msra.mxu0 %v3090
  %3794 = vmatprep.subr.mxu0 0.0
  %3795 = vmatpush1.msra.mxu0 %v3091
  %3796 = vmatprep.subr.mxu0 0.0
  %3797 = vmatpush1.msra.mxu0 0.0
  %3798 = vmatprep.subr.mxu0 0.0
  %3799 = vmatpush1.msra.mxu0 0.0
  %3800 = vmatprep.subr.mxu0 0.0
  %3801 = vmatpush1.msra.mxu0 0.0
  %3802 = vmatprep.subr.mxu0 0.0
  %3803 = vmatpush1.msra.mxu0 0.0
  %3804 = vmatprep.subr.mxu0 0.0
  %3805 = vmatpush1.msra.mxu0 0.0
  %3806 = vmatprep.subr.mxu0 0.0
  %3807 = vmatpush1.msra.mxu0 0.0
  %3808 = vmatprep.subr.mxu0 0.0
  %3809 = vmatpush1.msra.mxu0 0.0
  %3810 = vmatprep.subr.mxu0 0.0
  %3811 = vmatpush1.msra.mxu0 0.0
  %3812 = vmatprep.subr.mxu0 0.0
  %3813 = vmatpush1.msra.mxu0 0.0
  %3814 = vmatprep.subr.mxu0 0.0
  %3815 = vmatpush1.msra.mxu0 0.0
  %3816 = vmatprep.subr.mxu0 0.0
  %3817 = vmatpush1.msra.mxu0 0.0
  %3818 = vmatprep.subr.mxu0 0.0
  %3819 = vmatpush1.msra.mxu0 0.0
  %3820 = vmatprep.subr.mxu0 0.0
  %3821 = vmatpush1.msra.mxu0 0.0
  %3822 = vmatprep.subr.mxu0 0.0
  %3823 = vmatpush1.msra.mxu0 0.0
  %3824 = vmatprep.subr.mxu0 0.0
  %3825 = vmatpush1.msra.mxu0 0.0
  %3826 = vmatprep.subr.mxu0 0.0
  %3827 = vmatpush1.msra.mxu0 0.0
  %3828 = vmatprep.subr.mxu0 0.0
  %3829 = vmatpush1.msra.mxu0 0.0
  %3830 = vmatprep.subr.mxu0 0.0
  %3831 = vmatpush1.msra.mxu0 0.0
  %3832 = vmatprep.subr.mxu0 0.0
  %3833 = vmatpush1.msra.mxu0 0.0
  %3834 = vmatprep.subr.mxu0 0.0
  %3835 = vmatpush1.msra.mxu0 0.0
  %3836 = vmatprep.subr.mxu0 0.0
  %3837 = vmatpush1.msra.mxu0 0.0
  %3838 = vmatprep.subr.mxu0 0.0
  %3839 = vmatpush1.msra.mxu0 0.0
  %3840 = vmatprep.subr.mxu0 0.0
  %3841 = vmatpush1.msra.mxu0 0.0
  %3842 = vmatprep.subr.mxu0 0.0
  %3843 = vmatpush1.msra.mxu0 0.0
  %3844 = vmatprep.subr.mxu0 0.0
  %3845 = vmatpush1.msra.mxu0 0.0
  %3846 = vmatprep.subr.mxu0 0.0
  %3847 = vmatpush1.msra.mxu0 0.0
  %3848 = vmatprep.subr.mxu0 0.0
  %3849 = vmatpush1.msra.mxu0 0.0
  %3850 = vmatprep.subr.mxu0 0.0
  %3851 = vmatpush1.msra.mxu0 0.0
  %3852 = vmatprep.subr.mxu0 0.0
  %3853 = vmatpush1.msra.mxu0 0.0
  %3854 = vmatprep.subr.mxu0 0.0
  %3855 = vmatpush1.msra.mxu0 0.0
  %3856 = vmatprep.mubr.f32.mxu0 0.0
  %3857 = vmatmul.mubr.f32.gmra.mrb[0].mxu0 %v3790
  %v3858 = vpop.f32.mrb[0].mxu0
  %v3859 = vadd.f32 0.0, %v3858
  %v3860 = vpop.f32.mrb[0].mxu0
  %3861 = vdwg.mxu0
  %v3862 = vadd.f32 %v3788, %v3859
  %v3864 = vsel %vm2846, %v3060, 0
  %3866 = vmatprep.subr.mxu0 0.0
  %3867 = vmatpush1.msra.mxu0 %v3092
  %3868 = vmatprep.subr.mxu0 0.0
  %3869 = vmatpush1.msra.mxu0 %v3093
  %3870 = vmatprep.subr.mxu0 0.0
  %3871 = vmatpush1.msra.mxu0 0.0
  %3872 = vmatprep.subr.mxu0 0.0
  %3873 = vmatpush1.msra.mxu0 0.0
  %3874 = vmatprep.subr.mxu0 0.0
  %3875 = vmatpush1.msra.mxu0 0.0
  %3876 = vmatprep.subr.mxu0 0.0
  %3877 = vmatpush1.msra.mxu0 0.0
  %3878 = vmatprep.subr.mxu0 0.0
  %3879 = vmatpush1.msra.mxu0 0.0
  %3880 = vmatprep.subr.mxu0 0.0
  %3881 = vmatpush1.msra.mxu0 0.0
  %3882 = vmatprep.subr.mxu0 0.0
  %3883 = vmatpush1.msra.mxu0 0.0
  %3884 = vmatprep.subr.mxu0 0.0
  %3885 = vmatpush1.msra.mxu0 0.0
  %3886 = vmatprep.subr.mxu0 0.0
  %3887 = vmatpush1.msra.mxu0 0.0
  %3888 = vmatprep.subr.mxu0 0.0
  %3889 = vmatpush1.msra.mxu0 0.0
  %3890 = vmatprep.subr.mxu0 0.0
  %3891 = vmatpush1.msra.mxu0 0.0
  %3892 = vmatprep.subr.mxu0 0.0
  %3893 = vmatpush1.msra.mxu0 0.0
  %3894 = vmatprep.subr.mxu0 0.0
  %3895 = vmatpush1.msra.mxu0 0.0
  %3896 = vmatprep.subr.mxu0 0.0
  %3897 = vmatpush1.msra.mxu0 0.0
  %3898 = vmatprep.subr.mxu0 0.0
  %3899 = vmatpush1.msra.mxu0 0.0
  %3900 = vmatprep.subr.mxu0 0.0
  %3901 = vmatpush1.msra.mxu0 0.0
  %3902 = vmatprep.subr.mxu0 0.0
  %3903 = vmatpush1.msra.mxu0 0.0
  %3904 = vmatprep.subr.mxu0 0.0
  %3905 = vmatpush1.msra.mxu0 0.0
  %3906 = vmatprep.subr.mxu0 0.0
  %3907 = vmatpush1.msra.mxu0 0.0
  %3908 = vmatprep.subr.mxu0 0.0
  %3909 = vmatpush1.msra.mxu0 0.0
  %3910 = vmatprep.subr.mxu0 0.0
  %3911 = vmatpush1.msra.mxu0 0.0
  %3912 = vmatprep.subr.mxu0 0.0
  %3913 = vmatpush1.msra.mxu0 0.0
  %3914 = vmatprep.subr.mxu0 0.0
  %3915 = vmatpush1.msra.mxu0 0.0
  %3916 = vmatprep.subr.mxu0 0.0
  %3917 = vmatpush1.msra.mxu0 0.0
  %3918 = vmatprep.subr.mxu0 0.0
  %3919 = vmatpush1.msra.mxu0 0.0
  %3920 = vmatprep.subr.mxu0 0.0
  %3921 = vmatpush1.msra.mxu0 0.0
  %3922 = vmatprep.subr.mxu0 0.0
  %3923 = vmatpush1.msra.mxu0 0.0
  %3924 = vmatprep.subr.mxu0 0.0
  %3925 = vmatpush1.msra.mxu0 0.0
  %3926 = vmatprep.subr.mxu0 0.0
  %3927 = vmatpush1.msra.mxu0 0.0
  %3928 = vmatprep.subr.mxu0 0.0
  %3929 = vmatpush1.msra.mxu0 0.0
  %3930 = vmatprep.mubr.f32.mxu0 0.0
  %3931 = vmatmul.mubr.f32.gmra.mrb[0].mxu0 %v3864
  %v3932 = vpop.f32.mrb[0].mxu0
  %v3933 = vadd.f32 0.0, %v3932
  %v3934 = vpop.f32.mrb[0].mxu0
  %3935 = vdwg.mxu0
  %v3936 = vadd.f32 %v3862, %v3933
  %v3938 = vsel %vm2846, %v3061, 0
  %3940 = vmatprep.subr.mxu0 0.0
  %3941 = vmatpush1.msra.mxu0 %v3094
  %3942 = vmatprep.subr.mxu0 0.0
  %3943 = vmatpush1.msra.mxu0 %v3095
  %3944 = vmatprep.subr.mxu0 0.0
  %3945 = vmatpush1.msra.mxu0 0.0
  %3946 = vmatprep.subr.mxu0 0.0
  %3947 = vmatpush1.msra.mxu0 0.0
  %3948 = vmatprep.subr.mxu0 0.0
  %3949 = vmatpush1.msra.mxu0 0.0
  %3950 = vmatprep.subr.mxu0 0.0
  %3951 = vmatpush1.msra.mxu0 0.0
  %3952 = vmatprep.subr.mxu0 0.0
  %3953 = vmatpush1.msra.mxu0 0.0
  %3954 = vmatprep.subr.mxu0 0.0
  %3955 = vmatpush1.msra.mxu0 0.0
  %3956 = vmatprep.subr.mxu0 0.0
  %3957 = vmatpush1.msra.mxu0 0.0
  %3958 = vmatprep.subr.mxu0 0.0
  %3959 = vmatpush1.msra.mxu0 0.0
  %3960 = vmatprep.subr.mxu0 0.0
  %3961 = vmatpush1.msra.mxu0 0.0
  %3962 = vmatprep.subr.mxu0 0.0
  %3963 = vmatpush1.msra.mxu0 0.0
  %3964 = vmatprep.subr.mxu0 0.0
  %3965 = vmatpush1.msra.mxu0 0.0
  %3966 = vmatprep.subr.mxu0 0.0
  %3967 = vmatpush1.msra.mxu0 0.0
  %3968 = vmatprep.subr.mxu0 0.0
  %3969 = vmatpush1.msra.mxu0 0.0
  %3970 = vmatprep.subr.mxu0 0.0
  %3971 = vmatpush1.msra.mxu0 0.0
  %3972 = vmatprep.subr.mxu0 0.0
  %3973 = vmatpush1.msra.mxu0 0.0
  %3974 = vmatprep.subr.mxu0 0.0
  %3975 = vmatpush1.msra.mxu0 0.0
  %3976 = vmatprep.subr.mxu0 0.0
  %3977 = vmatpush1.msra.mxu0 0.0
  %3978 = vmatprep.subr.mxu0 0.0
  %3979 = vmatpush1.msra.mxu0 0.0
  %3980 = vmatprep.subr.mxu0 0.0
  %3981 = vmatpush1.msra.mxu0 0.0
  %3982 = vmatprep.subr.mxu0 0.0
  %3983 = vmatpush1.msra.mxu0 0.0
  %3984 = vmatprep.subr.mxu0 0.0
  %3985 = vmatpush1.msra.mxu0 0.0
  %3986 = vmatprep.subr.mxu0 0.0
  %3987 = vmatpush1.msra.mxu0 0.0
  %3988 = vmatprep.subr.mxu0 0.0
  %3989 = vmatpush1.msra.mxu0 0.0
  %3990 = vmatprep.subr.mxu0 0.0
  %3991 = vmatpush1.msra.mxu0 0.0
  %3992 = vmatprep.subr.mxu0 0.0
  %3993 = vmatpush1.msra.mxu0 0.0
  %3994 = vmatprep.subr.mxu0 0.0
  %3995 = vmatpush1.msra.mxu0 0.0
  %3996 = vmatprep.subr.mxu0 0.0
  %3997 = vmatpush1.msra.mxu0 0.0
  %3998 = vmatprep.subr.mxu0 0.0
  %3999 = vmatpush1.msra.mxu0 0.0
  %4000 = vmatprep.subr.mxu0 0.0
  %4001 = vmatpush1.msra.mxu0 0.0
  %4002 = vmatprep.subr.mxu0 0.0
  %4003 = vmatpush1.msra.mxu0 0.0
  %4004 = vmatprep.mubr.f32.mxu0 0.0
  %4005 = vmatmul.mubr.f32.gmra.mrb[0].mxu0 %v3938
  %v4006 = vpop.f32.mrb[0].mxu0
  %v4007 = vadd.f32 0.0, %v4006
  %v4008 = vpop.f32.mrb[0].mxu0
  %4009 = vdwg.mxu0
  %v4010 = vadd.f32 %v3936, %v4007
  %v4012 = vsel %vm2846, %v3062, 0
  %4014 = vmatprep.subr.mxu0 0.0
  %4015 = vmatpush1.msra.mxu0 %v3096
  %4016 = vmatprep.subr.mxu0 0.0
  %4017 = vmatpush1.msra.mxu0 %v3097
  %4018 = vmatprep.subr.mxu0 0.0
  %4019 = vmatpush1.msra.mxu0 0.0
  %4020 = vmatprep.subr.mxu0 0.0
  %4021 = vmatpush1.msra.mxu0 0.0
  %4022 = vmatprep.subr.mxu0 0.0
  %4023 = vmatpush1.msra.mxu0 0.0
  %4024 = vmatprep.subr.mxu0 0.0
  %4025 = vmatpush1.msra.mxu0 0.0
  %4026 = vmatprep.subr.mxu0 0.0
  %4027 = vmatpush1.msra.mxu0 0.0
  %4028 = vmatprep.subr.mxu0 0.0
  %4029 = vmatpush1.msra.mxu0 0.0
  %4030 = vmatprep.subr.mxu0 0.0
  %4031 = vmatpush1.msra.mxu0 0.0
  %4032 = vmatprep.subr.mxu0 0.0
  %4033 = vmatpush1.msra.mxu0 0.0
  %4034 = vmatprep.subr.mxu0 0.0
  %4035 = vmatpush1.msra.mxu0 0.0
  %4036 = vmatprep.subr.mxu0 0.0
  %4037 = vmatpush1.msra.mxu0 0.0
  %4038 = vmatprep.subr.mxu0 0.0
  %4039 = vmatpush1.msra.mxu0 0.0
  %4040 = vmatprep.subr.mxu0 0.0
  %4041 = vmatpush1.msra.mxu0 0.0
  %4042 = vmatprep.subr.mxu0 0.0
  %4043 = vmatpush1.msra.mxu0 0.0
  %4044 = vmatprep.subr.mxu0 0.0
  %4045 = vmatpush1.msra.mxu0 0.0
  %4046 = vmatprep.subr.mxu0 0.0
  %4047 = vmatpush1.msra.mxu0 0.0
  %4048 = vmatprep.subr.mxu0 0.0
  %4049 = vmatpush1.msra.mxu0 0.0
  %4050 = vmatprep.subr.mxu0 0.0
  %4051 = vmatpush1.msra.mxu0 0.0
  %4052 = vmatprep.subr.mxu0 0.0
  %4053 = vmatpush1.msra.mxu0 0.0
  %4054 = vmatprep.subr.mxu0 0.0
  %4055 = vmatpush1.msra.mxu0 0.0
  %4056 = vmatprep.subr.mxu0 0.0
  %4057 = vmatpush1.msra.mxu0 0.0
  %4058 = vmatprep.subr.mxu0 0.0
  %4059 = vmatpush1.msra.mxu0 0.0
  %4060 = vmatprep.subr.mxu0 0.0
  %4061 = vmatpush1.msra.mxu0 0.0
  %4062 = vmatprep.subr.mxu0 0.0
  %4063 = vmatpush1.msra.mxu0 0.0
  %4064 = vmatprep.subr.mxu0 0.0
  %4065 = vmatpush1.msra.mxu0 0.0
  %4066 = vmatprep.subr.mxu0 0.0
  %4067 = vmatpush1.msra.mxu0 0.0
  %4068 = vmatprep.subr.mxu0 0.0
  %4069 = vmatpush1.msra.mxu0 0.0
  %4070 = vmatprep.subr.mxu0 0.0
  %4071 = vmatpush1.msra.mxu0 0.0
  %4072 = vmatprep.subr.mxu0 0.0
  %4073 = vmatpush1.msra.mxu0 0.0
  %4074 = vmatprep.subr.mxu0 0.0
  %4075 = vmatpush1.msra.mxu0 0.0
  %4076 = vmatprep.subr.mxu0 0.0
  %4077 = vmatpush1.msra.mxu0 0.0
  %4078 = vmatprep.mubr.f32.mxu0 0.0
  %4079 = vmatmul.mubr.f32.gmra.mrb[0].mxu0 %v4012
  %v4080 = vpop.f32.mrb[0].mxu0
  %v4081 = vadd.f32 0.0, %v4080
  %v4082 = vpop.f32.mrb[0].mxu0
  %4083 = vdwg.mxu0
  %v4084 = vadd.f32 %v4010, %v4081
  %v4086 = vsel %vm2846, %v3063, 0
  %4088 = vmatprep.subr.mxu0 0.0
  %4089 = vmatpush1.msra.mxu0 %v3098
  %4090 = vmatprep.subr.mxu0 0.0
  %4091 = vmatpush1.msra.mxu0 %v3099
  %4092 = vmatprep.subr.mxu0 0.0
  %4093 = vmatpush1.msra.mxu0 0.0
  %4094 = vmatprep.subr.mxu0 0.0
  %4095 = vmatpush1.msra.mxu0 0.0
  %4096 = vmatprep.subr.mxu0 0.0
  %4097 = vmatpush1.msra.mxu0 0.0
  %4098 = vmatprep.subr.mxu0 0.0
  %4099 = vmatpush1.msra.mxu0 0.0
  %4100 = vmatprep.subr.mxu0 0.0
  %4101 = vmatpush1.msra.mxu0 0.0
  %4102 = vmatprep.subr.mxu0 0.0
  %4103 = vmatpush1.msra.mxu0 0.0
  %4104 = vmatprep.subr.mxu0 0.0
  %4105 = vmatpush1.msra.mxu0 0.0
  %4106 = vmatprep.subr.mxu0 0.0
  %4107 = vmatpush1.msra.mxu0 0.0
  %4108 = vmatprep.subr.mxu0 0.0
  %4109 = vmatpush1.msra.mxu0 0.0
  %4110 = vmatprep.subr.mxu0 0.0
  %4111 = vmatpush1.msra.mxu0 0.0
  %4112 = vmatprep.subr.mxu0 0.0
  %4113 = vmatpush1.msra.mxu0 0.0
  %4114 = vmatprep.subr.mxu0 0.0
  %4115 = vmatpush1.msra.mxu0 0.0
  %4116 = vmatprep.subr.mxu0 0.0
  %4117 = vmatpush1.msra.mxu0 0.0
  %4118 = vmatprep.subr.mxu0 0.0
  %4119 = vmatpush1.msra.mxu0 0.0
  %4120 = vmatprep.subr.mxu0 0.0
  %4121 = vmatpush1.msra.mxu0 0.0
  %4122 = vmatprep.subr.mxu0 0.0
  %4123 = vmatpush1.msra.mxu0 0.0
  %4124 = vmatprep.subr.mxu0 0.0
  %4125 = vmatpush1.msra.mxu0 0.0
  %4126 = vmatprep.subr.mxu0 0.0
  %4127 = vmatpush1.msra.mxu0 0.0
  %4128 = vmatprep.subr.mxu0 0.0
  %4129 = vmatpush1.msra.mxu0 0.0
  %4130 = vmatprep.subr.mxu0 0.0
  %4131 = vmatpush1.msra.mxu0 0.0
  %4132 = vmatprep.subr.mxu0 0.0
  %4133 = vmatpush1.msra.mxu0 0.0
  %4134 = vmatprep.subr.mxu0 0.0
  %4135 = vmatpush1.msra.mxu0 0.0
  %4136 = vmatprep.subr.mxu0 0.0
  %4137 = vmatpush1.msra.mxu0 0.0
  %4138 = vmatprep.subr.mxu0 0.0
  %4139 = vmatpush1.msra.mxu0 0.0
  %4140 = vmatprep.subr.mxu0 0.0
  %4141 = vmatpush1.msra.mxu0 0.0
  %4142 = vmatprep.subr.mxu0 0.0
  %4143 = vmatpush1.msra.mxu0 0.0
  %4144 = vmatprep.subr.mxu0 0.0
  %4145 = vmatpush1.msra.mxu0 0.0
  %4146 = vmatprep.subr.mxu0 0.0
  %4147 = vmatpush1.msra.mxu0 0.0
  %4148 = vmatprep.subr.mxu0 0.0
  %4149 = vmatpush1.msra.mxu0 0.0
  %4150 = vmatprep.subr.mxu0 0.0
  %4151 = vmatpush1.msra.mxu0 0.0
  %4152 = vmatprep.mubr.f32.mxu0 0.0
  %4153 = vmatmul.mubr.f32.gmra.mrb[0].mxu0 %v4086
  %v4154 = vpop.f32.mrb[0].mxu0
  %v4155 = vadd.f32 0.0, %v4154
  %v4156 = vpop.f32.mrb[0].mxu0
  %4157 = vdwg.mxu0
  %v4158 = vadd.f32 %v4084, %v4155
  %v4160 = vsel %vm2846, %v3064, 0
  %4162 = vmatprep.subr.mxu0 0.0
  %4163 = vmatpush1.msra.mxu0 %v3100
  %4164 = vmatprep.subr.mxu0 0.0
  %4165 = vmatpush1.msra.mxu0 %v3101
  %4166 = vmatprep.subr.mxu0 0.0
  %4167 = vmatpush1.msra.mxu0 0.0
  %4168 = vmatprep.subr.mxu0 0.0
  %4169 = vmatpush1.msra.mxu0 0.0
  %4170 = vmatprep.subr.mxu0 0.0
  %4171 = vmatpush1.msra.mxu0 0.0
  %4172 = vmatprep.subr.mxu0 0.0
  %4173 = vmatpush1.msra.mxu0 0.0
  %4174 = vmatprep.subr.mxu0 0.0
  %4175 = vmatpush1.msra.mxu0 0.0
  %4176 = vmatprep.subr.mxu0 0.0
  %4177 = vmatpush1.msra.mxu0 0.0
  %4178 = vmatprep.subr.mxu0 0.0
  %4179 = vmatpush1.msra.mxu0 0.0
  %4180 = vmatprep.subr.mxu0 0.0
  %4181 = vmatpush1.msra.mxu0 0.0
  %4182 = vmatprep.subr.mxu0 0.0
  %4183 = vmatpush1.msra.mxu0 0.0
  %4184 = vmatprep.subr.mxu0 0.0
  %4185 = vmatpush1.msra.mxu0 0.0
  %4186 = vmatprep.subr.mxu0 0.0
  %4187 = vmatpush1.msra.mxu0 0.0
  %4188 = vmatprep.subr.mxu0 0.0
  %4189 = vmatpush1.msra.mxu0 0.0
  %4190 = vmatprep.subr.mxu0 0.0
  %4191 = vmatpush1.msra.mxu0 0.0
  %4192 = vmatprep.subr.mxu0 0.0
  %4193 = vmatpush1.msra.mxu0 0.0
  %4194 = vmatprep.subr.mxu0 0.0
  %4195 = vmatpush1.msra.mxu0 0.0
  %4196 = vmatprep.subr.mxu0 0.0
  %4197 = vmatpush1.msra.mxu0 0.0
  %4198 = vmatprep.subr.mxu0 0.0
  %4199 = vmatpush1.msra.mxu0 0.0
  %4200 = vmatprep.subr.mxu0 0.0
  %4201 = vmatpush1.msra.mxu0 0.0
  %4202 = vmatprep.subr.mxu0 0.0
  %4203 = vmatpush1.msra.mxu0 0.0
  %4204 = vmatprep.subr.mxu0 0.0
  %4205 = vmatpush1.msra.mxu0 0.0
  %4206 = vmatprep.subr.mxu0 0.0
  %4207 = vmatpush1.msra.mxu0 0.0
  %4208 = vmatprep.subr.mxu0 0.0
  %4209 = vmatpush1.msra.mxu0 0.0
  %4210 = vmatprep.subr.mxu0 0.0
  %4211 = vmatpush1.msra.mxu0 0.0
  %4212 = vmatprep.subr.mxu0 0.0
  %4213 = vmatpush1.msra.mxu0 0.0
  %4214 = vmatprep.subr.mxu0 0.0
  %4215 = vmatpush1.msra.mxu0 0.0
  %4216 = vmatprep.subr.mxu0 0.0
  %4217 = vmatpush1.msra.mxu0 0.0
  %4218 = vmatprep.subr.mxu0 0.0
  %4219 = vmatpush1.msra.mxu0 0.0
  %4220 = vmatprep.subr.mxu0 0.0
  %4221 = vmatpush1.msra.mxu0 0.0
  %4222 = vmatprep.subr.mxu0 0.0
  %4223 = vmatpush1.msra.mxu0 0.0
  %4224 = vmatprep.subr.mxu0 0.0
  %4225 = vmatpush1.msra.mxu0 0.0
  %4226 = vmatprep.mubr.f32.mxu0 0.0
  %4227 = vmatmul.mubr.f32.gmra.mrb[0].mxu0 %v4160
  %v4228 = vpop.f32.mrb[0].mxu0
  %v4229 = vadd.f32 0.0, %v4228
  %v4230 = vpop.f32.mrb[0].mxu0
  %4231 = vdwg.mxu0
  %v4232 = vadd.f32 %v4158, %v4229
  %v4234 = vsel %vm2846, %v3065, 0
  %4236 = vmatprep.subr.mxu0 0.0
  %4237 = vmatpush1.msra.mxu0 %v3102
  %4238 = vmatprep.subr.mxu0 0.0
  %4239 = vmatpush1.msra.mxu0 %v3103
  %4240 = vmatprep.subr.mxu0 0.0
  %4241 = vmatpush1.msra.mxu0 0.0
  %4242 = vmatprep.subr.mxu0 0.0
  %4243 = vmatpush1.msra.mxu0 0.0
  %4244 = vmatprep.subr.mxu0 0.0
  %4245 = vmatpush1.msra.mxu0 0.0
  %4246 = vmatprep.subr.mxu0 0.0
  %4247 = vmatpush1.msra.mxu0 0.0
  %4248 = vmatprep.subr.mxu0 0.0
  %4249 = vmatpush1.msra.mxu0 0.0
  %4250 = vmatprep.subr.mxu0 0.0
  %4251 = vmatpush1.msra.mxu0 0.0
  %4252 = vmatprep.subr.mxu0 0.0
  %4253 = vmatpush1.msra.mxu0 0.0
  %4254 = vmatprep.subr.mxu0 0.0
  %4255 = vmatpush1.msra.mxu0 0.0
  %4256 = vmatprep.subr.mxu0 0.0
  %4257 = vmatpush1.msra.mxu0 0.0
  %4258 = vmatprep.subr.mxu0 0.0
  %4259 = vmatpush1.msra.mxu0 0.0
  %4260 = vmatprep.subr.mxu0 0.0
  %4261 = vmatpush1.msra.mxu0 0.0
  %4262 = vmatprep.subr.mxu0 0.0
  %4263 = vmatpush1.msra.mxu0 0.0
  %4264 = vmatprep.subr.mxu0 0.0
  %4265 = vmatpush1.msra.mxu0 0.0
  %4266 = vmatprep.subr.mxu0 0.0
  %4267 = vmatpush1.msra.mxu0 0.0
  %4268 = vmatprep.subr.mxu0 0.0
  %4269 = vmatpush1.msra.mxu0 0.0
  %4270 = vmatprep.subr.mxu0 0.0
  %4271 = vmatpush1.msra.mxu0 0.0
  %4272 = vmatprep.subr.mxu0 0.0
  %4273 = vmatpush1.msra.mxu0 0.0
  %4274 = vmatprep.subr.mxu0 0.0
  %4275 = vmatpush1.msra.mxu0 0.0
  %4276 = vmatprep.subr.mxu0 0.0
  %4277 = vmatpush1.msra.mxu0 0.0
  %4278 = vmatprep.subr.mxu0 0.0
  %4279 = vmatpush1.msra.mxu0 0.0
  %4280 = vmatprep.subr.mxu0 0.0
  %4281 = vmatpush1.msra.mxu0 0.0
  %4282 = vmatprep.subr.mxu0 0.0
  %4283 = vmatpush1.msra.mxu0 0.0
  %4284 = vmatprep.subr.mxu0 0.0
  %4285 = vmatpush1.msra.mxu0 0.0
  %4286 = vmatprep.subr.mxu0 0.0
  %4287 = vmatpush1.msra.mxu0 0.0
  %4288 = vmatprep.subr.mxu0 0.0
  %4289 = vmatpush1.msra.mxu0 0.0
  %4290 = vmatprep.subr.mxu0 0.0
  %4291 = vmatpush1.msra.mxu0 0.0
  %4292 = vmatprep.subr.mxu0 0.0
  %4293 = vmatpush1.msra.mxu0 0.0
  %4294 = vmatprep.subr.mxu0 0.0
  %4295 = vmatpush1.msra.mxu0 0.0
  %4296 = vmatprep.subr.mxu0 0.0
  %4297 = vmatpush1.msra.mxu0 0.0
  %4298 = vmatprep.subr.mxu0 0.0
  %4299 = vmatpush1.msra.mxu0 0.0
  %4300 = vmatprep.mubr.f32.mxu0 0.0
  %4301 = vmatmul.mubr.f32.gmra.mrb[0].mxu0 %v4234
  %v4302 = vpop.f32.mrb[0].mxu0
  %v4303 = vadd.f32 0.0, %v4302
  %v4304 = vpop.f32.mrb[0].mxu0
  %4305 = vdwg.mxu0
  %v4306 = vadd.f32 %v4232, %v4303
  %v4308 = vsel %vm2846, %v3066, 0
  %4310 = vmatprep.subr.mxu0 0.0
  %4311 = vmatpush1.msra.mxu0 %v3104
  %4312 = vmatprep.subr.mxu0 0.0
  %4313 = vmatpush1.msra.mxu0 %v3105
  %4314 = vmatprep.subr.mxu0 0.0
  %4315 = vmatpush1.msra.mxu0 0.0
  %4316 = vmatprep.subr.mxu0 0.0
  %4317 = vmatpush1.msra.mxu0 0.0
  %4318 = vmatprep.subr.mxu0 0.0
  %4319 = vmatpush1.msra.mxu0 0.0
  %4320 = vmatprep.subr.mxu0 0.0
  %4321 = vmatpush1.msra.mxu0 0.0
  %4322 = vmatprep.subr.mxu0 0.0
  %4323 = vmatpush1.msra.mxu0 0.0
  %4324 = vmatprep.subr.mxu0 0.0
  %4325 = vmatpush1.msra.mxu0 0.0
  %4326 = vmatprep.subr.mxu0 0.0
  %4327 = vmatpush1.msra.mxu0 0.0
  %4328 = vmatprep.subr.mxu0 0.0
  %4329 = vmatpush1.msra.mxu0 0.0
  %4330 = vmatprep.subr.mxu0 0.0
  %4331 = vmatpush1.msra.mxu0 0.0
  %4332 = vmatprep.subr.mxu0 0.0
  %4333 = vmatpush1.msra.mxu0 0.0
  %4334 = vmatprep.subr.mxu0 0.0
  %4335 = vmatpush1.msra.mxu0 0.0
  %4336 = vmatprep.subr.mxu0 0.0
  %4337 = vmatpush1.msra.mxu0 0.0
  %4338 = vmatprep.subr.mxu0 0.0
  %4339 = vmatpush1.msra.mxu0 0.0
  %4340 = vmatprep.subr.mxu0 0.0
  %4341 = vmatpush1.msra.mxu0 0.0
  %4342 = vmatprep.subr.mxu0 0.0
  %4343 = vmatpush1.msra.mxu0 0.0
  %4344 = vmatprep.subr.mxu0 0.0
  %4345 = vmatpush1.msra.mxu0 0.0
  %4346 = vmatprep.subr.mxu0 0.0
  %4347 = vmatpush1.msra.mxu0 0.0
  %4348 = vmatprep.subr.mxu0 0.0
  %4349 = vmatpush1.msra.mxu0 0.0
  %4350 = vmatprep.subr.mxu0 0.0
  %4351 = vmatpush1.msra.mxu0 0.0
  %4352 = vmatprep.subr.mxu0 0.0
  %4353 = vmatpush1.msra.mxu0 0.0
  %4354 = vmatprep.subr.mxu0 0.0
  %4355 = vmatpush1.msra.mxu0 0.0
  %4356 = vmatprep.subr.mxu0 0.0
  %4357 = vmatpush1.msra.mxu0 0.0
  %4358 = vmatprep.subr.mxu0 0.0
  %4359 = vmatpush1.msra.mxu0 0.0
  %4360 = vmatprep.subr.mxu0 0.0
  %4361 = vmatpush1.msra.mxu0 0.0
  %4362 = vmatprep.subr.mxu0 0.0
  %4363 = vmatpush1.msra.mxu0 0.0
  %4364 = vmatprep.subr.mxu0 0.0
  %4365 = vmatpush1.msra.mxu0 0.0
  %4366 = vmatprep.subr.mxu0 0.0
  %4367 = vmatpush1.msra.mxu0 0.0
  %4368 = vmatprep.subr.mxu0 0.0
  %4369 = vmatpush1.msra.mxu0 0.0
  %4370 = vmatprep.subr.mxu0 0.0
  %4371 = vmatpush1.msra.mxu0 0.0
  %4372 = vmatprep.subr.mxu0 0.0
  %4373 = vmatpush1.msra.mxu0 0.0
  %4374 = vmatprep.mubr.f32.mxu0 0.0
  %4375 = vmatmul.mubr.f32.gmra.mrb[0].mxu0 %v4308
  %v4376 = vpop.f32.mrb[0].mxu0
  %v4377 = vadd.f32 0.0, %v4376
  %v4378 = vpop.f32.mrb[0].mxu0
  %4379 = vdwg.mxu0
  %v4380 = vadd.f32 %v4306, %v4377
  %v4382 = vsel %vm2846, %v3067, 0
  %4384 = vmatprep.subr.mxu0 0.0
  %4385 = vmatpush1.msra.mxu0 %v3106
  %4386 = vmatprep.subr.mxu0 0.0
  %4387 = vmatpush1.msra.mxu0 %v3107
  %4388 = vmatprep.subr.mxu0 0.0
  %4389 = vmatpush1.msra.mxu0 0.0
  %4390 = vmatprep.subr.mxu0 0.0
  %4391 = vmatpush1.msra.mxu0 0.0
  %4392 = vmatprep.subr.mxu0 0.0
  %4393 = vmatpush1.msra.mxu0 0.0
  %4394 = vmatprep.subr.mxu0 0.0
  %4395 = vmatpush1.msra.mxu0 0.0
  %4396 = vmatprep.subr.mxu0 0.0
  %4397 = vmatpush1.msra.mxu0 0.0
  %4398 = vmatprep.subr.mxu0 0.0
  %4399 = vmatpush1.msra.mxu0 0.0
  %4400 = vmatprep.subr.mxu0 0.0
  %4401 = vmatpush1.msra.mxu0 0.0
  %4402 = vmatprep.subr.mxu0 0.0
  %4403 = vmatpush1.msra.mxu0 0.0
  %4404 = vmatprep.subr.mxu0 0.0
  %4405 = vmatpush1.msra.mxu0 0.0
  %4406 = vmatprep.subr.mxu0 0.0
  %4407 = vmatpush1.msra.mxu0 0.0
  %4408 = vmatprep.subr.mxu0 0.0
  %4409 = vmatpush1.msra.mxu0 0.0
  %4410 = vmatprep.subr.mxu0 0.0
  %4411 = vmatpush1.msra.mxu0 0.0
  %4412 = vmatprep.subr.mxu0 0.0
  %4413 = vmatpush1.msra.mxu0 0.0
  %4414 = vmatprep.subr.mxu0 0.0
  %4415 = vmatpush1.msra.mxu0 0.0
  %4416 = vmatprep.subr.mxu0 0.0
  %4417 = vmatpush1.msra.mxu0 0.0
  %4418 = vmatprep.subr.mxu0 0.0
  %4419 = vmatpush1.msra.mxu0 0.0
  %4420 = vmatprep.subr.mxu0 0.0
  %4421 = vmatpush1.msra.mxu0 0.0
  %4422 = vmatprep.subr.mxu0 0.0
  %4423 = vmatpush1.msra.mxu0 0.0
  %4424 = vmatprep.subr.mxu0 0.0
  %4425 = vmatpush1.msra.mxu0 0.0
  %4426 = vmatprep.subr.mxu0 0.0
  %4427 = vmatpush1.msra.mxu0 0.0
  %4428 = vmatprep.subr.mxu0 0.0
  %4429 = vmatpush1.msra.mxu0 0.0
  %4430 = vmatprep.subr.mxu0 0.0
  %4431 = vmatpush1.msra.mxu0 0.0
  %4432 = vmatprep.subr.mxu0 0.0
  %4433 = vmatpush1.msra.mxu0 0.0
  %4434 = vmatprep.subr.mxu0 0.0
  %4435 = vmatpush1.msra.mxu0 0.0
  %4436 = vmatprep.subr.mxu0 0.0
  %4437 = vmatpush1.msra.mxu0 0.0
  %4438 = vmatprep.subr.mxu0 0.0
  %4439 = vmatpush1.msra.mxu0 0.0
  %4440 = vmatprep.subr.mxu0 0.0
  %4441 = vmatpush1.msra.mxu0 0.0
  %4442 = vmatprep.subr.mxu0 0.0
  %4443 = vmatpush1.msra.mxu0 0.0
  %4444 = vmatprep.subr.mxu0 0.0
  %4445 = vmatpush1.msra.mxu0 0.0
  %4446 = vmatprep.subr.mxu0 0.0
  %4447 = vmatpush1.msra.mxu0 0.0
  %4448 = vmatprep.mubr.f32.mxu0 0.0
  %4449 = vmatmul.mubr.f32.gmra.mrb[0].mxu0 %v4382
  %v4450 = vpop.f32.mrb[0].mxu0
  %v4451 = vadd.f32 0.0, %v4450
  %v4452 = vpop.f32.mrb[0].mxu0
  %4453 = vdwg.mxu0
  %v4454 = vadd.f32 %v4380, %v4451
  %v4456 = vsel %vm2846, %v3068, 0
  %4458 = vmatprep.subr.mxu0 0.0
  %4459 = vmatpush1.msra.mxu0 %v3108
  %4460 = vmatprep.subr.mxu0 0.0
  %4461 = vmatpush1.msra.mxu0 %v3109
  %4462 = vmatprep.subr.mxu0 0.0
  %4463 = vmatpush1.msra.mxu0 0.0
  %4464 = vmatprep.subr.mxu0 0.0
  %4465 = vmatpush1.msra.mxu0 0.0
  %4466 = vmatprep.subr.mxu0 0.0
  %4467 = vmatpush1.msra.mxu0 0.0
  %4468 = vmatprep.subr.mxu0 0.0
  %4469 = vmatpush1.msra.mxu0 0.0
  %4470 = vmatprep.subr.mxu0 0.0
  %4471 = vmatpush1.msra.mxu0 0.0
  %4472 = vmatprep.subr.mxu0 0.0
  %4473 = vmatpush1.msra.mxu0 0.0
  %4474 = vmatprep.subr.mxu0 0.0
  %4475 = vmatpush1.msra.mxu0 0.0
  %4476 = vmatprep.subr.mxu0 0.0
  %4477 = vmatpush1.msra.mxu0 0.0
  %4478 = vmatprep.subr.mxu0 0.0
  %4479 = vmatpush1.msra.mxu0 0.0
  %4480 = vmatprep.subr.mxu0 0.0
  %4481 = vmatpush1.msra.mxu0 0.0
  %4482 = vmatprep.subr.mxu0 0.0
  %4483 = vmatpush1.msra.mxu0 0.0
  %4484 = vmatprep.subr.mxu0 0.0
  %4485 = vmatpush1.msra.mxu0 0.0
  %4486 = vmatprep.subr.mxu0 0.0
  %4487 = vmatpush1.msra.mxu0 0.0
  %4488 = vmatprep.subr.mxu0 0.0
  %4489 = vmatpush1.msra.mxu0 0.0
  %4490 = vmatprep.subr.mxu0 0.0
  %4491 = vmatpush1.msra.mxu0 0.0
  %4492 = vmatprep.subr.mxu0 0.0
  %4493 = vmatpush1.msra.mxu0 0.0
  %4494 = vmatprep.subr.mxu0 0.0
  %4495 = vmatpush1.msra.mxu0 0.0
  %4496 = vmatprep.subr.mxu0 0.0
  %4497 = vmatpush1.msra.mxu0 0.0
  %4498 = vmatprep.subr.mxu0 0.0
  %4499 = vmatpush1.msra.mxu0 0.0
  %4500 = vmatprep.subr.mxu0 0.0
  %4501 = vmatpush1.msra.mxu0 0.0
  %4502 = vmatprep.subr.mxu0 0.0
  %4503 = vmatpush1.msra.mxu0 0.0
  %4504 = vmatprep.subr.mxu0 0.0
  %4505 = vmatpush1.msra.mxu0 0.0
  %4506 = vmatprep.subr.mxu0 0.0
  %4507 = vmatpush1.msra.mxu0 0.0
  %4508 = vmatprep.subr.mxu0 0.0
  %4509 = vmatpush1.msra.mxu0 0.0
  %4510 = vmatprep.subr.mxu0 0.0
  %4511 = vmatpush1.msra.mxu0 0.0
  %4512 = vmatprep.subr.mxu0 0.0
  %4513 = vmatpush1.msra.mxu0 0.0
  %4514 = vmatprep.subr.mxu0 0.0
  %4515 = vmatpush1.msra.mxu0 0.0
  %4516 = vmatprep.subr.mxu0 0.0
  %4517 = vmatpush1.msra.mxu0 0.0
  %4518 = vmatprep.subr.mxu0 0.0
  %4519 = vmatpush1.msra.mxu0 0.0
  %4520 = vmatprep.subr.mxu0 0.0
  %4521 = vmatpush1.msra.mxu0 0.0
  %4522 = vmatprep.mubr.f32.mxu0 0.0
  %4523 = vmatmul.mubr.f32.gmra.mrb[0].mxu0 %v4456
  %v4524 = vpop.f32.mrb[0].mxu0
  %v4525 = vadd.f32 0.0, %v4524
  %v4526 = vpop.f32.mrb[0].mxu0
  %4527 = vdwg.mxu0
  %v4528 = vadd.f32 %v4454, %v4525
  %v4530 = vsel %vm2846, %v3069, 0
  %4532 = vmatprep.subr.mxu0 0.0
  %4533 = vmatpush1.msra.mxu0 %v3110
  %4534 = vmatprep.subr.mxu0 0.0
  %4535 = vmatpush1.msra.mxu0 %v3111
  %4536 = vmatprep.subr.mxu0 0.0
  %4537 = vmatpush1.msra.mxu0 0.0
  %4538 = vmatprep.subr.mxu0 0.0
  %4539 = vmatpush1.msra.mxu0 0.0
  %4540 = vmatprep.subr.mxu0 0.0
  %4541 = vmatpush1.msra.mxu0 0.0
  %4542 = vmatprep.subr.mxu0 0.0
  %4543 = vmatpush1.msra.mxu0 0.0
  %4544 = vmatprep.subr.mxu0 0.0
  %4545 = vmatpush1.msra.mxu0 0.0
  %4546 = vmatprep.subr.mxu0 0.0
  %4547 = vmatpush1.msra.mxu0 0.0
  %4548 = vmatprep.subr.mxu0 0.0
  %4549 = vmatpush1.msra.mxu0 0.0
  %4550 = vmatprep.subr.mxu0 0.0
  %4551 = vmatpush1.msra.mxu0 0.0
  %4552 = vmatprep.subr.mxu0 0.0
  %4553 = vmatpush1.msra.mxu0 0.0
  %4554 = vmatprep.subr.mxu0 0.0
  %4555 = vmatpush1.msra.mxu0 0.0
  %4556 = vmatprep.subr.mxu0 0.0
  %4557 = vmatpush1.msra.mxu0 0.0
  %4558 = vmatprep.subr.mxu0 0.0
  %4559 = vmatpush1.msra.mxu0 0.0
  %4560 = vmatprep.subr.mxu0 0.0
  %4561 = vmatpush1.msra.mxu0 0.0
  %4562 = vmatprep.subr.mxu0 0.0
  %4563 = vmatpush1.msra.mxu0 0.0
  %4564 = vmatprep.subr.mxu0 0.0
  %4565 = vmatpush1.msra.mxu0 0.0
  %4566 = vmatprep.subr.mxu0 0.0
  %4567 = vmatpush1.msra.mxu0 0.0
  %4568 = vmatprep.subr.mxu0 0.0
  %4569 = vmatpush1.msra.mxu0 0.0
  %4570 = vmatprep.subr.mxu0 0.0
  %4571 = vmatpush1.msra.mxu0 0.0
  %4572 = vmatprep.subr.mxu0 0.0
  %4573 = vmatpush1.msra.mxu0 0.0
  %4574 = vmatprep.subr.mxu0 0.0
  %4575 = vmatpush1.msra.mxu0 0.0
  %4576 = vmatprep.subr.mxu0 0.0
  %4577 = vmatpush1.msra.mxu0 0.0
  %4578 = vmatprep.subr.mxu0 0.0
  %4579 = vmatpush1.msra.mxu0 0.0
  %4580 = vmatprep.subr.mxu0 0.0
  %4581 = vmatpush1.msra.mxu0 0.0
  %4582 = vmatprep.subr.mxu0 0.0
  %4583 = vmatpush1.msra.mxu0 0.0
  %4584 = vmatprep.subr.mxu0 0.0
  %4585 = vmatpush1.msra.mxu0 0.0
  %4586 = vmatprep.subr.mxu0 0.0
  %4587 = vmatpush1.msra.mxu0 0.0
  %4588 = vmatprep.subr.mxu0 0.0
  %4589 = vmatpush1.msra.mxu0 0.0
  %4590 = vmatprep.subr.mxu0 0.0
  %4591 = vmatpush1.msra.mxu0 0.0
  %4592 = vmatprep.subr.mxu0 0.0
  %4593 = vmatpush1.msra.mxu0 0.0
  %4594 = vmatprep.subr.mxu0 0.0
  %4595 = vmatpush1.msra.mxu0 0.0
  %4596 = vmatprep.mubr.f32.mxu0 0.0
  %4597 = vmatmul.mubr.f32.gmra.mrb[0].mxu0 %v4530
  %v4598 = vpop.f32.mrb[0].mxu0
  %v4599 = vadd.f32 0.0, %v4598
  %v4600 = vpop.f32.mrb[0].mxu0
  %4601 = vdwg.mxu0
  %v4602 = vadd.f32 %v4528, %v4599
  %v4604 = vsel %vm2846, %v3070, 0
  %4606 = vmatprep.subr.mxu0 0.0
  %4607 = vmatpush1.msra.mxu0 %v3112
  %4608 = vmatprep.subr.mxu0 0.0
  %4609 = vmatpush1.msra.mxu0 %v3113
  %4610 = vmatprep.subr.mxu0 0.0
  %4611 = vmatpush1.msra.mxu0 0.0
  %4612 = vmatprep.subr.mxu0 0.0
  %4613 = vmatpush1.msra.mxu0 0.0
  %4614 = vmatprep.subr.mxu0 0.0
  %4615 = vmatpush1.msra.mxu0 0.0
  %4616 = vmatprep.subr.mxu0 0.0
  %4617 = vmatpush1.msra.mxu0 0.0
  %4618 = vmatprep.subr.mxu0 0.0
  %4619 = vmatpush1.msra.mxu0 0.0
  %4620 = vmatprep.subr.mxu0 0.0
  %4621 = vmatpush1.msra.mxu0 0.0
  %4622 = vmatprep.subr.mxu0 0.0
  %4623 = vmatpush1.msra.mxu0 0.0
  %4624 = vmatprep.subr.mxu0 0.0
  %4625 = vmatpush1.msra.mxu0 0.0
  %4626 = vmatprep.subr.mxu0 0.0
  %4627 = vmatpush1.msra.mxu0 0.0
  %4628 = vmatprep.subr.mxu0 0.0
  %4629 = vmatpush1.msra.mxu0 0.0
  %4630 = vmatprep.subr.mxu0 0.0
  %4631 = vmatpush1.msra.mxu0 0.0
  %4632 = vmatprep.subr.mxu0 0.0
  %4633 = vmatpush1.msra.mxu0 0.0
  %4634 = vmatprep.subr.mxu0 0.0
  %4635 = vmatpush1.msra.mxu0 0.0
  %4636 = vmatprep.subr.mxu0 0.0
  %4637 = vmatpush1.msra.mxu0 0.0
  %4638 = vmatprep.subr.mxu0 0.0
  %4639 = vmatpush1.msra.mxu0 0.0
  %4640 = vmatprep.subr.mxu0 0.0
  %4641 = vmatpush1.msra.mxu0 0.0
  %4642 = vmatprep.subr.mxu0 0.0
  %4643 = vmatpush1.msra.mxu0 0.0
  %4644 = vmatprep.subr.mxu0 0.0
  %4645 = vmatpush1.msra.mxu0 0.0
  %4646 = vmatprep.subr.mxu0 0.0
  %4647 = vmatpush1.msra.mxu0 0.0
  %4648 = vmatprep.subr.mxu0 0.0
  %4649 = vmatpush1.msra.mxu0 0.0
  %4650 = vmatprep.subr.mxu0 0.0
  %4651 = vmatpush1.msra.mxu0 0.0
  %4652 = vmatprep.subr.mxu0 0.0
  %4653 = vmatpush1.msra.mxu0 0.0
  %4654 = vmatprep.subr.mxu0 0.0
  %4655 = vmatpush1.msra.mxu0 0.0
  %4656 = vmatprep.subr.mxu0 0.0
  %4657 = vmatpush1.msra.mxu0 0.0
  %4658 = vmatprep.subr.mxu0 0.0
  %4659 = vmatpush1.msra.mxu0 0.0
  %4660 = vmatprep.subr.mxu0 0.0
  %4661 = vmatpush1.msra.mxu0 0.0
  %4662 = vmatprep.subr.mxu0 0.0
  %4663 = vmatpush1.msra.mxu0 0.0
  %4664 = vmatprep.subr.mxu0 0.0
  %4665 = vmatpush1.msra.mxu0 0.0
  %4666 = vmatprep.subr.mxu0 0.0
  %4667 = vmatpush1.msra.mxu0 0.0
  %4668 = vmatprep.subr.mxu0 0.0
  %4669 = vmatpush1.msra.mxu0 0.0
  %4670 = vmatprep.mubr.f32.mxu0 0.0
  %4671 = vmatmul.mubr.f32.gmra.mrb[0].mxu0 %v4604
  %v4672 = vpop.f32.mrb[0].mxu0
  %v4673 = vadd.f32 0.0, %v4672
  %v4674 = vpop.f32.mrb[0].mxu0
  %4675 = vdwg.mxu0
  %v4676 = vadd.f32 %v4602, %v4673
  %v4678 = vsel %vm2846, %v3071, 0
  %4680 = vmatprep.subr.mxu0 0.0
  %4681 = vmatpush1.msra.mxu0 %v3114
  %4682 = vmatprep.subr.mxu0 0.0
  %4683 = vmatpush1.msra.mxu0 %v3115
  %4684 = vmatprep.subr.mxu0 0.0
  %4685 = vmatpush1.msra.mxu0 0.0
  %4686 = vmatprep.subr.mxu0 0.0
  %4687 = vmatpush1.msra.mxu0 0.0
  %4688 = vmatprep.subr.mxu0 0.0
  %4689 = vmatpush1.msra.mxu0 0.0
  %4690 = vmatprep.subr.mxu0 0.0
  %4691 = vmatpush1.msra.mxu0 0.0
  %4692 = vmatprep.subr.mxu0 0.0
  %4693 = vmatpush1.msra.mxu0 0.0
  %4694 = vmatprep.subr.mxu0 0.0
  %4695 = vmatpush1.msra.mxu0 0.0
  %4696 = vmatprep.subr.mxu0 0.0
  %4697 = vmatpush1.msra.mxu0 0.0
  %4698 = vmatprep.subr.mxu0 0.0
  %4699 = vmatpush1.msra.mxu0 0.0
  %4700 = vmatprep.subr.mxu0 0.0
  %4701 = vmatpush1.msra.mxu0 0.0
  %4702 = vmatprep.subr.mxu0 0.0
  %4703 = vmatpush1.msra.mxu0 0.0
  %4704 = vmatprep.subr.mxu0 0.0
  %4705 = vmatpush1.msra.mxu0 0.0
  %4706 = vmatprep.subr.mxu0 0.0
  %4707 = vmatpush1.msra.mxu0 0.0
  %4708 = vmatprep.subr.mxu0 0.0
  %4709 = vmatpush1.msra.mxu0 0.0
  %4710 = vmatprep.subr.mxu0 0.0
  %4711 = vmatpush1.msra.mxu0 0.0
  %4712 = vmatprep.subr.mxu0 0.0
  %4713 = vmatpush1.msra.mxu0 0.0
  %4714 = vmatprep.subr.mxu0 0.0
  %4715 = vmatpush1.msra.mxu0 0.0
  %4716 = vmatprep.subr.mxu0 0.0
  %4717 = vmatpush1.msra.mxu0 0.0
  %4718 = vmatprep.subr.mxu0 0.0
  %4719 = vmatpush1.msra.mxu0 0.0
  %4720 = vmatprep.subr.mxu0 0.0
  %4721 = vmatpush1.msra.mxu0 0.0
  %4722 = vmatprep.subr.mxu0 0.0
  %4723 = vmatpush1.msra.mxu0 0.0
  %4724 = vmatprep.subr.mxu0 0.0
  %4725 = vmatpush1.msra.mxu0 0.0
  %4726 = vmatprep.subr.mxu0 0.0
  %4727 = vmatpush1.msra.mxu0 0.0
  %4728 = vmatprep.subr.mxu0 0.0
  %4729 = vmatpush1.msra.mxu0 0.0
  %4730 = vmatprep.subr.mxu0 0.0
  %4731 = vmatpush1.msra.mxu0 0.0
  %4732 = vmatprep.subr.mxu0 0.0
  %4733 = vmatpush1.msra.mxu0 0.0
  %4734 = vmatprep.subr.mxu0 0.0
  %4735 = vmatpush1.msra.mxu0 0.0
  %4736 = vmatprep.subr.mxu0 0.0
  %4737 = vmatpush1.msra.mxu0 0.0
  %4738 = vmatprep.subr.mxu0 0.0
  %4739 = vmatpush1.msra.mxu0 0.0
  %4740 = vmatprep.subr.mxu0 0.0
  %4741 = vmatpush1.msra.mxu0 0.0
  %4742 = vmatprep.subr.mxu0 0.0
  %4743 = vmatpush1.msra.mxu0 0.0
  %4744 = vmatprep.mubr.f32.mxu0 0.0
  %4745 = vmatmul.mubr.f32.gmra.mrb[0].mxu0 %v4678
  %v4746 = vpop.f32.mrb[0].mxu0
  %v4747 = vadd.f32 0.0, %v4746
  %v4748 = vpop.f32.mrb[0].mxu0
  %4749 = vdwg.mxu0
  %v4750 = vadd.f32 %v4676, %v4747
  %v4751 = vmax.f32 %v4750, 0.0
  %v4752 = vld [vmem:[%s11] sm:$0x1]
  %v4753 = vld [vmem:[%s12] sm:$0x1]
  %v4754 = vrot.slane %v4751, 4
  %v4755 = vadd.f32 %v4751, %v4754
  %v4756 = vrot.slane %v4755, 2
  %v4757 = vadd.f32 %v4755, %v4756
  %v4758 = vrot.slane %v4757, 1
  %v4759 = vadd.f32 %v4757, %v4758
  %v4760 = vrcp.pop 8.0
  %v4761 = vmul.f32 %v4759, %v4760
  %v4762 = vsub.f32 %v4751, %v4761
  %v4763 = vmul.f32 %v4762, %v4762
  %v4764 = vrot.slane %v4763, 4
  %v4765 = vadd.f32 %v4763, %v4764
  %v4766 = vrot.slane %v4765, 2
  %v4767 = vadd.f32 %v4765, %v4766
  %v4768 = vrot.slane %v4767, 1
  %v4769 = vadd.f32 %v4767, %v4768
  %v4770 = vmul.f32 %v4769, %v4760
  %v4772 = vlaneseq
  %v4773 = vshrl.u32 %v4772, 7
  %v4774 = vsub.s32 0, %v4773
  %v4775 = vrot.slane %v4752, %v4774
  %v4777 = vmul.f32 %v4775, %v4762
  %v4778 = vadd.f32 %v4770, 1e-05
  %v4779 = vrsqrt.pop %v4778
  %v4780 = vmul.f32 %v4777, %v4779
  %v4782 = vlaneseq
  %v4783 = vshrl.u32 %v4782, 7
  %v4784 = vsub.s32 0, %v4783
  %v4785 = vrot.slane %v4753, %v4784
  %v4787 = vadd.f32 %v4780, %v4785
  %4788 = vst [vmem:[%s13] sm:$0xff] %v4787
  // Predicated region
  $region54: #{discrete_graph_learning_forward.2} parent=0 // pred_check
    _
  $region55: #{discrete_graph_learning_forward.2} parent=0 // pred_check_branch
    %4790 = sbr.rel (0) target = $region57
  $region56: #{discrete_graph_learning_forward.2} parent=0 // pred_region
    _
  $region57: #{discrete_graph_learning_forward.2} parent=0 // pred_fallthru
    _
  // Predicated region
  $region58: #{discrete_graph_learning_forward.2} parent=0 // pred_check
    _
  $region59: #{discrete_graph_learning_forward.2} parent=0 // pred_check_branch
    %4792 = sbr.rel (0) target = $region61
  $region60: #{discrete_graph_learning_forward.2} parent=0 // pred_region
    _
  $region61: #{discrete_graph_learning_forward.2} parent=0 // pred_fallthru
    _

</llo_original>
